<compile_context>
chip_gen: v6e
topology: v6e:2x2x1
jax: 0.10.0
libtpu: 0.0.40
codegen_flags: <defaults>
</compile_context>

<pallas_src>
import jax
import jax.numpy as jnp
from jax.experimental import pallas as pl
from jax.experimental.pallas import tpu as pltpu


# ----------------------------------------------------------------------------
# Geometry (fixed by the module: 32x32 input, 5x5 convs, 2x2/2 pools)
# ----------------------------------------------------------------------------
_H = _W = 32
_C_IN, _C1, _C2, _K = 3, 6, 16, 5
_HW = _H * _W                       # 1024 : flat length of one input channel
_L1 = 27 * _W + 28                  # 892  : conv1 output span, coords l = 32*ho + wo
_MA1 = _L1 - 1                      # 891
_LP1 = _MA1 - _W                    # 859  : pool1 span, coords 64*i + 2*j
_L2 = 9 * (2 * _W) + 2 * 9 + 1      # 595  : conv2 output span, coords 64*ho + 2*wo
_MA2 = _L2 - 2                      # 593
_LP2 = _MA2 - 2 * _W                # 529  : pool2 span, coords 128*i + 4*j
_NF = 25                            # 5*5 valid pooled positions per channel

_VMEM = pl.BlockSpec(memory_space=pltpu.MemorySpace.VMEM)


# ----------------------------------------------------------------------------
# The fused kernel
# ----------------------------------------------------------------------------
def _lenet_kernel(x_ref, w1_ref, b1_ref, w2_ref, b2_ref,
                  fc1w_ref, fc1b_ref, fc2w_ref, fc2b_ref, fc3w_ref, fc3b_ref,
                  out_ref, cols1_ref, cols2_ref, feat_ref):
    B = x_ref.shape[0]

    # --- conv1 im2col: 25 contiguous slab copies (all batches at once) ------
    # cols1[b, kk*Cin + c, l] = x[b, c, l + 32*kh + kw],  kk = kh*5 + kw
    for kh in range(_K):
        for kw in range(_K):
            kk = kh * _K + kw
            s = kh * _W + kw
            cols1_ref[:, kk * _C_IN:(kk + 1) * _C_IN, :] = x_ref[:, :, s:s + _L1]

    w1 = w1_ref[...]          # (6, 75)   rows ordered kk*3 + c
    b1 = b1_ref[...]          # (6, 1)
    w2 = w2_ref[...]          # (16, 150) rows ordered kk*6 + c
    b2 = b2_ref[...]          # (16, 1)

    # Zero the (padded-row) feature scratch once; rows >= B stay zero.
    feat_ref[...] = jnp.zeros(feat_ref.shape, jnp.float32)

    for b in range(B):
        # ---- conv1 + bias + ReLU (MXU), output in flat coords l = 32*ho+wo --
        a1 = jnp.dot(w1, cols1_ref[b], preferred_element_type=jnp.float32)
        a1 = jnp.maximum(a1 + b1, 0.0)                              # (6, 892)

        # ---- 2x2/2 max pool as two shifted maxes (invalid cols ride along) --
        m1 = jnp.maximum(a1[:, 0:_MA1], a1[:, 1:_MA1 + 1])          # +0 / +1  (w)
        p1 = jnp.maximum(m1[:, 0:_LP1], m1[:, _W:_W + _LP1])        # +0 / +32 (h)
        # pooled value for (i, j) sits at coord 64*i + 2*j           (6, 859)

        # ---- conv2 im2col: 25 contiguous slab copies of the pooled value ----
        for kh in range(_K):
            for kw in range(_K):
                kk = kh * _K + kw
                s = kh * 2 * _W + 2 * kw
                cols2_ref[kk * _C1:(kk + 1) * _C1, :] = p1[:, s:s + _L2]

        # ---- conv2 + bias + ReLU, output coords 64*ho + 2*wo ----------------
        a2 = jnp.dot(w2, cols2_ref[...], preferred_element_type=jnp.float32)
        a2 = jnp.maximum(a2 + b2, 0.0)                              # (16, 595)

        m2 = jnp.maximum(a2[:, 0:_MA2], a2[:, 2:_MA2 + 2])          # +0 / +2
        p2 = jnp.maximum(m2[:, 0:_LP2], m2[:, 2 * _W:2 * _W + _LP2])  # +0 / +64
        # pooled value for (i, j) sits at coord 128*i + 4*j          (16, 529)

        # ---- gather the 5x5 valid positions into the FC feature scratch -----
        # feat[b, c, i*5 + j] = pooled2[b, c, i, j]
        for i in range(5):
            for j in range(5):
                k = i * 5 + j
                p = 4 * _W * i + 4 * j
                feat_ref[b, :, k:k + 1] = p2[:, p:p + 1]

    # --- fully-connected head (rows padded to >=8 sublanes) ------------------
    # fc1 contracts over (channel, 25 positions): 16 small 2D dots, accumulated.
    mp = feat_ref.shape[0]
    acc = jnp.zeros((mp, fc1w_ref.shape[2]), jnp.float32)
    for c in range(_C2):
        acc = acc + jnp.dot(feat_ref[:, c, :], fc1w_ref[c],
                            preferred_element_type=jnp.float32)
    h1 = jnp.maximum(acc + fc1b_ref[...], 0.0)                      # (mp, 120)
    h2 = jnp.dot(h1, fc2w_ref[...], preferred_element_type=jnp.float32)
    h2 = jnp.maximum(h2 + fc2b_ref[...], 0.0)                       # (mp, 84)
    logits = jnp.dot(h2, fc3w_ref[...], preferred_element_type=jnp.float32)
    logits = logits + fc3b_ref[...]                                 # (mp, nc)

    out_ref[...] = logits[0:B, :]


# ----------------------------------------------------------------------------
# Wrapper
# ----------------------------------------------------------------------------
@jax.jit
def net_forward(x, kp):
    """x: (B, 3, 32, 32) f32 NCHW; kp: kernel-layout params from prepare_params."""
    B, C, H, W = x.shape
    assert (C, H, W) == (_C_IN, _H, _W), "Net requires 3x32x32 inputs"
    nc = kp["fc3_w"].shape[1]
    mp = max(8, ((B + 7) // 8) * 8)           # pad FC rows to sublane granularity
    xf = x.reshape(B, C, H * W)               # free reshape (contiguous dims)

    return pl.pallas_call(
        _lenet_kernel,
        out_shape=jax.ShapeDtypeStruct((B, nc), jnp.float32),
        in_specs=[_VMEM] * 11,
        out_specs=_VMEM,
        scratch_shapes=[
            pltpu.VMEM((B, _C_IN * _K * _K, _L1), jnp.float32),   # conv1 im2col
            pltpu.VMEM((_C1 * _K * _K, _L2), jnp.float32),        # conv2 im2col (per-batch reuse)
            pltpu.VMEM((mp, _C2, _NF), jnp.float32),              # flat features
        ],
    )(xf,
      kp["conv1_w"], kp["conv1_b"], kp["conv2_w"], kp["conv2_b"],
      kp["fc1_w"], kp["fc1_b"], kp["fc2_w"], kp["fc2_b"],
      kp["fc3_w"], kp["fc3_b"])


# ----------------------------------------------------------------------------
# Parameters: PyTorch-layout init + one-time repack into kernel layouts
# ----------------------------------------------------------------------------
def init_params(key, num_classes=10):
    def uniform(key, shape, fan_in):
        bound = 1.0 / jnp.sqrt(fan_in)
        return jax.random.uniform(key, shape, jnp.float32, -bound, bound)

    ks = jax.random.split(key, 10)
    return {
        "conv1_w": uniform(ks[0], (6, 3, 5, 5), 3 * 5 * 5),
        "conv1_b": uniform(ks[1], (6,), 3 * 5 * 5),
        "conv2_w": uniform(ks[2], (16, 6, 5, 5), 6 * 5 * 5),
        "conv2_b": uniform(ks[3], (16,), 6 * 5 * 5),
        "fc1_w": uniform(ks[4], (120, 16 * 5 * 5), 16 * 5 * 5),
        "fc1_b": uniform(ks[5], (120,), 16 * 5 * 5),
        "fc2_w": uniform(ks[6], (84, 120), 120),
        "fc2_b": uniform(ks[7], (84,), 120),
        "fc3_w": uniform(ks[8], (num_classes, 84), 84),
        "fc3_b": uniform(ks[9], (num_classes,), 84),
    }


def prepare_params(p):
    """One-time repack of PyTorch-layout params into the kernel's layouts
    (done once, outside the hot path — no per-forward relayouts)."""
    w1 = p["conv1_w"].transpose(0, 2, 3, 1).reshape(_C1, _C_IN * _K * _K)
    w2 = p["conv2_w"].transpose(0, 2, 3, 1).reshape(_C2, _C1 * _K * _K)
    fc1 = p["fc1_w"].T.reshape(_C2, _NF, -1)      # (16, 25, 120): rows = c*25+i*5+j
    return {
        "conv1_w": w1,                 "conv1_b": p["conv1_b"].reshape(_C1, 1),
        "conv2_w": w2,                 "conv2_b": p["conv2_b"].reshape(_C2, 1),
        "fc1_w": fc1,                  "fc1_b": p["fc1_b"].reshape(1, -1),
        "fc2_w": p["fc2_w"].T,         "fc2_b": p["fc2_b"].reshape(1, -1),
        "fc3_w": p["fc3_w"].T,         "fc3_b": p["fc3_b"].reshape(1, -1),
    }


# ----------------------------------------------------------------------------
# Pure-JAX reference (independent path, original layouts) for correctness check
# ----------------------------------------------------------------------------
def ref_forward(x, p):
    def conv(x, w, b):
        y = jax.lax.conv_general_dilated(
            x, w, window_strides=(1, 1), padding="VALID",
            dimension_numbers=("NCHW", "OIHW", "NCHW"))
        return jnp.maximum(y + b.reshape(1, -1, 1, 1), 0.0)

    def pool(x):
        return jax.lax.reduce_window(
            x, -jnp.inf, jax.lax.max,
            window_dimensions=(1, 1, 2, 2), window_strides=(1, 1, 2, 2),
            padding="VALID")

    x = pool(conv(x, p["conv1_w"], p["conv1_b"]))
    x = pool(conv(x, p["conv2_w"], p["conv2_b"]))
    x = x.reshape(x.shape[0], 16 * 5 * 5)
    x = jnp.maximum(x @ p["fc1_w"].T + p["fc1_b"], 0.0)
    x = jnp.maximum(x @ p["fc2_w"].T + p["fc2_b"], 0.0)
    x = x @ p["fc3_w"].T + p["fc3_b"]
    return x


if __name__ == "__main__":
    key = jax.random.PRNGKey(0)
    k_x, k_p = jax.random.split(key)

    # The forward pass requires 32x32 spatial input (16*5*5 = 400 after conv/pool).
    x = jax.random.normal(k_x, (2, 3, 32, 32), jnp.float32)
    params = init_params(k_p, num_classes=10)
    kparams = prepare_params(params)          # one-time weight repack

    out = jax.block_until_ready(net_forward(x, kparams))
    ref = ref_forward(x, params)

    assert out.shape == (2, 10), out.shape
    max_err = float(jnp.max(jnp.abs(out - ref)))
    assert jnp.allclose(out, ref, rtol=1e-2, atol=1e-2), f"max abs err = {max_err}"

    print("KERNEL_OK")
</pallas_src>

<mosaic_0001>
module attributes {stable_mosaic.version = 11 : i64} {
  func.func @_lenet_kernel(%arg0: memref<2x3x1024xf32, #tpu.memory_space<vmem>>, %arg1: memref<6x75xf32, #tpu.memory_space<vmem>>, %arg2: memref<6x1xf32, #tpu.memory_space<vmem>>, %arg3: memref<16x150xf32, #tpu.memory_space<vmem>>, %arg4: memref<16x1xf32, #tpu.memory_space<vmem>>, %arg5: memref<16x25x120xf32, #tpu.memory_space<vmem>>, %arg6: memref<1x120xf32, #tpu.memory_space<vmem>>, %arg7: memref<120x84xf32, #tpu.memory_space<vmem>>, %arg8: memref<1x84xf32, #tpu.memory_space<vmem>>, %arg9: memref<84x10xf32, #tpu.memory_space<vmem>>, %arg10: memref<1x10xf32, #tpu.memory_space<vmem>>, %arg11: memref<2x10xf32, #tpu.memory_space<vmem>>, %arg12: memref<2x75x892xf32, #tpu.memory_space<vmem>>, %arg13: memref<150x595xf32, #tpu.memory_space<vmem>>, %arg14: memref<8x16x25xf32, #tpu.memory_space<vmem>>) attributes {dimension_semantics = [], scalar_prefetch = 0 : i64, scratch_operands = 3 : i64, tpu.core_type = #tpu.core_type<tc>} {
    %c0 = arith.constant 0 : index
    %c0_0 = arith.constant 0 : index
    %c0_1 = arith.constant 0 : index
    %0 = vector.load %arg0[%c0, %c0_0, %c0_1] : memref<2x3x1024xf32, #tpu.memory_space<vmem>>, vector<2x3x892xf32>
    %c0_2 = arith.constant 0 : index
    %c0_3 = arith.constant 0 : index
    %c0_4 = arith.constant 0 : index
    %1 = vector.load %arg12[%c0_2, %c0_3, %c0_4] : memref<2x75x892xf32, #tpu.memory_space<vmem>>, vector<2x3x892xf32>
    tpu.vector_store %arg12[%c0_2, %c0_3, %c0_4], %0 {strides = array<i32>} : memref<2x75x892xf32, #tpu.memory_space<vmem>>, vector<2x3x892xf32>,
    %c0_5 = arith.constant 0 : index
    %c0_6 = arith.constant 0 : index
    %c1 = arith.constant 1 : index
    %2 = vector.load %arg0[%c0_5, %c0_6, %c1] : memref<2x3x1024xf32, #tpu.memory_space<vmem>>, vector<2x3x892xf32>
    %c0_7 = arith.constant 0 : index
    %c3 = arith.constant 3 : index
    %c0_8 = arith.constant 0 : index
    %3 = vector.load %arg12[%c0_7, %c3, %c0_8] : memref<2x75x892xf32, #tpu.memory_space<vmem>>, vector<2x3x892xf32>
    tpu.vector_store %arg12[%c0_7, %c3, %c0_8], %2 {strides = array<i32>} : memref<2x75x892xf32, #tpu.memory_space<vmem>>, vector<2x3x892xf32>,
    %c0_9 = arith.constant 0 : index
    %c0_10 = arith.constant 0 : index
    %c2 = arith.constant 2 : index
    %4 = vector.load %arg0[%c0_9, %c0_10, %c2] : memref<2x3x1024xf32, #tpu.memory_space<vmem>>, vector<2x3x892xf32>
    %c0_11 = arith.constant 0 : index
    %c6 = arith.constant 6 : index
    %c0_12 = arith.constant 0 : index
    %5 = vector.load %arg12[%c0_11, %c6, %c0_12] : memref<2x75x892xf32, #tpu.memory_space<vmem>>, vector<2x3x892xf32>
    tpu.vector_store %arg12[%c0_11, %c6, %c0_12], %4 {strides = array<i32>} : memref<2x75x892xf32, #tpu.memory_space<vmem>>, vector<2x3x892xf32>,
    %c0_13 = arith.constant 0 : index
    %c0_14 = arith.constant 0 : index
    %c3_15 = arith.constant 3 : index
    %6 = vector.load %arg0[%c0_13, %c0_14, %c3_15] : memref<2x3x1024xf32, #tpu.memory_space<vmem>>, vector<2x3x892xf32>
    %c0_16 = arith.constant 0 : index
    %c9 = arith.constant 9 : index
    %c0_17 = arith.constant 0 : index
    %7 = vector.load %arg12[%c0_16, %c9, %c0_17] : memref<2x75x892xf32, #tpu.memory_space<vmem>>, vector<2x3x892xf32>
    tpu.vector_store %arg12[%c0_16, %c9, %c0_17], %6 {strides = array<i32>} : memref<2x75x892xf32, #tpu.memory_space<vmem>>, vector<2x3x892xf32>,
    %c0_18 = arith.constant 0 : index
    %c0_19 = arith.constant 0 : index
    %c4 = arith.constant 4 : index
    %8 = vector.load %arg0[%c0_18, %c0_19, %c4] : memref<2x3x1024xf32, #tpu.memory_space<vmem>>, vector<2x3x892xf32>
    %c0_20 = arith.constant 0 : index
    %c12 = arith.constant 12 : index
    %c0_21 = arith.constant 0 : index
    %9 = vector.load %arg12[%c0_20, %c12, %c0_21] : memref<2x75x892xf32, #tpu.memory_space<vmem>>, vector<2x3x892xf32>
    tpu.vector_store %arg12[%c0_20, %c12, %c0_21], %8 {strides = array<i32>} : memref<2x75x892xf32, #tpu.memory_space<vmem>>, vector<2x3x892xf32>,
    %c0_22 = arith.constant 0 : index
    %c0_23 = arith.constant 0 : index
    %c32 = arith.constant 32 : index
    %10 = vector.load %arg0[%c0_22, %c0_23, %c32] : memref<2x3x1024xf32, #tpu.memory_space<vmem>>, vector<2x3x892xf32>
    %c0_24 = arith.constant 0 : index
    %c15 = arith.constant 15 : index
    %c0_25 = arith.constant 0 : index
    %11 = vector.load %arg12[%c0_24, %c15, %c0_25] : memref<2x75x892xf32, #tpu.memory_space<vmem>>, vector<2x3x892xf32>
    tpu.vector_store %arg12[%c0_24, %c15, %c0_25], %10 {strides = array<i32>} : memref<2x75x892xf32, #tpu.memory_space<vmem>>, vector<2x3x892xf32>,
    %c0_26 = arith.constant 0 : index
    %c0_27 = arith.constant 0 : index
    %c33 = arith.constant 33 : index
    %12 = vector.load %arg0[%c0_26, %c0_27, %c33] : memref<2x3x1024xf32, #tpu.memory_space<vmem>>, vector<2x3x892xf32>
    %c0_28 = arith.constant 0 : index
    %c18 = arith.constant 18 : index
    %c0_29 = arith.constant 0 : index
    %13 = vector.load %arg12[%c0_28, %c18, %c0_29] : memref<2x75x892xf32, #tpu.memory_space<vmem>>, vector<2x3x892xf32>
    tpu.vector_store %arg12[%c0_28, %c18, %c0_29], %12 {strides = array<i32>} : memref<2x75x892xf32, #tpu.memory_space<vmem>>, vector<2x3x892xf32>,
    %c0_30 = arith.constant 0 : index
    %c0_31 = arith.constant 0 : index
    %c34 = arith.constant 34 : index
    %14 = vector.load %arg0[%c0_30, %c0_31, %c34] : memref<2x3x1024xf32, #tpu.memory_space<vmem>>, vector<2x3x892xf32>
    %c0_32 = arith.constant 0 : index
    %c21 = arith.constant 21 : index
    %c0_33 = arith.constant 0 : index
    %15 = vector.load %arg12[%c0_32, %c21, %c0_33] : memref<2x75x892xf32, #tpu.memory_space<vmem>>, vector<2x3x892xf32>
    tpu.vector_store %arg12[%c0_32, %c21, %c0_33], %14 {strides = array<i32>} : memref<2x75x892xf32, #tpu.memory_space<vmem>>, vector<2x3x892xf32>,
    %c0_34 = arith.constant 0 : index
    %c0_35 = arith.constant 0 : index
    %c35 = arith.constant 35 : index
    %16 = vector.load %arg0[%c0_34, %c0_35, %c35] : memref<2x3x1024xf32, #tpu.memory_space<vmem>>, vector<2x3x892xf32>
    %c0_36 = arith.constant 0 : index
    %c24 = arith.constant 24 : index
    %c0_37 = arith.constant 0 : index
    %17 = vector.load %arg12[%c0_36, %c24, %c0_37] : memref<2x75x892xf32, #tpu.memory_space<vmem>>, vector<2x3x892xf32>
    tpu.vector_store %arg12[%c0_36, %c24, %c0_37], %16 {strides = array<i32>} : memref<2x75x892xf32, #tpu.memory_space<vmem>>, vector<2x3x892xf32>,
    %c0_38 = arith.constant 0 : index
    %c0_39 = arith.constant 0 : index
    %c36 = arith.constant 36 : index
    %18 = vector.load %arg0[%c0_38, %c0_39, %c36] : memref<2x3x1024xf32, #tpu.memory_space<vmem>>, vector<2x3x892xf32>
    %c0_40 = arith.constant 0 : index
    %c27 = arith.constant 27 : index
    %c0_41 = arith.constant 0 : index
    %19 = vector.load %arg12[%c0_40, %c27, %c0_41] : memref<2x75x892xf32, #tpu.memory_space<vmem>>, vector<2x3x892xf32>
    tpu.vector_store %arg12[%c0_40, %c27, %c0_41], %18 {strides = array<i32>} : memref<2x75x892xf32, #tpu.memory_space<vmem>>, vector<2x3x892xf32>,
    %c0_42 = arith.constant 0 : index
    %c0_43 = arith.constant 0 : index
    %c64 = arith.constant 64 : index
    %20 = vector.load %arg0[%c0_42, %c0_43, %c64] : memref<2x3x1024xf32, #tpu.memory_space<vmem>>, vector<2x3x892xf32>
    %c0_44 = arith.constant 0 : index
    %c30 = arith.constant 30 : index
    %c0_45 = arith.constant 0 : index
    %21 = vector.load %arg12[%c0_44, %c30, %c0_45] : memref<2x75x892xf32, #tpu.memory_space<vmem>>, vector<2x3x892xf32>
    tpu.vector_store %arg12[%c0_44, %c30, %c0_45], %20 {strides = array<i32>} : memref<2x75x892xf32, #tpu.memory_space<vmem>>, vector<2x3x892xf32>,
    %c0_46 = arith.constant 0 : index
    %c0_47 = arith.constant 0 : index
    %c65 = arith.constant 65 : index
    %22 = vector.load %arg0[%c0_46, %c0_47, %c65] : memref<2x3x1024xf32, #tpu.memory_space<vmem>>, vector<2x3x892xf32>
    %c0_48 = arith.constant 0 : index
    %c33_49 = arith.constant 33 : index
    %c0_50 = arith.constant 0 : index
    %23 = vector.load %arg12[%c0_48, %c33_49, %c0_50] : memref<2x75x892xf32, #tpu.memory_space<vmem>>, vector<2x3x892xf32>
    tpu.vector_store %arg12[%c0_48, %c33_49, %c0_50], %22 {strides = array<i32>} : memref<2x75x892xf32, #tpu.memory_space<vmem>>, vector<2x3x892xf32>,
    %c0_51 = arith.constant 0 : index
    %c0_52 = arith.constant 0 : index
    %c66 = arith.constant 66 : index
    %24 = vector.load %arg0[%c0_51, %c0_52, %c66] : memref<2x3x1024xf32, #tpu.memory_space<vmem>>, vector<2x3x892xf32>
    %c0_53 = arith.constant 0 : index
    %c36_54 = arith.constant 36 : index
    %c0_55 = arith.constant 0 : index
    %25 = vector.load %arg12[%c0_53, %c36_54, %c0_55] : memref<2x75x892xf32, #tpu.memory_space<vmem>>, vector<2x3x892xf32>
    tpu.vector_store %arg12[%c0_53, %c36_54, %c0_55], %24 {strides = array<i32>} : memref<2x75x892xf32, #tpu.memory_space<vmem>>, vector<2x3x892xf32>,
    %c0_56 = arith.constant 0 : index
    %c0_57 = arith.constant 0 : index
    %c67 = arith.constant 67 : index
    %26 = vector.load %arg0[%c0_56, %c0_57, %c67] : memref<2x3x1024xf32, #tpu.memory_space<vmem>>, vector<2x3x892xf32>
    %c0_58 = arith.constant 0 : index
    %c39 = arith.constant 39 : index
    %c0_59 = arith.constant 0 : index
    %27 = vector.load %arg12[%c0_58, %c39, %c0_59] : memref<2x75x892xf32, #tpu.memory_space<vmem>>, vector<2x3x892xf32>
    tpu.vector_store %arg12[%c0_58, %c39, %c0_59], %26 {strides = array<i32>} : memref<2x75x892xf32, #tpu.memory_space<vmem>>, vector<2x3x892xf32>,
    %c0_60 = arith.constant 0 : index
    %c0_61 = arith.constant 0 : index
    %c68 = arith.constant 68 : index
    %28 = vector.load %arg0[%c0_60, %c0_61, %c68] : memref<2x3x1024xf32, #tpu.memory_space<vmem>>, vector<2x3x892xf32>
    %c0_62 = arith.constant 0 : index
    %c42 = arith.constant 42 : index
    %c0_63 = arith.constant 0 : index
    %29 = vector.load %arg12[%c0_62, %c42, %c0_63] : memref<2x75x892xf32, #tpu.memory_space<vmem>>, vector<2x3x892xf32>
    tpu.vector_store %arg12[%c0_62, %c42, %c0_63], %28 {strides = array<i32>} : memref<2x75x892xf32, #tpu.memory_space<vmem>>, vector<2x3x892xf32>,
    %c0_64 = arith.constant 0 : index
    %c0_65 = arith.constant 0 : index
    %c96 = arith.constant 96 : index
    %30 = vector.load %arg0[%c0_64, %c0_65, %c96] : memref<2x3x1024xf32, #tpu.memory_space<vmem>>, vector<2x3x892xf32>
    %c0_66 = arith.constant 0 : index
    %c45 = arith.constant 45 : index
    %c0_67 = arith.constant 0 : index
    %31 = vector.load %arg12[%c0_66, %c45, %c0_67] : memref<2x75x892xf32, #tpu.memory_space<vmem>>, vector<2x3x892xf32>
    tpu.vector_store %arg12[%c0_66, %c45, %c0_67], %30 {strides = array<i32>} : memref<2x75x892xf32, #tpu.memory_space<vmem>>, vector<2x3x892xf32>,
    %c0_68 = arith.constant 0 : index
    %c0_69 = arith.constant 0 : index
    %c97 = arith.constant 97 : index
    %32 = vector.load %arg0[%c0_68, %c0_69, %c97] : memref<2x3x1024xf32, #tpu.memory_space<vmem>>, vector<2x3x892xf32>
    %c0_70 = arith.constant 0 : index
    %c48 = arith.constant 48 : index
    %c0_71 = arith.constant 0 : index
    %33 = vector.load %arg12[%c0_70, %c48, %c0_71] : memref<2x75x892xf32, #tpu.memory_space<vmem>>, vector<2x3x892xf32>
    tpu.vector_store %arg12[%c0_70, %c48, %c0_71], %32 {strides = array<i32>} : memref<2x75x892xf32, #tpu.memory_space<vmem>>, vector<2x3x892xf32>,
    %c0_72 = arith.constant 0 : index
    %c0_73 = arith.constant 0 : index
    %c98 = arith.constant 98 : index
    %34 = vector.load %arg0[%c0_72, %c0_73, %c98] : memref<2x3x1024xf32, #tpu.memory_space<vmem>>, vector<2x3x892xf32>
    %c0_74 = arith.constant 0 : index
    %c51 = arith.constant 51 : index
    %c0_75 = arith.constant 0 : index
    %35 = vector.load %arg12[%c0_74, %c51, %c0_75] : memref<2x75x892xf32, #tpu.memory_space<vmem>>, vector<2x3x892xf32>
    tpu.vector_store %arg12[%c0_74, %c51, %c0_75], %34 {strides = array<i32>} : memref<2x75x892xf32, #tpu.memory_space<vmem>>, vector<2x3x892xf32>,
    %c0_76 = arith.constant 0 : index
    %c0_77 = arith.constant 0 : index
    %c99 = arith.constant 99 : index
    %36 = vector.load %arg0[%c0_76, %c0_77, %c99] : memref<2x3x1024xf32, #tpu.memory_space<vmem>>, vector<2x3x892xf32>
    %c0_78 = arith.constant 0 : index
    %c54 = arith.constant 54 : index
    %c0_79 = arith.constant 0 : index
    %37 = vector.load %arg12[%c0_78, %c54, %c0_79] : memref<2x75x892xf32, #tpu.memory_space<vmem>>, vector<2x3x892xf32>
    tpu.vector_store %arg12[%c0_78, %c54, %c0_79], %36 {strides = array<i32>} : memref<2x75x892xf32, #tpu.memory_space<vmem>>, vector<2x3x892xf32>,
    %c0_80 = arith.constant 0 : index
    %c0_81 = arith.constant 0 : index
    %c100 = arith.constant 100 : index
    %38 = vector.load %arg0[%c0_80, %c0_81, %c100] : memref<2x3x1024xf32, #tpu.memory_space<vmem>>, vector<2x3x892xf32>
    %c0_82 = arith.constant 0 : index
    %c57 = arith.constant 57 : index
    %c0_83 = arith.constant 0 : index
    %39 = vector.load %arg12[%c0_82, %c57, %c0_83] : memref<2x75x892xf32, #tpu.memory_space<vmem>>, vector<2x3x892xf32>
    tpu.vector_store %arg12[%c0_82, %c57, %c0_83], %38 {strides = array<i32>} : memref<2x75x892xf32, #tpu.memory_space<vmem>>, vector<2x3x892xf32>,
    %c0_84 = arith.constant 0 : index
    %c0_85 = arith.constant 0 : index
    %c128 = arith.constant 128 : index
    %40 = vector.load %arg0[%c0_84, %c0_85, %c128] : memref<2x3x1024xf32, #tpu.memory_space<vmem>>, vector<2x3x892xf32>
    %c0_86 = arith.constant 0 : index
    %c60 = arith.constant 60 : index
    %c0_87 = arith.constant 0 : index
    %41 = vector.load %arg12[%c0_86, %c60, %c0_87] : memref<2x75x892xf32, #tpu.memory_space<vmem>>, vector<2x3x892xf32>
    tpu.vector_store %arg12[%c0_86, %c60, %c0_87], %40 {strides = array<i32>} : memref<2x75x892xf32, #tpu.memory_space<vmem>>, vector<2x3x892xf32>,
    %c0_88 = arith.constant 0 : index
    %c0_89 = arith.constant 0 : index
    %c129 = arith.constant 129 : index
    %42 = vector.load %arg0[%c0_88, %c0_89, %c129] : memref<2x3x1024xf32, #tpu.memory_space<vmem>>, vector<2x3x892xf32>
    %c0_90 = arith.constant 0 : index
    %c63 = arith.constant 63 : index
    %c0_91 = arith.constant 0 : index
    %43 = vector.load %arg12[%c0_90, %c63, %c0_91] : memref<2x75x892xf32, #tpu.memory_space<vmem>>, vector<2x3x892xf32>
    tpu.vector_store %arg12[%c0_90, %c63, %c0_91], %42 {strides = array<i32>} : memref<2x75x892xf32, #tpu.memory_space<vmem>>, vector<2x3x892xf32>,
    %c0_92 = arith.constant 0 : index
    %c0_93 = arith.constant 0 : index
    %c130 = arith.constant 130 : index
    %44 = vector.load %arg0[%c0_92, %c0_93, %c130] : memref<2x3x1024xf32, #tpu.memory_space<vmem>>, vector<2x3x892xf32>
    %c0_94 = arith.constant 0 : index
    %c66_95 = arith.constant 66 : index
    %c0_96 = arith.constant 0 : index
    %45 = vector.load %arg12[%c0_94, %c66_95, %c0_96] : memref<2x75x892xf32, #tpu.memory_space<vmem>>, vector<2x3x892xf32>
    tpu.vector_store %arg12[%c0_94, %c66_95, %c0_96], %44 {strides = array<i32>} : memref<2x75x892xf32, #tpu.memory_space<vmem>>, vector<2x3x892xf32>,
    %c0_97 = arith.constant 0 : index
    %c0_98 = arith.constant 0 : index
    %c131 = arith.constant 131 : index
    %46 = vector.load %arg0[%c0_97, %c0_98, %c131] : memref<2x3x1024xf32, #tpu.memory_space<vmem>>, vector<2x3x892xf32>
    %c0_99 = arith.constant 0 : index
    %c69 = arith.constant 69 : index
    %c0_100 = arith.constant 0 : index
    %47 = vector.load %arg12[%c0_99, %c69, %c0_100] : memref<2x75x892xf32, #tpu.memory_space<vmem>>, vector<2x3x892xf32>
    tpu.vector_store %arg12[%c0_99, %c69, %c0_100], %46 {strides = array<i32>} : memref<2x75x892xf32, #tpu.memory_space<vmem>>, vector<2x3x892xf32>,
    %c0_101 = arith.constant 0 : index
    %c0_102 = arith.constant 0 : index
    %c132 = arith.constant 132 : index
    %48 = vector.load %arg0[%c0_101, %c0_102, %c132] : memref<2x3x1024xf32, #tpu.memory_space<vmem>>, vector<2x3x892xf32>
    %c0_103 = arith.constant 0 : index
    %c72 = arith.constant 72 : index
    %c0_104 = arith.constant 0 : index
    %49 = vector.load %arg12[%c0_103, %c72, %c0_104] : memref<2x75x892xf32, #tpu.memory_space<vmem>>, vector<2x3x892xf32>
    tpu.vector_store %arg12[%c0_103, %c72, %c0_104], %48 {strides = array<i32>} : memref<2x75x892xf32, #tpu.memory_space<vmem>>, vector<2x3x892xf32>,
    %c0_105 = arith.constant 0 : index
    %c0_106 = arith.constant 0 : index
    %50 = vector.load %arg1[%c0_105, %c0_106] : memref<6x75xf32, #tpu.memory_space<vmem>>, vector<6x75xf32>
    %c0_107 = arith.constant 0 : index
    %c0_108 = arith.constant 0 : index
    %51 = vector.load %arg2[%c0_107, %c0_108] : memref<6x1xf32, #tpu.memory_space<vmem>>, vector<6x1xf32>
    %c0_109 = arith.constant 0 : index
    %c0_110 = arith.constant 0 : index
    %52 = vector.load %arg3[%c0_109, %c0_110] : memref<16x150xf32, #tpu.memory_space<vmem>>, vector<16x150xf32>
    %c0_111 = arith.constant 0 : index
    %c0_112 = arith.constant 0 : index
    %53 = vector.load %arg4[%c0_111, %c0_112] : memref<16x1xf32, #tpu.memory_space<vmem>>, vector<16x1xf32>
    %cst = arith.constant 0.000000e+00 : f32
    %54 = vector.broadcast %cst : f32 to vector<8x16x25xf32>
    %c0_113 = arith.constant 0 : index
    %c0_114 = arith.constant 0 : index
    %c0_115 = arith.constant 0 : index
    %55 = vector.load %arg14[%c0_113, %c0_114, %c0_115] : memref<8x16x25xf32, #tpu.memory_space<vmem>>, vector<8x16x25xf32>
    tpu.vector_store %arg14[%c0_113, %c0_114, %c0_115], %54 {strides = array<i32>} : memref<8x16x25xf32, #tpu.memory_space<vmem>>, vector<8x16x25xf32>,
    %c0_116 = arith.constant 0 : index
    %c0_117 = arith.constant 0 : index
    %c0_118 = arith.constant 0 : index
    %56 = vector.load %arg12[%c0_116, %c0_117, %c0_118] : memref<2x75x892xf32, #tpu.memory_space<vmem>>, vector<1x75x892xf32>
    %57 = vector.shape_cast %56 : vector<1x75x892xf32> to vector<75x892xf32>
    %cst_119 = arith.constant dense<0.000000e+00> : vector<6x892xf32>
    %58 = tpu.matmul %50, %57, %cst_119 {dimension_numbers = #tpu.dot_dimension_numbers<[1], [0], [0], [1], [0, 0, 1, 1], [], []>} : vector<6x75xf32>, vector<75x892xf32>, vector<6x892xf32> -> vector<6x892xf32>
    %59 = vector.broadcast %51 : vector<6x1xf32> to vector<6x892xf32>
    %60 = arith.addf %58, %59 : vector<6x892xf32>
    %cst_120 = arith.constant 0.000000e+00 : f32
    %61 = vector.broadcast %cst_120 : f32 to vector<6x892xf32>
    %62 = arith.maximumf %60, %61 : vector<6x892xf32>
    %63 = vector.extract_strided_slice %62 {offsets = [0, 0], sizes = [6, 891], strides = [1, 1]} : vector<6x892xf32> to vector<6x891xf32>
    %64 = vector.extract_strided_slice %62 {offsets = [0, 1], sizes = [6, 891], strides = [1, 1]} : vector<6x892xf32> to vector<6x891xf32>
    %65 = arith.maximumf %63, %64 : vector<6x891xf32>
    %66 = vector.extract_strided_slice %65 {offsets = [0, 0], sizes = [6, 859], strides = [1, 1]} : vector<6x891xf32> to vector<6x859xf32>
    %67 = vector.extract_strided_slice %65 {offsets = [0, 32], sizes = [6, 859], strides = [1, 1]} : vector<6x891xf32> to vector<6x859xf32>
    %68 = arith.maximumf %66, %67 : vector<6x859xf32>
    %69 = vector.extract_strided_slice %68 {offsets = [0, 0], sizes = [6, 595], strides = [1, 1]} : vector<6x859xf32> to vector<6x595xf32>
    %c0_121 = arith.constant 0 : index
    %c0_122 = arith.constant 0 : index
    %70 = vector.load %arg13[%c0_121, %c0_122] : memref<150x595xf32, #tpu.memory_space<vmem>>, vector<6x595xf32>
    tpu.vector_store %arg13[%c0_121, %c0_122], %69 {strides = array<i32>} : memref<150x595xf32, #tpu.memory_space<vmem>>, vector<6x595xf32>,
    %71 = vector.extract_strided_slice %68 {offsets = [0, 2], sizes = [6, 595], strides = [1, 1]} : vector<6x859xf32> to vector<6x595xf32>
    %c6_123 = arith.constant 6 : index
    %c0_124 = arith.constant 0 : index
    %72 = vector.load %arg13[%c6_123, %c0_124] : memref<150x595xf32, #tpu.memory_space<vmem>>, vector<6x595xf32>
    tpu.vector_store %arg13[%c6_123, %c0_124], %71 {strides = array<i32>} : memref<150x595xf32, #tpu.memory_space<vmem>>, vector<6x595xf32>,
    %73 = vector.extract_strided_slice %68 {offsets = [0, 4], sizes = [6, 595], strides = [1, 1]} : vector<6x859xf32> to vector<6x595xf32>
    %c12_125 = arith.constant 12 : index
    %c0_126 = arith.constant 0 : index
    %74 = vector.load %arg13[%c12_125, %c0_126] : memref<150x595xf32, #tpu.memory_space<vmem>>, vector<6x595xf32>
    tpu.vector_store %arg13[%c12_125, %c0_126], %73 {strides = array<i32>} : memref<150x595xf32, #tpu.memory_space<vmem>>, vector<6x595xf32>,
    %75 = vector.extract_strided_slice %68 {offsets = [0, 6], sizes = [6, 595], strides = [1, 1]} : vector<6x859xf32> to vector<6x595xf32>
    %c18_127 = arith.constant 18 : index
    %c0_128 = arith.constant 0 : index
    %76 = vector.load %arg13[%c18_127, %c0_128] : memref<150x595xf32, #tpu.memory_space<vmem>>, vector<6x595xf32>
    tpu.vector_store %arg13[%c18_127, %c0_128], %75 {strides = array<i32>} : memref<150x595xf32, #tpu.memory_space<vmem>>, vector<6x595xf32>,
    %77 = vector.extract_strided_slice %68 {offsets = [0, 8], sizes = [6, 595], strides = [1, 1]} : vector<6x859xf32> to vector<6x595xf32>
    %c24_129 = arith.constant 24 : index
    %c0_130 = arith.constant 0 : index
    %78 = vector.load %arg13[%c24_129, %c0_130] : memref<150x595xf32, #tpu.memory_space<vmem>>, vector<6x595xf32>
    tpu.vector_store %arg13[%c24_129, %c0_130], %77 {strides = array<i32>} : memref<150x595xf32, #tpu.memory_space<vmem>>, vector<6x595xf32>,
    %79 = vector.extract_strided_slice %68 {offsets = [0, 64], sizes = [6, 595], strides = [1, 1]} : vector<6x859xf32> to vector<6x595xf32>
    %c30_131 = arith.constant 30 : index
    %c0_132 = arith.constant 0 : index
    %80 = vector.load %arg13[%c30_131, %c0_132] : memref<150x595xf32, #tpu.memory_space<vmem>>, vector<6x595xf32>
    tpu.vector_store %arg13[%c30_131, %c0_132], %79 {strides = array<i32>} : memref<150x595xf32, #tpu.memory_space<vmem>>, vector<6x595xf32>,
    %81 = vector.extract_strided_slice %68 {offsets = [0, 66], sizes = [6, 595], strides = [1, 1]} : vector<6x859xf32> to vector<6x595xf32>
    %c36_133 = arith.constant 36 : index
    %c0_134 = arith.constant 0 : index
    %82 = vector.load %arg13[%c36_133, %c0_134] : memref<150x595xf32, #tpu.memory_space<vmem>>, vector<6x595xf32>
    tpu.vector_store %arg13[%c36_133, %c0_134], %81 {strides = array<i32>} : memref<150x595xf32, #tpu.memory_space<vmem>>, vector<6x595xf32>,
    %83 = vector.extract_strided_slice %68 {offsets = [0, 68], sizes = [6, 595], strides = [1, 1]} : vector<6x859xf32> to vector<6x595xf32>
    %c42_135 = arith.constant 42 : index
    %c0_136 = arith.constant 0 : index
    %84 = vector.load %arg13[%c42_135, %c0_136] : memref<150x595xf32, #tpu.memory_space<vmem>>, vector<6x595xf32>
    tpu.vector_store %arg13[%c42_135, %c0_136], %83 {strides = array<i32>} : memref<150x595xf32, #tpu.memory_space<vmem>>, vector<6x595xf32>,
    %85 = vector.extract_strided_slice %68 {offsets = [0, 70], sizes = [6, 595], strides = [1, 1]} : vector<6x859xf32> to vector<6x595xf32>
    %c48_137 = arith.constant 48 : index
    %c0_138 = arith.constant 0 : index
    %86 = vector.load %arg13[%c48_137, %c0_138] : memref<150x595xf32, #tpu.memory_space<vmem>>, vector<6x595xf32>
    tpu.vector_store %arg13[%c48_137, %c0_138], %85 {strides = array<i32>} : memref<150x595xf32, #tpu.memory_space<vmem>>, vector<6x595xf32>,
    %87 = vector.extract_strided_slice %68 {offsets = [0, 72], sizes = [6, 595], strides = [1, 1]} : vector<6x859xf32> to vector<6x595xf32>
    %c54_139 = arith.constant 54 : index
    %c0_140 = arith.constant 0 : index
    %88 = vector.load %arg13[%c54_139, %c0_140] : memref<150x595xf32, #tpu.memory_space<vmem>>, vector<6x595xf32>
    tpu.vector_store %arg13[%c54_139, %c0_140], %87 {strides = array<i32>} : memref<150x595xf32, #tpu.memory_space<vmem>>, vector<6x595xf32>,
    %89 = vector.extract_strided_slice %68 {offsets = [0, 128], sizes = [6, 595], strides = [1, 1]} : vector<6x859xf32> to vector<6x595xf32>
    %c60_141 = arith.constant 60 : index
    %c0_142 = arith.constant 0 : index
    %90 = vector.load %arg13[%c60_141, %c0_142] : memref<150x595xf32, #tpu.memory_space<vmem>>, vector<6x595xf32>
    tpu.vector_store %arg13[%c60_141, %c0_142], %89 {strides = array<i32>} : memref<150x595xf32, #tpu.memory_space<vmem>>, vector<6x595xf32>,
    %91 = vector.extract_strided_slice %68 {offsets = [0, 130], sizes = [6, 595], strides = [1, 1]} : vector<6x859xf32> to vector<6x595xf32>
    %c66_143 = arith.constant 66 : index
    %c0_144 = arith.constant 0 : index
    %92 = vector.load %arg13[%c66_143, %c0_144] : memref<150x595xf32, #tpu.memory_space<vmem>>, vector<6x595xf32>
    tpu.vector_store %arg13[%c66_143, %c0_144], %91 {strides = array<i32>} : memref<150x595xf32, #tpu.memory_space<vmem>>, vector<6x595xf32>,
    %93 = vector.extract_strided_slice %68 {offsets = [0, 132], sizes = [6, 595], strides = [1, 1]} : vector<6x859xf32> to vector<6x595xf32>
    %c72_145 = arith.constant 72 : index
    %c0_146 = arith.constant 0 : index
    %94 = vector.load %arg13[%c72_145, %c0_146] : memref<150x595xf32, #tpu.memory_space<vmem>>, vector<6x595xf32>
    tpu.vector_store %arg13[%c72_145, %c0_146], %93 {strides = array<i32>} : memref<150x595xf32, #tpu.memory_space<vmem>>, vector<6x595xf32>,
    %95 = vector.extract_strided_slice %68 {offsets = [0, 134], sizes = [6, 595], strides = [1, 1]} : vector<6x859xf32> to vector<6x595xf32>
    %c78 = arith.constant 78 : index
    %c0_147 = arith.constant 0 : index
    %96 = vector.load %arg13[%c78, %c0_147] : memref<150x595xf32, #tpu.memory_space<vmem>>, vector<6x595xf32>
    tpu.vector_store %arg13[%c78, %c0_147], %95 {strides = array<i32>} : memref<150x595xf32, #tpu.memory_space<vmem>>, vector<6x595xf32>,
    %97 = vector.extract_strided_slice %68 {offsets = [0, 136], sizes = [6, 595], strides = [1, 1]} : vector<6x859xf32> to vector<6x595xf32>
    %c84 = arith.constant 84 : index
    %c0_148 = arith.constant 0 : index
    %98 = vector.load %arg13[%c84, %c0_148] : memref<150x595xf32, #tpu.memory_space<vmem>>, vector<6x595xf32>
    tpu.vector_store %arg13[%c84, %c0_148], %97 {strides = array<i32>} : memref<150x595xf32, #tpu.memory_space<vmem>>, vector<6x595xf32>,
    %99 = vector.extract_strided_slice %68 {offsets = [0, 192], sizes = [6, 595], strides = [1, 1]} : vector<6x859xf32> to vector<6x595xf32>
    %c90 = arith.constant 90 : index
    %c0_149 = arith.constant 0 : index
    %100 = vector.load %arg13[%c90, %c0_149] : memref<150x595xf32, #tpu.memory_space<vmem>>, vector<6x595xf32>
    tpu.vector_store %arg13[%c90, %c0_149], %99 {strides = array<i32>} : memref<150x595xf32, #tpu.memory_space<vmem>>, vector<6x595xf32>,
    %101 = vector.extract_strided_slice %68 {offsets = [0, 194], sizes = [6, 595], strides = [1, 1]} : vector<6x859xf32> to vector<6x595xf32>
    %c96_150 = arith.constant 96 : index
    %c0_151 = arith.constant 0 : index
    %102 = vector.load %arg13[%c96_150, %c0_151] : memref<150x595xf32, #tpu.memory_space<vmem>>, vector<6x595xf32>
    tpu.vector_store %arg13[%c96_150, %c0_151], %101 {strides = array<i32>} : memref<150x595xf32, #tpu.memory_space<vmem>>, vector<6x595xf32>,
    %103 = vector.extract_strided_slice %68 {offsets = [0, 196], sizes = [6, 595], strides = [1, 1]} : vector<6x859xf32> to vector<6x595xf32>
    %c102 = arith.constant 102 : index
    %c0_152 = arith.constant 0 : index
    %104 = vector.load %arg13[%c102, %c0_152] : memref<150x595xf32, #tpu.memory_space<vmem>>, vector<6x595xf32>
    tpu.vector_store %arg13[%c102, %c0_152], %103 {strides = array<i32>} : memref<150x595xf32, #tpu.memory_space<vmem>>, vector<6x595xf32>,
    %105 = vector.extract_strided_slice %68 {offsets = [0, 198], sizes = [6, 595], strides = [1, 1]} : vector<6x859xf32> to vector<6x595xf32>
    %c108 = arith.constant 108 : index
    %c0_153 = arith.constant 0 : index
    %106 = vector.load %arg13[%c108, %c0_153] : memref<150x595xf32, #tpu.memory_space<vmem>>, vector<6x595xf32>
    tpu.vector_store %arg13[%c108, %c0_153], %105 {strides = array<i32>} : memref<150x595xf32, #tpu.memory_space<vmem>>, vector<6x595xf32>,
    %107 = vector.extract_strided_slice %68 {offsets = [0, 200], sizes = [6, 595], strides = [1, 1]} : vector<6x859xf32> to vector<6x595xf32>
    %c114 = arith.constant 114 : index
    %c0_154 = arith.constant 0 : index
    %108 = vector.load %arg13[%c114, %c0_154] : memref<150x595xf32, #tpu.memory_space<vmem>>, vector<6x595xf32>
    tpu.vector_store %arg13[%c114, %c0_154], %107 {strides = array<i32>} : memref<150x595xf32, #tpu.memory_space<vmem>>, vector<6x595xf32>,
    %109 = vector.extract_strided_slice %68 {offsets = [0, 256], sizes = [6, 595], strides = [1, 1]} : vector<6x859xf32> to vector<6x595xf32>
    %c120 = arith.constant 120 : index
    %c0_155 = arith.constant 0 : index
    %110 = vector.load %arg13[%c120, %c0_155] : memref<150x595xf32, #tpu.memory_space<vmem>>, vector<6x595xf32>
    tpu.vector_store %arg13[%c120, %c0_155], %109 {strides = array<i32>} : memref<150x595xf32, #tpu.memory_space<vmem>>, vector<6x595xf32>,
    %111 = vector.extract_strided_slice %68 {offsets = [0, 258], sizes = [6, 595], strides = [1, 1]} : vector<6x859xf32> to vector<6x595xf32>
    %c126 = arith.constant 126 : index
    %c0_156 = arith.constant 0 : index
    %112 = vector.load %arg13[%c126, %c0_156] : memref<150x595xf32, #tpu.memory_space<vmem>>, vector<6x595xf32>
    tpu.vector_store %arg13[%c126, %c0_156], %111 {strides = array<i32>} : memref<150x595xf32, #tpu.memory_space<vmem>>, vector<6x595xf32>,
    %113 = vector.extract_strided_slice %68 {offsets = [0, 260], sizes = [6, 595], strides = [1, 1]} : vector<6x859xf32> to vector<6x595xf32>
    %c132_157 = arith.constant 132 : index
    %c0_158 = arith.constant 0 : index
    %114 = vector.load %arg13[%c132_157, %c0_158] : memref<150x595xf32, #tpu.memory_space<vmem>>, vector<6x595xf32>
    tpu.vector_store %arg13[%c132_157, %c0_158], %113 {strides = array<i32>} : memref<150x595xf32, #tpu.memory_space<vmem>>, vector<6x595xf32>,
    %115 = vector.extract_strided_slice %68 {offsets = [0, 262], sizes = [6, 595], strides = [1, 1]} : vector<6x859xf32> to vector<6x595xf32>
    %c138 = arith.constant 138 : index
    %c0_159 = arith.constant 0 : index
    %116 = vector.load %arg13[%c138, %c0_159] : memref<150x595xf32, #tpu.memory_space<vmem>>, vector<6x595xf32>
    tpu.vector_store %arg13[%c138, %c0_159], %115 {strides = array<i32>} : memref<150x595xf32, #tpu.memory_space<vmem>>, vector<6x595xf32>,
    %117 = vector.extract_strided_slice %68 {offsets = [0, 264], sizes = [6, 595], strides = [1, 1]} : vector<6x859xf32> to vector<6x595xf32>
    %c144 = arith.constant 144 : index
    %c0_160 = arith.constant 0 : index
    %118 = vector.load %arg13[%c144, %c0_160] : memref<150x595xf32, #tpu.memory_space<vmem>>, vector<6x595xf32>
    tpu.vector_store %arg13[%c144, %c0_160], %117 {strides = array<i32>} : memref<150x595xf32, #tpu.memory_space<vmem>>, vector<6x595xf32>,
    %c0_161 = arith.constant 0 : index
    %c0_162 = arith.constant 0 : index
    %119 = vector.load %arg13[%c0_161, %c0_162] : memref<150x595xf32, #tpu.memory_space<vmem>>, vector<150x595xf32>
    %cst_163 = arith.constant dense<0.000000e+00> : vector<16x595xf32>
    %120 = tpu.matmul %52, %119, %cst_163 {dimension_numbers = #tpu.dot_dimension_numbers<[1], [0], [0], [1], [0, 0, 1, 1], [], []>} : vector<16x150xf32>, vector<150x595xf32>, vector<16x595xf32> -> vector<16x595xf32>
    %121 = vector.broadcast %53 : vector<16x1xf32> to vector<16x595xf32>
    %122 = arith.addf %120, %121 : vector<16x595xf32>
    %cst_164 = arith.constant 0.000000e+00 : f32
    %123 = vector.broadcast %cst_164 : f32 to vector<16x595xf32>
    %124 = arith.maximumf %122, %123 : vector<16x595xf32>
    %125 = vector.extract_strided_slice %124 {offsets = [0, 0], sizes = [16, 593], strides = [1, 1]} : vector<16x595xf32> to vector<16x593xf32>
    %126 = vector.extract_strided_slice %124 {offsets = [0, 2], sizes = [16, 593], strides = [1, 1]} : vector<16x595xf32> to vector<16x593xf32>
    %127 = arith.maximumf %125, %126 : vector<16x593xf32>
    %128 = vector.extract_strided_slice %127 {offsets = [0, 0], sizes = [16, 529], strides = [1, 1]} : vector<16x593xf32> to vector<16x529xf32>
    %129 = vector.extract_strided_slice %127 {offsets = [0, 64], sizes = [16, 529], strides = [1, 1]} : vector<16x593xf32> to vector<16x529xf32>
    %130 = arith.maximumf %128, %129 : vector<16x529xf32>
    %131 = vector.extract_strided_slice %130 {offsets = [0, 0], sizes = [16, 1], strides = [1, 1]} : vector<16x529xf32> to vector<16x1xf32>
    %c0_165 = arith.constant 0 : index
    %c0_166 = arith.constant 0 : index
    %c0_167 = arith.constant 0 : index
    %132 = vector.load %arg14[%c0_165, %c0_166, %c0_167] : memref<8x16x25xf32, #tpu.memory_space<vmem>>, vector<1x16x1xf32>
    %133 = vector.shape_cast %132 : vector<1x16x1xf32> to vector<16x1xf32>
    %134 = vector.shape_cast %131 : vector<16x1xf32> to vector<1x16x1xf32>
    tpu.vector_store %arg14[%c0_165, %c0_166, %c0_167], %134 {strides = array<i32>} : memref<8x16x25xf32, #tpu.memory_space<vmem>>, vector<1x16x1xf32>,
    %135 = vector.extract_strided_slice %130 {offsets = [0, 4], sizes = [16, 1], strides = [1, 1]} : vector<16x529xf32> to vector<16x1xf32>
    %c0_168 = arith.constant 0 : index
    %c0_169 = arith.constant 0 : index
    %c1_170 = arith.constant 1 : index
    %136 = vector.load %arg14[%c0_168, %c0_169, %c1_170] : memref<8x16x25xf32, #tpu.memory_space<vmem>>, vector<1x16x1xf32>
    %137 = vector.shape_cast %136 : vector<1x16x1xf32> to vector<16x1xf32>
    %138 = vector.shape_cast %135 : vector<16x1xf32> to vector<1x16x1xf32>
    tpu.vector_store %arg14[%c0_168, %c0_169, %c1_170], %138 {strides = array<i32>} : memref<8x16x25xf32, #tpu.memory_space<vmem>>, vector<1x16x1xf32>,
    %139 = vector.extract_strided_slice %130 {offsets = [0, 8], sizes = [16, 1], strides = [1, 1]} : vector<16x529xf32> to vector<16x1xf32>
    %c0_171 = arith.constant 0 : index
    %c0_172 = arith.constant 0 : index
    %c2_173 = arith.constant 2 : index
    %140 = vector.load %arg14[%c0_171, %c0_172, %c2_173] : memref<8x16x25xf32, #tpu.memory_space<vmem>>, vector<1x16x1xf32>
    %141 = vector.shape_cast %140 : vector<1x16x1xf32> to vector<16x1xf32>
    %142 = vector.shape_cast %139 : vector<16x1xf32> to vector<1x16x1xf32>
    tpu.vector_store %arg14[%c0_171, %c0_172, %c2_173], %142 {strides = array<i32>} : memref<8x16x25xf32, #tpu.memory_space<vmem>>, vector<1x16x1xf32>,
    %143 = vector.extract_strided_slice %130 {offsets = [0, 12], sizes = [16, 1], strides = [1, 1]} : vector<16x529xf32> to vector<16x1xf32>
    %c0_174 = arith.constant 0 : index
    %c0_175 = arith.constant 0 : index
    %c3_176 = arith.constant 3 : index
    %144 = vector.load %arg14[%c0_174, %c0_175, %c3_176] : memref<8x16x25xf32, #tpu.memory_space<vmem>>, vector<1x16x1xf32>
    %145 = vector.shape_cast %144 : vector<1x16x1xf32> to vector<16x1xf32>
    %146 = vector.shape_cast %143 : vector<16x1xf32> to vector<1x16x1xf32>
    tpu.vector_store %arg14[%c0_174, %c0_175, %c3_176], %146 {strides = array<i32>} : memref<8x16x25xf32, #tpu.memory_space<vmem>>, vector<1x16x1xf32>,
    %147 = vector.extract_strided_slice %130 {offsets = [0, 16], sizes = [16, 1], strides = [1, 1]} : vector<16x529xf32> to vector<16x1xf32>
    %c0_177 = arith.constant 0 : index
    %c0_178 = arith.constant 0 : index
    %c4_179 = arith.constant 4 : index
    %148 = vector.load %arg14[%c0_177, %c0_178, %c4_179] : memref<8x16x25xf32, #tpu.memory_space<vmem>>, vector<1x16x1xf32>
    %149 = vector.shape_cast %148 : vector<1x16x1xf32> to vector<16x1xf32>
    %150 = vector.shape_cast %147 : vector<16x1xf32> to vector<1x16x1xf32>
    tpu.vector_store %arg14[%c0_177, %c0_178, %c4_179], %150 {strides = array<i32>} : memref<8x16x25xf32, #tpu.memory_space<vmem>>, vector<1x16x1xf32>,
    %151 = vector.extract_strided_slice %130 {offsets = [0, 128], sizes = [16, 1], strides = [1, 1]} : vector<16x529xf32> to vector<16x1xf32>
    %c0_180 = arith.constant 0 : index
    %c0_181 = arith.constant 0 : index
    %c5 = arith.constant 5 : index
    %152 = vector.load %arg14[%c0_180, %c0_181, %c5] : memref<8x16x25xf32, #tpu.memory_space<vmem>>, vector<1x16x1xf32>
    %153 = vector.shape_cast %152 : vector<1x16x1xf32> to vector<16x1xf32>
    %154 = vector.shape_cast %151 : vector<16x1xf32> to vector<1x16x1xf32>
    tpu.vector_store %arg14[%c0_180, %c0_181, %c5], %154 {strides = array<i32>} : memref<8x16x25xf32, #tpu.memory_space<vmem>>, vector<1x16x1xf32>,
    %155 = vector.extract_strided_slice %130 {offsets = [0, 132], sizes = [16, 1], strides = [1, 1]} : vector<16x529xf32> to vector<16x1xf32>
    %c0_182 = arith.constant 0 : index
    %c0_183 = arith.constant 0 : index
    %c6_184 = arith.constant 6 : index
    %156 = vector.load %arg14[%c0_182, %c0_183, %c6_184] : memref<8x16x25xf32, #tpu.memory_space<vmem>>, vector<1x16x1xf32>
    %157 = vector.shape_cast %156 : vector<1x16x1xf32> to vector<16x1xf32>
    %158 = vector.shape_cast %155 : vector<16x1xf32> to vector<1x16x1xf32>
    tpu.vector_store %arg14[%c0_182, %c0_183, %c6_184], %158 {strides = array<i32>} : memref<8x16x25xf32, #tpu.memory_space<vmem>>, vector<1x16x1xf32>,
    %159 = vector.extract_strided_slice %130 {offsets = [0, 136], sizes = [16, 1], strides = [1, 1]} : vector<16x529xf32> to vector<16x1xf32>
    %c0_185 = arith.constant 0 : index
    %c0_186 = arith.constant 0 : index
    %c7 = arith.constant 7 : index
    %160 = vector.load %arg14[%c0_185, %c0_186, %c7] : memref<8x16x25xf32, #tpu.memory_space<vmem>>, vector<1x16x1xf32>
    %161 = vector.shape_cast %160 : vector<1x16x1xf32> to vector<16x1xf32>
    %162 = vector.shape_cast %159 : vector<16x1xf32> to vector<1x16x1xf32>
    tpu.vector_store %arg14[%c0_185, %c0_186, %c7], %162 {strides = array<i32>} : memref<8x16x25xf32, #tpu.memory_space<vmem>>, vector<1x16x1xf32>,
    %163 = vector.extract_strided_slice %130 {offsets = [0, 140], sizes = [16, 1], strides = [1, 1]} : vector<16x529xf32> to vector<16x1xf32>
    %c0_187 = arith.constant 0 : index
    %c0_188 = arith.constant 0 : index
    %c8 = arith.constant 8 : index
    %164 = vector.load %arg14[%c0_187, %c0_188, %c8] : memref<8x16x25xf32, #tpu.memory_space<vmem>>, vector<1x16x1xf32>
    %165 = vector.shape_cast %164 : vector<1x16x1xf32> to vector<16x1xf32>
    %166 = vector.shape_cast %163 : vector<16x1xf32> to vector<1x16x1xf32>
    tpu.vector_store %arg14[%c0_187, %c0_188, %c8], %166 {strides = array<i32>} : memref<8x16x25xf32, #tpu.memory_space<vmem>>, vector<1x16x1xf32>,
    %167 = vector.extract_strided_slice %130 {offsets = [0, 144], sizes = [16, 1], strides = [1, 1]} : vector<16x529xf32> to vector<16x1xf32>
    %c0_189 = arith.constant 0 : index
    %c0_190 = arith.constant 0 : index
    %c9_191 = arith.constant 9 : index
    %168 = vector.load %arg14[%c0_189, %c0_190, %c9_191] : memref<8x16x25xf32, #tpu.memory_space<vmem>>, vector<1x16x1xf32>
    %169 = vector.shape_cast %168 : vector<1x16x1xf32> to vector<16x1xf32>
    %170 = vector.shape_cast %167 : vector<16x1xf32> to vector<1x16x1xf32>
    tpu.vector_store %arg14[%c0_189, %c0_190, %c9_191], %170 {strides = array<i32>} : memref<8x16x25xf32, #tpu.memory_space<vmem>>, vector<1x16x1xf32>,
    %171 = vector.extract_strided_slice %130 {offsets = [0, 256], sizes = [16, 1], strides = [1, 1]} : vector<16x529xf32> to vector<16x1xf32>
    %c0_192 = arith.constant 0 : index
    %c0_193 = arith.constant 0 : index
    %c10 = arith.constant 10 : index
    %172 = vector.load %arg14[%c0_192, %c0_193, %c10] : memref<8x16x25xf32, #tpu.memory_space<vmem>>, vector<1x16x1xf32>
    %173 = vector.shape_cast %172 : vector<1x16x1xf32> to vector<16x1xf32>
    %174 = vector.shape_cast %171 : vector<16x1xf32> to vector<1x16x1xf32>
    tpu.vector_store %arg14[%c0_192, %c0_193, %c10], %174 {strides = array<i32>} : memref<8x16x25xf32, #tpu.memory_space<vmem>>, vector<1x16x1xf32>,
    %175 = vector.extract_strided_slice %130 {offsets = [0, 260], sizes = [16, 1], strides = [1, 1]} : vector<16x529xf32> to vector<16x1xf32>
    %c0_194 = arith.constant 0 : index
    %c0_195 = arith.constant 0 : index
    %c11 = arith.constant 11 : index
    %176 = vector.load %arg14[%c0_194, %c0_195, %c11] : memref<8x16x25xf32, #tpu.memory_space<vmem>>, vector<1x16x1xf32>
    %177 = vector.shape_cast %176 : vector<1x16x1xf32> to vector<16x1xf32>
    %178 = vector.shape_cast %175 : vector<16x1xf32> to vector<1x16x1xf32>
    tpu.vector_store %arg14[%c0_194, %c0_195, %c11], %178 {strides = array<i32>} : memref<8x16x25xf32, #tpu.memory_space<vmem>>, vector<1x16x1xf32>,
    %179 = vector.extract_strided_slice %130 {offsets = [0, 264], sizes = [16, 1], strides = [1, 1]} : vector<16x529xf32> to vector<16x1xf32>
    %c0_196 = arith.constant 0 : index
    %c0_197 = arith.constant 0 : index
    %c12_198 = arith.constant 12 : index
    %180 = vector.load %arg14[%c0_196, %c0_197, %c12_198] : memref<8x16x25xf32, #tpu.memory_space<vmem>>, vector<1x16x1xf32>
    %181 = vector.shape_cast %180 : vector<1x16x1xf32> to vector<16x1xf32>
    %182 = vector.shape_cast %179 : vector<16x1xf32> to vector<1x16x1xf32>
    tpu.vector_store %arg14[%c0_196, %c0_197, %c12_198], %182 {strides = array<i32>} : memref<8x16x25xf32, #tpu.memory_space<vmem>>, vector<1x16x1xf32>,
    %183 = vector.extract_strided_slice %130 {offsets = [0, 268], sizes = [16, 1], strides = [1, 1]} : vector<16x529xf32> to vector<16x1xf32>
    %c0_199 = arith.constant 0 : index
    %c0_200 = arith.constant 0 : index
    %c13 = arith.constant 13 : index
    %184 = vector.load %arg14[%c0_199, %c0_200, %c13] : memref<8x16x25xf32, #tpu.memory_space<vmem>>, vector<1x16x1xf32>
    %185 = vector.shape_cast %184 : vector<1x16x1xf32> to vector<16x1xf32>
    %186 = vector.shape_cast %183 : vector<16x1xf32> to vector<1x16x1xf32>
    tpu.vector_store %arg14[%c0_199, %c0_200, %c13], %186 {strides = array<i32>} : memref<8x16x25xf32, #tpu.memory_space<vmem>>, vector<1x16x1xf32>,
    %187 = vector.extract_strided_slice %130 {offsets = [0, 272], sizes = [16, 1], strides = [1, 1]} : vector<16x529xf32> to vector<16x1xf32>
    %c0_201 = arith.constant 0 : index
    %c0_202 = arith.constant 0 : index
    %c14 = arith.constant 14 : index
    %188 = vector.load %arg14[%c0_201, %c0_202, %c14] : memref<8x16x25xf32, #tpu.memory_space<vmem>>, vector<1x16x1xf32>
    %189 = vector.shape_cast %188 : vector<1x16x1xf32> to vector<16x1xf32>
    %190 = vector.shape_cast %187 : vector<16x1xf32> to vector<1x16x1xf32>
    tpu.vector_store %arg14[%c0_201, %c0_202, %c14], %190 {strides = array<i32>} : memref<8x16x25xf32, #tpu.memory_space<vmem>>, vector<1x16x1xf32>,
    %191 = vector.extract_strided_slice %130 {offsets = [0, 384], sizes = [16, 1], strides = [1, 1]} : vector<16x529xf32> to vector<16x1xf32>
    %c0_203 = arith.constant 0 : index
    %c0_204 = arith.constant 0 : index
    %c15_205 = arith.constant 15 : index
    %192 = vector.load %arg14[%c0_203, %c0_204, %c15_205] : memref<8x16x25xf32, #tpu.memory_space<vmem>>, vector<1x16x1xf32>
    %193 = vector.shape_cast %192 : vector<1x16x1xf32> to vector<16x1xf32>
    %194 = vector.shape_cast %191 : vector<16x1xf32> to vector<1x16x1xf32>
    tpu.vector_store %arg14[%c0_203, %c0_204, %c15_205], %194 {strides = array<i32>} : memref<8x16x25xf32, #tpu.memory_space<vmem>>, vector<1x16x1xf32>,
    %195 = vector.extract_strided_slice %130 {offsets = [0, 388], sizes = [16, 1], strides = [1, 1]} : vector<16x529xf32> to vector<16x1xf32>
    %c0_206 = arith.constant 0 : index
    %c0_207 = arith.constant 0 : index
    %c16 = arith.constant 16 : index
    %196 = vector.load %arg14[%c0_206, %c0_207, %c16] : memref<8x16x25xf32, #tpu.memory_space<vmem>>, vector<1x16x1xf32>
    %197 = vector.shape_cast %196 : vector<1x16x1xf32> to vector<16x1xf32>
    %198 = vector.shape_cast %195 : vector<16x1xf32> to vector<1x16x1xf32>
    tpu.vector_store %arg14[%c0_206, %c0_207, %c16], %198 {strides = array<i32>} : memref<8x16x25xf32, #tpu.memory_space<vmem>>, vector<1x16x1xf32>,
    %199 = vector.extract_strided_slice %130 {offsets = [0, 392], sizes = [16, 1], strides = [1, 1]} : vector<16x529xf32> to vector<16x1xf32>
    %c0_208 = arith.constant 0 : index
    %c0_209 = arith.constant 0 : index
    %c17 = arith.constant 17 : index
    %200 = vector.load %arg14[%c0_208, %c0_209, %c17] : memref<8x16x25xf32, #tpu.memory_space<vmem>>, vector<1x16x1xf32>
    %201 = vector.shape_cast %200 : vector<1x16x1xf32> to vector<16x1xf32>
    %202 = vector.shape_cast %199 : vector<16x1xf32> to vector<1x16x1xf32>
    tpu.vector_store %arg14[%c0_208, %c0_209, %c17], %202 {strides = array<i32>} : memref<8x16x25xf32, #tpu.memory_space<vmem>>, vector<1x16x1xf32>,
    %203 = vector.extract_strided_slice %130 {offsets = [0, 396], sizes = [16, 1], strides = [1, 1]} : vector<16x529xf32> to vector<16x1xf32>
    %c0_210 = arith.constant 0 : index
    %c0_211 = arith.constant 0 : index
    %c18_212 = arith.constant 18 : index
    %204 = vector.load %arg14[%c0_210, %c0_211, %c18_212] : memref<8x16x25xf32, #tpu.memory_space<vmem>>, vector<1x16x1xf32>
    %205 = vector.shape_cast %204 : vector<1x16x1xf32> to vector<16x1xf32>
    %206 = vector.shape_cast %203 : vector<16x1xf32> to vector<1x16x1xf32>
    tpu.vector_store %arg14[%c0_210, %c0_211, %c18_212], %206 {strides = array<i32>} : memref<8x16x25xf32, #tpu.memory_space<vmem>>, vector<1x16x1xf32>,
    %207 = vector.extract_strided_slice %130 {offsets = [0, 400], sizes = [16, 1], strides = [1, 1]} : vector<16x529xf32> to vector<16x1xf32>
    %c0_213 = arith.constant 0 : index
    %c0_214 = arith.constant 0 : index
    %c19 = arith.constant 19 : index
    %208 = vector.load %arg14[%c0_213, %c0_214, %c19] : memref<8x16x25xf32, #tpu.memory_space<vmem>>, vector<1x16x1xf32>
    %209 = vector.shape_cast %208 : vector<1x16x1xf32> to vector<16x1xf32>
    %210 = vector.shape_cast %207 : vector<16x1xf32> to vector<1x16x1xf32>
    tpu.vector_store %arg14[%c0_213, %c0_214, %c19], %210 {strides = array<i32>} : memref<8x16x25xf32, #tpu.memory_space<vmem>>, vector<1x16x1xf32>,
    %211 = vector.extract_strided_slice %130 {offsets = [0, 512], sizes = [16, 1], strides = [1, 1]} : vector<16x529xf32> to vector<16x1xf32>
    %c0_215 = arith.constant 0 : index
    %c0_216 = arith.constant 0 : index
    %c20 = arith.constant 20 : index
    %212 = vector.load %arg14[%c0_215, %c0_216, %c20] : memref<8x16x25xf32, #tpu.memory_space<vmem>>, vector<1x16x1xf32>
    %213 = vector.shape_cast %212 : vector<1x16x1xf32> to vector<16x1xf32>
    %214 = vector.shape_cast %211 : vector<16x1xf32> to vector<1x16x1xf32>
    tpu.vector_store %arg14[%c0_215, %c0_216, %c20], %214 {strides = array<i32>} : memref<8x16x25xf32, #tpu.memory_space<vmem>>, vector<1x16x1xf32>,
    %215 = vector.extract_strided_slice %130 {offsets = [0, 516], sizes = [16, 1], strides = [1, 1]} : vector<16x529xf32> to vector<16x1xf32>
    %c0_217 = arith.constant 0 : index
    %c0_218 = arith.constant 0 : index
    %c21_219 = arith.constant 21 : index
    %216 = vector.load %arg14[%c0_217, %c0_218, %c21_219] : memref<8x16x25xf32, #tpu.memory_space<vmem>>, vector<1x16x1xf32>
    %217 = vector.shape_cast %216 : vector<1x16x1xf32> to vector<16x1xf32>
    %218 = vector.shape_cast %215 : vector<16x1xf32> to vector<1x16x1xf32>
    tpu.vector_store %arg14[%c0_217, %c0_218, %c21_219], %218 {strides = array<i32>} : memref<8x16x25xf32, #tpu.memory_space<vmem>>, vector<1x16x1xf32>,
    %219 = vector.extract_strided_slice %130 {offsets = [0, 520], sizes = [16, 1], strides = [1, 1]} : vector<16x529xf32> to vector<16x1xf32>
    %c0_220 = arith.constant 0 : index
    %c0_221 = arith.constant 0 : index
    %c22 = arith.constant 22 : index
    %220 = vector.load %arg14[%c0_220, %c0_221, %c22] : memref<8x16x25xf32, #tpu.memory_space<vmem>>, vector<1x16x1xf32>
    %221 = vector.shape_cast %220 : vector<1x16x1xf32> to vector<16x1xf32>
    %222 = vector.shape_cast %219 : vector<16x1xf32> to vector<1x16x1xf32>
    tpu.vector_store %arg14[%c0_220, %c0_221, %c22], %222 {strides = array<i32>} : memref<8x16x25xf32, #tpu.memory_space<vmem>>, vector<1x16x1xf32>,
    %223 = vector.extract_strided_slice %130 {offsets = [0, 524], sizes = [16, 1], strides = [1, 1]} : vector<16x529xf32> to vector<16x1xf32>
    %c0_222 = arith.constant 0 : index
    %c0_223 = arith.constant 0 : index
    %c23 = arith.constant 23 : index
    %224 = vector.load %arg14[%c0_222, %c0_223, %c23] : memref<8x16x25xf32, #tpu.memory_space<vmem>>, vector<1x16x1xf32>
    %225 = vector.shape_cast %224 : vector<1x16x1xf32> to vector<16x1xf32>
    %226 = vector.shape_cast %223 : vector<16x1xf32> to vector<1x16x1xf32>
    tpu.vector_store %arg14[%c0_222, %c0_223, %c23], %226 {strides = array<i32>} : memref<8x16x25xf32, #tpu.memory_space<vmem>>, vector<1x16x1xf32>,
    %227 = vector.extract_strided_slice %130 {offsets = [0, 528], sizes = [16, 1], strides = [1, 1]} : vector<16x529xf32> to vector<16x1xf32>
    %c0_224 = arith.constant 0 : index
    %c0_225 = arith.constant 0 : index
    %c24_226 = arith.constant 24 : index
    %228 = vector.load %arg14[%c0_224, %c0_225, %c24_226] : memref<8x16x25xf32, #tpu.memory_space<vmem>>, vector<1x16x1xf32>
    %229 = vector.shape_cast %228 : vector<1x16x1xf32> to vector<16x1xf32>
    %230 = vector.shape_cast %227 : vector<16x1xf32> to vector<1x16x1xf32>
    tpu.vector_store %arg14[%c0_224, %c0_225, %c24_226], %230 {strides = array<i32>} : memref<8x16x25xf32, #tpu.memory_space<vmem>>, vector<1x16x1xf32>,
    %c1_227 = arith.constant 1 : index
    %c0_228 = arith.constant 0 : index
    %c0_229 = arith.constant 0 : index
    %231 = vector.load %arg12[%c1_227, %c0_228, %c0_229] : memref<2x75x892xf32, #tpu.memory_space<vmem>>, vector<1x75x892xf32>
    %232 = vector.shape_cast %231 : vector<1x75x892xf32> to vector<75x892xf32>
    %cst_230 = arith.constant dense<0.000000e+00> : vector<6x892xf32>
    %233 = tpu.matmul %50, %232, %cst_230 {dimension_numbers = #tpu.dot_dimension_numbers<[1], [0], [0], [1], [0, 0, 1, 1], [], []>} : vector<6x75xf32>, vector<75x892xf32>, vector<6x892xf32> -> vector<6x892xf32>
    %234 = vector.broadcast %51 : vector<6x1xf32> to vector<6x892xf32>
    %235 = arith.addf %233, %234 : vector<6x892xf32>
    %cst_231 = arith.constant 0.000000e+00 : f32
    %236 = vector.broadcast %cst_231 : f32 to vector<6x892xf32>
    %237 = arith.maximumf %235, %236 : vector<6x892xf32>
    %238 = vector.extract_strided_slice %237 {offsets = [0, 0], sizes = [6, 891], strides = [1, 1]} : vector<6x892xf32> to vector<6x891xf32>
    %239 = vector.extract_strided_slice %237 {offsets = [0, 1], sizes = [6, 891], strides = [1, 1]} : vector<6x892xf32> to vector<6x891xf32>
    %240 = arith.maximumf %238, %239 : vector<6x891xf32>
    %241 = vector.extract_strided_slice %240 {offsets = [0, 0], sizes = [6, 859], strides = [1, 1]} : vector<6x891xf32> to vector<6x859xf32>
    %242 = vector.extract_strided_slice %240 {offsets = [0, 32], sizes = [6, 859], strides = [1, 1]} : vector<6x891xf32> to vector<6x859xf32>
    %243 = arith.maximumf %241, %242 : vector<6x859xf32>
    %244 = vector.extract_strided_slice %243 {offsets = [0, 0], sizes = [6, 595], strides = [1, 1]} : vector<6x859xf32> to vector<6x595xf32>
    %c0_232 = arith.constant 0 : index
    %c0_233 = arith.constant 0 : index
    %245 = vector.load %arg13[%c0_232, %c0_233] : memref<150x595xf32, #tpu.memory_space<vmem>>, vector<6x595xf32>
    tpu.vector_store %arg13[%c0_232, %c0_233], %244 {strides = array<i32>} : memref<150x595xf32, #tpu.memory_space<vmem>>, vector<6x595xf32>,
    %246 = vector.extract_strided_slice %243 {offsets = [0, 2], sizes = [6, 595], strides = [1, 1]} : vector<6x859xf32> to vector<6x595xf32>
    %c6_234 = arith.constant 6 : index
    %c0_235 = arith.constant 0 : index
    %247 = vector.load %arg13[%c6_234, %c0_235] : memref<150x595xf32, #tpu.memory_space<vmem>>, vector<6x595xf32>
    tpu.vector_store %arg13[%c6_234, %c0_235], %246 {strides = array<i32>} : memref<150x595xf32, #tpu.memory_space<vmem>>, vector<6x595xf32>,
    %248 = vector.extract_strided_slice %243 {offsets = [0, 4], sizes = [6, 595], strides = [1, 1]} : vector<6x859xf32> to vector<6x595xf32>
    %c12_236 = arith.constant 12 : index
    %c0_237 = arith.constant 0 : index
    %249 = vector.load %arg13[%c12_236, %c0_237] : memref<150x595xf32, #tpu.memory_space<vmem>>, vector<6x595xf32>
    tpu.vector_store %arg13[%c12_236, %c0_237], %248 {strides = array<i32>} : memref<150x595xf32, #tpu.memory_space<vmem>>, vector<6x595xf32>,
    %250 = vector.extract_strided_slice %243 {offsets = [0, 6], sizes = [6, 595], strides = [1, 1]} : vector<6x859xf32> to vector<6x595xf32>
    %c18_238 = arith.constant 18 : index
    %c0_239 = arith.constant 0 : index
    %251 = vector.load %arg13[%c18_238, %c0_239] : memref<150x595xf32, #tpu.memory_space<vmem>>, vector<6x595xf32>
    tpu.vector_store %arg13[%c18_238, %c0_239], %250 {strides = array<i32>} : memref<150x595xf32, #tpu.memory_space<vmem>>, vector<6x595xf32>,
    %252 = vector.extract_strided_slice %243 {offsets = [0, 8], sizes = [6, 595], strides = [1, 1]} : vector<6x859xf32> to vector<6x595xf32>
    %c24_240 = arith.constant 24 : index
    %c0_241 = arith.constant 0 : index
    %253 = vector.load %arg13[%c24_240, %c0_241] : memref<150x595xf32, #tpu.memory_space<vmem>>, vector<6x595xf32>
    tpu.vector_store %arg13[%c24_240, %c0_241], %252 {strides = array<i32>} : memref<150x595xf32, #tpu.memory_space<vmem>>, vector<6x595xf32>,
    %254 = vector.extract_strided_slice %243 {offsets = [0, 64], sizes = [6, 595], strides = [1, 1]} : vector<6x859xf32> to vector<6x595xf32>
    %c30_242 = arith.constant 30 : index
    %c0_243 = arith.constant 0 : index
    %255 = vector.load %arg13[%c30_242, %c0_243] : memref<150x595xf32, #tpu.memory_space<vmem>>, vector<6x595xf32>
    tpu.vector_store %arg13[%c30_242, %c0_243], %254 {strides = array<i32>} : memref<150x595xf32, #tpu.memory_space<vmem>>, vector<6x595xf32>,
    %256 = vector.extract_strided_slice %243 {offsets = [0, 66], sizes = [6, 595], strides = [1, 1]} : vector<6x859xf32> to vector<6x595xf32>
    %c36_244 = arith.constant 36 : index
    %c0_245 = arith.constant 0 : index
    %257 = vector.load %arg13[%c36_244, %c0_245] : memref<150x595xf32, #tpu.memory_space<vmem>>, vector<6x595xf32>
    tpu.vector_store %arg13[%c36_244, %c0_245], %256 {strides = array<i32>} : memref<150x595xf32, #tpu.memory_space<vmem>>, vector<6x595xf32>,
    %258 = vector.extract_strided_slice %243 {offsets = [0, 68], sizes = [6, 595], strides = [1, 1]} : vector<6x859xf32> to vector<6x595xf32>
    %c42_246 = arith.constant 42 : index
    %c0_247 = arith.constant 0 : index
    %259 = vector.load %arg13[%c42_246, %c0_247] : memref<150x595xf32, #tpu.memory_space<vmem>>, vector<6x595xf32>
    tpu.vector_store %arg13[%c42_246, %c0_247], %258 {strides = array<i32>} : memref<150x595xf32, #tpu.memory_space<vmem>>, vector<6x595xf32>,
    %260 = vector.extract_strided_slice %243 {offsets = [0, 70], sizes = [6, 595], strides = [1, 1]} : vector<6x859xf32> to vector<6x595xf32>
    %c48_248 = arith.constant 48 : index
    %c0_249 = arith.constant 0 : index
    %261 = vector.load %arg13[%c48_248, %c0_249] : memref<150x595xf32, #tpu.memory_space<vmem>>, vector<6x595xf32>
    tpu.vector_store %arg13[%c48_248, %c0_249], %260 {strides = array<i32>} : memref<150x595xf32, #tpu.memory_space<vmem>>, vector<6x595xf32>,
    %262 = vector.extract_strided_slice %243 {offsets = [0, 72], sizes = [6, 595], strides = [1, 1]} : vector<6x859xf32> to vector<6x595xf32>
    %c54_250 = arith.constant 54 : index
    %c0_251 = arith.constant 0 : index
    %263 = vector.load %arg13[%c54_250, %c0_251] : memref<150x595xf32, #tpu.memory_space<vmem>>, vector<6x595xf32>
    tpu.vector_store %arg13[%c54_250, %c0_251], %262 {strides = array<i32>} : memref<150x595xf32, #tpu.memory_space<vmem>>, vector<6x595xf32>,
    %264 = vector.extract_strided_slice %243 {offsets = [0, 128], sizes = [6, 595], strides = [1, 1]} : vector<6x859xf32> to vector<6x595xf32>
    %c60_252 = arith.constant 60 : index
    %c0_253 = arith.constant 0 : index
    %265 = vector.load %arg13[%c60_252, %c0_253] : memref<150x595xf32, #tpu.memory_space<vmem>>, vector<6x595xf32>
    tpu.vector_store %arg13[%c60_252, %c0_253], %264 {strides = array<i32>} : memref<150x595xf32, #tpu.memory_space<vmem>>, vector<6x595xf32>,
    %266 = vector.extract_strided_slice %243 {offsets = [0, 130], sizes = [6, 595], strides = [1, 1]} : vector<6x859xf32> to vector<6x595xf32>
    %c66_254 = arith.constant 66 : index
    %c0_255 = arith.constant 0 : index
    %267 = vector.load %arg13[%c66_254, %c0_255] : memref<150x595xf32, #tpu.memory_space<vmem>>, vector<6x595xf32>
    tpu.vector_store %arg13[%c66_254, %c0_255], %266 {strides = array<i32>} : memref<150x595xf32, #tpu.memory_space<vmem>>, vector<6x595xf32>,
    %268 = vector.extract_strided_slice %243 {offsets = [0, 132], sizes = [6, 595], strides = [1, 1]} : vector<6x859xf32> to vector<6x595xf32>
    %c72_256 = arith.constant 72 : index
    %c0_257 = arith.constant 0 : index
    %269 = vector.load %arg13[%c72_256, %c0_257] : memref<150x595xf32, #tpu.memory_space<vmem>>, vector<6x595xf32>
    tpu.vector_store %arg13[%c72_256, %c0_257], %268 {strides = array<i32>} : memref<150x595xf32, #tpu.memory_space<vmem>>, vector<6x595xf32>,
    %270 = vector.extract_strided_slice %243 {offsets = [0, 134], sizes = [6, 595], strides = [1, 1]} : vector<6x859xf32> to vector<6x595xf32>
    %c78_258 = arith.constant 78 : index
    %c0_259 = arith.constant 0 : index
    %271 = vector.load %arg13[%c78_258, %c0_259] : memref<150x595xf32, #tpu.memory_space<vmem>>, vector<6x595xf32>
    tpu.vector_store %arg13[%c78_258, %c0_259], %270 {strides = array<i32>} : memref<150x595xf32, #tpu.memory_space<vmem>>, vector<6x595xf32>,
    %272 = vector.extract_strided_slice %243 {offsets = [0, 136], sizes = [6, 595], strides = [1, 1]} : vector<6x859xf32> to vector<6x595xf32>
    %c84_260 = arith.constant 84 : index
    %c0_261 = arith.constant 0 : index
    %273 = vector.load %arg13[%c84_260, %c0_261] : memref<150x595xf32, #tpu.memory_space<vmem>>, vector<6x595xf32>
    tpu.vector_store %arg13[%c84_260, %c0_261], %272 {strides = array<i32>} : memref<150x595xf32, #tpu.memory_space<vmem>>, vector<6x595xf32>,
    %274 = vector.extract_strided_slice %243 {offsets = [0, 192], sizes = [6, 595], strides = [1, 1]} : vector<6x859xf32> to vector<6x595xf32>
    %c90_262 = arith.constant 90 : index
    %c0_263 = arith.constant 0 : index
    %275 = vector.load %arg13[%c90_262, %c0_263] : memref<150x595xf32, #tpu.memory_space<vmem>>, vector<6x595xf32>
    tpu.vector_store %arg13[%c90_262, %c0_263], %274 {strides = array<i32>} : memref<150x595xf32, #tpu.memory_space<vmem>>, vector<6x595xf32>,
    %276 = vector.extract_strided_slice %243 {offsets = [0, 194], sizes = [6, 595], strides = [1, 1]} : vector<6x859xf32> to vector<6x595xf32>
    %c96_264 = arith.constant 96 : index
    %c0_265 = arith.constant 0 : index
    %277 = vector.load %arg13[%c96_264, %c0_265] : memref<150x595xf32, #tpu.memory_space<vmem>>, vector<6x595xf32>
    tpu.vector_store %arg13[%c96_264, %c0_265], %276 {strides = array<i32>} : memref<150x595xf32, #tpu.memory_space<vmem>>, vector<6x595xf32>,
    %278 = vector.extract_strided_slice %243 {offsets = [0, 196], sizes = [6, 595], strides = [1, 1]} : vector<6x859xf32> to vector<6x595xf32>
    %c102_266 = arith.constant 102 : index
    %c0_267 = arith.constant 0 : index
    %279 = vector.load %arg13[%c102_266, %c0_267] : memref<150x595xf32, #tpu.memory_space<vmem>>, vector<6x595xf32>
    tpu.vector_store %arg13[%c102_266, %c0_267], %278 {strides = array<i32>} : memref<150x595xf32, #tpu.memory_space<vmem>>, vector<6x595xf32>,
    %280 = vector.extract_strided_slice %243 {offsets = [0, 198], sizes = [6, 595], strides = [1, 1]} : vector<6x859xf32> to vector<6x595xf32>
    %c108_268 = arith.constant 108 : index
    %c0_269 = arith.constant 0 : index
    %281 = vector.load %arg13[%c108_268, %c0_269] : memref<150x595xf32, #tpu.memory_space<vmem>>, vector<6x595xf32>
    tpu.vector_store %arg13[%c108_268, %c0_269], %280 {strides = array<i32>} : memref<150x595xf32, #tpu.memory_space<vmem>>, vector<6x595xf32>,
    %282 = vector.extract_strided_slice %243 {offsets = [0, 200], sizes = [6, 595], strides = [1, 1]} : vector<6x859xf32> to vector<6x595xf32>
    %c114_270 = arith.constant 114 : index
    %c0_271 = arith.constant 0 : index
    %283 = vector.load %arg13[%c114_270, %c0_271] : memref<150x595xf32, #tpu.memory_space<vmem>>, vector<6x595xf32>
    tpu.vector_store %arg13[%c114_270, %c0_271], %282 {strides = array<i32>} : memref<150x595xf32, #tpu.memory_space<vmem>>, vector<6x595xf32>,
    %284 = vector.extract_strided_slice %243 {offsets = [0, 256], sizes = [6, 595], strides = [1, 1]} : vector<6x859xf32> to vector<6x595xf32>
    %c120_272 = arith.constant 120 : index
    %c0_273 = arith.constant 0 : index
    %285 = vector.load %arg13[%c120_272, %c0_273] : memref<150x595xf32, #tpu.memory_space<vmem>>, vector<6x595xf32>
    tpu.vector_store %arg13[%c120_272, %c0_273], %284 {strides = array<i32>} : memref<150x595xf32, #tpu.memory_space<vmem>>, vector<6x595xf32>,
    %286 = vector.extract_strided_slice %243 {offsets = [0, 258], sizes = [6, 595], strides = [1, 1]} : vector<6x859xf32> to vector<6x595xf32>
    %c126_274 = arith.constant 126 : index
    %c0_275 = arith.constant 0 : index
    %287 = vector.load %arg13[%c126_274, %c0_275] : memref<150x595xf32, #tpu.memory_space<vmem>>, vector<6x595xf32>
    tpu.vector_store %arg13[%c126_274, %c0_275], %286 {strides = array<i32>} : memref<150x595xf32, #tpu.memory_space<vmem>>, vector<6x595xf32>,
    %288 = vector.extract_strided_slice %243 {offsets = [0, 260], sizes = [6, 595], strides = [1, 1]} : vector<6x859xf32> to vector<6x595xf32>
    %c132_276 = arith.constant 132 : index
    %c0_277 = arith.constant 0 : index
    %289 = vector.load %arg13[%c132_276, %c0_277] : memref<150x595xf32, #tpu.memory_space<vmem>>, vector<6x595xf32>
    tpu.vector_store %arg13[%c132_276, %c0_277], %288 {strides = array<i32>} : memref<150x595xf32, #tpu.memory_space<vmem>>, vector<6x595xf32>,
    %290 = vector.extract_strided_slice %243 {offsets = [0, 262], sizes = [6, 595], strides = [1, 1]} : vector<6x859xf32> to vector<6x595xf32>
    %c138_278 = arith.constant 138 : index
    %c0_279 = arith.constant 0 : index
    %291 = vector.load %arg13[%c138_278, %c0_279] : memref<150x595xf32, #tpu.memory_space<vmem>>, vector<6x595xf32>
    tpu.vector_store %arg13[%c138_278, %c0_279], %290 {strides = array<i32>} : memref<150x595xf32, #tpu.memory_space<vmem>>, vector<6x595xf32>,
    %292 = vector.extract_strided_slice %243 {offsets = [0, 264], sizes = [6, 595], strides = [1, 1]} : vector<6x859xf32> to vector<6x595xf32>
    %c144_280 = arith.constant 144 : index
    %c0_281 = arith.constant 0 : index
    %293 = vector.load %arg13[%c144_280, %c0_281] : memref<150x595xf32, #tpu.memory_space<vmem>>, vector<6x595xf32>
    tpu.vector_store %arg13[%c144_280, %c0_281], %292 {strides = array<i32>} : memref<150x595xf32, #tpu.memory_space<vmem>>, vector<6x595xf32>,
    %c0_282 = arith.constant 0 : index
    %c0_283 = arith.constant 0 : index
    %294 = vector.load %arg13[%c0_282, %c0_283] : memref<150x595xf32, #tpu.memory_space<vmem>>, vector<150x595xf32>
    %cst_284 = arith.constant dense<0.000000e+00> : vector<16x595xf32>
    %295 = tpu.matmul %52, %294, %cst_284 {dimension_numbers = #tpu.dot_dimension_numbers<[1], [0], [0], [1], [0, 0, 1, 1], [], []>} : vector<16x150xf32>, vector<150x595xf32>, vector<16x595xf32> -> vector<16x595xf32>
    %296 = vector.broadcast %53 : vector<16x1xf32> to vector<16x595xf32>
    %297 = arith.addf %295, %296 : vector<16x595xf32>
    %cst_285 = arith.constant 0.000000e+00 : f32
    %298 = vector.broadcast %cst_285 : f32 to vector<16x595xf32>
    %299 = arith.maximumf %297, %298 : vector<16x595xf32>
    %300 = vector.extract_strided_slice %299 {offsets = [0, 0], sizes = [16, 593], strides = [1, 1]} : vector<16x595xf32> to vector<16x593xf32>
    %301 = vector.extract_strided_slice %299 {offsets = [0, 2], sizes = [16, 593], strides = [1, 1]} : vector<16x595xf32> to vector<16x593xf32>
    %302 = arith.maximumf %300, %301 : vector<16x593xf32>
    %303 = vector.extract_strided_slice %302 {offsets = [0, 0], sizes = [16, 529], strides = [1, 1]} : vector<16x593xf32> to vector<16x529xf32>
    %304 = vector.extract_strided_slice %302 {offsets = [0, 64], sizes = [16, 529], strides = [1, 1]} : vector<16x593xf32> to vector<16x529xf32>
    %305 = arith.maximumf %303, %304 : vector<16x529xf32>
    %306 = vector.extract_strided_slice %305 {offsets = [0, 0], sizes = [16, 1], strides = [1, 1]} : vector<16x529xf32> to vector<16x1xf32>
    %c1_286 = arith.constant 1 : index
    %c0_287 = arith.constant 0 : index
    %c0_288 = arith.constant 0 : index
    %307 = vector.load %arg14[%c1_286, %c0_287, %c0_288] : memref<8x16x25xf32, #tpu.memory_space<vmem>>, vector<1x16x1xf32>
    %308 = vector.shape_cast %307 : vector<1x16x1xf32> to vector<16x1xf32>
    %309 = vector.shape_cast %306 : vector<16x1xf32> to vector<1x16x1xf32>
    tpu.vector_store %arg14[%c1_286, %c0_287, %c0_288], %309 {strides = array<i32>} : memref<8x16x25xf32, #tpu.memory_space<vmem>>, vector<1x16x1xf32>,
    %310 = vector.extract_strided_slice %305 {offsets = [0, 4], sizes = [16, 1], strides = [1, 1]} : vector<16x529xf32> to vector<16x1xf32>
    %c1_289 = arith.constant 1 : index
    %c0_290 = arith.constant 0 : index
    %c1_291 = arith.constant 1 : index
    %311 = vector.load %arg14[%c1_289, %c0_290, %c1_291] : memref<8x16x25xf32, #tpu.memory_space<vmem>>, vector<1x16x1xf32>
    %312 = vector.shape_cast %311 : vector<1x16x1xf32> to vector<16x1xf32>
    %313 = vector.shape_cast %310 : vector<16x1xf32> to vector<1x16x1xf32>
    tpu.vector_store %arg14[%c1_289, %c0_290, %c1_291], %313 {strides = array<i32>} : memref<8x16x25xf32, #tpu.memory_space<vmem>>, vector<1x16x1xf32>,
    %314 = vector.extract_strided_slice %305 {offsets = [0, 8], sizes = [16, 1], strides = [1, 1]} : vector<16x529xf32> to vector<16x1xf32>
    %c1_292 = arith.constant 1 : index
    %c0_293 = arith.constant 0 : index
    %c2_294 = arith.constant 2 : index
    %315 = vector.load %arg14[%c1_292, %c0_293, %c2_294] : memref<8x16x25xf32, #tpu.memory_space<vmem>>, vector<1x16x1xf32>
    %316 = vector.shape_cast %315 : vector<1x16x1xf32> to vector<16x1xf32>
    %317 = vector.shape_cast %314 : vector<16x1xf32> to vector<1x16x1xf32>
    tpu.vector_store %arg14[%c1_292, %c0_293, %c2_294], %317 {strides = array<i32>} : memref<8x16x25xf32, #tpu.memory_space<vmem>>, vector<1x16x1xf32>,
    %318 = vector.extract_strided_slice %305 {offsets = [0, 12], sizes = [16, 1], strides = [1, 1]} : vector<16x529xf32> to vector<16x1xf32>
    %c1_295 = arith.constant 1 : index
    %c0_296 = arith.constant 0 : index
    %c3_297 = arith.constant 3 : index
    %319 = vector.load %arg14[%c1_295, %c0_296, %c3_297] : memref<8x16x25xf32, #tpu.memory_space<vmem>>, vector<1x16x1xf32>
    %320 = vector.shape_cast %319 : vector<1x16x1xf32> to vector<16x1xf32>
    %321 = vector.shape_cast %318 : vector<16x1xf32> to vector<1x16x1xf32>
    tpu.vector_store %arg14[%c1_295, %c0_296, %c3_297], %321 {strides = array<i32>} : memref<8x16x25xf32, #tpu.memory_space<vmem>>, vector<1x16x1xf32>,
    %322 = vector.extract_strided_slice %305 {offsets = [0, 16], sizes = [16, 1], strides = [1, 1]} : vector<16x529xf32> to vector<16x1xf32>
    %c1_298 = arith.constant 1 : index
    %c0_299 = arith.constant 0 : index
    %c4_300 = arith.constant 4 : index
    %323 = vector.load %arg14[%c1_298, %c0_299, %c4_300] : memref<8x16x25xf32, #tpu.memory_space<vmem>>, vector<1x16x1xf32>
    %324 = vector.shape_cast %323 : vector<1x16x1xf32> to vector<16x1xf32>
    %325 = vector.shape_cast %322 : vector<16x1xf32> to vector<1x16x1xf32>
    tpu.vector_store %arg14[%c1_298, %c0_299, %c4_300], %325 {strides = array<i32>} : memref<8x16x25xf32, #tpu.memory_space<vmem>>, vector<1x16x1xf32>,
    %326 = vector.extract_strided_slice %305 {offsets = [0, 128], sizes = [16, 1], strides = [1, 1]} : vector<16x529xf32> to vector<16x1xf32>
    %c1_301 = arith.constant 1 : index
    %c0_302 = arith.constant 0 : index
    %c5_303 = arith.constant 5 : index
    %327 = vector.load %arg14[%c1_301, %c0_302, %c5_303] : memref<8x16x25xf32, #tpu.memory_space<vmem>>, vector<1x16x1xf32>
    %328 = vector.shape_cast %327 : vector<1x16x1xf32> to vector<16x1xf32>
    %329 = vector.shape_cast %326 : vector<16x1xf32> to vector<1x16x1xf32>
    tpu.vector_store %arg14[%c1_301, %c0_302, %c5_303], %329 {strides = array<i32>} : memref<8x16x25xf32, #tpu.memory_space<vmem>>, vector<1x16x1xf32>,
    %330 = vector.extract_strided_slice %305 {offsets = [0, 132], sizes = [16, 1], strides = [1, 1]} : vector<16x529xf32> to vector<16x1xf32>
    %c1_304 = arith.constant 1 : index
    %c0_305 = arith.constant 0 : index
    %c6_306 = arith.constant 6 : index
    %331 = vector.load %arg14[%c1_304, %c0_305, %c6_306] : memref<8x16x25xf32, #tpu.memory_space<vmem>>, vector<1x16x1xf32>
    %332 = vector.shape_cast %331 : vector<1x16x1xf32> to vector<16x1xf32>
    %333 = vector.shape_cast %330 : vector<16x1xf32> to vector<1x16x1xf32>
    tpu.vector_store %arg14[%c1_304, %c0_305, %c6_306], %333 {strides = array<i32>} : memref<8x16x25xf32, #tpu.memory_space<vmem>>, vector<1x16x1xf32>,
    %334 = vector.extract_strided_slice %305 {offsets = [0, 136], sizes = [16, 1], strides = [1, 1]} : vector<16x529xf32> to vector<16x1xf32>
    %c1_307 = arith.constant 1 : index
    %c0_308 = arith.constant 0 : index
    %c7_309 = arith.constant 7 : index
    %335 = vector.load %arg14[%c1_307, %c0_308, %c7_309] : memref<8x16x25xf32, #tpu.memory_space<vmem>>, vector<1x16x1xf32>
    %336 = vector.shape_cast %335 : vector<1x16x1xf32> to vector<16x1xf32>
    %337 = vector.shape_cast %334 : vector<16x1xf32> to vector<1x16x1xf32>
    tpu.vector_store %arg14[%c1_307, %c0_308, %c7_309], %337 {strides = array<i32>} : memref<8x16x25xf32, #tpu.memory_space<vmem>>, vector<1x16x1xf32>,
    %338 = vector.extract_strided_slice %305 {offsets = [0, 140], sizes = [16, 1], strides = [1, 1]} : vector<16x529xf32> to vector<16x1xf32>
    %c1_310 = arith.constant 1 : index
    %c0_311 = arith.constant 0 : index
    %c8_312 = arith.constant 8 : index
    %339 = vector.load %arg14[%c1_310, %c0_311, %c8_312] : memref<8x16x25xf32, #tpu.memory_space<vmem>>, vector<1x16x1xf32>
    %340 = vector.shape_cast %339 : vector<1x16x1xf32> to vector<16x1xf32>
    %341 = vector.shape_cast %338 : vector<16x1xf32> to vector<1x16x1xf32>
    tpu.vector_store %arg14[%c1_310, %c0_311, %c8_312], %341 {strides = array<i32>} : memref<8x16x25xf32, #tpu.memory_space<vmem>>, vector<1x16x1xf32>,
    %342 = vector.extract_strided_slice %305 {offsets = [0, 144], sizes = [16, 1], strides = [1, 1]} : vector<16x529xf32> to vector<16x1xf32>
    %c1_313 = arith.constant 1 : index
    %c0_314 = arith.constant 0 : index
    %c9_315 = arith.constant 9 : index
    %343 = vector.load %arg14[%c1_313, %c0_314, %c9_315] : memref<8x16x25xf32, #tpu.memory_space<vmem>>, vector<1x16x1xf32>
    %344 = vector.shape_cast %343 : vector<1x16x1xf32> to vector<16x1xf32>
    %345 = vector.shape_cast %342 : vector<16x1xf32> to vector<1x16x1xf32>
    tpu.vector_store %arg14[%c1_313, %c0_314, %c9_315], %345 {strides = array<i32>} : memref<8x16x25xf32, #tpu.memory_space<vmem>>, vector<1x16x1xf32>,
    %346 = vector.extract_strided_slice %305 {offsets = [0, 256], sizes = [16, 1], strides = [1, 1]} : vector<16x529xf32> to vector<16x1xf32>
    %c1_316 = arith.constant 1 : index
    %c0_317 = arith.constant 0 : index
    %c10_318 = arith.constant 10 : index
    %347 = vector.load %arg14[%c1_316, %c0_317, %c10_318] : memref<8x16x25xf32, #tpu.memory_space<vmem>>, vector<1x16x1xf32>
    %348 = vector.shape_cast %347 : vector<1x16x1xf32> to vector<16x1xf32>
    %349 = vector.shape_cast %346 : vector<16x1xf32> to vector<1x16x1xf32>
    tpu.vector_store %arg14[%c1_316, %c0_317, %c10_318], %349 {strides = array<i32>} : memref<8x16x25xf32, #tpu.memory_space<vmem>>, vector<1x16x1xf32>,
    %350 = vector.extract_strided_slice %305 {offsets = [0, 260], sizes = [16, 1], strides = [1, 1]} : vector<16x529xf32> to vector<16x1xf32>
    %c1_319 = arith.constant 1 : index
    %c0_320 = arith.constant 0 : index
    %c11_321 = arith.constant 11 : index
    %351 = vector.load %arg14[%c1_319, %c0_320, %c11_321] : memref<8x16x25xf32, #tpu.memory_space<vmem>>, vector<1x16x1xf32>
    %352 = vector.shape_cast %351 : vector<1x16x1xf32> to vector<16x1xf32>
    %353 = vector.shape_cast %350 : vector<16x1xf32> to vector<1x16x1xf32>
    tpu.vector_store %arg14[%c1_319, %c0_320, %c11_321], %353 {strides = array<i32>} : memref<8x16x25xf32, #tpu.memory_space<vmem>>, vector<1x16x1xf32>,
    %354 = vector.extract_strided_slice %305 {offsets = [0, 264], sizes = [16, 1], strides = [1, 1]} : vector<16x529xf32> to vector<16x1xf32>
    %c1_322 = arith.constant 1 : index
    %c0_323 = arith.constant 0 : index
    %c12_324 = arith.constant 12 : index
    %355 = vector.load %arg14[%c1_322, %c0_323, %c12_324] : memref<8x16x25xf32, #tpu.memory_space<vmem>>, vector<1x16x1xf32>
    %356 = vector.shape_cast %355 : vector<1x16x1xf32> to vector<16x1xf32>
    %357 = vector.shape_cast %354 : vector<16x1xf32> to vector<1x16x1xf32>
    tpu.vector_store %arg14[%c1_322, %c0_323, %c12_324], %357 {strides = array<i32>} : memref<8x16x25xf32, #tpu.memory_space<vmem>>, vector<1x16x1xf32>,
    %358 = vector.extract_strided_slice %305 {offsets = [0, 268], sizes = [16, 1], strides = [1, 1]} : vector<16x529xf32> to vector<16x1xf32>
    %c1_325 = arith.constant 1 : index
    %c0_326 = arith.constant 0 : index
    %c13_327 = arith.constant 13 : index
    %359 = vector.load %arg14[%c1_325, %c0_326, %c13_327] : memref<8x16x25xf32, #tpu.memory_space<vmem>>, vector<1x16x1xf32>
    %360 = vector.shape_cast %359 : vector<1x16x1xf32> to vector<16x1xf32>
    %361 = vector.shape_cast %358 : vector<16x1xf32> to vector<1x16x1xf32>
    tpu.vector_store %arg14[%c1_325, %c0_326, %c13_327], %361 {strides = array<i32>} : memref<8x16x25xf32, #tpu.memory_space<vmem>>, vector<1x16x1xf32>,
    %362 = vector.extract_strided_slice %305 {offsets = [0, 272], sizes = [16, 1], strides = [1, 1]} : vector<16x529xf32> to vector<16x1xf32>
    %c1_328 = arith.constant 1 : index
    %c0_329 = arith.constant 0 : index
    %c14_330 = arith.constant 14 : index
    %363 = vector.load %arg14[%c1_328, %c0_329, %c14_330] : memref<8x16x25xf32, #tpu.memory_space<vmem>>, vector<1x16x1xf32>
    %364 = vector.shape_cast %363 : vector<1x16x1xf32> to vector<16x1xf32>
    %365 = vector.shape_cast %362 : vector<16x1xf32> to vector<1x16x1xf32>
    tpu.vector_store %arg14[%c1_328, %c0_329, %c14_330], %365 {strides = array<i32>} : memref<8x16x25xf32, #tpu.memory_space<vmem>>, vector<1x16x1xf32>,
    %366 = vector.extract_strided_slice %305 {offsets = [0, 384], sizes = [16, 1], strides = [1, 1]} : vector<16x529xf32> to vector<16x1xf32>
    %c1_331 = arith.constant 1 : index
    %c0_332 = arith.constant 0 : index
    %c15_333 = arith.constant 15 : index
    %367 = vector.load %arg14[%c1_331, %c0_332, %c15_333] : memref<8x16x25xf32, #tpu.memory_space<vmem>>, vector<1x16x1xf32>
    %368 = vector.shape_cast %367 : vector<1x16x1xf32> to vector<16x1xf32>
    %369 = vector.shape_cast %366 : vector<16x1xf32> to vector<1x16x1xf32>
    tpu.vector_store %arg14[%c1_331, %c0_332, %c15_333], %369 {strides = array<i32>} : memref<8x16x25xf32, #tpu.memory_space<vmem>>, vector<1x16x1xf32>,
    %370 = vector.extract_strided_slice %305 {offsets = [0, 388], sizes = [16, 1], strides = [1, 1]} : vector<16x529xf32> to vector<16x1xf32>
    %c1_334 = arith.constant 1 : index
    %c0_335 = arith.constant 0 : index
    %c16_336 = arith.constant 16 : index
    %371 = vector.load %arg14[%c1_334, %c0_335, %c16_336] : memref<8x16x25xf32, #tpu.memory_space<vmem>>, vector<1x16x1xf32>
    %372 = vector.shape_cast %371 : vector<1x16x1xf32> to vector<16x1xf32>
    %373 = vector.shape_cast %370 : vector<16x1xf32> to vector<1x16x1xf32>
    tpu.vector_store %arg14[%c1_334, %c0_335, %c16_336], %373 {strides = array<i32>} : memref<8x16x25xf32, #tpu.memory_space<vmem>>, vector<1x16x1xf32>,
    %374 = vector.extract_strided_slice %305 {offsets = [0, 392], sizes = [16, 1], strides = [1, 1]} : vector<16x529xf32> to vector<16x1xf32>
    %c1_337 = arith.constant 1 : index
    %c0_338 = arith.constant 0 : index
    %c17_339 = arith.constant 17 : index
    %375 = vector.load %arg14[%c1_337, %c0_338, %c17_339] : memref<8x16x25xf32, #tpu.memory_space<vmem>>, vector<1x16x1xf32>
    %376 = vector.shape_cast %375 : vector<1x16x1xf32> to vector<16x1xf32>
    %377 = vector.shape_cast %374 : vector<16x1xf32> to vector<1x16x1xf32>
    tpu.vector_store %arg14[%c1_337, %c0_338, %c17_339], %377 {strides = array<i32>} : memref<8x16x25xf32, #tpu.memory_space<vmem>>, vector<1x16x1xf32>,
    %378 = vector.extract_strided_slice %305 {offsets = [0, 396], sizes = [16, 1], strides = [1, 1]} : vector<16x529xf32> to vector<16x1xf32>
    %c1_340 = arith.constant 1 : index
    %c0_341 = arith.constant 0 : index
    %c18_342 = arith.constant 18 : index
    %379 = vector.load %arg14[%c1_340, %c0_341, %c18_342] : memref<8x16x25xf32, #tpu.memory_space<vmem>>, vector<1x16x1xf32>
    %380 = vector.shape_cast %379 : vector<1x16x1xf32> to vector<16x1xf32>
    %381 = vector.shape_cast %378 : vector<16x1xf32> to vector<1x16x1xf32>
    tpu.vector_store %arg14[%c1_340, %c0_341, %c18_342], %381 {strides = array<i32>} : memref<8x16x25xf32, #tpu.memory_space<vmem>>, vector<1x16x1xf32>,
    %382 = vector.extract_strided_slice %305 {offsets = [0, 400], sizes = [16, 1], strides = [1, 1]} : vector<16x529xf32> to vector<16x1xf32>
    %c1_343 = arith.constant 1 : index
    %c0_344 = arith.constant 0 : index
    %c19_345 = arith.constant 19 : index
    %383 = vector.load %arg14[%c1_343, %c0_344, %c19_345] : memref<8x16x25xf32, #tpu.memory_space<vmem>>, vector<1x16x1xf32>
    %384 = vector.shape_cast %383 : vector<1x16x1xf32> to vector<16x1xf32>
    %385 = vector.shape_cast %382 : vector<16x1xf32> to vector<1x16x1xf32>
    tpu.vector_store %arg14[%c1_343, %c0_344, %c19_345], %385 {strides = array<i32>} : memref<8x16x25xf32, #tpu.memory_space<vmem>>, vector<1x16x1xf32>,
    %386 = vector.extract_strided_slice %305 {offsets = [0, 512], sizes = [16, 1], strides = [1, 1]} : vector<16x529xf32> to vector<16x1xf32>
    %c1_346 = arith.constant 1 : index
    %c0_347 = arith.constant 0 : index
    %c20_348 = arith.constant 20 : index
    %387 = vector.load %arg14[%c1_346, %c0_347, %c20_348] : memref<8x16x25xf32, #tpu.memory_space<vmem>>, vector<1x16x1xf32>
    %388 = vector.shape_cast %387 : vector<1x16x1xf32> to vector<16x1xf32>
    %389 = vector.shape_cast %386 : vector<16x1xf32> to vector<1x16x1xf32>
    tpu.vector_store %arg14[%c1_346, %c0_347, %c20_348], %389 {strides = array<i32>} : memref<8x16x25xf32, #tpu.memory_space<vmem>>, vector<1x16x1xf32>,
    %390 = vector.extract_strided_slice %305 {offsets = [0, 516], sizes = [16, 1], strides = [1, 1]} : vector<16x529xf32> to vector<16x1xf32>
    %c1_349 = arith.constant 1 : index
    %c0_350 = arith.constant 0 : index
    %c21_351 = arith.constant 21 : index
    %391 = vector.load %arg14[%c1_349, %c0_350, %c21_351] : memref<8x16x25xf32, #tpu.memory_space<vmem>>, vector<1x16x1xf32>
    %392 = vector.shape_cast %391 : vector<1x16x1xf32> to vector<16x1xf32>
    %393 = vector.shape_cast %390 : vector<16x1xf32> to vector<1x16x1xf32>
    tpu.vector_store %arg14[%c1_349, %c0_350, %c21_351], %393 {strides = array<i32>} : memref<8x16x25xf32, #tpu.memory_space<vmem>>, vector<1x16x1xf32>,
    %394 = vector.extract_strided_slice %305 {offsets = [0, 520], sizes = [16, 1], strides = [1, 1]} : vector<16x529xf32> to vector<16x1xf32>
    %c1_352 = arith.constant 1 : index
    %c0_353 = arith.constant 0 : index
    %c22_354 = arith.constant 22 : index
    %395 = vector.load %arg14[%c1_352, %c0_353, %c22_354] : memref<8x16x25xf32, #tpu.memory_space<vmem>>, vector<1x16x1xf32>
    %396 = vector.shape_cast %395 : vector<1x16x1xf32> to vector<16x1xf32>
    %397 = vector.shape_cast %394 : vector<16x1xf32> to vector<1x16x1xf32>
    tpu.vector_store %arg14[%c1_352, %c0_353, %c22_354], %397 {strides = array<i32>} : memref<8x16x25xf32, #tpu.memory_space<vmem>>, vector<1x16x1xf32>,
    %398 = vector.extract_strided_slice %305 {offsets = [0, 524], sizes = [16, 1], strides = [1, 1]} : vector<16x529xf32> to vector<16x1xf32>
    %c1_355 = arith.constant 1 : index
    %c0_356 = arith.constant 0 : index
    %c23_357 = arith.constant 23 : index
    %399 = vector.load %arg14[%c1_355, %c0_356, %c23_357] : memref<8x16x25xf32, #tpu.memory_space<vmem>>, vector<1x16x1xf32>
    %400 = vector.shape_cast %399 : vector<1x16x1xf32> to vector<16x1xf32>
    %401 = vector.shape_cast %398 : vector<16x1xf32> to vector<1x16x1xf32>
    tpu.vector_store %arg14[%c1_355, %c0_356, %c23_357], %401 {strides = array<i32>} : memref<8x16x25xf32, #tpu.memory_space<vmem>>, vector<1x16x1xf32>,
    %402 = vector.extract_strided_slice %305 {offsets = [0, 528], sizes = [16, 1], strides = [1, 1]} : vector<16x529xf32> to vector<16x1xf32>
    %c1_358 = arith.constant 1 : index
    %c0_359 = arith.constant 0 : index
    %c24_360 = arith.constant 24 : index
    %403 = vector.load %arg14[%c1_358, %c0_359, %c24_360] : memref<8x16x25xf32, #tpu.memory_space<vmem>>, vector<1x16x1xf32>
    %404 = vector.shape_cast %403 : vector<1x16x1xf32> to vector<16x1xf32>
    %405 = vector.shape_cast %402 : vector<16x1xf32> to vector<1x16x1xf32>
    tpu.vector_store %arg14[%c1_358, %c0_359, %c24_360], %405 {strides = array<i32>} : memref<8x16x25xf32, #tpu.memory_space<vmem>>, vector<1x16x1xf32>,
    %cst_361 = arith.constant 0.000000e+00 : f32
    %406 = vector.broadcast %cst_361 : f32 to vector<8x120xf32>
    %c0_362 = arith.constant 0 : index
    %c0_363 = arith.constant 0 : index
    %c0_364 = arith.constant 0 : index
    %407 = vector.load %arg14[%c0_362, %c0_363, %c0_364] : memref<8x16x25xf32, #tpu.memory_space<vmem>>, vector<8x1x25xf32>
    %408 = vector.shape_cast %407 : vector<8x1x25xf32> to vector<8x25xf32>
    %c0_365 = arith.constant 0 : index
    %c0_366 = arith.constant 0 : index
    %c0_367 = arith.constant 0 : index
    %409 = vector.load %arg5[%c0_365, %c0_366, %c0_367] : memref<16x25x120xf32, #tpu.memory_space<vmem>>, vector<1x25x120xf32>
    %410 = vector.shape_cast %409 : vector<1x25x120xf32> to vector<25x120xf32>
    %cst_368 = arith.constant dense<0.000000e+00> : vector<8x120xf32>
    %411 = tpu.matmul %408, %410, %cst_368 {dimension_numbers = #tpu.dot_dimension_numbers<[1], [0], [0], [1], [0, 0, 1, 1], [], []>} : vector<8x25xf32>, vector<25x120xf32>, vector<8x120xf32> -> vector<8x120xf32>
    %412 = arith.addf %406, %411 : vector<8x120xf32>
    %c0_369 = arith.constant 0 : index
    %c1_370 = arith.constant 1 : index
    %c0_371 = arith.constant 0 : index
    %413 = vector.load %arg14[%c0_369, %c1_370, %c0_371] : memref<8x16x25xf32, #tpu.memory_space<vmem>>, vector<8x1x25xf32>
    %414 = vector.shape_cast %413 : vector<8x1x25xf32> to vector<8x25xf32>
    %c1_372 = arith.constant 1 : index
    %c0_373 = arith.constant 0 : index
    %c0_374 = arith.constant 0 : index
    %415 = vector.load %arg5[%c1_372, %c0_373, %c0_374] : memref<16x25x120xf32, #tpu.memory_space<vmem>>, vector<1x25x120xf32>
    %416 = vector.shape_cast %415 : vector<1x25x120xf32> to vector<25x120xf32>
    %cst_375 = arith.constant dense<0.000000e+00> : vector<8x120xf32>
    %417 = tpu.matmul %414, %416, %cst_375 {dimension_numbers = #tpu.dot_dimension_numbers<[1], [0], [0], [1], [0, 0, 1, 1], [], []>} : vector<8x25xf32>, vector<25x120xf32>, vector<8x120xf32> -> vector<8x120xf32>
    %418 = arith.addf %412, %417 : vector<8x120xf32>
    %c0_376 = arith.constant 0 : index
    %c2_377 = arith.constant 2 : index
    %c0_378 = arith.constant 0 : index
    %419 = vector.load %arg14[%c0_376, %c2_377, %c0_378] : memref<8x16x25xf32, #tpu.memory_space<vmem>>, vector<8x1x25xf32>
    %420 = vector.shape_cast %419 : vector<8x1x25xf32> to vector<8x25xf32>
    %c2_379 = arith.constant 2 : index
    %c0_380 = arith.constant 0 : index
    %c0_381 = arith.constant 0 : index
    %421 = vector.load %arg5[%c2_379, %c0_380, %c0_381] : memref<16x25x120xf32, #tpu.memory_space<vmem>>, vector<1x25x120xf32>
    %422 = vector.shape_cast %421 : vector<1x25x120xf32> to vector<25x120xf32>
    %cst_382 = arith.constant dense<0.000000e+00> : vector<8x120xf32>
    %423 = tpu.matmul %420, %422, %cst_382 {dimension_numbers = #tpu.dot_dimension_numbers<[1], [0], [0], [1], [0, 0, 1, 1], [], []>} : vector<8x25xf32>, vector<25x120xf32>, vector<8x120xf32> -> vector<8x120xf32>
    %424 = arith.addf %418, %423 : vector<8x120xf32>
    %c0_383 = arith.constant 0 : index
    %c3_384 = arith.constant 3 : index
    %c0_385 = arith.constant 0 : index
    %425 = vector.load %arg14[%c0_383, %c3_384, %c0_385] : memref<8x16x25xf32, #tpu.memory_space<vmem>>, vector<8x1x25xf32>
    %426 = vector.shape_cast %425 : vector<8x1x25xf32> to vector<8x25xf32>
    %c3_386 = arith.constant 3 : index
    %c0_387 = arith.constant 0 : index
    %c0_388 = arith.constant 0 : index
    %427 = vector.load %arg5[%c3_386, %c0_387, %c0_388] : memref<16x25x120xf32, #tpu.memory_space<vmem>>, vector<1x25x120xf32>
    %428 = vector.shape_cast %427 : vector<1x25x120xf32> to vector<25x120xf32>
    %cst_389 = arith.constant dense<0.000000e+00> : vector<8x120xf32>
    %429 = tpu.matmul %426, %428, %cst_389 {dimension_numbers = #tpu.dot_dimension_numbers<[1], [0], [0], [1], [0, 0, 1, 1], [], []>} : vector<8x25xf32>, vector<25x120xf32>, vector<8x120xf32> -> vector<8x120xf32>
    %430 = arith.addf %424, %429 : vector<8x120xf32>
    %c0_390 = arith.constant 0 : index
    %c4_391 = arith.constant 4 : index
    %c0_392 = arith.constant 0 : index
    %431 = vector.load %arg14[%c0_390, %c4_391, %c0_392] : memref<8x16x25xf32, #tpu.memory_space<vmem>>, vector<8x1x25xf32>
    %432 = vector.shape_cast %431 : vector<8x1x25xf32> to vector<8x25xf32>
    %c4_393 = arith.constant 4 : index
    %c0_394 = arith.constant 0 : index
    %c0_395 = arith.constant 0 : index
    %433 = vector.load %arg5[%c4_393, %c0_394, %c0_395] : memref<16x25x120xf32, #tpu.memory_space<vmem>>, vector<1x25x120xf32>
    %434 = vector.shape_cast %433 : vector<1x25x120xf32> to vector<25x120xf32>
    %cst_396 = arith.constant dense<0.000000e+00> : vector<8x120xf32>
    %435 = tpu.matmul %432, %434, %cst_396 {dimension_numbers = #tpu.dot_dimension_numbers<[1], [0], [0], [1], [0, 0, 1, 1], [], []>} : vector<8x25xf32>, vector<25x120xf32>, vector<8x120xf32> -> vector<8x120xf32>
    %436 = arith.addf %430, %435 : vector<8x120xf32>
    %c0_397 = arith.constant 0 : index
    %c5_398 = arith.constant 5 : index
    %c0_399 = arith.constant 0 : index
    %437 = vector.load %arg14[%c0_397, %c5_398, %c0_399] : memref<8x16x25xf32, #tpu.memory_space<vmem>>, vector<8x1x25xf32>
    %438 = vector.shape_cast %437 : vector<8x1x25xf32> to vector<8x25xf32>
    %c5_400 = arith.constant 5 : index
    %c0_401 = arith.constant 0 : index
    %c0_402 = arith.constant 0 : index
    %439 = vector.load %arg5[%c5_400, %c0_401, %c0_402] : memref<16x25x120xf32, #tpu.memory_space<vmem>>, vector<1x25x120xf32>
    %440 = vector.shape_cast %439 : vector<1x25x120xf32> to vector<25x120xf32>
    %cst_403 = arith.constant dense<0.000000e+00> : vector<8x120xf32>
    %441 = tpu.matmul %438, %440, %cst_403 {dimension_numbers = #tpu.dot_dimension_numbers<[1], [0], [0], [1], [0, 0, 1, 1], [], []>} : vector<8x25xf32>, vector<25x120xf32>, vector<8x120xf32> -> vector<8x120xf32>
    %442 = arith.addf %436, %441 : vector<8x120xf32>
    %c0_404 = arith.constant 0 : index
    %c6_405 = arith.constant 6 : index
    %c0_406 = arith.constant 0 : index
    %443 = vector.load %arg14[%c0_404, %c6_405, %c0_406] : memref<8x16x25xf32, #tpu.memory_space<vmem>>, vector<8x1x25xf32>
    %444 = vector.shape_cast %443 : vector<8x1x25xf32> to vector<8x25xf32>
    %c6_407 = arith.constant 6 : index
    %c0_408 = arith.constant 0 : index
    %c0_409 = arith.constant 0 : index
    %445 = vector.load %arg5[%c6_407, %c0_408, %c0_409] : memref<16x25x120xf32, #tpu.memory_space<vmem>>, vector<1x25x120xf32>
    %446 = vector.shape_cast %445 : vector<1x25x120xf32> to vector<25x120xf32>
    %cst_410 = arith.constant dense<0.000000e+00> : vector<8x120xf32>
    %447 = tpu.matmul %444, %446, %cst_410 {dimension_numbers = #tpu.dot_dimension_numbers<[1], [0], [0], [1], [0, 0, 1, 1], [], []>} : vector<8x25xf32>, vector<25x120xf32>, vector<8x120xf32> -> vector<8x120xf32>
    %448 = arith.addf %442, %447 : vector<8x120xf32>
    %c0_411 = arith.constant 0 : index
    %c7_412 = arith.constant 7 : index
    %c0_413 = arith.constant 0 : index
    %449 = vector.load %arg14[%c0_411, %c7_412, %c0_413] : memref<8x16x25xf32, #tpu.memory_space<vmem>>, vector<8x1x25xf32>
    %450 = vector.shape_cast %449 : vector<8x1x25xf32> to vector<8x25xf32>
    %c7_414 = arith.constant 7 : index
    %c0_415 = arith.constant 0 : index
    %c0_416 = arith.constant 0 : index
    %451 = vector.load %arg5[%c7_414, %c0_415, %c0_416] : memref<16x25x120xf32, #tpu.memory_space<vmem>>, vector<1x25x120xf32>
    %452 = vector.shape_cast %451 : vector<1x25x120xf32> to vector<25x120xf32>
    %cst_417 = arith.constant dense<0.000000e+00> : vector<8x120xf32>
    %453 = tpu.matmul %450, %452, %cst_417 {dimension_numbers = #tpu.dot_dimension_numbers<[1], [0], [0], [1], [0, 0, 1, 1], [], []>} : vector<8x25xf32>, vector<25x120xf32>, vector<8x120xf32> -> vector<8x120xf32>
    %454 = arith.addf %448, %453 : vector<8x120xf32>
    %c0_418 = arith.constant 0 : index
    %c8_419 = arith.constant 8 : index
    %c0_420 = arith.constant 0 : index
    %455 = vector.load %arg14[%c0_418, %c8_419, %c0_420] : memref<8x16x25xf32, #tpu.memory_space<vmem>>, vector<8x1x25xf32>
    %456 = vector.shape_cast %455 : vector<8x1x25xf32> to vector<8x25xf32>
    %c8_421 = arith.constant 8 : index
    %c0_422 = arith.constant 0 : index
    %c0_423 = arith.constant 0 : index
    %457 = vector.load %arg5[%c8_421, %c0_422, %c0_423] : memref<16x25x120xf32, #tpu.memory_space<vmem>>, vector<1x25x120xf32>
    %458 = vector.shape_cast %457 : vector<1x25x120xf32> to vector<25x120xf32>
    %cst_424 = arith.constant dense<0.000000e+00> : vector<8x120xf32>
    %459 = tpu.matmul %456, %458, %cst_424 {dimension_numbers = #tpu.dot_dimension_numbers<[1], [0], [0], [1], [0, 0, 1, 1], [], []>} : vector<8x25xf32>, vector<25x120xf32>, vector<8x120xf32> -> vector<8x120xf32>
    %460 = arith.addf %454, %459 : vector<8x120xf32>
    %c0_425 = arith.constant 0 : index
    %c9_426 = arith.constant 9 : index
    %c0_427 = arith.constant 0 : index
    %461 = vector.load %arg14[%c0_425, %c9_426, %c0_427] : memref<8x16x25xf32, #tpu.memory_space<vmem>>, vector<8x1x25xf32>
    %462 = vector.shape_cast %461 : vector<8x1x25xf32> to vector<8x25xf32>
    %c9_428 = arith.constant 9 : index
    %c0_429 = arith.constant 0 : index
    %c0_430 = arith.constant 0 : index
    %463 = vector.load %arg5[%c9_428, %c0_429, %c0_430] : memref<16x25x120xf32, #tpu.memory_space<vmem>>, vector<1x25x120xf32>
    %464 = vector.shape_cast %463 : vector<1x25x120xf32> to vector<25x120xf32>
    %cst_431 = arith.constant dense<0.000000e+00> : vector<8x120xf32>
    %465 = tpu.matmul %462, %464, %cst_431 {dimension_numbers = #tpu.dot_dimension_numbers<[1], [0], [0], [1], [0, 0, 1, 1], [], []>} : vector<8x25xf32>, vector<25x120xf32>, vector<8x120xf32> -> vector<8x120xf32>
    %466 = arith.addf %460, %465 : vector<8x120xf32>
    %c0_432 = arith.constant 0 : index
    %c10_433 = arith.constant 10 : index
    %c0_434 = arith.constant 0 : index
    %467 = vector.load %arg14[%c0_432, %c10_433, %c0_434] : memref<8x16x25xf32, #tpu.memory_space<vmem>>, vector<8x1x25xf32>
    %468 = vector.shape_cast %467 : vector<8x1x25xf32> to vector<8x25xf32>
    %c10_435 = arith.constant 10 : index
    %c0_436 = arith.constant 0 : index
    %c0_437 = arith.constant 0 : index
    %469 = vector.load %arg5[%c10_435, %c0_436, %c0_437] : memref<16x25x120xf32, #tpu.memory_space<vmem>>, vector<1x25x120xf32>
    %470 = vector.shape_cast %469 : vector<1x25x120xf32> to vector<25x120xf32>
    %cst_438 = arith.constant dense<0.000000e+00> : vector<8x120xf32>
    %471 = tpu.matmul %468, %470, %cst_438 {dimension_numbers = #tpu.dot_dimension_numbers<[1], [0], [0], [1], [0, 0, 1, 1], [], []>} : vector<8x25xf32>, vector<25x120xf32>, vector<8x120xf32> -> vector<8x120xf32>
    %472 = arith.addf %466, %471 : vector<8x120xf32>
    %c0_439 = arith.constant 0 : index
    %c11_440 = arith.constant 11 : index
    %c0_441 = arith.constant 0 : index
    %473 = vector.load %arg14[%c0_439, %c11_440, %c0_441] : memref<8x16x25xf32, #tpu.memory_space<vmem>>, vector<8x1x25xf32>
    %474 = vector.shape_cast %473 : vector<8x1x25xf32> to vector<8x25xf32>
    %c11_442 = arith.constant 11 : index
    %c0_443 = arith.constant 0 : index
    %c0_444 = arith.constant 0 : index
    %475 = vector.load %arg5[%c11_442, %c0_443, %c0_444] : memref<16x25x120xf32, #tpu.memory_space<vmem>>, vector<1x25x120xf32>
    %476 = vector.shape_cast %475 : vector<1x25x120xf32> to vector<25x120xf32>
    %cst_445 = arith.constant dense<0.000000e+00> : vector<8x120xf32>
    %477 = tpu.matmul %474, %476, %cst_445 {dimension_numbers = #tpu.dot_dimension_numbers<[1], [0], [0], [1], [0, 0, 1, 1], [], []>} : vector<8x25xf32>, vector<25x120xf32>, vector<8x120xf32> -> vector<8x120xf32>
    %478 = arith.addf %472, %477 : vector<8x120xf32>
    %c0_446 = arith.constant 0 : index
    %c12_447 = arith.constant 12 : index
    %c0_448 = arith.constant 0 : index
    %479 = vector.load %arg14[%c0_446, %c12_447, %c0_448] : memref<8x16x25xf32, #tpu.memory_space<vmem>>, vector<8x1x25xf32>
    %480 = vector.shape_cast %479 : vector<8x1x25xf32> to vector<8x25xf32>
    %c12_449 = arith.constant 12 : index
    %c0_450 = arith.constant 0 : index
    %c0_451 = arith.constant 0 : index
    %481 = vector.load %arg5[%c12_449, %c0_450, %c0_451] : memref<16x25x120xf32, #tpu.memory_space<vmem>>, vector<1x25x120xf32>
    %482 = vector.shape_cast %481 : vector<1x25x120xf32> to vector<25x120xf32>
    %cst_452 = arith.constant dense<0.000000e+00> : vector<8x120xf32>
    %483 = tpu.matmul %480, %482, %cst_452 {dimension_numbers = #tpu.dot_dimension_numbers<[1], [0], [0], [1], [0, 0, 1, 1], [], []>} : vector<8x25xf32>, vector<25x120xf32>, vector<8x120xf32> -> vector<8x120xf32>
    %484 = arith.addf %478, %483 : vector<8x120xf32>
    %c0_453 = arith.constant 0 : index
    %c13_454 = arith.constant 13 : index
    %c0_455 = arith.constant 0 : index
    %485 = vector.load %arg14[%c0_453, %c13_454, %c0_455] : memref<8x16x25xf32, #tpu.memory_space<vmem>>, vector<8x1x25xf32>
    %486 = vector.shape_cast %485 : vector<8x1x25xf32> to vector<8x25xf32>
    %c13_456 = arith.constant 13 : index
    %c0_457 = arith.constant 0 : index
    %c0_458 = arith.constant 0 : index
    %487 = vector.load %arg5[%c13_456, %c0_457, %c0_458] : memref<16x25x120xf32, #tpu.memory_space<vmem>>, vector<1x25x120xf32>
    %488 = vector.shape_cast %487 : vector<1x25x120xf32> to vector<25x120xf32>
    %cst_459 = arith.constant dense<0.000000e+00> : vector<8x120xf32>
    %489 = tpu.matmul %486, %488, %cst_459 {dimension_numbers = #tpu.dot_dimension_numbers<[1], [0], [0], [1], [0, 0, 1, 1], [], []>} : vector<8x25xf32>, vector<25x120xf32>, vector<8x120xf32> -> vector<8x120xf32>
    %490 = arith.addf %484, %489 : vector<8x120xf32>
    %c0_460 = arith.constant 0 : index
    %c14_461 = arith.constant 14 : index
    %c0_462 = arith.constant 0 : index
    %491 = vector.load %arg14[%c0_460, %c14_461, %c0_462] : memref<8x16x25xf32, #tpu.memory_space<vmem>>, vector<8x1x25xf32>
    %492 = vector.shape_cast %491 : vector<8x1x25xf32> to vector<8x25xf32>
    %c14_463 = arith.constant 14 : index
    %c0_464 = arith.constant 0 : index
    %c0_465 = arith.constant 0 : index
    %493 = vector.load %arg5[%c14_463, %c0_464, %c0_465] : memref<16x25x120xf32, #tpu.memory_space<vmem>>, vector<1x25x120xf32>
    %494 = vector.shape_cast %493 : vector<1x25x120xf32> to vector<25x120xf32>
    %cst_466 = arith.constant dense<0.000000e+00> : vector<8x120xf32>
    %495 = tpu.matmul %492, %494, %cst_466 {dimension_numbers = #tpu.dot_dimension_numbers<[1], [0], [0], [1], [0, 0, 1, 1], [], []>} : vector<8x25xf32>, vector<25x120xf32>, vector<8x120xf32> -> vector<8x120xf32>
    %496 = arith.addf %490, %495 : vector<8x120xf32>
    %c0_467 = arith.constant 0 : index
    %c15_468 = arith.constant 15 : index
    %c0_469 = arith.constant 0 : index
    %497 = vector.load %arg14[%c0_467, %c15_468, %c0_469] : memref<8x16x25xf32, #tpu.memory_space<vmem>>, vector<8x1x25xf32>
    %498 = vector.shape_cast %497 : vector<8x1x25xf32> to vector<8x25xf32>
    %c15_470 = arith.constant 15 : index
    %c0_471 = arith.constant 0 : index
    %c0_472 = arith.constant 0 : index
    %499 = vector.load %arg5[%c15_470, %c0_471, %c0_472] : memref<16x25x120xf32, #tpu.memory_space<vmem>>, vector<1x25x120xf32>
    %500 = vector.shape_cast %499 : vector<1x25x120xf32> to vector<25x120xf32>
    %cst_473 = arith.constant dense<0.000000e+00> : vector<8x120xf32>
    %501 = tpu.matmul %498, %500, %cst_473 {dimension_numbers = #tpu.dot_dimension_numbers<[1], [0], [0], [1], [0, 0, 1, 1], [], []>} : vector<8x25xf32>, vector<25x120xf32>, vector<8x120xf32> -> vector<8x120xf32>
    %502 = arith.addf %496, %501 : vector<8x120xf32>
    %c0_474 = arith.constant 0 : index
    %c0_475 = arith.constant 0 : index
    %503 = vector.load %arg6[%c0_474, %c0_475] : memref<1x120xf32, #tpu.memory_space<vmem>>, vector<1x120xf32>
    %504 = vector.broadcast %503 : vector<1x120xf32> to vector<8x120xf32>
    %505 = arith.addf %502, %504 : vector<8x120xf32>
    %cst_476 = arith.constant 0.000000e+00 : f32
    %506 = vector.broadcast %cst_476 : f32 to vector<8x120xf32>
    %507 = arith.maximumf %505, %506 : vector<8x120xf32>
    %c0_477 = arith.constant 0 : index
    %c0_478 = arith.constant 0 : index
    %508 = vector.load %arg7[%c0_477, %c0_478] : memref<120x84xf32, #tpu.memory_space<vmem>>, vector<120x84xf32>
    %cst_479 = arith.constant dense<0.000000e+00> : vector<8x84xf32>
    %509 = tpu.matmul %507, %508, %cst_479 {dimension_numbers = #tpu.dot_dimension_numbers<[1], [0], [0], [1], [0, 0, 1, 1], [], []>} : vector<8x120xf32>, vector<120x84xf32>, vector<8x84xf32> -> vector<8x84xf32>
    %c0_480 = arith.constant 0 : index
    %c0_481 = arith.constant 0 : index
    %510 = vector.load %arg8[%c0_480, %c0_481] : memref<1x84xf32, #tpu.memory_space<vmem>>, vector<1x84xf32>
    %511 = vector.broadcast %510 : vector<1x84xf32> to vector<8x84xf32>
    %512 = arith.addf %509, %511 : vector<8x84xf32>
    %cst_482 = arith.constant 0.000000e+00 : f32
    %513 = vector.broadcast %cst_482 : f32 to vector<8x84xf32>
    %514 = arith.maximumf %512, %513 : vector<8x84xf32>
    %c0_483 = arith.constant 0 : index
    %c0_484 = arith.constant 0 : index
    %515 = vector.load %arg9[%c0_483, %c0_484] : memref<84x10xf32, #tpu.memory_space<vmem>>, vector<84x10xf32>
    %cst_485 = arith.constant dense<0.000000e+00> : vector<8x10xf32>
    %516 = tpu.matmul %514, %515, %cst_485 {dimension_numbers = #tpu.dot_dimension_numbers<[1], [0], [0], [1], [0, 0, 1, 1], [], []>} : vector<8x84xf32>, vector<84x10xf32>, vector<8x10xf32> -> vector<8x10xf32>
    %c0_486 = arith.constant 0 : index
    %c0_487 = arith.constant 0 : index
    %517 = vector.load %arg10[%c0_486, %c0_487] : memref<1x10xf32, #tpu.memory_space<vmem>>, vector<1x10xf32>
    %518 = vector.broadcast %517 : vector<1x10xf32> to vector<8x10xf32>
    %519 = arith.addf %516, %518 : vector<8x10xf32>
    %520 = vector.extract_strided_slice %519 {offsets = [0, 0], sizes = [2, 10], strides = [1, 1]} : vector<8x10xf32> to vector<2x10xf32>
    %c0_488 = arith.constant 0 : index
    %c0_489 = arith.constant 0 : index
    %521 = vector.load %arg11[%c0_488, %c0_489] : memref<2x10xf32, #tpu.memory_space<vmem>>, vector<2x10xf32>
    tpu.vector_store %arg11[%c0_488, %c0_489], %520 {strides = array<i32>} : memref<2x10xf32, #tpu.memory_space<vmem>>, vector<2x10xf32>,
    return
  }
}

</mosaic_0001>

<llo_original>
// kernel: net_forward.1
$region0: #{net_forward.1}
  #allocation0 [shape = 'u32[]', space=smem, size = 0x4, offset = 0x4, fixed_abs, tag = 'smem constant byte address 0x4 - core index']
  #allocation1 [shape = 'u32[144,128]{1,0:T(1,128)}', space=vmem, size = 0x12000, scoped, tag = 'internal scratch']
  #allocation2 [shape = 'f32[2,75,892]{2,1,0:T(8,128)}', space=vmem, size = 0x8c000, scoped, tag = 'scratch operand']
  #allocation3 [shape = 'f32[150,595]{1,0:T(8,128)}', space=vmem, size = 0x5f000, scoped, tag = 'scratch operand']
  #allocation4 [shape = 'f32[8,16,25]{2,1,0:T(8,128)}', space=vmem, size = 0x10000, scoped, tag = 'scratch operand']
  %s0 = inlined_call_operand.vmem [shape: f32[2,3,1024], index: 0, kind: input, shape index: {}]
  %s1 = inlined_call_operand.vmem [shape: f32[6,75], index: 1, kind: input, shape index: {}]
  %s2 = inlined_call_operand.vmem [shape: f32[6,1], index: 2, kind: input, shape index: {}]
  %s3 = inlined_call_operand.vmem [shape: f32[16,150], index: 3, kind: input, shape index: {}]
  %s4 = inlined_call_operand.vmem [shape: f32[16,1], index: 4, kind: input, shape index: {}]
  %s5 = inlined_call_operand.vmem [shape: f32[16,25,120], index: 5, kind: input, shape index: {}]
  %s6 = inlined_call_operand.vmem [shape: f32[1,120], index: 6, kind: input, shape index: {}]
  %s7 = inlined_call_operand.vmem [shape: f32[120,84], index: 7, kind: input, shape index: {}]
  %s8 = inlined_call_operand.vmem [shape: f32[1,84], index: 8, kind: input, shape index: {}]
  %s9 = inlined_call_operand.vmem [shape: f32[84,10], index: 9, kind: input, shape index: {}]
  %s10 = inlined_call_operand.vmem [shape: f32[1,10], index: 10, kind: input, shape index: {}]
  %s11 = inlined_call_operand.hbm [shape: f32[2,10], index: 11, kind: output, shape index: {}]
  %s12 = sld [smem:[#allocation0]]
  $region54: #{net_forward.1} parent=0
    _
  %s14 = ssub.s32 1, %s12
  %s15 = scalar_select 0, %s14, %s12
  $region1: #{net_forward.1} parent=0
    #allocation5 [shape = 'u8[1024]{0}', space=vmem, size = 0x400, scoped, tag = 'output window, operand 0, single buffered']
    #allocation6 [shape = 's32[1]{0}', space=sflag, size = 0x4, scoped, tag = 'scoped memory for net_forward.1']
    %16 = vsyncpa [#allocation6], 0
    // Predicated region
    $region2: #{net_forward.1} parent=1 // pred_check
      _
    $region3: #{net_forward.1} parent=1 // pred_check_branch
      %18 = sbr.rel (0) target = $region5
    $region4: #{net_forward.1} parent=1 // pred_region
      _
    $region5: #{net_forward.1} parent=1 // pred_fallthru
      _
    // Predicated region
    $region6: #{net_forward.1} parent=1 // pred_check
      _
    $region7: #{net_forward.1} parent=1 // pred_check_branch
      %20 = sbr.rel (0) target = $region9
    $region8: #{net_forward.1} parent=1 // pred_region
      _
    $region9: #{net_forward.1} parent=1 // pred_fallthru
      _
    // Predicated region
    $region10: #{net_forward.1} parent=1 // pred_check
      _
    $region11: #{net_forward.1} parent=1 // pred_check_branch
      %22 = sbr.rel (0) target = $region13
    $region12: #{net_forward.1} parent=1 // pred_region
      _
    $region13: #{net_forward.1} parent=1 // pred_fallthru
      _
    // Predicated region
    $region14: #{net_forward.1} parent=1 // pred_check
      _
    $region15: #{net_forward.1} parent=1 // pred_check_branch
      %24 = sbr.rel (0) target = $region17
    $region16: #{net_forward.1} parent=1 // pred_region
      _
    $region17: #{net_forward.1} parent=1 // pred_fallthru
      _
    // Predicated region
    $region18: #{net_forward.1} parent=1 // pred_check
      _
    $region19: #{net_forward.1} parent=1 // pred_check_branch
      %26 = sbr.rel (0) target = $region21
    $region20: #{net_forward.1} parent=1 // pred_region
      _
    $region21: #{net_forward.1} parent=1 // pred_fallthru
      _
    // Predicated region
    $region22: #{net_forward.1} parent=1 // pred_check
      _
    $region23: #{net_forward.1} parent=1 // pred_check_branch
      %28 = sbr.rel (0) target = $region25
    $region24: #{net_forward.1} parent=1 // pred_region
      _
    $region25: #{net_forward.1} parent=1 // pred_fallthru
      _
    // Predicated region
    $region26: #{net_forward.1} parent=1 // pred_check
      _
    $region27: #{net_forward.1} parent=1 // pred_check_branch
      %30 = sbr.rel (0) target = $region29
    $region28: #{net_forward.1} parent=1 // pred_region
      _
    $region29: #{net_forward.1} parent=1 // pred_fallthru
      _
    // Predicated region
    $region30: #{net_forward.1} parent=1 // pred_check
      _
    $region31: #{net_forward.1} parent=1 // pred_check_branch
      %32 = sbr.rel (0) target = $region33
    $region32: #{net_forward.1} parent=1 // pred_region
      _
    $region33: #{net_forward.1} parent=1 // pred_fallthru
      _
    // Predicated region
    $region34: #{net_forward.1} parent=1 // pred_check
      _
    $region35: #{net_forward.1} parent=1 // pred_check_branch
      %34 = sbr.rel (0) target = $region37
    $region36: #{net_forward.1} parent=1 // pred_region
      _
    $region37: #{net_forward.1} parent=1 // pred_fallthru
      _
    // Predicated region
    $region38: #{net_forward.1} parent=1 // pred_check
      _
    $region39: #{net_forward.1} parent=1 // pred_check_branch
      %36 = sbr.rel (0) target = $region41
    $region40: #{net_forward.1} parent=1 // pred_region
      _
    $region41: #{net_forward.1} parent=1 // pred_fallthru
      _
    // Predicated region
    $region42: #{net_forward.1} parent=1 // pred_check
      _
    $region43: #{net_forward.1} parent=1 // pred_check_branch
      %38 = sbr.rel (0) target = $region45
    $region44: #{net_forward.1} parent=1 // pred_region
      _
    $region45: #{net_forward.1} parent=1 // pred_fallthru
      _
    %v39 = vld [vmem:[%s0] sm:$0x77]
    %v40 = vld [vmem:[%s0 + $0x8] sm:$0x77]
    %v41 = vld [vmem:[%s0 + $0x10] sm:$0x77]
    %v42 = vld [vmem:[%s0 + $0x18] sm:$0x7]
    %v43 = vld [vmem:[%s0 + $0x20] sm:$0x77]
    %v44 = vld [vmem:[%s0 + $0x28] sm:$0x77]
    %v45 = vld [vmem:[%s0 + $0x30] sm:$0x77]
    %v46 = vld [vmem:[%s0 + $0x38] sm:$0x7]
    %v53 = vcombine.high %v39, %v39
    %v54 = vcombine.high %v40, %v40
    %v55 = vcombine.high %v41, %v41
    %v56 = vcombine.high %v43, %v43
    %v57 = vcombine.high %v44, %v44
    %v58 = vcombine.high %v45, %v45
    %65 = vst [vmem:[#allocation2] sm:$0x7] %v39
    %66 = vst [vmem:[#allocation2 + $0x8] sm:$0x7] %v53
    %67 = vst [vmem:[#allocation2 + $0x10] sm:$0x7] %v40
    %68 = vst [vmem:[#allocation2 + $0x18] sm:$0x7] %v54
    %69 = vst [vmem:[#allocation2 + $0x20] sm:$0x7] %v41
    %70 = vst [vmem:[#allocation2 + $0x28] sm:$0x7] %v55
    %vm71 = vcmask 1009664
    %72 = vst.msk [vmem:[#allocation2 + $0x30] sm:$0x7] %vm71, %v42
    %73 = vst [vmem:[#allocation2 + $0x230] sm:$0x7] %v43
    %74 = vst [vmem:[#allocation2 + $0x238] sm:$0x7] %v56
    %75 = vst [vmem:[#allocation2 + $0x240] sm:$0x7] %v44
    %76 = vst [vmem:[#allocation2 + $0x248] sm:$0x7] %v57
    %77 = vst [vmem:[#allocation2 + $0x250] sm:$0x7] %v45
    %78 = vst [vmem:[#allocation2 + $0x258] sm:$0x7] %v58
    %79 = vst.msk [vmem:[#allocation2 + $0x260] sm:$0x7] %vm71, %v46
    %v80 = vld [vmem:[%s0] sm:$0x77]
    %v81 = vld [vmem:[%s0 + $0x8] sm:$0x77]
    %v82 = vld [vmem:[%s0 + $0x10] sm:$0x77]
    %v83 = vld [vmem:[%s0 + $0x18] sm:$0x7]
    %v84 = vld [vmem:[%s0 + $0x20] sm:$0x77]
    %v85 = vld [vmem:[%s0 + $0x28] sm:$0x77]
    %v86 = vld [vmem:[%s0 + $0x30] sm:$0x77]
    %v87 = vld [vmem:[%s0 + $0x38] sm:$0x7]
    %v96 = vcombine.high %v80, %v80
    %v97 = vcombine.high %v81, %v81
    %v98 = vcombine.high %v82, %v82
    %v99 = vcombine.high %v84, %v84
    %v100 = vcombine.high %v85, %v85
    %v101 = vcombine.high %v86, %v86
    %v102 = vrot.slane %v80, 5
    %v103 = vrot.slane %v96, 5
    %v104 = vrot.slane %v81, 5
    %v105 = vrot.slane %v97, 5
    %v106 = vrot.slane %v82, 5
    %v107 = vrot.slane %v98, 5
    %v108 = vrot.slane %v83, 5
    %v109 = vrot.slane %v84, 5
    %v110 = vrot.slane %v99, 5
    %v111 = vrot.slane %v85, 5
    %v112 = vrot.slane %v100, 5
    %v113 = vrot.slane %v86, 5
    %v114 = vrot.slane %v101, 5
    %v115 = vrot.slane %v87, 5
    %116 = vrot.lane.b32.xlu0 %v102, 127
    %v117 = vpop.permute.xlu0 %116
    %118 = vrot.lane.b32.xlu0 %v103, 127
    %v119 = vpop.permute.xlu0 %118
    %120 = vrot.lane.b32.xlu0 %v104, 127
    %v121 = vpop.permute.xlu0 %120
    %122 = vrot.lane.b32.xlu0 %v105, 127
    %v123 = vpop.permute.xlu0 %122
    %124 = vrot.lane.b32.xlu0 %v106, 127
    %v125 = vpop.permute.xlu0 %124
    %126 = vrot.lane.b32.xlu0 %v107, 127
    %v127 = vpop.permute.xlu0 %126
    %128 = vrot.lane.b32.xlu0 %v108, 127
    %v129 = vpop.permute.xlu0 %128
    %130 = vrot.lane.b32.xlu0 %v109, 127
    %v131 = vpop.permute.xlu0 %130
    %132 = vrot.lane.b32.xlu0 %v110, 127
    %v133 = vpop.permute.xlu0 %132
    %134 = vrot.lane.b32.xlu0 %v111, 127
    %v135 = vpop.permute.xlu0 %134
    %136 = vrot.lane.b32.xlu0 %v112, 127
    %v137 = vpop.permute.xlu0 %136
    %138 = vrot.lane.b32.xlu0 %v113, 127
    %v139 = vpop.permute.xlu0 %138
    %140 = vrot.lane.b32.xlu0 %v114, 127
    %v141 = vpop.permute.xlu0 %140
    %142 = vrot.lane.b32.xlu0 %v115, 127
    %v143 = vpop.permute.xlu0 %142
    %vm144 = vcmask 1039360
    %v145 = vsel %vm144, %v117, %v119
    %v146 = vsel %vm144, %v119, %v121
    %v147 = vsel %vm144, %v121, %v123
    %v148 = vsel %vm144, %v123, %v125
    %v149 = vsel %vm144, %v125, %v127
    %v150 = vsel %vm144, %v127, %v129
    %v151 = vsel %vm144, %v131, %v133
    %v152 = vsel %vm144, %v133, %v135
    %v153 = vsel %vm144, %v135, %v137
    %v154 = vsel %vm144, %v137, %v139
    %v155 = vsel %vm144, %v139, %v141
    %v156 = vsel %vm144, %v141, %v143
    %171 = vst [vmem:[#allocation2] sm:$0x38] %v145
    %172 = vst [vmem:[#allocation2 + $0x8] sm:$0x38] %v146
    %173 = vst [vmem:[#allocation2 + $0x10] sm:$0x38] %v147
    %174 = vst [vmem:[#allocation2 + $0x18] sm:$0x38] %v148
    %175 = vst [vmem:[#allocation2 + $0x20] sm:$0x38] %v149
    %176 = vst [vmem:[#allocation2 + $0x28] sm:$0x38] %v150
    %vm177 = vcmask 1012739
    %178 = vst.msk [vmem:[#allocation2 + $0x30] sm:$0x38] %vm177, %v129
    %179 = vst [vmem:[#allocation2 + $0x230] sm:$0x38] %v151
    %180 = vst [vmem:[#allocation2 + $0x238] sm:$0x38] %v152
    %181 = vst [vmem:[#allocation2 + $0x240] sm:$0x38] %v153
    %182 = vst [vmem:[#allocation2 + $0x248] sm:$0x38] %v154
    %183 = vst [vmem:[#allocation2 + $0x250] sm:$0x38] %v155
    %184 = vst [vmem:[#allocation2 + $0x258] sm:$0x38] %v156
    %185 = vst.msk [vmem:[#allocation2 + $0x260] sm:$0x38] %vm177, %v143
    %v186 = vld [vmem:[%s0] sm:$0x77]
    %v187 = vld [vmem:[%s0 + $0x8] sm:$0x77]
    %v188 = vld [vmem:[%s0 + $0x10] sm:$0x77]
    %v189 = vld [vmem:[%s0 + $0x18] sm:$0x7]
    %v190 = vld [vmem:[%s0 + $0x20] sm:$0x77]
    %v191 = vld [vmem:[%s0 + $0x28] sm:$0x77]
    %v192 = vld [vmem:[%s0 + $0x30] sm:$0x77]
    %v193 = vld [vmem:[%s0 + $0x38] sm:$0x7]
    %v202 = vcombine.high %v186, %v186
    %v203 = vcombine.high %v187, %v187
    %v204 = vcombine.high %v188, %v188
    %v205 = vcombine.high %v190, %v190
    %v206 = vcombine.high %v191, %v191
    %v207 = vcombine.high %v192, %v192
    %v208 = vrot.slane %v186, 2
    %v209 = vrot.slane %v202, 2
    %v210 = vrot.slane %v187, 2
    %v211 = vrot.slane %v203, 2
    %v212 = vrot.slane %v188, 2
    %v213 = vrot.slane %v204, 2
    %v214 = vrot.slane %v189, 2
    %v215 = vrot.slane %v190, 2
    %v216 = vrot.slane %v205, 2
    %v217 = vrot.slane %v191, 2
    %v218 = vrot.slane %v206, 2
    %v219 = vrot.slane %v192, 2
    %v220 = vrot.slane %v207, 2
    %v221 = vrot.slane %v193, 2
    %222 = vrot.lane.b32.xlu0 %v208, 126
    %v223 = vpop.permute.xlu0 %222
    %224 = vrot.lane.b32.xlu0 %v209, 126
    %v225 = vpop.permute.xlu0 %224
    %226 = vrot.lane.b32.xlu0 %v210, 126
    %v227 = vpop.permute.xlu0 %226
    %228 = vrot.lane.b32.xlu0 %v211, 126
    %v229 = vpop.permute.xlu0 %228
    %230 = vrot.lane.b32.xlu0 %v212, 126
    %v231 = vpop.permute.xlu0 %230
    %232 = vrot.lane.b32.xlu0 %v213, 126
    %v233 = vpop.permute.xlu0 %232
    %234 = vrot.lane.b32.xlu0 %v214, 126
    %v235 = vpop.permute.xlu0 %234
    %236 = vrot.lane.b32.xlu0 %v215, 126
    %v237 = vpop.permute.xlu0 %236
    %238 = vrot.lane.b32.xlu0 %v216, 126
    %v239 = vpop.permute.xlu0 %238
    %240 = vrot.lane.b32.xlu0 %v217, 126
    %v241 = vpop.permute.xlu0 %240
    %242 = vrot.lane.b32.xlu0 %v218, 126
    %v243 = vpop.permute.xlu0 %242
    %244 = vrot.lane.b32.xlu0 %v219, 126
    %v245 = vpop.permute.xlu0 %244
    %246 = vrot.lane.b32.xlu0 %v220, 126
    %v247 = vpop.permute.xlu0 %246
    %248 = vrot.lane.b32.xlu0 %v221, 126
    %v249 = vpop.permute.xlu0 %248
    %vm250 = vcmask 1031168
    %v251 = vsel %vm250, %v223, %v225
    %v252 = vsel %vm250, %v225, %v227
    %v253 = vsel %vm250, %v227, %v229
    %v254 = vsel %vm250, %v229, %v231
    %v255 = vsel %vm250, %v231, %v233
    %v256 = vsel %vm250, %v233, %v235
    %v257 = vsel %vm250, %v237, %v239
    %v258 = vsel %vm250, %v239, %v241
    %v259 = vsel %vm250, %v241, %v243
    %v260 = vsel %vm250, %v243, %v245
    %v261 = vsel %vm250, %v245, %v247
    %v262 = vsel %vm250, %v247, %v249
    %277 = vst [vmem:[#allocation2] sm:$0xc0] %v251
    %278 = vst [vmem:[#allocation2 + $0x8] sm:$0xc0] %v252
    %279 = vst [vmem:[#allocation2 + $0x10] sm:$0xc0] %v253
    %280 = vst [vmem:[#allocation2 + $0x18] sm:$0xc0] %v254
    %281 = vst [vmem:[#allocation2 + $0x20] sm:$0xc0] %v255
    %282 = vst [vmem:[#allocation2 + $0x28] sm:$0xc0] %v256
    %vm283 = vcmask 1014790
    %284 = vst.msk [vmem:[#allocation2 + $0x30] sm:$0xc0] %vm283, %v235
    %285 = vst [vmem:[#allocation2 + $0x38] sm:$0x1] %v251
    %286 = vst [vmem:[#allocation2 + $0x40] sm:$0x1] %v252
    %287 = vst [vmem:[#allocation2 + $0x48] sm:$0x1] %v253
    %288 = vst [vmem:[#allocation2 + $0x50] sm:$0x1] %v254
    %289 = vst [vmem:[#allocation2 + $0x58] sm:$0x1] %v255
    %290 = vst [vmem:[#allocation2 + $0x60] sm:$0x1] %v256
    %vm291 = vcmask 1007616
    %292 = vst.msk [vmem:[#allocation2 + $0x68] sm:$0x1] %vm291, %v235
    %293 = vst [vmem:[#allocation2 + $0x230] sm:$0xc0] %v257
    %294 = vst [vmem:[#allocation2 + $0x238] sm:$0xc0] %v258
    %295 = vst [vmem:[#allocation2 + $0x240] sm:$0xc0] %v259
    %296 = vst [vmem:[#allocation2 + $0x248] sm:$0xc0] %v260
    %297 = vst [vmem:[#allocation2 + $0x250] sm:$0xc0] %v261
    %298 = vst [vmem:[#allocation2 + $0x258] sm:$0xc0] %v262
    %299 = vst.msk [vmem:[#allocation2 + $0x260] sm:$0xc0] %vm283, %v249
    %300 = vst [vmem:[#allocation2 + $0x268] sm:$0x1] %v257
    %301 = vst [vmem:[#allocation2 + $0x270] sm:$0x1] %v258
    %302 = vst [vmem:[#allocation2 + $0x278] sm:$0x1] %v259
    %303 = vst [vmem:[#allocation2 + $0x280] sm:$0x1] %v260
    %304 = vst [vmem:[#allocation2 + $0x288] sm:$0x1] %v261
    %305 = vst [vmem:[#allocation2 + $0x290] sm:$0x1] %v262
    %306 = vst.msk [vmem:[#allocation2 + $0x298] sm:$0x1] %vm291, %v249
    %v307 = vld [vmem:[%s0] sm:$0x77]
    %v308 = vld [vmem:[%s0 + $0x8] sm:$0x77]
    %v309 = vld [vmem:[%s0 + $0x10] sm:$0x77]
    %v310 = vld [vmem:[%s0 + $0x18] sm:$0x7]
    %v311 = vld [vmem:[%s0 + $0x20] sm:$0x77]
    %v312 = vld [vmem:[%s0 + $0x28] sm:$0x77]
    %v313 = vld [vmem:[%s0 + $0x30] sm:$0x77]
    %v314 = vld [vmem:[%s0 + $0x38] sm:$0x7]
    %v323 = vcombine.high %v307, %v307
    %v324 = vcombine.high %v308, %v308
    %v325 = vcombine.high %v309, %v309
    %v326 = vcombine.high %v311, %v311
    %v327 = vcombine.high %v312, %v312
    %v328 = vcombine.high %v313, %v313
    %v329 = vrot.slane %v307, 7
    %v330 = vrot.slane %v323, 7
    %v331 = vrot.slane %v308, 7
    %v332 = vrot.slane %v324, 7
    %v333 = vrot.slane %v309, 7
    %v334 = vrot.slane %v325, 7
    %v335 = vrot.slane %v310, 7
    %v336 = vrot.slane %v311, 7
    %v337 = vrot.slane %v326, 7
    %v338 = vrot.slane %v312, 7
    %v339 = vrot.slane %v327, 7
    %v340 = vrot.slane %v313, 7
    %v341 = vrot.slane %v328, 7
    %v342 = vrot.slane %v314, 7
    %343 = vrot.lane.b32.xlu0 %v329, 125
    %v344 = vpop.permute.xlu0 %343
    %345 = vrot.lane.b32.xlu0 %v330, 125
    %v346 = vpop.permute.xlu0 %345
    %347 = vrot.lane.b32.xlu0 %v331, 125
    %v348 = vpop.permute.xlu0 %347
    %349 = vrot.lane.b32.xlu0 %v332, 125
    %v350 = vpop.permute.xlu0 %349
    %351 = vrot.lane.b32.xlu0 %v333, 125
    %v352 = vpop.permute.xlu0 %351
    %353 = vrot.lane.b32.xlu0 %v334, 125
    %v354 = vpop.permute.xlu0 %353
    %355 = vrot.lane.b32.xlu0 %v335, 125
    %v356 = vpop.permute.xlu0 %355
    %357 = vrot.lane.b32.xlu0 %v336, 125
    %v358 = vpop.permute.xlu0 %357
    %359 = vrot.lane.b32.xlu0 %v337, 125
    %v360 = vpop.permute.xlu0 %359
    %361 = vrot.lane.b32.xlu0 %v338, 125
    %v362 = vpop.permute.xlu0 %361
    %363 = vrot.lane.b32.xlu0 %v339, 125
    %v364 = vpop.permute.xlu0 %363
    %365 = vrot.lane.b32.xlu0 %v340, 125
    %v366 = vpop.permute.xlu0 %365
    %367 = vrot.lane.b32.xlu0 %v341, 125
    %v368 = vpop.permute.xlu0 %367
    %369 = vrot.lane.b32.xlu0 %v342, 125
    %v370 = vpop.permute.xlu0 %369
    %vm371 = vcmask 1022976
    %v372 = vsel %vm371, %v344, %v346
    %v373 = vsel %vm371, %v346, %v348
    %v374 = vsel %vm371, %v348, %v350
    %v375 = vsel %vm371, %v350, %v352
    %v376 = vsel %vm371, %v352, %v354
    %v377 = vsel %vm371, %v354, %v356
    %v378 = vsel %vm371, %v358, %v360
    %v379 = vsel %vm371, %v360, %v362
    %v380 = vsel %vm371, %v362, %v364
    %v381 = vsel %vm371, %v364, %v366
    %v382 = vsel %vm371, %v366, %v368
    %v383 = vsel %vm371, %v368, %v370
    %398 = vst [vmem:[#allocation2 + $0x38] sm:$0xe] %v372
    %399 = vst [vmem:[#allocation2 + $0x40] sm:$0xe] %v373
    %400 = vst [vmem:[#allocation2 + $0x48] sm:$0xe] %v374
    %401 = vst [vmem:[#allocation2 + $0x50] sm:$0xe] %v375
    %402 = vst [vmem:[#allocation2 + $0x58] sm:$0xe] %v376
    %403 = vst [vmem:[#allocation2 + $0x60] sm:$0xe] %v377
    %vm404 = vcmask 1010689
    %405 = vst.msk [vmem:[#allocation2 + $0x68] sm:$0xe] %vm404, %v356
    %406 = vst [vmem:[#allocation2 + $0x268] sm:$0xe] %v378
    %407 = vst [vmem:[#allocation2 + $0x270] sm:$0xe] %v379
    %408 = vst [vmem:[#allocation2 + $0x278] sm:$0xe] %v380
    %409 = vst [vmem:[#allocation2 + $0x280] sm:$0xe] %v381
    %410 = vst [vmem:[#allocation2 + $0x288] sm:$0xe] %v382
    %411 = vst [vmem:[#allocation2 + $0x290] sm:$0xe] %v383
    %412 = vst.msk [vmem:[#allocation2 + $0x298] sm:$0xe] %vm404, %v370
    %v413 = vld [vmem:[%s0] sm:$0x77]
    %v414 = vld [vmem:[%s0 + $0x8] sm:$0x77]
    %v415 = vld [vmem:[%s0 + $0x10] sm:$0x77]
    %v416 = vld [vmem:[%s0 + $0x18] sm:$0x7]
    %v417 = vld [vmem:[%s0 + $0x20] sm:$0x77]
    %v418 = vld [vmem:[%s0 + $0x28] sm:$0x77]
    %v419 = vld [vmem:[%s0 + $0x30] sm:$0x77]
    %v420 = vld [vmem:[%s0 + $0x38] sm:$0x7]
    %v429 = vcombine.low %v413, %v413
    %v430 = vcombine.low %v414, %v414
    %v431 = vcombine.low %v415, %v415
    %v432 = vcombine.low %v416, %v416
    %v433 = vcombine.low %v417, %v417
    %v434 = vcombine.low %v418, %v418
    %v435 = vcombine.low %v419, %v419
    %v436 = vcombine.low %v420, %v420
    %437 = vrot.lane.b32.xlu0 %v429, 124
    %v438 = vpop.permute.xlu0 %437
    %439 = vrot.lane.b32.xlu0 %v413, 124
    %v440 = vpop.permute.xlu0 %439
    %441 = vrot.lane.b32.xlu0 %v430, 124
    %v442 = vpop.permute.xlu0 %441
    %443 = vrot.lane.b32.xlu0 %v414, 124
    %v444 = vpop.permute.xlu0 %443
    %445 = vrot.lane.b32.xlu0 %v431, 124
    %v446 = vpop.permute.xlu0 %445
    %447 = vrot.lane.b32.xlu0 %v415, 124
    %v448 = vpop.permute.xlu0 %447
    %449 = vrot.lane.b32.xlu0 %v432, 124
    %v450 = vpop.permute.xlu0 %449
    %451 = vrot.lane.b32.xlu0 %v433, 124
    %v452 = vpop.permute.xlu0 %451
    %453 = vrot.lane.b32.xlu0 %v417, 124
    %v454 = vpop.permute.xlu0 %453
    %455 = vrot.lane.b32.xlu0 %v434, 124
    %v456 = vpop.permute.xlu0 %455
    %457 = vrot.lane.b32.xlu0 %v418, 124
    %v458 = vpop.permute.xlu0 %457
    %459 = vrot.lane.b32.xlu0 %v435, 124
    %v460 = vpop.permute.xlu0 %459
    %461 = vrot.lane.b32.xlu0 %v419, 124
    %v462 = vpop.permute.xlu0 %461
    %463 = vrot.lane.b32.xlu0 %v436, 124
    %v464 = vpop.permute.xlu0 %463
    %vm465 = vcmask 1014784
    %v466 = vsel %vm465, %v438, %v440
    %v467 = vsel %vm465, %v440, %v442
    %v468 = vsel %vm465, %v442, %v444
    %v469 = vsel %vm465, %v444, %v446
    %v470 = vsel %vm465, %v446, %v448
    %v471 = vsel %vm465, %v448, %v450
    %v472 = vsel %vm465, %v452, %v454
    %v473 = vsel %vm465, %v454, %v456
    %v474 = vsel %vm465, %v456, %v458
    %v475 = vsel %vm465, %v458, %v460
    %v476 = vsel %vm465, %v460, %v462
    %v477 = vsel %vm465, %v462, %v464
    %492 = vst [vmem:[#allocation2 + $0x38] sm:$0x70] %v466
    %493 = vst [vmem:[#allocation2 + $0x40] sm:$0x70] %v467
    %494 = vst [vmem:[#allocation2 + $0x48] sm:$0x70] %v468
    %495 = vst [vmem:[#allocation2 + $0x50] sm:$0x70] %v469
    %496 = vst [vmem:[#allocation2 + $0x58] sm:$0x70] %v470
    %497 = vst [vmem:[#allocation2 + $0x60] sm:$0x70] %v471
    %vm498 = vcmask 1013764
    %499 = vst.msk [vmem:[#allocation2 + $0x68] sm:$0x70] %vm498, %v450
    %500 = vst [vmem:[#allocation2 + $0x268] sm:$0x70] %v472
    %501 = vst [vmem:[#allocation2 + $0x270] sm:$0x70] %v473
    %502 = vst [vmem:[#allocation2 + $0x278] sm:$0x70] %v474
    %503 = vst [vmem:[#allocation2 + $0x280] sm:$0x70] %v475
    %504 = vst [vmem:[#allocation2 + $0x288] sm:$0x70] %v476
    %505 = vst [vmem:[#allocation2 + $0x290] sm:$0x70] %v477
    %506 = vst.msk [vmem:[#allocation2 + $0x298] sm:$0x70] %vm498, %v464
    %v507 = vld [vmem:[%s0] sm:$0x77]
    %v508 = vld [vmem:[%s0 + $0x8] sm:$0x77]
    %v509 = vld [vmem:[%s0 + $0x10] sm:$0x77]
    %v510 = vld [vmem:[%s0 + $0x18] sm:$0x77]
    %v511 = vld [vmem:[%s0 + $0x20] sm:$0x77]
    %v512 = vld [vmem:[%s0 + $0x28] sm:$0x77]
    %v513 = vld [vmem:[%s0 + $0x30] sm:$0x77]
    %v514 = vld [vmem:[%s0 + $0x38] sm:$0x77]
    %v523 = vcombine.high %v507, %v507
    %v524 = vcombine.high %v508, %v508
    %v525 = vcombine.high %v509, %v509
    %v526 = vcombine.high %v510, %v510
    %v527 = vcombine.high %v511, %v511
    %v528 = vcombine.high %v512, %v512
    %v529 = vcombine.high %v513, %v513
    %v530 = vcombine.high %v514, %v514
    %v531 = vrot.slane %v507, 1
    %v532 = vrot.slane %v523, 1
    %v533 = vrot.slane %v508, 1
    %v534 = vrot.slane %v524, 1
    %v535 = vrot.slane %v509, 1
    %v536 = vrot.slane %v525, 1
    %v537 = vrot.slane %v510, 1
    %v538 = vrot.slane %v526, 1
    %v539 = vrot.slane %v511, 1
    %v540 = vrot.slane %v527, 1
    %v541 = vrot.slane %v512, 1
    %v542 = vrot.slane %v528, 1
    %v543 = vrot.slane %v513, 1
    %v544 = vrot.slane %v529, 1
    %v545 = vrot.slane %v514, 1
    %v546 = vrot.slane %v530, 1
    %547 = vrot.lane.b32.xlu0 %v531, 96
    %v548 = vpop.permute.xlu0 %547
    %549 = vrot.lane.b32.xlu0 %v532, 96
    %v550 = vpop.permute.xlu0 %549
    %551 = vrot.lane.b32.xlu0 %v533, 96
    %v552 = vpop.permute.xlu0 %551
    %553 = vrot.lane.b32.xlu0 %v534, 96
    %v554 = vpop.permute.xlu0 %553
    %555 = vrot.lane.b32.xlu0 %v535, 96
    %v556 = vpop.permute.xlu0 %555
    %557 = vrot.lane.b32.xlu0 %v536, 96
    %v558 = vpop.permute.xlu0 %557
    %559 = vrot.lane.b32.xlu0 %v537, 96
    %v560 = vpop.permute.xlu0 %559
    %561 = vrot.lane.b32.xlu0 %v538, 96
    %v562 = vpop.permute.xlu0 %561
    %563 = vrot.lane.b32.xlu0 %v539, 96
    %v564 = vpop.permute.xlu0 %563
    %565 = vrot.lane.b32.xlu0 %v540, 96
    %v566 = vpop.permute.xlu0 %565
    %567 = vrot.lane.b32.xlu0 %v541, 96
    %v568 = vpop.permute.xlu0 %567
    %569 = vrot.lane.b32.xlu0 %v542, 96
    %v570 = vpop.permute.xlu0 %569
    %571 = vrot.lane.b32.xlu0 %v543, 96
    %v572 = vpop.permute.xlu0 %571
    %573 = vrot.lane.b32.xlu0 %v544, 96
    %v574 = vpop.permute.xlu0 %573
    %575 = vrot.lane.b32.xlu0 %v545, 96
    %v576 = vpop.permute.xlu0 %575
    %577 = vrot.lane.b32.xlu0 %v546, 96
    %v578 = vpop.permute.xlu0 %577
    %vm579 = vcmask 785408
    %v580 = vsel %vm579, %v548, %v550
    %v581 = vsel %vm579, %v550, %v552
    %v582 = vsel %vm579, %v552, %v554
    %v583 = vsel %vm579, %v554, %v556
    %v584 = vsel %vm579, %v556, %v558
    %v585 = vsel %vm579, %v558, %v560
    %v586 = vsel %vm579, %v560, %v562
    %v587 = vsel %vm579, %v564, %v566
    %v588 = vsel %vm579, %v566, %v568
    %v589 = vsel %vm579, %v568, %v570
    %v590 = vsel %vm579, %v570, %v572
    %v591 = vsel %vm579, %v572, %v574
    %v592 = vsel %vm579, %v574, %v576
    %v593 = vsel %vm579, %v576, %v578
    %608 = vst [vmem:[#allocation2 + $0x38] sm:$0x80] %v580
    %609 = vst [vmem:[#allocation2 + $0x40] sm:$0x80] %v581
    %610 = vst [vmem:[#allocation2 + $0x48] sm:$0x80] %v582
    %611 = vst [vmem:[#allocation2 + $0x50] sm:$0x80] %v583
    %612 = vst [vmem:[#allocation2 + $0x58] sm:$0x80] %v584
    %613 = vst [vmem:[#allocation2 + $0x60] sm:$0x80] %v585
    %vm614 = vcmask 1014791
    %615 = vst.msk [vmem:[#allocation2 + $0x68] sm:$0x80] %vm614, %v586
    %616 = vst [vmem:[#allocation2 + $0x70] sm:$0x3] %v580
    %617 = vst [vmem:[#allocation2 + $0x78] sm:$0x3] %v581
    %618 = vst [vmem:[#allocation2 + $0x80] sm:$0x3] %v582
    %619 = vst [vmem:[#allocation2 + $0x88] sm:$0x3] %v583
    %620 = vst [vmem:[#allocation2 + $0x90] sm:$0x3] %v584
    %621 = vst [vmem:[#allocation2 + $0x98] sm:$0x3] %v585
    %vm622 = vcmask 1008640
    %623 = vst.msk [vmem:[#allocation2 + $0xa0] sm:$0x3] %vm622, %v586
    %624 = vst [vmem:[#allocation2 + $0x268] sm:$0x80] %v587
    %625 = vst [vmem:[#allocation2 + $0x270] sm:$0x80] %v588
    %626 = vst [vmem:[#allocation2 + $0x278] sm:$0x80] %v589
    %627 = vst [vmem:[#allocation2 + $0x280] sm:$0x80] %v590
    %628 = vst [vmem:[#allocation2 + $0x288] sm:$0x80] %v591
    %629 = vst [vmem:[#allocation2 + $0x290] sm:$0x80] %v592
    %630 = vst.msk [vmem:[#allocation2 + $0x298] sm:$0x80] %vm614, %v593
    %631 = vst [vmem:[#allocation2 + $0x2a0] sm:$0x3] %v587
    %632 = vst [vmem:[#allocation2 + $0x2a8] sm:$0x3] %v588
    %633 = vst [vmem:[#allocation2 + $0x2b0] sm:$0x3] %v589
    %634 = vst [vmem:[#allocation2 + $0x2b8] sm:$0x3] %v590
    %635 = vst [vmem:[#allocation2 + $0x2c0] sm:$0x3] %v591
    %636 = vst [vmem:[#allocation2 + $0x2c8] sm:$0x3] %v592
    %637 = vst.msk [vmem:[#allocation2 + $0x2d0] sm:$0x3] %vm622, %v593
    %v638 = vld [vmem:[%s0] sm:$0x77]
    %v639 = vld [vmem:[%s0 + $0x8] sm:$0x77]
    %v640 = vld [vmem:[%s0 + $0x10] sm:$0x77]
    %v641 = vld [vmem:[%s0 + $0x18] sm:$0x77]
    %v642 = vld [vmem:[%s0 + $0x20] sm:$0x77]
    %v643 = vld [vmem:[%s0 + $0x28] sm:$0x77]
    %v644 = vld [vmem:[%s0 + $0x30] sm:$0x77]
    %v645 = vld [vmem:[%s0 + $0x38] sm:$0x77]
    %v654 = vcombine.high %v638, %v638
    %v655 = vcombine.high %v639, %v639
    %v656 = vcombine.high %v640, %v640
    %v657 = vcombine.high %v641, %v641
    %v658 = vcombine.high %v642, %v642
    %v659 = vcombine.high %v643, %v643
    %v660 = vcombine.high %v644, %v644
    %v661 = vcombine.high %v645, %v645
    %v662 = vrot.slane %v638, 6
    %v663 = vrot.slane %v654, 6
    %v664 = vrot.slane %v639, 6
    %v665 = vrot.slane %v655, 6
    %v666 = vrot.slane %v640, 6
    %v667 = vrot.slane %v656, 6
    %v668 = vrot.slane %v641, 6
    %v669 = vrot.slane %v657, 6
    %v670 = vrot.slane %v642, 6
    %v671 = vrot.slane %v658, 6
    %v672 = vrot.slane %v643, 6
    %v673 = vrot.slane %v659, 6
    %v674 = vrot.slane %v644, 6
    %v675 = vrot.slane %v660, 6
    %v676 = vrot.slane %v645, 6
    %v677 = vrot.slane %v661, 6
    %678 = vrot.lane.b32.xlu0 %v662, 95
    %v679 = vpop.permute.xlu0 %678
    %680 = vrot.lane.b32.xlu0 %v663, 95
    %v681 = vpop.permute.xlu0 %680
    %682 = vrot.lane.b32.xlu0 %v664, 95
    %v683 = vpop.permute.xlu0 %682
    %684 = vrot.lane.b32.xlu0 %v665, 95
    %v685 = vpop.permute.xlu0 %684
    %686 = vrot.lane.b32.xlu0 %v666, 95
    %v687 = vpop.permute.xlu0 %686
    %688 = vrot.lane.b32.xlu0 %v667, 95
    %v689 = vpop.permute.xlu0 %688
    %690 = vrot.lane.b32.xlu0 %v668, 95
    %v691 = vpop.permute.xlu0 %690
    %692 = vrot.lane.b32.xlu0 %v669, 95
    %v693 = vpop.permute.xlu0 %692
    %694 = vrot.lane.b32.xlu0 %v670, 95
    %v695 = vpop.permute.xlu0 %694
    %696 = vrot.lane.b32.xlu0 %v671, 95
    %v697 = vpop.permute.xlu0 %696
    %698 = vrot.lane.b32.xlu0 %v672, 95
    %v699 = vpop.permute.xlu0 %698
    %700 = vrot.lane.b32.xlu0 %v673, 95
    %v701 = vpop.permute.xlu0 %700
    %702 = vrot.lane.b32.xlu0 %v674, 95
    %v703 = vpop.permute.xlu0 %702
    %704 = vrot.lane.b32.xlu0 %v675, 95
    %v705 = vpop.permute.xlu0 %704
    %706 = vrot.lane.b32.xlu0 %v676, 95
    %v707 = vpop.permute.xlu0 %706
    %708 = vrot.lane.b32.xlu0 %v677, 95
    %v709 = vpop.permute.xlu0 %708
    %vm710 = vcmask 777216
    %v711 = vsel %vm710, %v679, %v681
    %v712 = vsel %vm710, %v681, %v683
    %v713 = vsel %vm710, %v683, %v685
    %v714 = vsel %vm710, %v685, %v687
    %v715 = vsel %vm710, %v687, %v689
    %v716 = vsel %vm710, %v689, %v691
    %v717 = vsel %vm710, %v691, %v693
    %v718 = vsel %vm710, %v695, %v697
    %v719 = vsel %vm710, %v697, %v699
    %v720 = vsel %vm710, %v699, %v701
    %v721 = vsel %vm710, %v701, %v703
    %v722 = vsel %vm710, %v703, %v705
    %v723 = vsel %vm710, %v705, %v707
    %v724 = vsel %vm710, %v707, %v709
    %739 = vst [vmem:[#allocation2 + $0x70] sm:$0x1c] %v711
    %740 = vst [vmem:[#allocation2 + $0x78] sm:$0x1c] %v712
    %741 = vst [vmem:[#allocation2 + $0x80] sm:$0x1c] %v713
    %742 = vst [vmem:[#allocation2 + $0x88] sm:$0x1c] %v714
    %743 = vst [vmem:[#allocation2 + $0x90] sm:$0x1c] %v715
    %744 = vst [vmem:[#allocation2 + $0x98] sm:$0x1c] %v716
    %vm745 = vcmask 1011714
    %746 = vst.msk [vmem:[#allocation2 + $0xa0] sm:$0x1c] %vm745, %v717
    %747 = vst [vmem:[#allocation2 + $0x2a0] sm:$0x1c] %v718
    %748 = vst [vmem:[#allocation2 + $0x2a8] sm:$0x1c] %v719
    %749 = vst [vmem:[#allocation2 + $0x2b0] sm:$0x1c] %v720
    %750 = vst [vmem:[#allocation2 + $0x2b8] sm:$0x1c] %v721
    %751 = vst [vmem:[#allocation2 + $0x2c0] sm:$0x1c] %v722
    %752 = vst [vmem:[#allocation2 + $0x2c8] sm:$0x1c] %v723
    %753 = vst.msk [vmem:[#allocation2 + $0x2d0] sm:$0x1c] %vm745, %v724
    %v754 = vld [vmem:[%s0] sm:$0x77]
    %v755 = vld [vmem:[%s0 + $0x8] sm:$0x77]
    %v756 = vld [vmem:[%s0 + $0x10] sm:$0x77]
    %v757 = vld [vmem:[%s0 + $0x18] sm:$0x77]
    %v758 = vld [vmem:[%s0 + $0x20] sm:$0x77]
    %v759 = vld [vmem:[%s0 + $0x28] sm:$0x77]
    %v760 = vld [vmem:[%s0 + $0x30] sm:$0x77]
    %v761 = vld [vmem:[%s0 + $0x38] sm:$0x77]
    %v770 = vcombine.high %v754, %v754
    %v771 = vcombine.high %v755, %v755
    %v772 = vcombine.high %v756, %v756
    %v773 = vcombine.high %v757, %v757
    %v774 = vcombine.high %v758, %v758
    %v775 = vcombine.high %v759, %v759
    %v776 = vcombine.high %v760, %v760
    %v777 = vcombine.high %v761, %v761
    %v778 = vrot.slane %v754, 3
    %v779 = vrot.slane %v770, 3
    %v780 = vrot.slane %v755, 3
    %v781 = vrot.slane %v771, 3
    %v782 = vrot.slane %v756, 3
    %v783 = vrot.slane %v772, 3
    %v784 = vrot.slane %v757, 3
    %v785 = vrot.slane %v773, 3
    %v786 = vrot.slane %v758, 3
    %v787 = vrot.slane %v774, 3
    %v788 = vrot.slane %v759, 3
    %v789 = vrot.slane %v775, 3
    %v790 = vrot.slane %v760, 3
    %v791 = vrot.slane %v776, 3
    %v792 = vrot.slane %v761, 3
    %v793 = vrot.slane %v777, 3
    %794 = vrot.lane.b32.xlu0 %v778, 94
    %v795 = vpop.permute.xlu0 %794
    %796 = vrot.lane.b32.xlu0 %v779, 94
    %v797 = vpop.permute.xlu0 %796
    %798 = vrot.lane.b32.xlu0 %v780, 94
    %v799 = vpop.permute.xlu0 %798
    %800 = vrot.lane.b32.xlu0 %v781, 94
    %v801 = vpop.permute.xlu0 %800
    %802 = vrot.lane.b32.xlu0 %v782, 94
    %v803 = vpop.permute.xlu0 %802
    %804 = vrot.lane.b32.xlu0 %v783, 94
    %v805 = vpop.permute.xlu0 %804
    %806 = vrot.lane.b32.xlu0 %v784, 94
    %v807 = vpop.permute.xlu0 %806
    %808 = vrot.lane.b32.xlu0 %v785, 94
    %v809 = vpop.permute.xlu0 %808
    %810 = vrot.lane.b32.xlu0 %v786, 94
    %v811 = vpop.permute.xlu0 %810
    %812 = vrot.lane.b32.xlu0 %v787, 94
    %v813 = vpop.permute.xlu0 %812
    %814 = vrot.lane.b32.xlu0 %v788, 94
    %v815 = vpop.permute.xlu0 %814
    %816 = vrot.lane.b32.xlu0 %v789, 94
    %v817 = vpop.permute.xlu0 %816
    %818 = vrot.lane.b32.xlu0 %v790, 94
    %v819 = vpop.permute.xlu0 %818
    %820 = vrot.lane.b32.xlu0 %v791, 94
    %v821 = vpop.permute.xlu0 %820
    %822 = vrot.lane.b32.xlu0 %v792, 94
    %v823 = vpop.permute.xlu0 %822
    %824 = vrot.lane.b32.xlu0 %v793, 94
    %v825 = vpop.permute.xlu0 %824
    %vm826 = vcmask 769024
    %v827 = vsel %vm826, %v795, %v797
    %v828 = vsel %vm826, %v797, %v799
    %v829 = vsel %vm826, %v799, %v801
    %v830 = vsel %vm826, %v801, %v803
    %v831 = vsel %vm826, %v803, %v805
    %v832 = vsel %vm826, %v805, %v807
    %v833 = vsel %vm826, %v807, %v809
    %v834 = vsel %vm826, %v811, %v813
    %v835 = vsel %vm826, %v813, %v815
    %v836 = vsel %vm826, %v815, %v817
    %v837 = vsel %vm826, %v817, %v819
    %v838 = vsel %vm826, %v819, %v821
    %v839 = vsel %vm826, %v821, %v823
    %v840 = vsel %vm826, %v823, %v825
    %855 = vst [vmem:[#allocation2 + $0x70] sm:$0xe0] %v827
    %856 = vst [vmem:[#allocation2 + $0x78] sm:$0xe0] %v828
    %857 = vst [vmem:[#allocation2 + $0x80] sm:$0xe0] %v829
    %858 = vst [vmem:[#allocation2 + $0x88] sm:$0xe0] %v830
    %859 = vst [vmem:[#allocation2 + $0x90] sm:$0xe0] %v831
    %860 = vst [vmem:[#allocation2 + $0x98] sm:$0xe0] %v832
    %vm861 = vcmask 1014789
    %862 = vst.msk [vmem:[#allocation2 + $0xa0] sm:$0xe0] %vm861, %v833
    %863 = vst [vmem:[#allocation2 + $0x2a0] sm:$0xe0] %v834
    %864 = vst [vmem:[#allocation2 + $0x2a8] sm:$0xe0] %v835
    %865 = vst [vmem:[#allocation2 + $0x2b0] sm:$0xe0] %v836
    %866 = vst [vmem:[#allocation2 + $0x2b8] sm:$0xe0] %v837
    %867 = vst [vmem:[#allocation2 + $0x2c0] sm:$0xe0] %v838
    %868 = vst [vmem:[#allocation2 + $0x2c8] sm:$0xe0] %v839
    %869 = vst.msk [vmem:[#allocation2 + $0x2d0] sm:$0xe0] %vm861, %v840
    %v870 = vld [vmem:[%s0] sm:$0x77]
    %v871 = vld [vmem:[%s0 + $0x8] sm:$0x77]
    %v872 = vld [vmem:[%s0 + $0x10] sm:$0x77]
    %v873 = vld [vmem:[%s0 + $0x18] sm:$0x77]
    %v874 = vld [vmem:[%s0 + $0x20] sm:$0x77]
    %v875 = vld [vmem:[%s0 + $0x28] sm:$0x77]
    %v876 = vld [vmem:[%s0 + $0x30] sm:$0x77]
    %v877 = vld [vmem:[%s0 + $0x38] sm:$0x77]
    %v886 = vcombine.high %v870, %v870
    %v887 = vcombine.high %v871, %v871
    %v888 = vcombine.high %v872, %v872
    %v889 = vcombine.high %v873, %v873
    %v890 = vcombine.high %v874, %v874
    %v891 = vcombine.high %v875, %v875
    %v892 = vcombine.high %v876, %v876
    %v893 = vcombine.high %v877, %v877
    %894 = vrot.lane.b32.xlu0 %v870, 93
    %v895 = vpop.permute.xlu0 %894
    %896 = vrot.lane.b32.xlu0 %v886, 93
    %v897 = vpop.permute.xlu0 %896
    %898 = vrot.lane.b32.xlu0 %v871, 93
    %v899 = vpop.permute.xlu0 %898
    %900 = vrot.lane.b32.xlu0 %v887, 93
    %v901 = vpop.permute.xlu0 %900
    %902 = vrot.lane.b32.xlu0 %v872, 93
    %v903 = vpop.permute.xlu0 %902
    %904 = vrot.lane.b32.xlu0 %v888, 93
    %v905 = vpop.permute.xlu0 %904
    %906 = vrot.lane.b32.xlu0 %v873, 93
    %v907 = vpop.permute.xlu0 %906
    %908 = vrot.lane.b32.xlu0 %v889, 93
    %v909 = vpop.permute.xlu0 %908
    %910 = vrot.lane.b32.xlu0 %v874, 93
    %v911 = vpop.permute.xlu0 %910
    %912 = vrot.lane.b32.xlu0 %v890, 93
    %v913 = vpop.permute.xlu0 %912
    %914 = vrot.lane.b32.xlu0 %v875, 93
    %v915 = vpop.permute.xlu0 %914
    %916 = vrot.lane.b32.xlu0 %v891, 93
    %v917 = vpop.permute.xlu0 %916
    %918 = vrot.lane.b32.xlu0 %v876, 93
    %v919 = vpop.permute.xlu0 %918
    %920 = vrot.lane.b32.xlu0 %v892, 93
    %v921 = vpop.permute.xlu0 %920
    %922 = vrot.lane.b32.xlu0 %v877, 93
    %v923 = vpop.permute.xlu0 %922
    %924 = vrot.lane.b32.xlu0 %v893, 93
    %v925 = vpop.permute.xlu0 %924
    %vm926 = vcmask 760832
    %v927 = vsel %vm926, %v895, %v897
    %v928 = vsel %vm926, %v897, %v899
    %v929 = vsel %vm926, %v899, %v901
    %v930 = vsel %vm926, %v901, %v903
    %v931 = vsel %vm926, %v903, %v905
    %v932 = vsel %vm926, %v905, %v907
    %v933 = vsel %vm926, %v907, %v909
    %v934 = vsel %vm926, %v911, %v913
    %v935 = vsel %vm926, %v913, %v915
    %v936 = vsel %vm926, %v915, %v917
    %v937 = vsel %vm926, %v917, %v919
    %v938 = vsel %vm926, %v919, %v921
    %v939 = vsel %vm926, %v921, %v923
    %v940 = vsel %vm926, %v923, %v925
    %955 = vst [vmem:[#allocation2 + $0xa8] sm:$0x7] %v927
    %956 = vst [vmem:[#allocation2 + $0xb0] sm:$0x7] %v928
    %957 = vst [vmem:[#allocation2 + $0xb8] sm:$0x7] %v929
    %958 = vst [vmem:[#allocation2 + $0xc0] sm:$0x7] %v930
    %959 = vst [vmem:[#allocation2 + $0xc8] sm:$0x7] %v931
    %960 = vst [vmem:[#allocation2 + $0xd0] sm:$0x7] %v932
    %961 = vst.msk [vmem:[#allocation2 + $0xd8] sm:$0x7] %vm71, %v933
    %962 = vst [vmem:[#allocation2 + $0x2d8] sm:$0x7] %v934
    %963 = vst [vmem:[#allocation2 + $0x2e0] sm:$0x7] %v935
    %964 = vst [vmem:[#allocation2 + $0x2e8] sm:$0x7] %v936
    %965 = vst [vmem:[#allocation2 + $0x2f0] sm:$0x7] %v937
    %966 = vst [vmem:[#allocation2 + $0x2f8] sm:$0x7] %v938
    %967 = vst [vmem:[#allocation2 + $0x300] sm:$0x7] %v939
    %968 = vst.msk [vmem:[#allocation2 + $0x308] sm:$0x7] %vm71, %v940
    %v969 = vld [vmem:[%s0] sm:$0x77]
    %v970 = vld [vmem:[%s0 + $0x8] sm:$0x77]
    %v971 = vld [vmem:[%s0 + $0x10] sm:$0x77]
    %v972 = vld [vmem:[%s0 + $0x18] sm:$0x77]
    %v973 = vld [vmem:[%s0 + $0x20] sm:$0x77]
    %v974 = vld [vmem:[%s0 + $0x28] sm:$0x77]
    %v975 = vld [vmem:[%s0 + $0x30] sm:$0x77]
    %v976 = vld [vmem:[%s0 + $0x38] sm:$0x77]
    %v985 = vcombine.high %v969, %v969
    %v986 = vcombine.high %v970, %v970
    %v987 = vcombine.high %v971, %v971
    %v988 = vcombine.high %v972, %v972
    %v989 = vcombine.high %v973, %v973
    %v990 = vcombine.high %v974, %v974
    %v991 = vcombine.high %v975, %v975
    %v992 = vcombine.high %v976, %v976
    %v993 = vrot.slane %v969, 5
    %v994 = vrot.slane %v985, 5
    %v995 = vrot.slane %v970, 5
    %v996 = vrot.slane %v986, 5
    %v997 = vrot.slane %v971, 5
    %v998 = vrot.slane %v987, 5
    %v999 = vrot.slane %v972, 5
    %v1000 = vrot.slane %v988, 5
    %v1001 = vrot.slane %v973, 5
    %v1002 = vrot.slane %v989, 5
    %v1003 = vrot.slane %v974, 5
    %v1004 = vrot.slane %v990, 5
    %v1005 = vrot.slane %v975, 5
    %v1006 = vrot.slane %v991, 5
    %v1007 = vrot.slane %v976, 5
    %v1008 = vrot.slane %v992, 5
    %1009 = vrot.lane.b32.xlu0 %v993, 92
    %v1010 = vpop.permute.xlu0 %1009
    %1011 = vrot.lane.b32.xlu0 %v994, 92
    %v1012 = vpop.permute.xlu0 %1011
    %1013 = vrot.lane.b32.xlu0 %v995, 92
    %v1014 = vpop.permute.xlu0 %1013
    %1015 = vrot.lane.b32.xlu0 %v996, 92
    %v1016 = vpop.permute.xlu0 %1015
    %1017 = vrot.lane.b32.xlu0 %v997, 92
    %v1018 = vpop.permute.xlu0 %1017
    %1019 = vrot.lane.b32.xlu0 %v998, 92
    %v1020 = vpop.permute.xlu0 %1019
    %1021 = vrot.lane.b32.xlu0 %v999, 92
    %v1022 = vpop.permute.xlu0 %1021
    %1023 = vrot.lane.b32.xlu0 %v1000, 92
    %v1024 = vpop.permute.xlu0 %1023
    %1025 = vrot.lane.b32.xlu0 %v1001, 92
    %v1026 = vpop.permute.xlu0 %1025
    %1027 = vrot.lane.b32.xlu0 %v1002, 92
    %v1028 = vpop.permute.xlu0 %1027
    %1029 = vrot.lane.b32.xlu0 %v1003, 92
    %v1030 = vpop.permute.xlu0 %1029
    %1031 = vrot.lane.b32.xlu0 %v1004, 92
    %v1032 = vpop.permute.xlu0 %1031
    %1033 = vrot.lane.b32.xlu0 %v1005, 92
    %v1034 = vpop.permute.xlu0 %1033
    %1035 = vrot.lane.b32.xlu0 %v1006, 92
    %v1036 = vpop.permute.xlu0 %1035
    %1037 = vrot.lane.b32.xlu0 %v1007, 92
    %v1038 = vpop.permute.xlu0 %1037
    %1039 = vrot.lane.b32.xlu0 %v1008, 92
    %v1040 = vpop.permute.xlu0 %1039
    %vm1041 = vcmask 752640
    %v1042 = vsel %vm1041, %v1010, %v1012
    %v1043 = vsel %vm1041, %v1012, %v1014
    %v1044 = vsel %vm1041, %v1014, %v1016
    %v1045 = vsel %vm1041, %v1016, %v1018
    %v1046 = vsel %vm1041, %v1018, %v1020
    %v1047 = vsel %vm1041, %v1020, %v1022
    %v1048 = vsel %vm1041, %v1022, %v1024
    %v1049 = vsel %vm1041, %v1026, %v1028
    %v1050 = vsel %vm1041, %v1028, %v1030
    %v1051 = vsel %vm1041, %v1030, %v1032
    %v1052 = vsel %vm1041, %v1032, %v1034
    %v1053 = vsel %vm1041, %v1034, %v1036
    %v1054 = vsel %vm1041, %v1036, %v1038
    %v1055 = vsel %vm1041, %v1038, %v1040
    %1070 = vst [vmem:[#allocation2 + $0xa8] sm:$0x38] %v1042
    %1071 = vst [vmem:[#allocation2 + $0xb0] sm:$0x38] %v1043
    %1072 = vst [vmem:[#allocation2 + $0xb8] sm:$0x38] %v1044
    %1073 = vst [vmem:[#allocation2 + $0xc0] sm:$0x38] %v1045
    %1074 = vst [vmem:[#allocation2 + $0xc8] sm:$0x38] %v1046
    %1075 = vst [vmem:[#allocation2 + $0xd0] sm:$0x38] %v1047
    %1076 = vst.msk [vmem:[#allocation2 + $0xd8] sm:$0x38] %vm177, %v1048
    %1077 = vst [vmem:[#allocation2 + $0x2d8] sm:$0x38] %v1049
    %1078 = vst [vmem:[#allocation2 + $0x2e0] sm:$0x38] %v1050
    %1079 = vst [vmem:[#allocation2 + $0x2e8] sm:$0x38] %v1051
    %1080 = vst [vmem:[#allocation2 + $0x2f0] sm:$0x38] %v1052
    %1081 = vst [vmem:[#allocation2 + $0x2f8] sm:$0x38] %v1053
    %1082 = vst [vmem:[#allocation2 + $0x300] sm:$0x38] %v1054
    %1083 = vst.msk [vmem:[#allocation2 + $0x308] sm:$0x38] %vm177, %v1055
    %v1084 = vld [vmem:[%s0] sm:$0x77]
    %v1085 = vld [vmem:[%s0 + $0x8] sm:$0x77]
    %v1086 = vld [vmem:[%s0 + $0x10] sm:$0x77]
    %v1087 = vld [vmem:[%s0 + $0x18] sm:$0x77]
    %v1088 = vld [vmem:[%s0 + $0x20] sm:$0x77]
    %v1089 = vld [vmem:[%s0 + $0x28] sm:$0x77]
    %v1090 = vld [vmem:[%s0 + $0x30] sm:$0x77]
    %v1091 = vld [vmem:[%s0 + $0x38] sm:$0x77]
    %v1100 = vcombine.high %v1084, %v1084
    %v1101 = vcombine.high %v1085, %v1085
    %v1102 = vcombine.high %v1086, %v1086
    %v1103 = vcombine.high %v1087, %v1087
    %v1104 = vcombine.high %v1088, %v1088
    %v1105 = vcombine.high %v1089, %v1089
    %v1106 = vcombine.high %v1090, %v1090
    %v1107 = vcombine.high %v1091, %v1091
    %v1108 = vrot.slane %v1084, 2
    %v1109 = vrot.slane %v1100, 2
    %v1110 = vrot.slane %v1085, 2
    %v1111 = vrot.slane %v1101, 2
    %v1112 = vrot.slane %v1086, 2
    %v1113 = vrot.slane %v1102, 2
    %v1114 = vrot.slane %v1087, 2
    %v1115 = vrot.slane %v1103, 2
    %v1116 = vrot.slane %v1088, 2
    %v1117 = vrot.slane %v1104, 2
    %v1118 = vrot.slane %v1089, 2
    %v1119 = vrot.slane %v1105, 2
    %v1120 = vrot.slane %v1090, 2
    %v1121 = vrot.slane %v1106, 2
    %v1122 = vrot.slane %v1091, 2
    %v1123 = vrot.slane %v1107, 2
    %1124 = vrot.lane.b32.xlu0 %v1108, 64
    %v1125 = vpop.permute.xlu0 %1124
    %1126 = vrot.lane.b32.xlu0 %v1109, 64
    %v1127 = vpop.permute.xlu0 %1126
    %1128 = vrot.lane.b32.xlu0 %v1110, 64
    %v1129 = vpop.permute.xlu0 %1128
    %1130 = vrot.lane.b32.xlu0 %v1111, 64
    %v1131 = vpop.permute.xlu0 %1130
    %1132 = vrot.lane.b32.xlu0 %v1112, 64
    %v1133 = vpop.permute.xlu0 %1132
    %1134 = vrot.lane.b32.xlu0 %v1113, 64
    %v1135 = vpop.permute.xlu0 %1134
    %1136 = vrot.lane.b32.xlu0 %v1114, 64
    %v1137 = vpop.permute.xlu0 %1136
    %1138 = vrot.lane.b32.xlu0 %v1115, 64
    %v1139 = vpop.permute.xlu0 %1138
    %1140 = vrot.lane.b32.xlu0 %v1116, 64
    %v1141 = vpop.permute.xlu0 %1140
    %1142 = vrot.lane.b32.xlu0 %v1117, 64
    %v1143 = vpop.permute.xlu0 %1142
    %1144 = vrot.lane.b32.xlu0 %v1118, 64
    %v1145 = vpop.permute.xlu0 %1144
    %1146 = vrot.lane.b32.xlu0 %v1119, 64
    %v1147 = vpop.permute.xlu0 %1146
    %1148 = vrot.lane.b32.xlu0 %v1120, 64
    %v1149 = vpop.permute.xlu0 %1148
    %1150 = vrot.lane.b32.xlu0 %v1121, 64
    %v1151 = vpop.permute.xlu0 %1150
    %1152 = vrot.lane.b32.xlu0 %v1122, 64
    %v1153 = vpop.permute.xlu0 %1152
    %1154 = vrot.lane.b32.xlu0 %v1123, 64
    %v1155 = vpop.permute.xlu0 %1154
    %vm1156 = vcmask 523264
    %v1157 = vsel %vm1156, %v1125, %v1127
    %v1158 = vsel %vm1156, %v1127, %v1129
    %v1159 = vsel %vm1156, %v1129, %v1131
    %v1160 = vsel %vm1156, %v1131, %v1133
    %v1161 = vsel %vm1156, %v1133, %v1135
    %v1162 = vsel %vm1156, %v1135, %v1137
    %v1163 = vsel %vm1156, %v1137, %v1139
    %v1164 = vsel %vm1156, %v1141, %v1143
    %v1165 = vsel %vm1156, %v1143, %v1145
    %v1166 = vsel %vm1156, %v1145, %v1147
    %v1167 = vsel %vm1156, %v1147, %v1149
    %v1168 = vsel %vm1156, %v1149, %v1151
    %v1169 = vsel %vm1156, %v1151, %v1153
    %v1170 = vsel %vm1156, %v1153, %v1155
    %1185 = vst [vmem:[#allocation2 + $0xa8] sm:$0xc0] %v1157
    %1186 = vst [vmem:[#allocation2 + $0xb0] sm:$0xc0] %v1158
    %1187 = vst [vmem:[#allocation2 + $0xb8] sm:$0xc0] %v1159
    %1188 = vst [vmem:[#allocation2 + $0xc0] sm:$0xc0] %v1160
    %1189 = vst [vmem:[#allocation2 + $0xc8] sm:$0xc0] %v1161
    %1190 = vst [vmem:[#allocation2 + $0xd0] sm:$0xc0] %v1162
    %1191 = vst.msk [vmem:[#allocation2 + $0xd8] sm:$0xc0] %vm283, %v1163
    %1192 = vst [vmem:[#allocation2 + $0xe0] sm:$0x1] %v1157
    %1193 = vst [vmem:[#allocation2 + $0xe8] sm:$0x1] %v1158
    %1194 = vst [vmem:[#allocation2 + $0xf0] sm:$0x1] %v1159
    %1195 = vst [vmem:[#allocation2 + $0xf8] sm:$0x1] %v1160
    %1196 = vst [vmem:[#allocation2 + $0x100] sm:$0x1] %v1161
    %1197 = vst [vmem:[#allocation2 + $0x108] sm:$0x1] %v1162
    %1198 = vst.msk [vmem:[#allocation2 + $0x110] sm:$0x1] %vm291, %v1163
    %1199 = vst [vmem:[#allocation2 + $0x2d8] sm:$0xc0] %v1164
    %1200 = vst [vmem:[#allocation2 + $0x2e0] sm:$0xc0] %v1165
    %1201 = vst [vmem:[#allocation2 + $0x2e8] sm:$0xc0] %v1166
    %1202 = vst [vmem:[#allocation2 + $0x2f0] sm:$0xc0] %v1167
    %1203 = vst [vmem:[#allocation2 + $0x2f8] sm:$0xc0] %v1168
    %1204 = vst [vmem:[#allocation2 + $0x300] sm:$0xc0] %v1169
    %1205 = vst.msk [vmem:[#allocation2 + $0x308] sm:$0xc0] %vm283, %v1170
    %1206 = vst [vmem:[#allocation2 + $0x310] sm:$0x1] %v1164
    %1207 = vst [vmem:[#allocation2 + $0x318] sm:$0x1] %v1165
    %1208 = vst [vmem:[#allocation2 + $0x320] sm:$0x1] %v1166
    %1209 = vst [vmem:[#allocation2 + $0x328] sm:$0x1] %v1167
    %1210 = vst [vmem:[#allocation2 + $0x330] sm:$0x1] %v1168
    %1211 = vst [vmem:[#allocation2 + $0x338] sm:$0x1] %v1169
    %1212 = vst.msk [vmem:[#allocation2 + $0x340] sm:$0x1] %vm291, %v1170
    %v1213 = vld [vmem:[%s0] sm:$0x77]
    %v1214 = vld [vmem:[%s0 + $0x8] sm:$0x77]
    %v1215 = vld [vmem:[%s0 + $0x10] sm:$0x77]
    %v1216 = vld [vmem:[%s0 + $0x18] sm:$0x77]
    %v1217 = vld [vmem:[%s0 + $0x20] sm:$0x77]
    %v1218 = vld [vmem:[%s0 + $0x28] sm:$0x77]
    %v1219 = vld [vmem:[%s0 + $0x30] sm:$0x77]
    %v1220 = vld [vmem:[%s0 + $0x38] sm:$0x77]
    %v1229 = vcombine.high %v1213, %v1213
    %v1230 = vcombine.high %v1214, %v1214
    %v1231 = vcombine.high %v1215, %v1215
    %v1232 = vcombine.high %v1216, %v1216
    %v1233 = vcombine.high %v1217, %v1217
    %v1234 = vcombine.high %v1218, %v1218
    %v1235 = vcombine.high %v1219, %v1219
    %v1236 = vcombine.high %v1220, %v1220
    %v1237 = vrot.slane %v1213, 7
    %v1238 = vrot.slane %v1229, 7
    %v1239 = vrot.slane %v1214, 7
    %v1240 = vrot.slane %v1230, 7
    %v1241 = vrot.slane %v1215, 7
    %v1242 = vrot.slane %v1231, 7
    %v1243 = vrot.slane %v1216, 7
    %v1244 = vrot.slane %v1232, 7
    %v1245 = vrot.slane %v1217, 7
    %v1246 = vrot.slane %v1233, 7
    %v1247 = vrot.slane %v1218, 7
    %v1248 = vrot.slane %v1234, 7
    %v1249 = vrot.slane %v1219, 7
    %v1250 = vrot.slane %v1235, 7
    %v1251 = vrot.slane %v1220, 7
    %v1252 = vrot.slane %v1236, 7
    %1253 = vrot.lane.b32.xlu0 %v1237, 63
    %v1254 = vpop.permute.xlu0 %1253
    %1255 = vrot.lane.b32.xlu0 %v1238, 63
    %v1256 = vpop.permute.xlu0 %1255
    %1257 = vrot.lane.b32.xlu0 %v1239, 63
    %v1258 = vpop.permute.xlu0 %1257
    %1259 = vrot.lane.b32.xlu0 %v1240, 63
    %v1260 = vpop.permute.xlu0 %1259
    %1261 = vrot.lane.b32.xlu0 %v1241, 63
    %v1262 = vpop.permute.xlu0 %1261
    %1263 = vrot.lane.b32.xlu0 %v1242, 63
    %v1264 = vpop.permute.xlu0 %1263
    %1265 = vrot.lane.b32.xlu0 %v1243, 63
    %v1266 = vpop.permute.xlu0 %1265
    %1267 = vrot.lane.b32.xlu0 %v1244, 63
    %v1268 = vpop.permute.xlu0 %1267
    %1269 = vrot.lane.b32.xlu0 %v1245, 63
    %v1270 = vpop.permute.xlu0 %1269
    %1271 = vrot.lane.b32.xlu0 %v1246, 63
    %v1272 = vpop.permute.xlu0 %1271
    %1273 = vrot.lane.b32.xlu0 %v1247, 63
    %v1274 = vpop.permute.xlu0 %1273
    %1275 = vrot.lane.b32.xlu0 %v1248, 63
    %v1276 = vpop.permute.xlu0 %1275
    %1277 = vrot.lane.b32.xlu0 %v1249, 63
    %v1278 = vpop.permute.xlu0 %1277
    %1279 = vrot.lane.b32.xlu0 %v1250, 63
    %v1280 = vpop.permute.xlu0 %1279
    %1281 = vrot.lane.b32.xlu0 %v1251, 63
    %v1282 = vpop.permute.xlu0 %1281
    %1283 = vrot.lane.b32.xlu0 %v1252, 63
    %v1284 = vpop.permute.xlu0 %1283
    %vm1285 = vcmask 515072
    %v1286 = vsel %vm1285, %v1254, %v1256
    %v1287 = vsel %vm1285, %v1256, %v1258
    %v1288 = vsel %vm1285, %v1258, %v1260
    %v1289 = vsel %vm1285, %v1260, %v1262
    %v1290 = vsel %vm1285, %v1262, %v1264
    %v1291 = vsel %vm1285, %v1264, %v1266
    %v1292 = vsel %vm1285, %v1266, %v1268
    %v1293 = vsel %vm1285, %v1270, %v1272
    %v1294 = vsel %vm1285, %v1272, %v1274
    %v1295 = vsel %vm1285, %v1274, %v1276
    %v1296 = vsel %vm1285, %v1276, %v1278
    %v1297 = vsel %vm1285, %v1278, %v1280
    %v1298 = vsel %vm1285, %v1280, %v1282
    %v1299 = vsel %vm1285, %v1282, %v1284
    %1314 = vst [vmem:[#allocation2 + $0xe0] sm:$0xe] %v1286
    %1315 = vst [vmem:[#allocation2 + $0xe8] sm:$0xe] %v1287
    %1316 = vst [vmem:[#allocation2 + $0xf0] sm:$0xe] %v1288
    %1317 = vst [vmem:[#allocation2 + $0xf8] sm:$0xe] %v1289
    %1318 = vst [vmem:[#allocation2 + $0x100] sm:$0xe] %v1290
    %1319 = vst [vmem:[#allocation2 + $0x108] sm:$0xe] %v1291
    %1320 = vst.msk [vmem:[#allocation2 + $0x110] sm:$0xe] %vm404, %v1292
    %1321 = vst [vmem:[#allocation2 + $0x310] sm:$0xe] %v1293
    %1322 = vst [vmem:[#allocation2 + $0x318] sm:$0xe] %v1294
    %1323 = vst [vmem:[#allocation2 + $0x320] sm:$0xe] %v1295
    %1324 = vst [vmem:[#allocation2 + $0x328] sm:$0xe] %v1296
    %1325 = vst [vmem:[#allocation2 + $0x330] sm:$0xe] %v1297
    %1326 = vst [vmem:[#allocation2 + $0x338] sm:$0xe] %v1298
    %1327 = vst.msk [vmem:[#allocation2 + $0x340] sm:$0xe] %vm404, %v1299
    %v1328 = vld [vmem:[%s0] sm:$0x77]
    %v1329 = vld [vmem:[%s0 + $0x8] sm:$0x77]
    %v1330 = vld [vmem:[%s0 + $0x10] sm:$0x77]
    %v1331 = vld [vmem:[%s0 + $0x18] sm:$0x77]
    %v1332 = vld [vmem:[%s0 + $0x20] sm:$0x77]
    %v1333 = vld [vmem:[%s0 + $0x28] sm:$0x77]
    %v1334 = vld [vmem:[%s0 + $0x30] sm:$0x77]
    %v1335 = vld [vmem:[%s0 + $0x38] sm:$0x77]
    %v1344 = vcombine.low %v1328, %v1328
    %v1345 = vcombine.low %v1329, %v1329
    %v1346 = vcombine.low %v1330, %v1330
    %v1347 = vcombine.low %v1331, %v1331
    %v1348 = vcombine.low %v1332, %v1332
    %v1349 = vcombine.low %v1333, %v1333
    %v1350 = vcombine.low %v1334, %v1334
    %v1351 = vcombine.low %v1335, %v1335
    %1352 = vrot.lane.b32.xlu0 %v1344, 62
    %v1353 = vpop.permute.xlu0 %1352
    %1354 = vrot.lane.b32.xlu0 %v1328, 62
    %v1355 = vpop.permute.xlu0 %1354
    %1356 = vrot.lane.b32.xlu0 %v1345, 62
    %v1357 = vpop.permute.xlu0 %1356
    %1358 = vrot.lane.b32.xlu0 %v1329, 62
    %v1359 = vpop.permute.xlu0 %1358
    %1360 = vrot.lane.b32.xlu0 %v1346, 62
    %v1361 = vpop.permute.xlu0 %1360
    %1362 = vrot.lane.b32.xlu0 %v1330, 62
    %v1363 = vpop.permute.xlu0 %1362
    %1364 = vrot.lane.b32.xlu0 %v1347, 62
    %v1365 = vpop.permute.xlu0 %1364
    %1366 = vrot.lane.b32.xlu0 %v1331, 62
    %v1367 = vpop.permute.xlu0 %1366
    %1368 = vrot.lane.b32.xlu0 %v1348, 62
    %v1369 = vpop.permute.xlu0 %1368
    %1370 = vrot.lane.b32.xlu0 %v1332, 62
    %v1371 = vpop.permute.xlu0 %1370
    %1372 = vrot.lane.b32.xlu0 %v1349, 62
    %v1373 = vpop.permute.xlu0 %1372
    %1374 = vrot.lane.b32.xlu0 %v1333, 62
    %v1375 = vpop.permute.xlu0 %1374
    %1376 = vrot.lane.b32.xlu0 %v1350, 62
    %v1377 = vpop.permute.xlu0 %1376
    %1378 = vrot.lane.b32.xlu0 %v1334, 62
    %v1379 = vpop.permute.xlu0 %1378
    %1380 = vrot.lane.b32.xlu0 %v1351, 62
    %v1381 = vpop.permute.xlu0 %1380
    %1382 = vrot.lane.b32.xlu0 %v1335, 62
    %v1383 = vpop.permute.xlu0 %1382
    %vm1384 = vcmask 506880
    %v1385 = vsel %vm1384, %v1353, %v1355
    %v1386 = vsel %vm1384, %v1355, %v1357
    %v1387 = vsel %vm1384, %v1357, %v1359
    %v1388 = vsel %vm1384, %v1359, %v1361
    %v1389 = vsel %vm1384, %v1361, %v1363
    %v1390 = vsel %vm1384, %v1363, %v1365
    %v1391 = vsel %vm1384, %v1365, %v1367
    %v1392 = vsel %vm1384, %v1369, %v1371
    %v1393 = vsel %vm1384, %v1371, %v1373
    %v1394 = vsel %vm1384, %v1373, %v1375
    %v1395 = vsel %vm1384, %v1375, %v1377
    %v1396 = vsel %vm1384, %v1377, %v1379
    %v1397 = vsel %vm1384, %v1379, %v1381
    %v1398 = vsel %vm1384, %v1381, %v1383
    %1413 = vst [vmem:[#allocation2 + $0xe0] sm:$0x70] %v1385
    %1414 = vst [vmem:[#allocation2 + $0xe8] sm:$0x70] %v1386
    %1415 = vst [vmem:[#allocation2 + $0xf0] sm:$0x70] %v1387
    %1416 = vst [vmem:[#allocation2 + $0xf8] sm:$0x70] %v1388
    %1417 = vst [vmem:[#allocation2 + $0x100] sm:$0x70] %v1389
    %1418 = vst [vmem:[#allocation2 + $0x108] sm:$0x70] %v1390
    %1419 = vst.msk [vmem:[#allocation2 + $0x110] sm:$0x70] %vm498, %v1391
    %1420 = vst [vmem:[#allocation2 + $0x310] sm:$0x70] %v1392
    %1421 = vst [vmem:[#allocation2 + $0x318] sm:$0x70] %v1393
    %1422 = vst [vmem:[#allocation2 + $0x320] sm:$0x70] %v1394
    %1423 = vst [vmem:[#allocation2 + $0x328] sm:$0x70] %v1395
    %1424 = vst [vmem:[#allocation2 + $0x330] sm:$0x70] %v1396
    %1425 = vst [vmem:[#allocation2 + $0x338] sm:$0x70] %v1397
    %1426 = vst.msk [vmem:[#allocation2 + $0x340] sm:$0x70] %vm498, %v1398
    %v1427 = vld [vmem:[%s0] sm:$0x77]
    %v1428 = vld [vmem:[%s0 + $0x8] sm:$0x77]
    %v1429 = vld [vmem:[%s0 + $0x10] sm:$0x77]
    %v1430 = vld [vmem:[%s0 + $0x18] sm:$0x77]
    %v1431 = vld [vmem:[%s0 + $0x20] sm:$0x77]
    %v1432 = vld [vmem:[%s0 + $0x28] sm:$0x77]
    %v1433 = vld [vmem:[%s0 + $0x30] sm:$0x77]
    %v1434 = vld [vmem:[%s0 + $0x38] sm:$0x77]
    %v1443 = vcombine.high %v1427, %v1427
    %v1444 = vcombine.high %v1428, %v1428
    %v1445 = vcombine.high %v1429, %v1429
    %v1446 = vcombine.high %v1430, %v1430
    %v1447 = vcombine.high %v1431, %v1431
    %v1448 = vcombine.high %v1432, %v1432
    %v1449 = vcombine.high %v1433, %v1433
    %v1450 = vcombine.high %v1434, %v1434
    %v1451 = vrot.slane %v1427, 1
    %v1452 = vrot.slane %v1443, 1
    %v1453 = vrot.slane %v1428, 1
    %v1454 = vrot.slane %v1444, 1
    %v1455 = vrot.slane %v1429, 1
    %v1456 = vrot.slane %v1445, 1
    %v1457 = vrot.slane %v1430, 1
    %v1458 = vrot.slane %v1446, 1
    %v1459 = vrot.slane %v1431, 1
    %v1460 = vrot.slane %v1447, 1
    %v1461 = vrot.slane %v1432, 1
    %v1462 = vrot.slane %v1448, 1
    %v1463 = vrot.slane %v1433, 1
    %v1464 = vrot.slane %v1449, 1
    %v1465 = vrot.slane %v1434, 1
    %v1466 = vrot.slane %v1450, 1
    %1467 = vrot.lane.b32.xlu0 %v1451, 61
    %v1468 = vpop.permute.xlu0 %1467
    %1469 = vrot.lane.b32.xlu0 %v1452, 61
    %v1470 = vpop.permute.xlu0 %1469
    %1471 = vrot.lane.b32.xlu0 %v1453, 61
    %v1472 = vpop.permute.xlu0 %1471
    %1473 = vrot.lane.b32.xlu0 %v1454, 61
    %v1474 = vpop.permute.xlu0 %1473
    %1475 = vrot.lane.b32.xlu0 %v1455, 61
    %v1476 = vpop.permute.xlu0 %1475
    %1477 = vrot.lane.b32.xlu0 %v1456, 61
    %v1478 = vpop.permute.xlu0 %1477
    %1479 = vrot.lane.b32.xlu0 %v1457, 61
    %v1480 = vpop.permute.xlu0 %1479
    %1481 = vrot.lane.b32.xlu0 %v1458, 61
    %v1482 = vpop.permute.xlu0 %1481
    %1483 = vrot.lane.b32.xlu0 %v1459, 61
    %v1484 = vpop.permute.xlu0 %1483
    %1485 = vrot.lane.b32.xlu0 %v1460, 61
    %v1486 = vpop.permute.xlu0 %1485
    %1487 = vrot.lane.b32.xlu0 %v1461, 61
    %v1488 = vpop.permute.xlu0 %1487
    %1489 = vrot.lane.b32.xlu0 %v1462, 61
    %v1490 = vpop.permute.xlu0 %1489
    %1491 = vrot.lane.b32.xlu0 %v1463, 61
    %v1492 = vpop.permute.xlu0 %1491
    %1493 = vrot.lane.b32.xlu0 %v1464, 61
    %v1494 = vpop.permute.xlu0 %1493
    %1495 = vrot.lane.b32.xlu0 %v1465, 61
    %v1496 = vpop.permute.xlu0 %1495
    %1497 = vrot.lane.b32.xlu0 %v1466, 61
    %v1498 = vpop.permute.xlu0 %1497
    %vm1499 = vcmask 498688
    %v1500 = vsel %vm1499, %v1468, %v1470
    %v1501 = vsel %vm1499, %v1470, %v1472
    %v1502 = vsel %vm1499, %v1472, %v1474
    %v1503 = vsel %vm1499, %v1474, %v1476
    %v1504 = vsel %vm1499, %v1476, %v1478
    %v1505 = vsel %vm1499, %v1478, %v1480
    %v1506 = vsel %vm1499, %v1480, %v1482
    %v1507 = vsel %vm1499, %v1484, %v1486
    %v1508 = vsel %vm1499, %v1486, %v1488
    %v1509 = vsel %vm1499, %v1488, %v1490
    %v1510 = vsel %vm1499, %v1490, %v1492
    %v1511 = vsel %vm1499, %v1492, %v1494
    %v1512 = vsel %vm1499, %v1494, %v1496
    %v1513 = vsel %vm1499, %v1496, %v1498
    %1528 = vst [vmem:[#allocation2 + $0xe0] sm:$0x80] %v1500
    %1529 = vst [vmem:[#allocation2 + $0xe8] sm:$0x80] %v1501
    %1530 = vst [vmem:[#allocation2 + $0xf0] sm:$0x80] %v1502
    %1531 = vst [vmem:[#allocation2 + $0xf8] sm:$0x80] %v1503
    %1532 = vst [vmem:[#allocation2 + $0x100] sm:$0x80] %v1504
    %1533 = vst [vmem:[#allocation2 + $0x108] sm:$0x80] %v1505
    %1534 = vst.msk [vmem:[#allocation2 + $0x110] sm:$0x80] %vm614, %v1506
    %1535 = vst [vmem:[#allocation2 + $0x118] sm:$0x3] %v1500
    %1536 = vst [vmem:[#allocation2 + $0x120] sm:$0x3] %v1501
    %1537 = vst [vmem:[#allocation2 + $0x128] sm:$0x3] %v1502
    %1538 = vst [vmem:[#allocation2 + $0x130] sm:$0x3] %v1503
    %1539 = vst [vmem:[#allocation2 + $0x138] sm:$0x3] %v1504
    %1540 = vst [vmem:[#allocation2 + $0x140] sm:$0x3] %v1505
    %1541 = vst.msk [vmem:[#allocation2 + $0x148] sm:$0x3] %vm622, %v1506
    %1542 = vst [vmem:[#allocation2 + $0x310] sm:$0x80] %v1507
    %1543 = vst [vmem:[#allocation2 + $0x318] sm:$0x80] %v1508
    %1544 = vst [vmem:[#allocation2 + $0x320] sm:$0x80] %v1509
    %1545 = vst [vmem:[#allocation2 + $0x328] sm:$0x80] %v1510
    %1546 = vst [vmem:[#allocation2 + $0x330] sm:$0x80] %v1511
    %1547 = vst [vmem:[#allocation2 + $0x338] sm:$0x80] %v1512
    %1548 = vst.msk [vmem:[#allocation2 + $0x340] sm:$0x80] %vm614, %v1513
    %1549 = vst [vmem:[#allocation2 + $0x348] sm:$0x3] %v1507
    %1550 = vst [vmem:[#allocation2 + $0x350] sm:$0x3] %v1508
    %1551 = vst [vmem:[#allocation2 + $0x358] sm:$0x3] %v1509
    %1552 = vst [vmem:[#allocation2 + $0x360] sm:$0x3] %v1510
    %1553 = vst [vmem:[#allocation2 + $0x368] sm:$0x3] %v1511
    %1554 = vst [vmem:[#allocation2 + $0x370] sm:$0x3] %v1512
    %1555 = vst.msk [vmem:[#allocation2 + $0x378] sm:$0x3] %vm622, %v1513
    %v1556 = vld [vmem:[%s0] sm:$0x77]
    %v1557 = vld [vmem:[%s0 + $0x8] sm:$0x77]
    %v1558 = vld [vmem:[%s0 + $0x10] sm:$0x77]
    %v1559 = vld [vmem:[%s0 + $0x18] sm:$0x77]
    %v1560 = vld [vmem:[%s0 + $0x20] sm:$0x77]
    %v1561 = vld [vmem:[%s0 + $0x28] sm:$0x77]
    %v1562 = vld [vmem:[%s0 + $0x30] sm:$0x77]
    %v1563 = vld [vmem:[%s0 + $0x38] sm:$0x77]
    %v1572 = vcombine.high %v1556, %v1556
    %v1573 = vcombine.high %v1557, %v1557
    %v1574 = vcombine.high %v1558, %v1558
    %v1575 = vcombine.high %v1559, %v1559
    %v1576 = vcombine.high %v1560, %v1560
    %v1577 = vcombine.high %v1561, %v1561
    %v1578 = vcombine.high %v1562, %v1562
    %v1579 = vcombine.high %v1563, %v1563
    %v1580 = vrot.slane %v1556, 6
    %v1581 = vrot.slane %v1572, 6
    %v1582 = vrot.slane %v1557, 6
    %v1583 = vrot.slane %v1573, 6
    %v1584 = vrot.slane %v1558, 6
    %v1585 = vrot.slane %v1574, 6
    %v1586 = vrot.slane %v1559, 6
    %v1587 = vrot.slane %v1575, 6
    %v1588 = vrot.slane %v1560, 6
    %v1589 = vrot.slane %v1576, 6
    %v1590 = vrot.slane %v1561, 6
    %v1591 = vrot.slane %v1577, 6
    %v1592 = vrot.slane %v1562, 6
    %v1593 = vrot.slane %v1578, 6
    %v1594 = vrot.slane %v1563, 6
    %v1595 = vrot.slane %v1579, 6
    %1596 = vrot.lane.b32.xlu0 %v1580, 60
    %v1597 = vpop.permute.xlu0 %1596
    %1598 = vrot.lane.b32.xlu0 %v1581, 60
    %v1599 = vpop.permute.xlu0 %1598
    %1600 = vrot.lane.b32.xlu0 %v1582, 60
    %v1601 = vpop.permute.xlu0 %1600
    %1602 = vrot.lane.b32.xlu0 %v1583, 60
    %v1603 = vpop.permute.xlu0 %1602
    %1604 = vrot.lane.b32.xlu0 %v1584, 60
    %v1605 = vpop.permute.xlu0 %1604
    %1606 = vrot.lane.b32.xlu0 %v1585, 60
    %v1607 = vpop.permute.xlu0 %1606
    %1608 = vrot.lane.b32.xlu0 %v1586, 60
    %v1609 = vpop.permute.xlu0 %1608
    %1610 = vrot.lane.b32.xlu0 %v1587, 60
    %v1611 = vpop.permute.xlu0 %1610
    %1612 = vrot.lane.b32.xlu0 %v1588, 60
    %v1613 = vpop.permute.xlu0 %1612
    %1614 = vrot.lane.b32.xlu0 %v1589, 60
    %v1615 = vpop.permute.xlu0 %1614
    %1616 = vrot.lane.b32.xlu0 %v1590, 60
    %v1617 = vpop.permute.xlu0 %1616
    %1618 = vrot.lane.b32.xlu0 %v1591, 60
    %v1619 = vpop.permute.xlu0 %1618
    %1620 = vrot.lane.b32.xlu0 %v1592, 60
    %v1621 = vpop.permute.xlu0 %1620
    %1622 = vrot.lane.b32.xlu0 %v1593, 60
    %v1623 = vpop.permute.xlu0 %1622
    %1624 = vrot.lane.b32.xlu0 %v1594, 60
    %v1625 = vpop.permute.xlu0 %1624
    %1626 = vrot.lane.b32.xlu0 %v1595, 60
    %v1627 = vpop.permute.xlu0 %1626
    %vm1628 = vcmask 490496
    %v1629 = vsel %vm1628, %v1597, %v1599
    %v1630 = vsel %vm1628, %v1599, %v1601
    %v1631 = vsel %vm1628, %v1601, %v1603
    %v1632 = vsel %vm1628, %v1603, %v1605
    %v1633 = vsel %vm1628, %v1605, %v1607
    %v1634 = vsel %vm1628, %v1607, %v1609
    %v1635 = vsel %vm1628, %v1609, %v1611
    %v1636 = vsel %vm1628, %v1613, %v1615
    %v1637 = vsel %vm1628, %v1615, %v1617
    %v1638 = vsel %vm1628, %v1617, %v1619
    %v1639 = vsel %vm1628, %v1619, %v1621
    %v1640 = vsel %vm1628, %v1621, %v1623
    %v1641 = vsel %vm1628, %v1623, %v1625
    %v1642 = vsel %vm1628, %v1625, %v1627
    %1657 = vst [vmem:[#allocation2 + $0x118] sm:$0x1c] %v1629
    %1658 = vst [vmem:[#allocation2 + $0x120] sm:$0x1c] %v1630
    %1659 = vst [vmem:[#allocation2 + $0x128] sm:$0x1c] %v1631
    %1660 = vst [vmem:[#allocation2 + $0x130] sm:$0x1c] %v1632
    %1661 = vst [vmem:[#allocation2 + $0x138] sm:$0x1c] %v1633
    %1662 = vst [vmem:[#allocation2 + $0x140] sm:$0x1c] %v1634
    %1663 = vst.msk [vmem:[#allocation2 + $0x148] sm:$0x1c] %vm745, %v1635
    %1664 = vst [vmem:[#allocation2 + $0x348] sm:$0x1c] %v1636
    %1665 = vst [vmem:[#allocation2 + $0x350] sm:$0x1c] %v1637
    %1666 = vst [vmem:[#allocation2 + $0x358] sm:$0x1c] %v1638
    %1667 = vst [vmem:[#allocation2 + $0x360] sm:$0x1c] %v1639
    %1668 = vst [vmem:[#allocation2 + $0x368] sm:$0x1c] %v1640
    %1669 = vst [vmem:[#allocation2 + $0x370] sm:$0x1c] %v1641
    %1670 = vst.msk [vmem:[#allocation2 + $0x378] sm:$0x1c] %vm745, %v1642
    %v1671 = vld [vmem:[%s0] sm:$0x77]
    %v1672 = vld [vmem:[%s0 + $0x8] sm:$0x77]
    %v1673 = vld [vmem:[%s0 + $0x10] sm:$0x77]
    %v1674 = vld [vmem:[%s0 + $0x18] sm:$0x77]
    %v1675 = vld [vmem:[%s0 + $0x20] sm:$0x77]
    %v1676 = vld [vmem:[%s0 + $0x28] sm:$0x77]
    %v1677 = vld [vmem:[%s0 + $0x30] sm:$0x77]
    %v1678 = vld [vmem:[%s0 + $0x38] sm:$0x77]
    %v1687 = vcombine.high %v1671, %v1671
    %v1688 = vcombine.high %v1672, %v1672
    %v1689 = vcombine.high %v1673, %v1673
    %v1690 = vcombine.high %v1674, %v1674
    %v1691 = vcombine.high %v1675, %v1675
    %v1692 = vcombine.high %v1676, %v1676
    %v1693 = vcombine.high %v1677, %v1677
    %v1694 = vcombine.high %v1678, %v1678
    %v1695 = vrot.slane %v1671, 3
    %v1696 = vrot.slane %v1687, 3
    %v1697 = vrot.slane %v1672, 3
    %v1698 = vrot.slane %v1688, 3
    %v1699 = vrot.slane %v1673, 3
    %v1700 = vrot.slane %v1689, 3
    %v1701 = vrot.slane %v1674, 3
    %v1702 = vrot.slane %v1690, 3
    %v1703 = vrot.slane %v1675, 3
    %v1704 = vrot.slane %v1691, 3
    %v1705 = vrot.slane %v1676, 3
    %v1706 = vrot.slane %v1692, 3
    %v1707 = vrot.slane %v1677, 3
    %v1708 = vrot.slane %v1693, 3
    %v1709 = vrot.slane %v1678, 3
    %v1710 = vrot.slane %v1694, 3
    %1711 = vrot.lane.b32.xlu0 %v1695, 32
    %v1712 = vpop.permute.xlu0 %1711
    %1713 = vrot.lane.b32.xlu0 %v1696, 32
    %v1714 = vpop.permute.xlu0 %1713
    %1715 = vrot.lane.b32.xlu0 %v1697, 32
    %v1716 = vpop.permute.xlu0 %1715
    %1717 = vrot.lane.b32.xlu0 %v1698, 32
    %v1718 = vpop.permute.xlu0 %1717
    %1719 = vrot.lane.b32.xlu0 %v1699, 32
    %v1720 = vpop.permute.xlu0 %1719
    %1721 = vrot.lane.b32.xlu0 %v1700, 32
    %v1722 = vpop.permute.xlu0 %1721
    %1723 = vrot.lane.b32.xlu0 %v1701, 32
    %v1724 = vpop.permute.xlu0 %1723
    %1725 = vrot.lane.b32.xlu0 %v1702, 32
    %v1726 = vpop.permute.xlu0 %1725
    %1727 = vrot.lane.b32.xlu0 %v1703, 32
    %v1728 = vpop.permute.xlu0 %1727
    %1729 = vrot.lane.b32.xlu0 %v1704, 32
    %v1730 = vpop.permute.xlu0 %1729
    %1731 = vrot.lane.b32.xlu0 %v1705, 32
    %v1732 = vpop.permute.xlu0 %1731
    %1733 = vrot.lane.b32.xlu0 %v1706, 32
    %v1734 = vpop.permute.xlu0 %1733
    %1735 = vrot.lane.b32.xlu0 %v1707, 32
    %v1736 = vpop.permute.xlu0 %1735
    %1737 = vrot.lane.b32.xlu0 %v1708, 32
    %v1738 = vpop.permute.xlu0 %1737
    %1739 = vrot.lane.b32.xlu0 %v1709, 32
    %v1740 = vpop.permute.xlu0 %1739
    %1741 = vrot.lane.b32.xlu0 %v1710, 32
    %v1742 = vpop.permute.xlu0 %1741
    %vm1743 = vcmask 261120
    %v1744 = vsel %vm1743, %v1712, %v1714
    %v1745 = vsel %vm1743, %v1714, %v1716
    %v1746 = vsel %vm1743, %v1716, %v1718
    %v1747 = vsel %vm1743, %v1718, %v1720
    %v1748 = vsel %vm1743, %v1720, %v1722
    %v1749 = vsel %vm1743, %v1722, %v1724
    %v1750 = vsel %vm1743, %v1724, %v1726
    %v1751 = vsel %vm1743, %v1728, %v1730
    %v1752 = vsel %vm1743, %v1730, %v1732
    %v1753 = vsel %vm1743, %v1732, %v1734
    %v1754 = vsel %vm1743, %v1734, %v1736
    %v1755 = vsel %vm1743, %v1736, %v1738
    %v1756 = vsel %vm1743, %v1738, %v1740
    %v1757 = vsel %vm1743, %v1740, %v1742
    %1772 = vst [vmem:[#allocation2 + $0x118] sm:$0xe0] %v1744
    %1773 = vst [vmem:[#allocation2 + $0x120] sm:$0xe0] %v1745
    %1774 = vst [vmem:[#allocation2 + $0x128] sm:$0xe0] %v1746
    %1775 = vst [vmem:[#allocation2 + $0x130] sm:$0xe0] %v1747
    %1776 = vst [vmem:[#allocation2 + $0x138] sm:$0xe0] %v1748
    %1777 = vst [vmem:[#allocation2 + $0x140] sm:$0xe0] %v1749
    %1778 = vst.msk [vmem:[#allocation2 + $0x148] sm:$0xe0] %vm861, %v1750
    %1779 = vst [vmem:[#allocation2 + $0x348] sm:$0xe0] %v1751
    %1780 = vst [vmem:[#allocation2 + $0x350] sm:$0xe0] %v1752
    %1781 = vst [vmem:[#allocation2 + $0x358] sm:$0xe0] %v1753
    %1782 = vst [vmem:[#allocation2 + $0x360] sm:$0xe0] %v1754
    %1783 = vst [vmem:[#allocation2 + $0x368] sm:$0xe0] %v1755
    %1784 = vst [vmem:[#allocation2 + $0x370] sm:$0xe0] %v1756
    %1785 = vst.msk [vmem:[#allocation2 + $0x378] sm:$0xe0] %vm861, %v1757
    %v1786 = vld [vmem:[%s0] sm:$0x77]
    %v1787 = vld [vmem:[%s0 + $0x8] sm:$0x77]
    %v1788 = vld [vmem:[%s0 + $0x10] sm:$0x77]
    %v1789 = vld [vmem:[%s0 + $0x18] sm:$0x77]
    %v1790 = vld [vmem:[%s0 + $0x20] sm:$0x77]
    %v1791 = vld [vmem:[%s0 + $0x28] sm:$0x77]
    %v1792 = vld [vmem:[%s0 + $0x30] sm:$0x77]
    %v1793 = vld [vmem:[%s0 + $0x38] sm:$0x77]
    %v1802 = vcombine.high %v1786, %v1786
    %v1803 = vcombine.high %v1787, %v1787
    %v1804 = vcombine.high %v1788, %v1788
    %v1805 = vcombine.high %v1789, %v1789
    %v1806 = vcombine.high %v1790, %v1790
    %v1807 = vcombine.high %v1791, %v1791
    %v1808 = vcombine.high %v1792, %v1792
    %v1809 = vcombine.high %v1793, %v1793
    %1810 = vrot.lane.b32.xlu0 %v1786, 31
    %v1811 = vpop.permute.xlu0 %1810
    %1812 = vrot.lane.b32.xlu0 %v1802, 31
    %v1813 = vpop.permute.xlu0 %1812
    %1814 = vrot.lane.b32.xlu0 %v1787, 31
    %v1815 = vpop.permute.xlu0 %1814
    %1816 = vrot.lane.b32.xlu0 %v1803, 31
    %v1817 = vpop.permute.xlu0 %1816
    %1818 = vrot.lane.b32.xlu0 %v1788, 31
    %v1819 = vpop.permute.xlu0 %1818
    %1820 = vrot.lane.b32.xlu0 %v1804, 31
    %v1821 = vpop.permute.xlu0 %1820
    %1822 = vrot.lane.b32.xlu0 %v1789, 31
    %v1823 = vpop.permute.xlu0 %1822
    %1824 = vrot.lane.b32.xlu0 %v1805, 31
    %v1825 = vpop.permute.xlu0 %1824
    %1826 = vrot.lane.b32.xlu0 %v1790, 31
    %v1827 = vpop.permute.xlu0 %1826
    %1828 = vrot.lane.b32.xlu0 %v1806, 31
    %v1829 = vpop.permute.xlu0 %1828
    %1830 = vrot.lane.b32.xlu0 %v1791, 31
    %v1831 = vpop.permute.xlu0 %1830
    %1832 = vrot.lane.b32.xlu0 %v1807, 31
    %v1833 = vpop.permute.xlu0 %1832
    %1834 = vrot.lane.b32.xlu0 %v1792, 31
    %v1835 = vpop.permute.xlu0 %1834
    %1836 = vrot.lane.b32.xlu0 %v1808, 31
    %v1837 = vpop.permute.xlu0 %1836
    %1838 = vrot.lane.b32.xlu0 %v1793, 31
    %v1839 = vpop.permute.xlu0 %1838
    %1840 = vrot.lane.b32.xlu0 %v1809, 31
    %v1841 = vpop.permute.xlu0 %1840
    %vm1842 = vcmask 252928
    %v1843 = vsel %vm1842, %v1811, %v1813
    %v1844 = vsel %vm1842, %v1813, %v1815
    %v1845 = vsel %vm1842, %v1815, %v1817
    %v1846 = vsel %vm1842, %v1817, %v1819
    %v1847 = vsel %vm1842, %v1819, %v1821
    %v1848 = vsel %vm1842, %v1821, %v1823
    %v1849 = vsel %vm1842, %v1823, %v1825
    %v1850 = vsel %vm1842, %v1827, %v1829
    %v1851 = vsel %vm1842, %v1829, %v1831
    %v1852 = vsel %vm1842, %v1831, %v1833
    %v1853 = vsel %vm1842, %v1833, %v1835
    %v1854 = vsel %vm1842, %v1835, %v1837
    %v1855 = vsel %vm1842, %v1837, %v1839
    %v1856 = vsel %vm1842, %v1839, %v1841
    %1871 = vst [vmem:[#allocation2 + $0x150] sm:$0x7] %v1843
    %1872 = vst [vmem:[#allocation2 + $0x158] sm:$0x7] %v1844
    %1873 = vst [vmem:[#allocation2 + $0x160] sm:$0x7] %v1845
    %1874 = vst [vmem:[#allocation2 + $0x168] sm:$0x7] %v1846
    %1875 = vst [vmem:[#allocation2 + $0x170] sm:$0x7] %v1847
    %1876 = vst [vmem:[#allocation2 + $0x178] sm:$0x7] %v1848
    %1877 = vst.msk [vmem:[#allocation2 + $0x180] sm:$0x7] %vm71, %v1849
    %1878 = vst [vmem:[#allocation2 + $0x380] sm:$0x7] %v1850
    %1879 = vst [vmem:[#allocation2 + $0x388] sm:$0x7] %v1851
    %1880 = vst [vmem:[#allocation2 + $0x390] sm:$0x7] %v1852
    %1881 = vst [vmem:[#allocation2 + $0x398] sm:$0x7] %v1853
    %1882 = vst [vmem:[#allocation2 + $0x3a0] sm:$0x7] %v1854
    %1883 = vst [vmem:[#allocation2 + $0x3a8] sm:$0x7] %v1855
    %1884 = vst.msk [vmem:[#allocation2 + $0x3b0] sm:$0x7] %vm71, %v1856
    %v1885 = vld [vmem:[%s0] sm:$0x77]
    %v1886 = vld [vmem:[%s0 + $0x8] sm:$0x77]
    %v1887 = vld [vmem:[%s0 + $0x10] sm:$0x77]
    %v1888 = vld [vmem:[%s0 + $0x18] sm:$0x77]
    %v1889 = vld [vmem:[%s0 + $0x20] sm:$0x77]
    %v1890 = vld [vmem:[%s0 + $0x28] sm:$0x77]
    %v1891 = vld [vmem:[%s0 + $0x30] sm:$0x77]
    %v1892 = vld [vmem:[%s0 + $0x38] sm:$0x77]
    %v1901 = vcombine.high %v1885, %v1885
    %v1902 = vcombine.high %v1886, %v1886
    %v1903 = vcombine.high %v1887, %v1887
    %v1904 = vcombine.high %v1888, %v1888
    %v1905 = vcombine.high %v1889, %v1889
    %v1906 = vcombine.high %v1890, %v1890
    %v1907 = vcombine.high %v1891, %v1891
    %v1908 = vcombine.high %v1892, %v1892
    %v1909 = vrot.slane %v1885, 5
    %v1910 = vrot.slane %v1901, 5
    %v1911 = vrot.slane %v1886, 5
    %v1912 = vrot.slane %v1902, 5
    %v1913 = vrot.slane %v1887, 5
    %v1914 = vrot.slane %v1903, 5
    %v1915 = vrot.slane %v1888, 5
    %v1916 = vrot.slane %v1904, 5
    %v1917 = vrot.slane %v1889, 5
    %v1918 = vrot.slane %v1905, 5
    %v1919 = vrot.slane %v1890, 5
    %v1920 = vrot.slane %v1906, 5
    %v1921 = vrot.slane %v1891, 5
    %v1922 = vrot.slane %v1907, 5
    %v1923 = vrot.slane %v1892, 5
    %v1924 = vrot.slane %v1908, 5
    %1925 = vrot.lane.b32.xlu0 %v1909, 30
    %v1926 = vpop.permute.xlu0 %1925
    %1927 = vrot.lane.b32.xlu0 %v1910, 30
    %v1928 = vpop.permute.xlu0 %1927
    %1929 = vrot.lane.b32.xlu0 %v1911, 30
    %v1930 = vpop.permute.xlu0 %1929
    %1931 = vrot.lane.b32.xlu0 %v1912, 30
    %v1932 = vpop.permute.xlu0 %1931
    %1933 = vrot.lane.b32.xlu0 %v1913, 30
    %v1934 = vpop.permute.xlu0 %1933
    %1935 = vrot.lane.b32.xlu0 %v1914, 30
    %v1936 = vpop.permute.xlu0 %1935
    %1937 = vrot.lane.b32.xlu0 %v1915, 30
    %v1938 = vpop.permute.xlu0 %1937
    %1939 = vrot.lane.b32.xlu0 %v1916, 30
    %v1940 = vpop.permute.xlu0 %1939
    %1941 = vrot.lane.b32.xlu0 %v1917, 30
    %v1942 = vpop.permute.xlu0 %1941
    %1943 = vrot.lane.b32.xlu0 %v1918, 30
    %v1944 = vpop.permute.xlu0 %1943
    %1945 = vrot.lane.b32.xlu0 %v1919, 30
    %v1946 = vpop.permute.xlu0 %1945
    %1947 = vrot.lane.b32.xlu0 %v1920, 30
    %v1948 = vpop.permute.xlu0 %1947
    %1949 = vrot.lane.b32.xlu0 %v1921, 30
    %v1950 = vpop.permute.xlu0 %1949
    %1951 = vrot.lane.b32.xlu0 %v1922, 30
    %v1952 = vpop.permute.xlu0 %1951
    %1953 = vrot.lane.b32.xlu0 %v1923, 30
    %v1954 = vpop.permute.xlu0 %1953
    %1955 = vrot.lane.b32.xlu0 %v1924, 30
    %v1956 = vpop.permute.xlu0 %1955
    %vm1957 = vcmask 244736
    %v1958 = vsel %vm1957, %v1926, %v1928
    %v1959 = vsel %vm1957, %v1928, %v1930
    %v1960 = vsel %vm1957, %v1930, %v1932
    %v1961 = vsel %vm1957, %v1932, %v1934
    %v1962 = vsel %vm1957, %v1934, %v1936
    %v1963 = vsel %vm1957, %v1936, %v1938
    %v1964 = vsel %vm1957, %v1938, %v1940
    %v1965 = vsel %vm1957, %v1942, %v1944
    %v1966 = vsel %vm1957, %v1944, %v1946
    %v1967 = vsel %vm1957, %v1946, %v1948
    %v1968 = vsel %vm1957, %v1948, %v1950
    %v1969 = vsel %vm1957, %v1950, %v1952
    %v1970 = vsel %vm1957, %v1952, %v1954
    %v1971 = vsel %vm1957, %v1954, %v1956
    %1986 = vst [vmem:[#allocation2 + $0x150] sm:$0x38] %v1958
    %1987 = vst [vmem:[#allocation2 + $0x158] sm:$0x38] %v1959
    %1988 = vst [vmem:[#allocation2 + $0x160] sm:$0x38] %v1960
    %1989 = vst [vmem:[#allocation2 + $0x168] sm:$0x38] %v1961
    %1990 = vst [vmem:[#allocation2 + $0x170] sm:$0x38] %v1962
    %1991 = vst [vmem:[#allocation2 + $0x178] sm:$0x38] %v1963
    %1992 = vst.msk [vmem:[#allocation2 + $0x180] sm:$0x38] %vm177, %v1964
    %1993 = vst [vmem:[#allocation2 + $0x380] sm:$0x38] %v1965
    %1994 = vst [vmem:[#allocation2 + $0x388] sm:$0x38] %v1966
    %1995 = vst [vmem:[#allocation2 + $0x390] sm:$0x38] %v1967
    %1996 = vst [vmem:[#allocation2 + $0x398] sm:$0x38] %v1968
    %1997 = vst [vmem:[#allocation2 + $0x3a0] sm:$0x38] %v1969
    %1998 = vst [vmem:[#allocation2 + $0x3a8] sm:$0x38] %v1970
    %1999 = vst.msk [vmem:[#allocation2 + $0x3b0] sm:$0x38] %vm177, %v1971
    %v2000 = vld [vmem:[%s0] sm:$0x77]
    %v2001 = vld [vmem:[%s0 + $0x8] sm:$0x77]
    %v2002 = vld [vmem:[%s0 + $0x10] sm:$0x77]
    %v2003 = vld [vmem:[%s0 + $0x18] sm:$0x77]
    %v2004 = vld [vmem:[%s0 + $0x20] sm:$0x77]
    %v2005 = vld [vmem:[%s0 + $0x28] sm:$0x77]
    %v2006 = vld [vmem:[%s0 + $0x30] sm:$0x77]
    %v2007 = vld [vmem:[%s0 + $0x38] sm:$0x77]
    %v2016 = vcombine.high %v2000, %v2000
    %v2017 = vcombine.high %v2001, %v2001
    %v2018 = vcombine.high %v2002, %v2002
    %v2019 = vcombine.high %v2003, %v2003
    %v2020 = vcombine.high %v2004, %v2004
    %v2021 = vcombine.high %v2005, %v2005
    %v2022 = vcombine.high %v2006, %v2006
    %v2023 = vcombine.high %v2007, %v2007
    %v2024 = vrot.slane %v2000, 2
    %v2025 = vrot.slane %v2016, 2
    %v2026 = vrot.slane %v2001, 2
    %v2027 = vrot.slane %v2017, 2
    %v2028 = vrot.slane %v2002, 2
    %v2029 = vrot.slane %v2018, 2
    %v2030 = vrot.slane %v2003, 2
    %v2031 = vrot.slane %v2019, 2
    %v2032 = vrot.slane %v2004, 2
    %v2033 = vrot.slane %v2020, 2
    %v2034 = vrot.slane %v2005, 2
    %v2035 = vrot.slane %v2021, 2
    %v2036 = vrot.slane %v2006, 2
    %v2037 = vrot.slane %v2022, 2
    %v2038 = vrot.slane %v2007, 2
    %v2039 = vrot.slane %v2023, 2
    %2040 = vrot.lane.b32.xlu0 %v2024, 29
    %v2041 = vpop.permute.xlu0 %2040
    %2042 = vrot.lane.b32.xlu0 %v2025, 29
    %v2043 = vpop.permute.xlu0 %2042
    %2044 = vrot.lane.b32.xlu0 %v2026, 29
    %v2045 = vpop.permute.xlu0 %2044
    %2046 = vrot.lane.b32.xlu0 %v2027, 29
    %v2047 = vpop.permute.xlu0 %2046
    %2048 = vrot.lane.b32.xlu0 %v2028, 29
    %v2049 = vpop.permute.xlu0 %2048
    %2050 = vrot.lane.b32.xlu0 %v2029, 29
    %v2051 = vpop.permute.xlu0 %2050
    %2052 = vrot.lane.b32.xlu0 %v2030, 29
    %v2053 = vpop.permute.xlu0 %2052
    %2054 = vrot.lane.b32.xlu0 %v2031, 29
    %v2055 = vpop.permute.xlu0 %2054
    %2056 = vrot.lane.b32.xlu0 %v2032, 29
    %v2057 = vpop.permute.xlu0 %2056
    %2058 = vrot.lane.b32.xlu0 %v2033, 29
    %v2059 = vpop.permute.xlu0 %2058
    %2060 = vrot.lane.b32.xlu0 %v2034, 29
    %v2061 = vpop.permute.xlu0 %2060
    %2062 = vrot.lane.b32.xlu0 %v2035, 29
    %v2063 = vpop.permute.xlu0 %2062
    %2064 = vrot.lane.b32.xlu0 %v2036, 29
    %v2065 = vpop.permute.xlu0 %2064
    %2066 = vrot.lane.b32.xlu0 %v2037, 29
    %v2067 = vpop.permute.xlu0 %2066
    %2068 = vrot.lane.b32.xlu0 %v2038, 29
    %v2069 = vpop.permute.xlu0 %2068
    %2070 = vrot.lane.b32.xlu0 %v2039, 29
    %v2071 = vpop.permute.xlu0 %2070
    %vm2072 = vcmask 236544
    %v2073 = vsel %vm2072, %v2041, %v2043
    %v2074 = vsel %vm2072, %v2043, %v2045
    %v2075 = vsel %vm2072, %v2045, %v2047
    %v2076 = vsel %vm2072, %v2047, %v2049
    %v2077 = vsel %vm2072, %v2049, %v2051
    %v2078 = vsel %vm2072, %v2051, %v2053
    %v2079 = vsel %vm2072, %v2053, %v2055
    %v2080 = vsel %vm2072, %v2057, %v2059
    %v2081 = vsel %vm2072, %v2059, %v2061
    %v2082 = vsel %vm2072, %v2061, %v2063
    %v2083 = vsel %vm2072, %v2063, %v2065
    %v2084 = vsel %vm2072, %v2065, %v2067
    %v2085 = vsel %vm2072, %v2067, %v2069
    %v2086 = vsel %vm2072, %v2069, %v2071
    %2101 = vst [vmem:[#allocation2 + $0x150] sm:$0xc0] %v2073
    %2102 = vst [vmem:[#allocation2 + $0x158] sm:$0xc0] %v2074
    %2103 = vst [vmem:[#allocation2 + $0x160] sm:$0xc0] %v2075
    %2104 = vst [vmem:[#allocation2 + $0x168] sm:$0xc0] %v2076
    %2105 = vst [vmem:[#allocation2 + $0x170] sm:$0xc0] %v2077
    %2106 = vst [vmem:[#allocation2 + $0x178] sm:$0xc0] %v2078
    %2107 = vst.msk [vmem:[#allocation2 + $0x180] sm:$0xc0] %vm283, %v2079
    %2108 = vst [vmem:[#allocation2 + $0x188] sm:$0x1] %v2073
    %2109 = vst [vmem:[#allocation2 + $0x190] sm:$0x1] %v2074
    %2110 = vst [vmem:[#allocation2 + $0x198] sm:$0x1] %v2075
    %2111 = vst [vmem:[#allocation2 + $0x1a0] sm:$0x1] %v2076
    %2112 = vst [vmem:[#allocation2 + $0x1a8] sm:$0x1] %v2077
    %2113 = vst [vmem:[#allocation2 + $0x1b0] sm:$0x1] %v2078
    %2114 = vst.msk [vmem:[#allocation2 + $0x1b8] sm:$0x1] %vm291, %v2079
    %2115 = vst [vmem:[#allocation2 + $0x380] sm:$0xc0] %v2080
    %2116 = vst [vmem:[#allocation2 + $0x388] sm:$0xc0] %v2081
    %2117 = vst [vmem:[#allocation2 + $0x390] sm:$0xc0] %v2082
    %2118 = vst [vmem:[#allocation2 + $0x398] sm:$0xc0] %v2083
    %2119 = vst [vmem:[#allocation2 + $0x3a0] sm:$0xc0] %v2084
    %2120 = vst [vmem:[#allocation2 + $0x3a8] sm:$0xc0] %v2085
    %2121 = vst.msk [vmem:[#allocation2 + $0x3b0] sm:$0xc0] %vm283, %v2086
    %2122 = vst [vmem:[#allocation2 + $0x3b8] sm:$0x1] %v2080
    %2123 = vst [vmem:[#allocation2 + $0x3c0] sm:$0x1] %v2081
    %2124 = vst [vmem:[#allocation2 + $0x3c8] sm:$0x1] %v2082
    %2125 = vst [vmem:[#allocation2 + $0x3d0] sm:$0x1] %v2083
    %2126 = vst [vmem:[#allocation2 + $0x3d8] sm:$0x1] %v2084
    %2127 = vst [vmem:[#allocation2 + $0x3e0] sm:$0x1] %v2085
    %2128 = vst.msk [vmem:[#allocation2 + $0x3e8] sm:$0x1] %vm291, %v2086
    %v2129 = vld [vmem:[%s0] sm:$0x77]
    %v2130 = vld [vmem:[%s0 + $0x8] sm:$0x77]
    %v2131 = vld [vmem:[%s0 + $0x10] sm:$0x77]
    %v2132 = vld [vmem:[%s0 + $0x18] sm:$0x77]
    %v2133 = vld [vmem:[%s0 + $0x20] sm:$0x77]
    %v2134 = vld [vmem:[%s0 + $0x28] sm:$0x77]
    %v2135 = vld [vmem:[%s0 + $0x30] sm:$0x77]
    %v2136 = vld [vmem:[%s0 + $0x38] sm:$0x77]
    %v2145 = vcombine.high %v2129, %v2129
    %v2146 = vcombine.high %v2130, %v2130
    %v2147 = vcombine.high %v2131, %v2131
    %v2148 = vcombine.high %v2132, %v2132
    %v2149 = vcombine.high %v2133, %v2133
    %v2150 = vcombine.high %v2134, %v2134
    %v2151 = vcombine.high %v2135, %v2135
    %v2152 = vcombine.high %v2136, %v2136
    %v2153 = vrot.slane %v2129, 7
    %v2154 = vrot.slane %v2145, 7
    %v2155 = vrot.slane %v2130, 7
    %v2156 = vrot.slane %v2146, 7
    %v2157 = vrot.slane %v2131, 7
    %v2158 = vrot.slane %v2147, 7
    %v2159 = vrot.slane %v2132, 7
    %v2160 = vrot.slane %v2148, 7
    %v2161 = vrot.slane %v2133, 7
    %v2162 = vrot.slane %v2149, 7
    %v2163 = vrot.slane %v2134, 7
    %v2164 = vrot.slane %v2150, 7
    %v2165 = vrot.slane %v2135, 7
    %v2166 = vrot.slane %v2151, 7
    %v2167 = vrot.slane %v2136, 7
    %v2168 = vrot.slane %v2152, 7
    %2169 = vrot.lane.b32.xlu0 %v2153, 28
    %v2170 = vpop.permute.xlu0 %2169
    %2171 = vrot.lane.b32.xlu0 %v2154, 28
    %v2172 = vpop.permute.xlu0 %2171
    %2173 = vrot.lane.b32.xlu0 %v2155, 28
    %v2174 = vpop.permute.xlu0 %2173
    %2175 = vrot.lane.b32.xlu0 %v2156, 28
    %v2176 = vpop.permute.xlu0 %2175
    %2177 = vrot.lane.b32.xlu0 %v2157, 28
    %v2178 = vpop.permute.xlu0 %2177
    %2179 = vrot.lane.b32.xlu0 %v2158, 28
    %v2180 = vpop.permute.xlu0 %2179
    %2181 = vrot.lane.b32.xlu0 %v2159, 28
    %v2182 = vpop.permute.xlu0 %2181
    %2183 = vrot.lane.b32.xlu0 %v2160, 28
    %v2184 = vpop.permute.xlu0 %2183
    %2185 = vrot.lane.b32.xlu0 %v2161, 28
    %v2186 = vpop.permute.xlu0 %2185
    %2187 = vrot.lane.b32.xlu0 %v2162, 28
    %v2188 = vpop.permute.xlu0 %2187
    %2189 = vrot.lane.b32.xlu0 %v2163, 28
    %v2190 = vpop.permute.xlu0 %2189
    %2191 = vrot.lane.b32.xlu0 %v2164, 28
    %v2192 = vpop.permute.xlu0 %2191
    %2193 = vrot.lane.b32.xlu0 %v2165, 28
    %v2194 = vpop.permute.xlu0 %2193
    %2195 = vrot.lane.b32.xlu0 %v2166, 28
    %v2196 = vpop.permute.xlu0 %2195
    %2197 = vrot.lane.b32.xlu0 %v2167, 28
    %v2198 = vpop.permute.xlu0 %2197
    %2199 = vrot.lane.b32.xlu0 %v2168, 28
    %v2200 = vpop.permute.xlu0 %2199
    %vm2201 = vcmask 228352
    %v2202 = vsel %vm2201, %v2170, %v2172
    %v2203 = vsel %vm2201, %v2172, %v2174
    %v2204 = vsel %vm2201, %v2174, %v2176
    %v2205 = vsel %vm2201, %v2176, %v2178
    %v2206 = vsel %vm2201, %v2178, %v2180
    %v2207 = vsel %vm2201, %v2180, %v2182
    %v2208 = vsel %vm2201, %v2182, %v2184
    %v2209 = vsel %vm2201, %v2186, %v2188
    %v2210 = vsel %vm2201, %v2188, %v2190
    %v2211 = vsel %vm2201, %v2190, %v2192
    %v2212 = vsel %vm2201, %v2192, %v2194
    %v2213 = vsel %vm2201, %v2194, %v2196
    %v2214 = vsel %vm2201, %v2196, %v2198
    %v2215 = vsel %vm2201, %v2198, %v2200
    %2230 = vst [vmem:[#allocation2 + $0x188] sm:$0xe] %v2202
    %2231 = vst [vmem:[#allocation2 + $0x190] sm:$0xe] %v2203
    %2232 = vst [vmem:[#allocation2 + $0x198] sm:$0xe] %v2204
    %2233 = vst [vmem:[#allocation2 + $0x1a0] sm:$0xe] %v2205
    %2234 = vst [vmem:[#allocation2 + $0x1a8] sm:$0xe] %v2206
    %2235 = vst [vmem:[#allocation2 + $0x1b0] sm:$0xe] %v2207
    %2236 = vst.msk [vmem:[#allocation2 + $0x1b8] sm:$0xe] %vm404, %v2208
    %2237 = vst [vmem:[#allocation2 + $0x3b8] sm:$0xe] %v2209
    %2238 = vst [vmem:[#allocation2 + $0x3c0] sm:$0xe] %v2210
    %2239 = vst [vmem:[#allocation2 + $0x3c8] sm:$0xe] %v2211
    %2240 = vst [vmem:[#allocation2 + $0x3d0] sm:$0xe] %v2212
    %2241 = vst [vmem:[#allocation2 + $0x3d8] sm:$0xe] %v2213
    %2242 = vst [vmem:[#allocation2 + $0x3e0] sm:$0xe] %v2214
    %2243 = vst.msk [vmem:[#allocation2 + $0x3e8] sm:$0xe] %vm404, %v2215
    %v2244 = vld [vmem:[%s0 + $0x4] sm:$0x77]
    %v2245 = vld [vmem:[%s0 + $0xc] sm:$0x77]
    %v2246 = vld [vmem:[%s0 + $0x14] sm:$0x77]
    %v2247 = vld [vmem:[%s0 + $0x1c] sm:$0x7]
    %v2248 = vld [vmem:[%s0 + $0x24] sm:$0x77]
    %v2249 = vld [vmem:[%s0 + $0x2c] sm:$0x77]
    %v2250 = vld [vmem:[%s0 + $0x34] sm:$0x77]
    %v2251 = vld [vmem:[%s0 + $0x3c] sm:$0x7]
    %v2260 = vcombine.low %v2244, %v2244
    %v2261 = vcombine.low %v2245, %v2245
    %v2262 = vcombine.low %v2246, %v2246
    %v2263 = vcombine.low %v2247, %v2247
    %v2264 = vcombine.low %v2248, %v2248
    %v2265 = vcombine.low %v2249, %v2249
    %v2266 = vcombine.low %v2250, %v2250
    %v2267 = vcombine.low %v2251, %v2251
    %2276 = vst [vmem:[#allocation2 + $0x188] sm:$0x70] %v2260
    %2277 = vst [vmem:[#allocation2 + $0x190] sm:$0x70] %v2244
    %2278 = vst [vmem:[#allocation2 + $0x198] sm:$0x70] %v2261
    %2279 = vst [vmem:[#allocation2 + $0x1a0] sm:$0x70] %v2245
    %2280 = vst [vmem:[#allocation2 + $0x1a8] sm:$0x70] %v2262
    %2281 = vst [vmem:[#allocation2 + $0x1b0] sm:$0x70] %v2246
    %2282 = vst.msk [vmem:[#allocation2 + $0x1b8] sm:$0x70] %vm498, %v2263
    %2283 = vst [vmem:[#allocation2 + $0x3b8] sm:$0x70] %v2264
    %2284 = vst [vmem:[#allocation2 + $0x3c0] sm:$0x70] %v2248
    %2285 = vst [vmem:[#allocation2 + $0x3c8] sm:$0x70] %v2265
    %2286 = vst [vmem:[#allocation2 + $0x3d0] sm:$0x70] %v2249
    %2287 = vst [vmem:[#allocation2 + $0x3d8] sm:$0x70] %v2266
    %2288 = vst [vmem:[#allocation2 + $0x3e0] sm:$0x70] %v2250
    %2289 = vst.msk [vmem:[#allocation2 + $0x3e8] sm:$0x70] %vm498, %v2267
    %v2290 = vld [vmem:[%s0 + $0x4] sm:$0x77]
    %v2291 = vld [vmem:[%s0 + $0xc] sm:$0x77]
    %v2292 = vld [vmem:[%s0 + $0x14] sm:$0x77]
    %v2293 = vld [vmem:[%s0 + $0x1c] sm:$0x7]
    %v2294 = vld [vmem:[%s0 + $0x24] sm:$0x77]
    %v2295 = vld [vmem:[%s0 + $0x2c] sm:$0x77]
    %v2296 = vld [vmem:[%s0 + $0x34] sm:$0x77]
    %v2297 = vld [vmem:[%s0 + $0x3c] sm:$0x7]
    %v2306 = vcombine.high %v2290, %v2290
    %v2307 = vcombine.high %v2291, %v2291
    %v2308 = vcombine.high %v2292, %v2292
    %v2309 = vcombine.high %v2294, %v2294
    %v2310 = vcombine.high %v2295, %v2295
    %v2311 = vcombine.high %v2296, %v2296
    %v2312 = vrot.slane %v2290, 1
    %v2313 = vrot.slane %v2306, 1
    %v2314 = vrot.slane %v2291, 1
    %v2315 = vrot.slane %v2307, 1
    %v2316 = vrot.slane %v2292, 1
    %v2317 = vrot.slane %v2308, 1
    %v2318 = vrot.slane %v2293, 1
    %v2319 = vrot.slane %v2294, 1
    %v2320 = vrot.slane %v2309, 1
    %v2321 = vrot.slane %v2295, 1
    %v2322 = vrot.slane %v2310, 1
    %v2323 = vrot.slane %v2296, 1
    %v2324 = vrot.slane %v2311, 1
    %v2325 = vrot.slane %v2297, 1
    %2326 = vrot.lane.b32.xlu0 %v2312, 127
    %v2327 = vpop.permute.xlu0 %2326
    %2328 = vrot.lane.b32.xlu0 %v2313, 127
    %v2329 = vpop.permute.xlu0 %2328
    %2330 = vrot.lane.b32.xlu0 %v2314, 127
    %v2331 = vpop.permute.xlu0 %2330
    %2332 = vrot.lane.b32.xlu0 %v2315, 127
    %v2333 = vpop.permute.xlu0 %2332
    %2334 = vrot.lane.b32.xlu0 %v2316, 127
    %v2335 = vpop.permute.xlu0 %2334
    %2336 = vrot.lane.b32.xlu0 %v2317, 127
    %v2337 = vpop.permute.xlu0 %2336
    %2338 = vrot.lane.b32.xlu0 %v2318, 127
    %v2339 = vpop.permute.xlu0 %2338
    %2340 = vrot.lane.b32.xlu0 %v2319, 127
    %v2341 = vpop.permute.xlu0 %2340
    %2342 = vrot.lane.b32.xlu0 %v2320, 127
    %v2343 = vpop.permute.xlu0 %2342
    %2344 = vrot.lane.b32.xlu0 %v2321, 127
    %v2345 = vpop.permute.xlu0 %2344
    %2346 = vrot.lane.b32.xlu0 %v2322, 127
    %v2347 = vpop.permute.xlu0 %2346
    %2348 = vrot.lane.b32.xlu0 %v2323, 127
    %v2349 = vpop.permute.xlu0 %2348
    %2350 = vrot.lane.b32.xlu0 %v2324, 127
    %v2351 = vpop.permute.xlu0 %2350
    %2352 = vrot.lane.b32.xlu0 %v2325, 127
    %v2353 = vpop.permute.xlu0 %2352
    %v2354 = vsel %vm144, %v2327, %v2329
    %v2355 = vsel %vm144, %v2329, %v2331
    %v2356 = vsel %vm144, %v2331, %v2333
    %v2357 = vsel %vm144, %v2333, %v2335
    %v2358 = vsel %vm144, %v2335, %v2337
    %v2359 = vsel %vm144, %v2337, %v2339
    %v2360 = vsel %vm144, %v2341, %v2343
    %v2361 = vsel %vm144, %v2343, %v2345
    %v2362 = vsel %vm144, %v2345, %v2347
    %v2363 = vsel %vm144, %v2347, %v2349
    %v2364 = vsel %vm144, %v2349, %v2351
    %v2365 = vsel %vm144, %v2351, %v2353
    %2380 = vst [vmem:[#allocation2 + $0x188] sm:$0x80] %v2354
    %2381 = vst [vmem:[#allocation2 + $0x190] sm:$0x80] %v2355
    %2382 = vst [vmem:[#allocation2 + $0x198] sm:$0x80] %v2356
    %2383 = vst [vmem:[#allocation2 + $0x1a0] sm:$0x80] %v2357
    %2384 = vst [vmem:[#allocation2 + $0x1a8] sm:$0x80] %v2358
    %2385 = vst [vmem:[#allocation2 + $0x1b0] sm:$0x80] %v2359
    %2386 = vst.msk [vmem:[#allocation2 + $0x1b8] sm:$0x80] %vm614, %v2339
    %2387 = vst [vmem:[#allocation2 + $0x1c0] sm:$0x3] %v2354
    %2388 = vst [vmem:[#allocation2 + $0x1c8] sm:$0x3] %v2355
    %2389 = vst [vmem:[#allocation2 + $0x1d0] sm:$0x3] %v2356
    %2390 = vst [vmem:[#allocation2 + $0x1d8] sm:$0x3] %v2357
    %2391 = vst [vmem:[#allocation2 + $0x1e0] sm:$0x3] %v2358
    %2392 = vst [vmem:[#allocation2 + $0x1e8] sm:$0x3] %v2359
    %2393 = vst.msk [vmem:[#allocation2 + $0x1f0] sm:$0x3] %vm622, %v2339
    %2394 = vst [vmem:[#allocation2 + $0x3b8] sm:$0x80] %v2360
    %2395 = vst [vmem:[#allocation2 + $0x3c0] sm:$0x80] %v2361
    %2396 = vst [vmem:[#allocation2 + $0x3c8] sm:$0x80] %v2362
    %2397 = vst [vmem:[#allocation2 + $0x3d0] sm:$0x80] %v2363
    %2398 = vst [vmem:[#allocation2 + $0x3d8] sm:$0x80] %v2364
    %2399 = vst [vmem:[#allocation2 + $0x3e0] sm:$0x80] %v2365
    %2400 = vst.msk [vmem:[#allocation2 + $0x3e8] sm:$0x80] %vm614, %v2353
    %2401 = vst [vmem:[#allocation2 + $0x3f0] sm:$0x3] %v2360
    %2402 = vst [vmem:[#allocation2 + $0x3f8] sm:$0x3] %v2361
    %2403 = vst [vmem:[#allocation2 + $0x400] sm:$0x3] %v2362
    %2404 = vst [vmem:[#allocation2 + $0x408] sm:$0x3] %v2363
    %2405 = vst [vmem:[#allocation2 + $0x410] sm:$0x3] %v2364
    %2406 = vst [vmem:[#allocation2 + $0x418] sm:$0x3] %v2365
    %2407 = vst.msk [vmem:[#allocation2 + $0x420] sm:$0x3] %vm622, %v2353
    %v2408 = vld [vmem:[%s0 + $0x4] sm:$0x77]
    %v2409 = vld [vmem:[%s0 + $0xc] sm:$0x77]
    %v2410 = vld [vmem:[%s0 + $0x14] sm:$0x77]
    %v2411 = vld [vmem:[%s0 + $0x1c] sm:$0x7]
    %v2412 = vld [vmem:[%s0 + $0x24] sm:$0x77]
    %v2413 = vld [vmem:[%s0 + $0x2c] sm:$0x77]
    %v2414 = vld [vmem:[%s0 + $0x34] sm:$0x77]
    %v2415 = vld [vmem:[%s0 + $0x3c] sm:$0x7]
    %v2424 = vcombine.high %v2408, %v2408
    %v2425 = vcombine.high %v2409, %v2409
    %v2426 = vcombine.high %v2410, %v2410
    %v2427 = vcombine.high %v2412, %v2412
    %v2428 = vcombine.high %v2413, %v2413
    %v2429 = vcombine.high %v2414, %v2414
    %v2430 = vrot.slane %v2408, 6
    %v2431 = vrot.slane %v2424, 6
    %v2432 = vrot.slane %v2409, 6
    %v2433 = vrot.slane %v2425, 6
    %v2434 = vrot.slane %v2410, 6
    %v2435 = vrot.slane %v2426, 6
    %v2436 = vrot.slane %v2411, 6
    %v2437 = vrot.slane %v2412, 6
    %v2438 = vrot.slane %v2427, 6
    %v2439 = vrot.slane %v2413, 6
    %v2440 = vrot.slane %v2428, 6
    %v2441 = vrot.slane %v2414, 6
    %v2442 = vrot.slane %v2429, 6
    %v2443 = vrot.slane %v2415, 6
    %2444 = vrot.lane.b32.xlu0 %v2430, 126
    %v2445 = vpop.permute.xlu0 %2444
    %2446 = vrot.lane.b32.xlu0 %v2431, 126
    %v2447 = vpop.permute.xlu0 %2446
    %2448 = vrot.lane.b32.xlu0 %v2432, 126
    %v2449 = vpop.permute.xlu0 %2448
    %2450 = vrot.lane.b32.xlu0 %v2433, 126
    %v2451 = vpop.permute.xlu0 %2450
    %2452 = vrot.lane.b32.xlu0 %v2434, 126
    %v2453 = vpop.permute.xlu0 %2452
    %2454 = vrot.lane.b32.xlu0 %v2435, 126
    %v2455 = vpop.permute.xlu0 %2454
    %2456 = vrot.lane.b32.xlu0 %v2436, 126
    %v2457 = vpop.permute.xlu0 %2456
    %2458 = vrot.lane.b32.xlu0 %v2437, 126
    %v2459 = vpop.permute.xlu0 %2458
    %2460 = vrot.lane.b32.xlu0 %v2438, 126
    %v2461 = vpop.permute.xlu0 %2460
    %2462 = vrot.lane.b32.xlu0 %v2439, 126
    %v2463 = vpop.permute.xlu0 %2462
    %2464 = vrot.lane.b32.xlu0 %v2440, 126
    %v2465 = vpop.permute.xlu0 %2464
    %2466 = vrot.lane.b32.xlu0 %v2441, 126
    %v2467 = vpop.permute.xlu0 %2466
    %2468 = vrot.lane.b32.xlu0 %v2442, 126
    %v2469 = vpop.permute.xlu0 %2468
    %2470 = vrot.lane.b32.xlu0 %v2443, 126
    %v2471 = vpop.permute.xlu0 %2470
    %v2472 = vsel %vm250, %v2445, %v2447
    %v2473 = vsel %vm250, %v2447, %v2449
    %v2474 = vsel %vm250, %v2449, %v2451
    %v2475 = vsel %vm250, %v2451, %v2453
    %v2476 = vsel %vm250, %v2453, %v2455
    %v2477 = vsel %vm250, %v2455, %v2457
    %v2478 = vsel %vm250, %v2459, %v2461
    %v2479 = vsel %vm250, %v2461, %v2463
    %v2480 = vsel %vm250, %v2463, %v2465
    %v2481 = vsel %vm250, %v2465, %v2467
    %v2482 = vsel %vm250, %v2467, %v2469
    %v2483 = vsel %vm250, %v2469, %v2471
    %2498 = vst [vmem:[#allocation2 + $0x1c0] sm:$0x1c] %v2472
    %2499 = vst [vmem:[#allocation2 + $0x1c8] sm:$0x1c] %v2473
    %2500 = vst [vmem:[#allocation2 + $0x1d0] sm:$0x1c] %v2474
    %2501 = vst [vmem:[#allocation2 + $0x1d8] sm:$0x1c] %v2475
    %2502 = vst [vmem:[#allocation2 + $0x1e0] sm:$0x1c] %v2476
    %2503 = vst [vmem:[#allocation2 + $0x1e8] sm:$0x1c] %v2477
    %2504 = vst.msk [vmem:[#allocation2 + $0x1f0] sm:$0x1c] %vm745, %v2457
    %2505 = vst [vmem:[#allocation2 + $0x3f0] sm:$0x1c] %v2478
    %2506 = vst [vmem:[#allocation2 + $0x3f8] sm:$0x1c] %v2479
    %2507 = vst [vmem:[#allocation2 + $0x400] sm:$0x1c] %v2480
    %2508 = vst [vmem:[#allocation2 + $0x408] sm:$0x1c] %v2481
    %2509 = vst [vmem:[#allocation2 + $0x410] sm:$0x1c] %v2482
    %2510 = vst [vmem:[#allocation2 + $0x418] sm:$0x1c] %v2483
    %2511 = vst.msk [vmem:[#allocation2 + $0x420] sm:$0x1c] %vm745, %v2471
    %v2512 = vld [vmem:[%s0 + $0x4] sm:$0x77]
    %v2513 = vld [vmem:[%s0 + $0xc] sm:$0x77]
    %v2514 = vld [vmem:[%s0 + $0x14] sm:$0x77]
    %v2515 = vld [vmem:[%s0 + $0x1c] sm:$0x7]
    %v2516 = vld [vmem:[%s0 + $0x24] sm:$0x77]
    %v2517 = vld [vmem:[%s0 + $0x2c] sm:$0x77]
    %v2518 = vld [vmem:[%s0 + $0x34] sm:$0x77]
    %v2519 = vld [vmem:[%s0 + $0x3c] sm:$0x7]
    %v2528 = vcombine.high %v2512, %v2512
    %v2529 = vcombine.high %v2513, %v2513
    %v2530 = vcombine.high %v2514, %v2514
    %v2531 = vcombine.high %v2516, %v2516
    %v2532 = vcombine.high %v2517, %v2517
    %v2533 = vcombine.high %v2518, %v2518
    %v2534 = vrot.slane %v2512, 3
    %v2535 = vrot.slane %v2528, 3
    %v2536 = vrot.slane %v2513, 3
    %v2537 = vrot.slane %v2529, 3
    %v2538 = vrot.slane %v2514, 3
    %v2539 = vrot.slane %v2530, 3
    %v2540 = vrot.slane %v2515, 3
    %v2541 = vrot.slane %v2516, 3
    %v2542 = vrot.slane %v2531, 3
    %v2543 = vrot.slane %v2517, 3
    %v2544 = vrot.slane %v2532, 3
    %v2545 = vrot.slane %v2518, 3
    %v2546 = vrot.slane %v2533, 3
    %v2547 = vrot.slane %v2519, 3
    %2548 = vrot.lane.b32.xlu0 %v2534, 125
    %v2549 = vpop.permute.xlu0 %2548
    %2550 = vrot.lane.b32.xlu0 %v2535, 125
    %v2551 = vpop.permute.xlu0 %2550
    %2552 = vrot.lane.b32.xlu0 %v2536, 125
    %v2553 = vpop.permute.xlu0 %2552
    %2554 = vrot.lane.b32.xlu0 %v2537, 125
    %v2555 = vpop.permute.xlu0 %2554
    %2556 = vrot.lane.b32.xlu0 %v2538, 125
    %v2557 = vpop.permute.xlu0 %2556
    %2558 = vrot.lane.b32.xlu0 %v2539, 125
    %v2559 = vpop.permute.xlu0 %2558
    %2560 = vrot.lane.b32.xlu0 %v2540, 125
    %v2561 = vpop.permute.xlu0 %2560
    %2562 = vrot.lane.b32.xlu0 %v2541, 125
    %v2563 = vpop.permute.xlu0 %2562
    %2564 = vrot.lane.b32.xlu0 %v2542, 125
    %v2565 = vpop.permute.xlu0 %2564
    %2566 = vrot.lane.b32.xlu0 %v2543, 125
    %v2567 = vpop.permute.xlu0 %2566
    %2568 = vrot.lane.b32.xlu0 %v2544, 125
    %v2569 = vpop.permute.xlu0 %2568
    %2570 = vrot.lane.b32.xlu0 %v2545, 125
    %v2571 = vpop.permute.xlu0 %2570
    %2572 = vrot.lane.b32.xlu0 %v2546, 125
    %v2573 = vpop.permute.xlu0 %2572
    %2574 = vrot.lane.b32.xlu0 %v2547, 125
    %v2575 = vpop.permute.xlu0 %2574
    %v2576 = vsel %vm371, %v2549, %v2551
    %v2577 = vsel %vm371, %v2551, %v2553
    %v2578 = vsel %vm371, %v2553, %v2555
    %v2579 = vsel %vm371, %v2555, %v2557
    %v2580 = vsel %vm371, %v2557, %v2559
    %v2581 = vsel %vm371, %v2559, %v2561
    %v2582 = vsel %vm371, %v2563, %v2565
    %v2583 = vsel %vm371, %v2565, %v2567
    %v2584 = vsel %vm371, %v2567, %v2569
    %v2585 = vsel %vm371, %v2569, %v2571
    %v2586 = vsel %vm371, %v2571, %v2573
    %v2587 = vsel %vm371, %v2573, %v2575
    %2602 = vst [vmem:[#allocation2 + $0x1c0] sm:$0xe0] %v2576
    %2603 = vst [vmem:[#allocation2 + $0x1c8] sm:$0xe0] %v2577
    %2604 = vst [vmem:[#allocation2 + $0x1d0] sm:$0xe0] %v2578
    %2605 = vst [vmem:[#allocation2 + $0x1d8] sm:$0xe0] %v2579
    %2606 = vst [vmem:[#allocation2 + $0x1e0] sm:$0xe0] %v2580
    %2607 = vst [vmem:[#allocation2 + $0x1e8] sm:$0xe0] %v2581
    %2608 = vst.msk [vmem:[#allocation2 + $0x1f0] sm:$0xe0] %vm861, %v2561
    %2609 = vst [vmem:[#allocation2 + $0x3f0] sm:$0xe0] %v2582
    %2610 = vst [vmem:[#allocation2 + $0x3f8] sm:$0xe0] %v2583
    %2611 = vst [vmem:[#allocation2 + $0x400] sm:$0xe0] %v2584
    %2612 = vst [vmem:[#allocation2 + $0x408] sm:$0xe0] %v2585
    %2613 = vst [vmem:[#allocation2 + $0x410] sm:$0xe0] %v2586
    %2614 = vst [vmem:[#allocation2 + $0x418] sm:$0xe0] %v2587
    %2615 = vst.msk [vmem:[#allocation2 + $0x420] sm:$0xe0] %vm861, %v2575
    %v2616 = vld [vmem:[%s0 + $0x4] sm:$0x77]
    %v2617 = vld [vmem:[%s0 + $0xc] sm:$0x77]
    %v2618 = vld [vmem:[%s0 + $0x14] sm:$0x77]
    %v2619 = vld [vmem:[%s0 + $0x1c] sm:$0x7]
    %v2620 = vld [vmem:[%s0 + $0x24] sm:$0x77]
    %v2621 = vld [vmem:[%s0 + $0x2c] sm:$0x77]
    %v2622 = vld [vmem:[%s0 + $0x34] sm:$0x77]
    %v2623 = vld [vmem:[%s0 + $0x3c] sm:$0x7]
    %v2632 = vcombine.high %v2616, %v2616
    %v2633 = vcombine.high %v2617, %v2617
    %v2634 = vcombine.high %v2618, %v2618
    %v2635 = vcombine.high %v2620, %v2620
    %v2636 = vcombine.high %v2621, %v2621
    %v2637 = vcombine.high %v2622, %v2622
    %2638 = vrot.lane.b32.xlu0 %v2616, 124
    %v2639 = vpop.permute.xlu0 %2638
    %2640 = vrot.lane.b32.xlu0 %v2632, 124
    %v2641 = vpop.permute.xlu0 %2640
    %2642 = vrot.lane.b32.xlu0 %v2617, 124
    %v2643 = vpop.permute.xlu0 %2642
    %2644 = vrot.lane.b32.xlu0 %v2633, 124
    %v2645 = vpop.permute.xlu0 %2644
    %2646 = vrot.lane.b32.xlu0 %v2618, 124
    %v2647 = vpop.permute.xlu0 %2646
    %2648 = vrot.lane.b32.xlu0 %v2634, 124
    %v2649 = vpop.permute.xlu0 %2648
    %2650 = vrot.lane.b32.xlu0 %v2619, 124
    %v2651 = vpop.permute.xlu0 %2650
    %2652 = vrot.lane.b32.xlu0 %v2620, 124
    %v2653 = vpop.permute.xlu0 %2652
    %2654 = vrot.lane.b32.xlu0 %v2635, 124
    %v2655 = vpop.permute.xlu0 %2654
    %2656 = vrot.lane.b32.xlu0 %v2621, 124
    %v2657 = vpop.permute.xlu0 %2656
    %2658 = vrot.lane.b32.xlu0 %v2636, 124
    %v2659 = vpop.permute.xlu0 %2658
    %2660 = vrot.lane.b32.xlu0 %v2622, 124
    %v2661 = vpop.permute.xlu0 %2660
    %2662 = vrot.lane.b32.xlu0 %v2637, 124
    %v2663 = vpop.permute.xlu0 %2662
    %2664 = vrot.lane.b32.xlu0 %v2623, 124
    %v2665 = vpop.permute.xlu0 %2664
    %v2666 = vsel %vm465, %v2639, %v2641
    %v2667 = vsel %vm465, %v2641, %v2643
    %v2668 = vsel %vm465, %v2643, %v2645
    %v2669 = vsel %vm465, %v2645, %v2647
    %v2670 = vsel %vm465, %v2647, %v2649
    %v2671 = vsel %vm465, %v2649, %v2651
    %v2672 = vsel %vm465, %v2653, %v2655
    %v2673 = vsel %vm465, %v2655, %v2657
    %v2674 = vsel %vm465, %v2657, %v2659
    %v2675 = vsel %vm465, %v2659, %v2661
    %v2676 = vsel %vm465, %v2661, %v2663
    %v2677 = vsel %vm465, %v2663, %v2665
    %2692 = vst [vmem:[#allocation2 + $0x1f8] sm:$0x7] %v2666
    %2693 = vst [vmem:[#allocation2 + $0x200] sm:$0x7] %v2667
    %2694 = vst [vmem:[#allocation2 + $0x208] sm:$0x7] %v2668
    %2695 = vst [vmem:[#allocation2 + $0x210] sm:$0x7] %v2669
    %2696 = vst [vmem:[#allocation2 + $0x218] sm:$0x7] %v2670
    %2697 = vst [vmem:[#allocation2 + $0x220] sm:$0x7] %v2671
    %2698 = vst.msk [vmem:[#allocation2 + $0x228] sm:$0x7] %vm71, %v2651
    %2699 = vst [vmem:[#allocation2 + $0x428] sm:$0x7] %v2672
    %2700 = vst [vmem:[#allocation2 + $0x430] sm:$0x7] %v2673
    %2701 = vst [vmem:[#allocation2 + $0x438] sm:$0x7] %v2674
    %2702 = vst [vmem:[#allocation2 + $0x440] sm:$0x7] %v2675
    %2703 = vst [vmem:[#allocation2 + $0x448] sm:$0x7] %v2676
    %2704 = vst [vmem:[#allocation2 + $0x450] sm:$0x7] %v2677
    %2705 = vst.msk [vmem:[#allocation2 + $0x458] sm:$0x7] %vm71, %v2665
    %v2706 = vld [vmem:[%s1] sm:$0x3f]
    %v2707 = vld [vmem:[%s2] sm:$0x3f]
    %v2708 = vld [vmem:[%s3] sm:$0xff]
    %v2709 = vld [vmem:[%s3 + $0x8] sm:$0xff]
    %v2710 = vld [vmem:[%s3 + $0x10] sm:$0xff]
    %v2711 = vld [vmem:[%s3 + $0x18] sm:$0xff]
    %v2712 = vld [vmem:[%s4] sm:$0xff]
    %v2713 = vld [vmem:[%s4 + $0x8] sm:$0xff]
    %vm2714 = vcmask 203776
    %2715 = vst.msk [vmem:[#allocation4] sm:$0xff] %vm2714, 0.0
    %2716 = vst.msk [vmem:[#allocation4 + $0x8] sm:$0xff] %vm2714, 0.0
    %2717 = vst.msk [vmem:[#allocation4 + $0x10] sm:$0xff] %vm2714, 0.0
    %2718 = vst.msk [vmem:[#allocation4 + $0x18] sm:$0xff] %vm2714, 0.0
    %2719 = vst.msk [vmem:[#allocation4 + $0x20] sm:$0xff] %vm2714, 0.0
    %2720 = vst.msk [vmem:[#allocation4 + $0x28] sm:$0xff] %vm2714, 0.0
    %2721 = vst.msk [vmem:[#allocation4 + $0x30] sm:$0xff] %vm2714, 0.0
    %2722 = vst.msk [vmem:[#allocation4 + $0x38] sm:$0xff] %vm2714, 0.0
    %2723 = vst.msk [vmem:[#allocation4 + $0x40] sm:$0xff] %vm2714, 0.0
    %2724 = vst.msk [vmem:[#allocation4 + $0x48] sm:$0xff] %vm2714, 0.0
    %2725 = vst.msk [vmem:[#allocation4 + $0x50] sm:$0xff] %vm2714, 0.0
    %2726 = vst.msk [vmem:[#allocation4 + $0x58] sm:$0xff] %vm2714, 0.0
    %2727 = vst.msk [vmem:[#allocation4 + $0x60] sm:$0xff] %vm2714, 0.0
    %2728 = vst.msk [vmem:[#allocation4 + $0x68] sm:$0xff] %vm2714, 0.0
    %2729 = vst.msk [vmem:[#allocation4 + $0x70] sm:$0xff] %vm2714, 0.0
    %2730 = vst.msk [vmem:[#allocation4 + $0x78] sm:$0xff] %vm2714, 0.0
    %v2731 = vld [vmem:[#allocation2] sm:$0xff]
    %v2732 = vld [vmem:[#allocation2 + $0x8] sm:$0xff]
    %v2733 = vld [vmem:[#allocation2 + $0x10] sm:$0xff]
    %v2734 = vld [vmem:[#allocation2 + $0x18] sm:$0xff]
    %v2735 = vld [vmem:[#allocation2 + $0x20] sm:$0xff]
    %v2736 = vld [vmem:[#allocation2 + $0x28] sm:$0xff]
    %v2737 = vld [vmem:[#allocation2 + $0x30] sm:$0xff]
    %v2738 = vld [vmem:[#allocation2 + $0x38] sm:$0xff]
    %v2739 = vld [vmem:[#allocation2 + $0x40] sm:$0xff]
    %v2740 = vld [vmem:[#allocation2 + $0x48] sm:$0xff]
    %v2741 = vld [vmem:[#allocation2 + $0x50] sm:$0xff]
    %v2742 = vld [vmem:[#allocation2 + $0x58] sm:$0xff]
    %v2743 = vld [vmem:[#allocation2 + $0x60] sm:$0xff]
    %v2744 = vld [vmem:[#allocation2 + $0x68] sm:$0xff]
    %v2745 = vld [vmem:[#allocation2 + $0x70] sm:$0xff]
    %v2746 = vld [vmem:[#allocation2 + $0x78] sm:$0xff]
    %v2747 = vld [vmem:[#allocation2 + $0x80] sm:$0xff]
    %v2748 = vld [vmem:[#allocation2 + $0x88] sm:$0xff]
    %v2749 = vld [vmem:[#allocation2 + $0x90] sm:$0xff]
    %v2750 = vld [vmem:[#allocation2 + $0x98] sm:$0xff]
    %v2751 = vld [vmem:[#allocation2 + $0xa0] sm:$0xff]
    %v2752 = vld [vmem:[#allocation2 + $0xa8] sm:$0xff]
    %v2753 = vld [vmem:[#allocation2 + $0xb0] sm:$0xff]
    %v2754 = vld [vmem:[#allocation2 + $0xb8] sm:$0xff]
    %v2755 = vld [vmem:[#allocation2 + $0xc0] sm:$0xff]
    %v2756 = vld [vmem:[#allocation2 + $0xc8] sm:$0xff]
    %v2757 = vld [vmem:[#allocation2 + $0xd0] sm:$0xff]
    %v2758 = vld [vmem:[#allocation2 + $0xd8] sm:$0xff]
    %v2759 = vld [vmem:[#allocation2 + $0xe0] sm:$0xff]
    %v2760 = vld [vmem:[#allocation2 + $0xe8] sm:$0xff]
    %v2761 = vld [vmem:[#allocation2 + $0xf0] sm:$0xff]
    %v2762 = vld [vmem:[#allocation2 + $0xf8] sm:$0xff]
    %v2763 = vld [vmem:[#allocation2 + $0x100] sm:$0xff]
    %v2764 = vld [vmem:[#allocation2 + $0x108] sm:$0xff]
    %v2765 = vld [vmem:[#allocation2 + $0x110] sm:$0xff]
    %v2766 = vld [vmem:[#allocation2 + $0x118] sm:$0xff]
    %v2767 = vld [vmem:[#allocation2 + $0x120] sm:$0xff]
    %v2768 = vld [vmem:[#allocation2 + $0x128] sm:$0xff]
    %v2769 = vld [vmem:[#allocation2 + $0x130] sm:$0xff]
    %v2770 = vld [vmem:[#allocation2 + $0x138] sm:$0xff]
    %v2771 = vld [vmem:[#allocation2 + $0x140] sm:$0xff]
    %v2772 = vld [vmem:[#allocation2 + $0x148] sm:$0xff]
    %v2773 = vld [vmem:[#allocation2 + $0x150] sm:$0xff]
    %v2774 = vld [vmem:[#allocation2 + $0x158] sm:$0xff]
    %v2775 = vld [vmem:[#allocation2 + $0x160] sm:$0xff]
    %v2776 = vld [vmem:[#allocation2 + $0x168] sm:$0xff]
    %v2777 = vld [vmem:[#allocation2 + $0x170] sm:$0xff]
    %v2778 = vld [vmem:[#allocation2 + $0x178] sm:$0xff]
    %v2779 = vld [vmem:[#allocation2 + $0x180] sm:$0xff]
    %v2780 = vld [vmem:[#allocation2 + $0x188] sm:$0xff]
    %v2781 = vld [vmem:[#allocation2 + $0x190] sm:$0xff]
    %v2782 = vld [vmem:[#allocation2 + $0x198] sm:$0xff]
    %v2783 = vld [vmem:[#allocation2 + $0x1a0] sm:$0xff]
    %v2784 = vld [vmem:[#allocation2 + $0x1a8] sm:$0xff]
    %v2785 = vld [vmem:[#allocation2 + $0x1b0] sm:$0xff]
    %v2786 = vld [vmem:[#allocation2 + $0x1b8] sm:$0xff]
    %v2787 = vld [vmem:[#allocation2 + $0x1c0] sm:$0xff]
    %v2788 = vld [vmem:[#allocation2 + $0x1c8] sm:$0xff]
    %v2789 = vld [vmem:[#allocation2 + $0x1d0] sm:$0xff]
    %v2790 = vld [vmem:[#allocation2 + $0x1d8] sm:$0xff]
    %v2791 = vld [vmem:[#allocation2 + $0x1e0] sm:$0xff]
    %v2792 = vld [vmem:[#allocation2 + $0x1e8] sm:$0xff]
    %v2793 = vld [vmem:[#allocation2 + $0x1f0] sm:$0xff]
    %v2794 = vld [vmem:[#allocation2 + $0x1f8] sm:$0x7]
    %v2795 = vld [vmem:[#allocation2 + $0x200] sm:$0x7]
    %v2796 = vld [vmem:[#allocation2 + $0x208] sm:$0x7]
    %v2797 = vld [vmem:[#allocation2 + $0x210] sm:$0x7]
    %v2798 = vld [vmem:[#allocation2 + $0x218] sm:$0x7]
    %v2799 = vld [vmem:[#allocation2 + $0x220] sm:$0x7]
    %v2800 = vld [vmem:[#allocation2 + $0x228] sm:$0x7]
    %2802 = vset.pattern.permute.xlu0 0
    %2803 = vperm.xlu0 %2802, %v2707
    %v2804 = vpop.permute.xlu0 %2803
    %vm2806 = vcmask 613376
    %v2808 = vsel %vm2806, %v2706, 0
    %vm2810 = vcmask 1042432
    %v2812 = vsel %vm2810, %v2794, 0
    %v2815 = vsel %vm2810, %v2795, 0
    %v2818 = vsel %vm2810, %v2796, 0
    %v2821 = vsel %vm2810, %v2797, 0
    %v2824 = vsel %vm2810, %v2798, 0
    %v2827 = vsel %vm2810, %v2799, 0
    %v2830 = vsel %vm2810, %v2800, 0
    %2832 = vmatprep.subr.mxu0 0.0
    %2833 = vmatpush1.msra.mxu0 0.0
    %2834 = vmatprep.subr.mxu0 0.0
    %2835 = vmatpush1.msra.mxu0 0.0
    %2836 = vmatprep.subr.mxu0 0.0
    %2837 = vmatpush1.msra.mxu0 0.0
    %2838 = vmatprep.subr.mxu0 0.0
    %2839 = vmatpush1.msra.mxu0 0.0
    %2840 = vmatprep.subr.mxu0 0.0
    %2841 = vmatpush1.msra.mxu0 0.0
    %2842 = vmatprep.subr.mxu0 0.0
    %2843 = vmatpush1.msra.mxu0 0.0
    %2844 = vmatprep.subr.mxu0 %v2815
    %2845 = vmatpush1.msra.mxu0 %v2812
    %2846 = vmatprep.subr.mxu0 %v2788
    %2847 = vmatpush1.msra.mxu0 %v2787
    %2848 = vmatprep.subr.mxu0 %v2781
    %2849 = vmatpush1.msra.mxu0 %v2780
    %2850 = vmatprep.subr.mxu0 %v2774
    %2851 = vmatpush1.msra.mxu0 %v2773
    %2852 = vmatprep.subr.mxu0 %v2767
    %2853 = vmatpush1.msra.mxu0 %v2766
    %2854 = vmatprep.subr.mxu0 %v2760
    %2855 = vmatpush1.msra.mxu0 %v2759
    %2856 = vmatprep.subr.mxu0 %v2753
    %2857 = vmatpush1.msra.mxu0 %v2752
    %2858 = vmatprep.subr.mxu0 %v2746
    %2859 = vmatpush1.msra.mxu0 %v2745
    %2860 = vmatprep.subr.mxu0 %v2739
    %2861 = vmatpush1.msra.mxu0 %v2738
    %2862 = vmatprep.subr.mxu0 %v2732
    %2863 = vmatpush1.msra.mxu0 %v2731
    %2864 = vmatprep.subr.mxu0 0.0
    %2865 = vmatpush2.msra.mxu0 0.0
    %2866 = vmatprep.subr.mxu0 0.0
    %2867 = vmatpush2.msra.mxu0 0.0
    %2868 = vmatprep.subr.mxu0 0.0
    %2869 = vmatpush2.msra.mxu0 0.0
    %2870 = vmatprep.subr.mxu0 0.0
    %2871 = vmatpush2.msra.mxu0 0.0
    %2872 = vmatprep.subr.mxu0 0.0
    %2873 = vmatpush2.msra.mxu0 0.0
    %2874 = vmatprep.subr.mxu0 0.0
    %2875 = vmatpush2.msra.mxu0 0.0
    %2876 = vmatprep.subr.mxu0 0.0
    %2877 = vmatpush2.msra.mxu0 0.0
    %2878 = vmatprep.subr.mxu0 0.0
    %2879 = vmatpush2.msra.mxu0 0.0
    %2880 = vmatprep.subr.mxu0 0.0
    %2881 = vmatpush2.msra.mxu0 0.0
    %2882 = vmatprep.subr.mxu0 0.0
    %2883 = vmatpush2.msra.mxu0 0.0
    %2884 = vmatprep.subr.mxu0 0.0
    %2885 = vmatpush2.msra.mxu0 0.0
    %2886 = vmatprep.subr.mxu0 0.0
    %2887 = vmatpush2.msra.mxu0 0.0
    %2888 = vmatprep.subr.mxu0 0.0
    %2889 = vmatpush2.msra.mxu0 0.0
    %2890 = vmatprep.subr.mxu0 0.0
    %2891 = vmatpush2.msra.mxu0 0.0
    %2892 = vmatprep.subr.mxu0 0.0
    %2893 = vmatpush2.msra.mxu0 0.0
    %2894 = vmatprep.subr.mxu0 0.0
    %2895 = vmatpush2.msra.mxu0 0.0
    %2896 = vmatprep.mubr.f32.mxu0 0.0
    %2897 = vmatmul.mubr.f32.gmra.mxu0 %v2808
    %v2898 = vpop.f32.mrf.mxu0
    %v2899 = vadd.f32 %v2804, %v2898
    %v2900 = vpop.f32.mrf.mxu0
    %v2901 = vadd.f32 %v2804, %v2900
    %2902 = vdwg.mxu0
    %2903 = vmatprep.subr.mxu0 0.0
    %2904 = vmatpush1.msra.mxu0 0.0
    %2905 = vmatprep.subr.mxu0 0.0
    %2906 = vmatpush1.msra.mxu0 0.0
    %2907 = vmatprep.subr.mxu0 0.0
    %2908 = vmatpush1.msra.mxu0 0.0
    %2909 = vmatprep.subr.mxu0 0.0
    %2910 = vmatpush1.msra.mxu0 0.0
    %2911 = vmatprep.subr.mxu0 0.0
    %2912 = vmatpush1.msra.mxu0 0.0
    %2913 = vmatprep.subr.mxu0 0.0
    %2914 = vmatpush1.msra.mxu0 0.0
    %2915 = vmatprep.subr.mxu0 %v2821
    %2916 = vmatpush1.msra.mxu0 %v2818
    %2917 = vmatprep.subr.mxu0 %v2790
    %2918 = vmatpush1.msra.mxu0 %v2789
    %2919 = vmatprep.subr.mxu0 %v2783
    %2920 = vmatpush1.msra.mxu0 %v2782
    %2921 = vmatprep.subr.mxu0 %v2776
    %2922 = vmatpush1.msra.mxu0 %v2775
    %2923 = vmatprep.subr.mxu0 %v2769
    %2924 = vmatpush1.msra.mxu0 %v2768
    %2925 = vmatprep.subr.mxu0 %v2762
    %2926 = vmatpush1.msra.mxu0 %v2761
    %2927 = vmatprep.subr.mxu0 %v2755
    %2928 = vmatpush1.msra.mxu0 %v2754
    %2929 = vmatprep.subr.mxu0 %v2748
    %2930 = vmatpush1.msra.mxu0 %v2747
    %2931 = vmatprep.subr.mxu0 %v2741
    %2932 = vmatpush1.msra.mxu0 %v2740
    %2933 = vmatprep.subr.mxu0 %v2734
    %2934 = vmatpush1.msra.mxu0 %v2733
    %2935 = vmatprep.subr.mxu0 0.0
    %2936 = vmatpush2.msra.mxu0 0.0
    %2937 = vmatprep.subr.mxu0 0.0
    %2938 = vmatpush2.msra.mxu0 0.0
    %2939 = vmatprep.subr.mxu0 0.0
    %2940 = vmatpush2.msra.mxu0 0.0
    %2941 = vmatprep.subr.mxu0 0.0
    %2942 = vmatpush2.msra.mxu0 0.0
    %2943 = vmatprep.subr.mxu0 0.0
    %2944 = vmatpush2.msra.mxu0 0.0
    %2945 = vmatprep.subr.mxu0 0.0
    %2946 = vmatpush2.msra.mxu0 0.0
    %2947 = vmatprep.subr.mxu0 0.0
    %2948 = vmatpush2.msra.mxu0 0.0
    %2949 = vmatprep.subr.mxu0 0.0
    %2950 = vmatpush2.msra.mxu0 0.0
    %2951 = vmatprep.subr.mxu0 0.0
    %2952 = vmatpush2.msra.mxu0 0.0
    %2953 = vmatprep.subr.mxu0 0.0
    %2954 = vmatpush2.msra.mxu0 0.0
    %2955 = vmatprep.subr.mxu0 0.0
    %2956 = vmatpush2.msra.mxu0 0.0
    %2957 = vmatprep.subr.mxu0 0.0
    %2958 = vmatpush2.msra.mxu0 0.0
    %2959 = vmatprep.subr.mxu0 0.0
    %2960 = vmatpush2.msra.mxu0 0.0
    %2961 = vmatprep.subr.mxu0 0.0
    %2962 = vmatpush2.msra.mxu0 0.0
    %2963 = vmatprep.subr.mxu0 0.0
    %2964 = vmatpush2.msra.mxu0 0.0
    %2965 = vmatprep.subr.mxu0 0.0
    %2966 = vmatpush2.msra.mxu0 0.0
    %2967 = vmatprep.mubr.f32.mxu0 0.0
    %2968 = vmatmul.mubr.f32.gmra.mxu0 %v2808
    %v2969 = vpop.f32.mrf.mxu0
    %v2970 = vadd.f32 %v2804, %v2969
    %v2971 = vpop.f32.mrf.mxu0
    %v2972 = vadd.f32 %v2804, %v2971
    %2973 = vdwg.mxu0
    %2974 = vmatprep.subr.mxu0 0.0
    %2975 = vmatpush1.msra.mxu0 0.0
    %2976 = vmatprep.subr.mxu0 0.0
    %2977 = vmatpush1.msra.mxu0 0.0
    %2978 = vmatprep.subr.mxu0 0.0
    %2979 = vmatpush1.msra.mxu0 0.0
    %2980 = vmatprep.subr.mxu0 0.0
    %2981 = vmatpush1.msra.mxu0 0.0
    %2982 = vmatprep.subr.mxu0 0.0
    %2983 = vmatpush1.msra.mxu0 0.0
    %2984 = vmatprep.subr.mxu0 0.0
    %2985 = vmatpush1.msra.mxu0 0.0
    %2986 = vmatprep.subr.mxu0 %v2827
    %2987 = vmatpush1.msra.mxu0 %v2824
    %2988 = vmatprep.subr.mxu0 %v2792
    %2989 = vmatpush1.msra.mxu0 %v2791
    %2990 = vmatprep.subr.mxu0 %v2785
    %2991 = vmatpush1.msra.mxu0 %v2784
    %2992 = vmatprep.subr.mxu0 %v2778
    %2993 = vmatpush1.msra.mxu0 %v2777
    %2994 = vmatprep.subr.mxu0 %v2771
    %2995 = vmatpush1.msra.mxu0 %v2770
    %2996 = vmatprep.subr.mxu0 %v2764
    %2997 = vmatpush1.msra.mxu0 %v2763
    %2998 = vmatprep.subr.mxu0 %v2757
    %2999 = vmatpush1.msra.mxu0 %v2756
    %3000 = vmatprep.subr.mxu0 %v2750
    %3001 = vmatpush1.msra.mxu0 %v2749
    %3002 = vmatprep.subr.mxu0 %v2743
    %3003 = vmatpush1.msra.mxu0 %v2742
    %3004 = vmatprep.subr.mxu0 %v2736
    %3005 = vmatpush1.msra.mxu0 %v2735
    %3006 = vmatprep.subr.mxu0 0.0
    %3007 = vmatpush2.msra.mxu0 0.0
    %3008 = vmatprep.subr.mxu0 0.0
    %3009 = vmatpush2.msra.mxu0 0.0
    %3010 = vmatprep.subr.mxu0 0.0
    %3011 = vmatpush2.msra.mxu0 0.0
    %3012 = vmatprep.subr.mxu0 0.0
    %3013 = vmatpush2.msra.mxu0 0.0
    %3014 = vmatprep.subr.mxu0 0.0
    %3015 = vmatpush2.msra.mxu0 0.0
    %3016 = vmatprep.subr.mxu0 0.0
    %3017 = vmatpush2.msra.mxu0 0.0
    %3018 = vmatprep.subr.mxu0 0.0
    %3019 = vmatpush2.msra.mxu0 0.0
    %3020 = vmatprep.subr.mxu0 0.0
    %3021 = vmatpush2.msra.mxu0 0.0
    %3022 = vmatprep.subr.mxu0 0.0
    %3023 = vmatpush2.msra.mxu0 0.0
    %3024 = vmatprep.subr.mxu0 0.0
    %3025 = vmatpush2.msra.mxu0 0.0
    %3026 = vmatprep.subr.mxu0 0.0
    %3027 = vmatpush2.msra.mxu0 0.0
    %3028 = vmatprep.subr.mxu0 0.0
    %3029 = vmatpush2.msra.mxu0 0.0
    %3030 = vmatprep.subr.mxu0 0.0
    %3031 = vmatpush2.msra.mxu0 0.0
    %3032 = vmatprep.subr.mxu0 0.0
    %3033 = vmatpush2.msra.mxu0 0.0
    %3034 = vmatprep.subr.mxu0 0.0
    %3035 = vmatpush2.msra.mxu0 0.0
    %3036 = vmatprep.subr.mxu0 0.0
    %3037 = vmatpush2.msra.mxu0 0.0
    %3038 = vmatprep.mubr.f32.mxu0 0.0
    %3039 = vmatmul.mubr.f32.gmra.mxu0 %v2808
    %v3040 = vpop.f32.mrf.mxu0
    %v3041 = vadd.f32 %v2804, %v3040
    %v3042 = vpop.f32.mrf.mxu0
    %v3043 = vadd.f32 %v2804, %v3042
    %3044 = vdwg.mxu0
    %3045 = vmatprep.subr.mxu0 0.0
    %3046 = vmatpush1.msra.mxu0 0.0
    %3047 = vmatprep.subr.mxu0 0.0
    %3048 = vmatpush1.msra.mxu0 0.0
    %3049 = vmatprep.subr.mxu0 0.0
    %3050 = vmatpush1.msra.mxu0 0.0
    %3051 = vmatprep.subr.mxu0 0.0
    %3052 = vmatpush1.msra.mxu0 0.0
    %3053 = vmatprep.subr.mxu0 0.0
    %3054 = vmatpush1.msra.mxu0 0.0
    %3055 = vmatprep.subr.mxu0 0.0
    %3056 = vmatpush1.msra.mxu0 0.0
    %3057 = vmatprep.subr.mxu0 0.0
    %3058 = vmatpush1.msra.mxu0 %v2830
    %3059 = vmatprep.subr.mxu0 0.0
    %3060 = vmatpush1.msra.mxu0 %v2793
    %3061 = vmatprep.subr.mxu0 0.0
    %3062 = vmatpush1.msra.mxu0 %v2786
    %3063 = vmatprep.subr.mxu0 0.0
    %3064 = vmatpush1.msra.mxu0 %v2779
    %3065 = vmatprep.subr.mxu0 0.0
    %3066 = vmatpush1.msra.mxu0 %v2772
    %3067 = vmatprep.subr.mxu0 0.0
    %3068 = vmatpush1.msra.mxu0 %v2765
    %3069 = vmatprep.subr.mxu0 0.0
    %3070 = vmatpush1.msra.mxu0 %v2758
    %3071 = vmatprep.subr.mxu0 0.0
    %3072 = vmatpush1.msra.mxu0 %v2751
    %3073 = vmatprep.subr.mxu0 0.0
    %3074 = vmatpush1.msra.mxu0 %v2744
    %3075 = vmatprep.subr.mxu0 0.0
    %3076 = vmatpush1.msra.mxu0 %v2737
    %3077 = vmatprep.subr.mxu0 0.0
    %3078 = vmatpush2.msra.mxu0 0.0
    %3079 = vmatprep.subr.mxu0 0.0
    %3080 = vmatpush2.msra.mxu0 0.0
    %3081 = vmatprep.subr.mxu0 0.0
    %3082 = vmatpush2.msra.mxu0 0.0
    %3083 = vmatprep.subr.mxu0 0.0
    %3084 = vmatpush2.msra.mxu0 0.0
    %3085 = vmatprep.subr.mxu0 0.0
    %3086 = vmatpush2.msra.mxu0 0.0
    %3087 = vmatprep.subr.mxu0 0.0
    %3088 = vmatpush2.msra.mxu0 0.0
    %3089 = vmatprep.subr.mxu0 0.0
    %3090 = vmatpush2.msra.mxu0 0.0
    %3091 = vmatprep.subr.mxu0 0.0
    %3092 = vmatpush2.msra.mxu0 0.0
    %3093 = vmatprep.subr.mxu0 0.0
    %3094 = vmatpush2.msra.mxu0 0.0
    %3095 = vmatprep.subr.mxu0 0.0
    %3096 = vmatpush2.msra.mxu0 0.0
    %3097 = vmatprep.subr.mxu0 0.0
    %3098 = vmatpush2.msra.mxu0 0.0
    %3099 = vmatprep.subr.mxu0 0.0
    %3100 = vmatpush2.msra.mxu0 0.0
    %3101 = vmatprep.subr.mxu0 0.0
    %3102 = vmatpush2.msra.mxu0 0.0
    %3103 = vmatprep.subr.mxu0 0.0
    %3104 = vmatpush2.msra.mxu0 0.0
    %3105 = vmatprep.subr.mxu0 0.0
    %3106 = vmatpush2.msra.mxu0 0.0
    %3107 = vmatprep.subr.mxu0 0.0
    %3108 = vmatpush2.msra.mxu0 0.0
    %3109 = vmatprep.mubr.f32.mxu0 0.0
    %3110 = vmatmul.mubr.f32.gmra.mxu0 %v2808
    %v3111 = vpop.f32.mrf.mxu0
    %v3112 = vadd.f32 %v2804, %v3111
    %v3113 = vpop.f32.mrf.mxu0
    %3114 = vdwg.mxu0
    %v3115 = vmax.f32 %v2899, 0.0
    %v3116 = vmax.f32 %v2901, 0.0
    %v3117 = vmax.f32 %v2970, 0.0
    %v3118 = vmax.f32 %v2972, 0.0
    %v3119 = vmax.f32 %v3041, 0.0
    %v3120 = vmax.f32 %v3043, 0.0
    %v3121 = vmax.f32 %v3112, 0.0
    %3129 = vrot.lane.b32.xlu0 %v3115, 127
    %v3130 = vpop.permute.xlu0 %3129
    %3131 = vrot.lane.b32.xlu0 %v3116, 127
    %v3132 = vpop.permute.xlu0 %3131
    %3133 = vrot.lane.b32.xlu0 %v3117, 127
    %v3134 = vpop.permute.xlu0 %3133
    %3135 = vrot.lane.b32.xlu0 %v3118, 127
    %v3136 = vpop.permute.xlu0 %3135
    %3137 = vrot.lane.b32.xlu0 %v3119, 127
    %v3138 = vpop.permute.xlu0 %3137
    %3139 = vrot.lane.b32.xlu0 %v3120, 127
    %v3140 = vpop.permute.xlu0 %3139
    %3141 = vrot.lane.b32.xlu0 %v3121, 127
    %v3142 = vpop.permute.xlu0 %3141
    %v3143 = vsel %vm144, %v3130, %v3132
    %v3144 = vsel %vm144, %v3132, %v3134
    %v3145 = vsel %vm144, %v3134, %v3136
    %v3146 = vsel %vm144, %v3136, %v3138
    %v3147 = vsel %vm144, %v3138, %v3140
    %v3148 = vsel %vm144, %v3140, %v3142
    %v3156 = vmax.f32 %v3115, %v3143
    %v3157 = vmax.f32 %v3116, %v3144
    %v3158 = vmax.f32 %v3117, %v3145
    %v3159 = vmax.f32 %v3118, %v3146
    %v3160 = vmax.f32 %v3119, %v3147
    %v3161 = vmax.f32 %v3120, %v3148
    %v3162 = vmax.f32 %v3121, %v3142
    %3170 = vrot.lane.b32.xlu0 %v3156, 96
    %v3171 = vpop.permute.xlu0 %3170
    %3172 = vrot.lane.b32.xlu0 %v3157, 96
    %v3173 = vpop.permute.xlu0 %3172
    %3174 = vrot.lane.b32.xlu0 %v3158, 96
    %v3175 = vpop.permute.xlu0 %3174
    %3176 = vrot.lane.b32.xlu0 %v3159, 96
    %v3177 = vpop.permute.xlu0 %3176
    %3178 = vrot.lane.b32.xlu0 %v3160, 96
    %v3179 = vpop.permute.xlu0 %3178
    %3180 = vrot.lane.b32.xlu0 %v3161, 96
    %v3181 = vpop.permute.xlu0 %3180
    %3182 = vrot.lane.b32.xlu0 %v3162, 96
    %v3183 = vpop.permute.xlu0 %3182
    %v3184 = vsel %vm579, %v3171, %v3173
    %v3185 = vsel %vm579, %v3173, %v3175
    %v3186 = vsel %vm579, %v3175, %v3177
    %v3187 = vsel %vm579, %v3177, %v3179
    %v3188 = vsel %vm579, %v3179, %v3181
    %v3189 = vsel %vm579, %v3181, %v3183
    %v3197 = vmax.f32 %v3156, %v3184
    %v3198 = vmax.f32 %v3157, %v3185
    %v3199 = vmax.f32 %v3158, %v3186
    %v3200 = vmax.f32 %v3159, %v3187
    %v3201 = vmax.f32 %v3160, %v3188
    %v3202 = vmax.f32 %v3161, %v3189
    %v3203 = vmax.f32 %v3162, %v3183
    %3204 = vst [vmem:[#allocation3] sm:$0x3f] %v3197
    %3205 = vst [vmem:[#allocation3 + $0x8] sm:$0x3f] %v3198
    %3206 = vst [vmem:[#allocation3 + $0x10] sm:$0x3f] %v3199
    %3207 = vst [vmem:[#allocation3 + $0x18] sm:$0x3f] %v3200
    %vm3208 = vcmask 676864
    %3209 = vst.msk [vmem:[#allocation3 + $0x20] sm:$0x3f] %vm3208, %v3201
    %v3215 = vrot.slane %v3197, 2
    %v3216 = vrot.slane %v3198, 2
    %v3217 = vrot.slane %v3199, 2
    %v3218 = vrot.slane %v3200, 2
    %v3219 = vrot.slane %v3201, 2
    %3220 = vrot.lane.b32.xlu0 %v3215, 126
    %v3221 = vpop.permute.xlu0 %3220
    %3222 = vrot.lane.b32.xlu0 %v3216, 126
    %v3223 = vpop.permute.xlu0 %3222
    %3224 = vrot.lane.b32.xlu0 %v3217, 126
    %v3225 = vpop.permute.xlu0 %3224
    %3226 = vrot.lane.b32.xlu0 %v3218, 126
    %v3227 = vpop.permute.xlu0 %3226
    %3228 = vrot.lane.b32.xlu0 %v3219, 126
    %v3229 = vpop.permute.xlu0 %3228
    %v3230 = vsel %vm250, %v3221, %v3223
    %v3231 = vsel %vm250, %v3223, %v3225
    %v3232 = vsel %vm250, %v3225, %v3227
    %v3233 = vsel %vm250, %v3227, %v3229
    %3239 = vst [vmem:[#allocation3] sm:$0xc0] %v3230
    %3240 = vst [vmem:[#allocation3 + $0x8] sm:$0xc0] %v3231
    %3241 = vst [vmem:[#allocation3 + $0x10] sm:$0xc0] %v3232
    %3242 = vst [vmem:[#allocation3 + $0x18] sm:$0xc0] %v3233
    %vm3243 = vcmask 678918
    %3244 = vst.msk [vmem:[#allocation3 + $0x20] sm:$0xc0] %vm3243, %v3229
    %3245 = vst [vmem:[#allocation3 + $0x28] sm:$0xf] %v3230
    %3246 = vst [vmem:[#allocation3 + $0x30] sm:$0xf] %v3231
    %3247 = vst [vmem:[#allocation3 + $0x38] sm:$0xf] %v3232
    %3248 = vst [vmem:[#allocation3 + $0x40] sm:$0xf] %v3233
    %vm3249 = vcmask 674816
    %3250 = vst.msk [vmem:[#allocation3 + $0x48] sm:$0xf] %vm3249, %v3229
    %v3251 = vrot.slane %v3197, 4
    %v3252 = vrot.slane %v3198, 4
    %v3253 = vrot.slane %v3199, 4
    %v3254 = vrot.slane %v3200, 4
    %v3255 = vrot.slane %v3201, 4
    %3256 = vrot.lane.b32.xlu0 %v3251, 124
    %v3257 = vpop.permute.xlu0 %3256
    %3258 = vrot.lane.b32.xlu0 %v3252, 124
    %v3259 = vpop.permute.xlu0 %3258
    %3260 = vrot.lane.b32.xlu0 %v3253, 124
    %v3261 = vpop.permute.xlu0 %3260
    %3262 = vrot.lane.b32.xlu0 %v3254, 124
    %v3263 = vpop.permute.xlu0 %3262
    %3264 = vrot.lane.b32.xlu0 %v3255, 124
    %v3265 = vpop.permute.xlu0 %3264
    %v3266 = vsel %vm465, %v3257, %v3259
    %v3267 = vsel %vm465, %v3259, %v3261
    %v3268 = vsel %vm465, %v3261, %v3263
    %v3269 = vsel %vm465, %v3263, %v3265
    %3275 = vst [vmem:[#allocation3 + $0x28] sm:$0xf0] %v3266
    %3276 = vst [vmem:[#allocation3 + $0x30] sm:$0xf0] %v3267
    %3277 = vst [vmem:[#allocation3 + $0x38] sm:$0xf0] %v3268
    %3278 = vst [vmem:[#allocation3 + $0x40] sm:$0xf0] %v3269
    %vm3279 = vcmask 678916
    %3280 = vst.msk [vmem:[#allocation3 + $0x48] sm:$0xf0] %vm3279, %v3265
    %3281 = vst [vmem:[#allocation3 + $0x50] sm:$0x3] %v3266
    %3282 = vst [vmem:[#allocation3 + $0x58] sm:$0x3] %v3267
    %3283 = vst [vmem:[#allocation3 + $0x60] sm:$0x3] %v3268
    %3284 = vst [vmem:[#allocation3 + $0x68] sm:$0x3] %v3269
    %vm3285 = vcmask 672768
    %3286 = vst.msk [vmem:[#allocation3 + $0x70] sm:$0x3] %vm3285, %v3265
    %v3287 = vrot.slane %v3197, 6
    %v3288 = vrot.slane %v3198, 6
    %v3289 = vrot.slane %v3199, 6
    %v3290 = vrot.slane %v3200, 6
    %v3291 = vrot.slane %v3201, 6
    %3292 = vrot.lane.b32.xlu0 %v3287, 122
    %v3293 = vpop.permute.xlu0 %3292
    %3294 = vrot.lane.b32.xlu0 %v3288, 122
    %v3295 = vpop.permute.xlu0 %3294
    %3296 = vrot.lane.b32.xlu0 %v3289, 122
    %v3297 = vpop.permute.xlu0 %3296
    %3298 = vrot.lane.b32.xlu0 %v3290, 122
    %v3299 = vpop.permute.xlu0 %3298
    %3300 = vrot.lane.b32.xlu0 %v3291, 122
    %v3301 = vpop.permute.xlu0 %3300
    %vm3302 = vcmask 998400
    %v3303 = vsel %vm3302, %v3293, %v3295
    %v3304 = vsel %vm3302, %v3295, %v3297
    %v3305 = vsel %vm3302, %v3297, %v3299
    %v3306 = vsel %vm3302, %v3299, %v3301
    %3312 = vst [vmem:[#allocation3 + $0x50] sm:$0xfc] %v3303
    %3313 = vst [vmem:[#allocation3 + $0x58] sm:$0xfc] %v3304
    %3314 = vst [vmem:[#allocation3 + $0x60] sm:$0xfc] %v3305
    %3315 = vst [vmem:[#allocation3 + $0x68] sm:$0xfc] %v3306
    %vm3316 = vcmask 678914
    %3317 = vst.msk [vmem:[#allocation3 + $0x70] sm:$0xfc] %vm3316, %v3301
    %3318 = vrot.lane.b32.xlu0 %v3197, 120
    %v3319 = vpop.permute.xlu0 %3318
    %3320 = vrot.lane.b32.xlu0 %v3198, 120
    %v3321 = vpop.permute.xlu0 %3320
    %3322 = vrot.lane.b32.xlu0 %v3199, 120
    %v3323 = vpop.permute.xlu0 %3322
    %3324 = vrot.lane.b32.xlu0 %v3200, 120
    %v3325 = vpop.permute.xlu0 %3324
    %3326 = vrot.lane.b32.xlu0 %v3201, 120
    %v3327 = vpop.permute.xlu0 %3326
    %vm3328 = vcmask 982016
    %v3329 = vsel %vm3328, %v3319, %v3321
    %v3330 = vsel %vm3328, %v3321, %v3323
    %v3331 = vsel %vm3328, %v3323, %v3325
    %v3332 = vsel %vm3328, %v3325, %v3327
    %3338 = vst [vmem:[#allocation3 + $0x78] sm:$0x3f] %v3329
    %3339 = vst [vmem:[#allocation3 + $0x80] sm:$0x3f] %v3330
    %3340 = vst [vmem:[#allocation3 + $0x88] sm:$0x3f] %v3331
    %3341 = vst [vmem:[#allocation3 + $0x90] sm:$0x3f] %v3332
    %3342 = vst.msk [vmem:[#allocation3 + $0x98] sm:$0x3f] %vm3208, %v3327
    %v3344 = vrot.slane %v3202, 2
    %3345 = vrot.lane.b32.xlu0 %v3215, 64
    %v3346 = vpop.permute.xlu0 %3345
    %3347 = vrot.lane.b32.xlu0 %v3216, 64
    %v3348 = vpop.permute.xlu0 %3347
    %3349 = vrot.lane.b32.xlu0 %v3217, 64
    %v3350 = vpop.permute.xlu0 %3349
    %3351 = vrot.lane.b32.xlu0 %v3218, 64
    %v3352 = vpop.permute.xlu0 %3351
    %3353 = vrot.lane.b32.xlu0 %v3219, 64
    %v3354 = vpop.permute.xlu0 %3353
    %3355 = vrot.lane.b32.xlu0 %v3344, 64
    %v3356 = vpop.permute.xlu0 %3355
    %v3357 = vsel %vm1156, %v3346, %v3348
    %v3358 = vsel %vm1156, %v3348, %v3350
    %v3359 = vsel %vm1156, %v3350, %v3352
    %v3360 = vsel %vm1156, %v3352, %v3354
    %v3361 = vsel %vm1156, %v3354, %v3356
    %3367 = vst [vmem:[#allocation3 + $0x78] sm:$0xc0] %v3357
    %3368 = vst [vmem:[#allocation3 + $0x80] sm:$0xc0] %v3358
    %3369 = vst [vmem:[#allocation3 + $0x88] sm:$0xc0] %v3359
    %3370 = vst [vmem:[#allocation3 + $0x90] sm:$0xc0] %v3360
    %3371 = vst.msk [vmem:[#allocation3 + $0x98] sm:$0xc0] %vm3243, %v3361
    %3372 = vst [vmem:[#allocation3 + $0xa0] sm:$0xf] %v3357
    %3373 = vst [vmem:[#allocation3 + $0xa8] sm:$0xf] %v3358
    %3374 = vst [vmem:[#allocation3 + $0xb0] sm:$0xf] %v3359
    %3375 = vst [vmem:[#allocation3 + $0xb8] sm:$0xf] %v3360
    %3376 = vst.msk [vmem:[#allocation3 + $0xc0] sm:$0xf] %vm3249, %v3361
    %v3377 = vrot.slane %v3202, 4
    %3378 = vrot.lane.b32.xlu0 %v3251, 62
    %v3379 = vpop.permute.xlu0 %3378
    %3380 = vrot.lane.b32.xlu0 %v3252, 62
    %v3381 = vpop.permute.xlu0 %3380
    %3382 = vrot.lane.b32.xlu0 %v3253, 62
    %v3383 = vpop.permute.xlu0 %3382
    %3384 = vrot.lane.b32.xlu0 %v3254, 62
    %v3385 = vpop.permute.xlu0 %3384
    %3386 = vrot.lane.b32.xlu0 %v3255, 62
    %v3387 = vpop.permute.xlu0 %3386
    %3388 = vrot.lane.b32.xlu0 %v3377, 62
    %v3389 = vpop.permute.xlu0 %3388
    %v3390 = vsel %vm1384, %v3379, %v3381
    %v3391 = vsel %vm1384, %v3381, %v3383
    %v3392 = vsel %vm1384, %v3383, %v3385
    %v3393 = vsel %vm1384, %v3385, %v3387
    %v3394 = vsel %vm1384, %v3387, %v3389
    %3400 = vst [vmem:[#allocation3 + $0xa0] sm:$0xf0] %v3390
    %3401 = vst [vmem:[#allocation3 + $0xa8] sm:$0xf0] %v3391
    %3402 = vst [vmem:[#allocation3 + $0xb0] sm:$0xf0] %v3392
    %3403 = vst [vmem:[#allocation3 + $0xb8] sm:$0xf0] %v3393
    %3404 = vst.msk [vmem:[#allocation3 + $0xc0] sm:$0xf0] %vm3279, %v3394
    %3405 = vst [vmem:[#allocation3 + $0xc8] sm:$0x3] %v3390
    %3406 = vst [vmem:[#allocation3 + $0xd0] sm:$0x3] %v3391
    %3407 = vst [vmem:[#allocation3 + $0xd8] sm:$0x3] %v3392
    %3408 = vst [vmem:[#allocation3 + $0xe0] sm:$0x3] %v3393
    %3409 = vst.msk [vmem:[#allocation3 + $0xe8] sm:$0x3] %vm3285, %v3394
    %v3410 = vrot.slane %v3202, 6
    %3411 = vrot.lane.b32.xlu0 %v3287, 60
    %v3412 = vpop.permute.xlu0 %3411
    %3413 = vrot.lane.b32.xlu0 %v3288, 60
    %v3414 = vpop.permute.xlu0 %3413
    %3415 = vrot.lane.b32.xlu0 %v3289, 60
    %v3416 = vpop.permute.xlu0 %3415
    %3417 = vrot.lane.b32.xlu0 %v3290, 60
    %v3418 = vpop.permute.xlu0 %3417
    %3419 = vrot.lane.b32.xlu0 %v3291, 60
    %v3420 = vpop.permute.xlu0 %3419
    %3421 = vrot.lane.b32.xlu0 %v3410, 60
    %v3422 = vpop.permute.xlu0 %3421
    %v3423 = vsel %vm1628, %v3412, %v3414
    %v3424 = vsel %vm1628, %v3414, %v3416
    %v3425 = vsel %vm1628, %v3416, %v3418
    %v3426 = vsel %vm1628, %v3418, %v3420
    %v3427 = vsel %vm1628, %v3420, %v3422
    %3433 = vst [vmem:[#allocation3 + $0xc8] sm:$0xfc] %v3423
    %3434 = vst [vmem:[#allocation3 + $0xd0] sm:$0xfc] %v3424
    %3435 = vst [vmem:[#allocation3 + $0xd8] sm:$0xfc] %v3425
    %3436 = vst [vmem:[#allocation3 + $0xe0] sm:$0xfc] %v3426
    %3437 = vst.msk [vmem:[#allocation3 + $0xe8] sm:$0xfc] %vm3316, %v3427
    %3438 = vrot.lane.b32.xlu0 %v3197, 58
    %v3439 = vpop.permute.xlu0 %3438
    %3440 = vrot.lane.b32.xlu0 %v3198, 58
    %v3441 = vpop.permute.xlu0 %3440
    %3442 = vrot.lane.b32.xlu0 %v3199, 58
    %v3443 = vpop.permute.xlu0 %3442
    %3444 = vrot.lane.b32.xlu0 %v3200, 58
    %v3445 = vpop.permute.xlu0 %3444
    %3446 = vrot.lane.b32.xlu0 %v3201, 58
    %v3447 = vpop.permute.xlu0 %3446
    %3448 = vrot.lane.b32.xlu0 %v3202, 58
    %v3449 = vpop.permute.xlu0 %3448
    %vm3450 = vcmask 474112
    %v3451 = vsel %vm3450, %v3439, %v3441
    %v3452 = vsel %vm3450, %v3441, %v3443
    %v3453 = vsel %vm3450, %v3443, %v3445
    %v3454 = vsel %vm3450, %v3445, %v3447
    %v3455 = vsel %vm3450, %v3447, %v3449
    %3461 = vst [vmem:[#allocation3 + $0xf0] sm:$0x3f] %v3451
    %3462 = vst [vmem:[#allocation3 + $0xf8] sm:$0x3f] %v3452
    %3463 = vst [vmem:[#allocation3 + $0x100] sm:$0x3f] %v3453
    %3464 = vst [vmem:[#allocation3 + $0x108] sm:$0x3f] %v3454
    %3465 = vst.msk [vmem:[#allocation3 + $0x110] sm:$0x3f] %vm3208, %v3455
    %3466 = vrot.lane.b32.xlu0 %v3215, 56
    %v3467 = vpop.permute.xlu0 %3466
    %3468 = vrot.lane.b32.xlu0 %v3216, 56
    %v3469 = vpop.permute.xlu0 %3468
    %3470 = vrot.lane.b32.xlu0 %v3217, 56
    %v3471 = vpop.permute.xlu0 %3470
    %3472 = vrot.lane.b32.xlu0 %v3218, 56
    %v3473 = vpop.permute.xlu0 %3472
    %3474 = vrot.lane.b32.xlu0 %v3219, 56
    %v3475 = vpop.permute.xlu0 %3474
    %3476 = vrot.lane.b32.xlu0 %v3344, 56
    %v3477 = vpop.permute.xlu0 %3476
    %vm3478 = vcmask 457728
    %v3479 = vsel %vm3478, %v3467, %v3469
    %v3480 = vsel %vm3478, %v3469, %v3471
    %v3481 = vsel %vm3478, %v3471, %v3473
    %v3482 = vsel %vm3478, %v3473, %v3475
    %v3483 = vsel %vm3478, %v3475, %v3477
    %3489 = vst [vmem:[#allocation3 + $0xf0] sm:$0xc0] %v3479
    %3490 = vst [vmem:[#allocation3 + $0xf8] sm:$0xc0] %v3480
    %3491 = vst [vmem:[#allocation3 + $0x100] sm:$0xc0] %v3481
    %3492 = vst [vmem:[#allocation3 + $0x108] sm:$0xc0] %v3482
    %3493 = vst.msk [vmem:[#allocation3 + $0x110] sm:$0xc0] %vm3243, %v3483
    %3494 = vst [vmem:[#allocation3 + $0x118] sm:$0xf] %v3479
    %3495 = vst [vmem:[#allocation3 + $0x120] sm:$0xf] %v3480
    %3496 = vst [vmem:[#allocation3 + $0x128] sm:$0xf] %v3481
    %3497 = vst [vmem:[#allocation3 + $0x130] sm:$0xf] %v3482
    %3498 = vst.msk [vmem:[#allocation3 + $0x138] sm:$0xf] %vm3249, %v3483
    %3504 = vst [vmem:[#allocation3 + $0x118] sm:$0xf0] %v3252
    %3505 = vst [vmem:[#allocation3 + $0x120] sm:$0xf0] %v3253
    %3506 = vst [vmem:[#allocation3 + $0x128] sm:$0xf0] %v3254
    %3507 = vst [vmem:[#allocation3 + $0x130] sm:$0xf0] %v3255
    %3508 = vst.msk [vmem:[#allocation3 + $0x138] sm:$0xf0] %vm3279, %v3377
    %3509 = vst [vmem:[#allocation3 + $0x140] sm:$0x3] %v3252
    %3510 = vst [vmem:[#allocation3 + $0x148] sm:$0x3] %v3253
    %3511 = vst [vmem:[#allocation3 + $0x150] sm:$0x3] %v3254
    %3512 = vst [vmem:[#allocation3 + $0x158] sm:$0x3] %v3255
    %3513 = vst.msk [vmem:[#allocation3 + $0x160] sm:$0x3] %vm3285, %v3377
    %3514 = vrot.lane.b32.xlu0 %v3288, 126
    %v3515 = vpop.permute.xlu0 %3514
    %3516 = vrot.lane.b32.xlu0 %v3289, 126
    %v3517 = vpop.permute.xlu0 %3516
    %3518 = vrot.lane.b32.xlu0 %v3290, 126
    %v3519 = vpop.permute.xlu0 %3518
    %3520 = vrot.lane.b32.xlu0 %v3291, 126
    %v3521 = vpop.permute.xlu0 %3520
    %3522 = vrot.lane.b32.xlu0 %v3410, 126
    %v3523 = vpop.permute.xlu0 %3522
    %v3524 = vsel %vm250, %v3515, %v3517
    %v3525 = vsel %vm250, %v3517, %v3519
    %v3526 = vsel %vm250, %v3519, %v3521
    %v3527 = vsel %vm250, %v3521, %v3523
    %3533 = vst [vmem:[#allocation3 + $0x140] sm:$0xfc] %v3524
    %3534 = vst [vmem:[#allocation3 + $0x148] sm:$0xfc] %v3525
    %3535 = vst [vmem:[#allocation3 + $0x150] sm:$0xfc] %v3526
    %3536 = vst [vmem:[#allocation3 + $0x158] sm:$0xfc] %v3527
    %3537 = vst.msk [vmem:[#allocation3 + $0x160] sm:$0xfc] %vm3316, %v3523
    %3538 = vrot.lane.b32.xlu0 %v3198, 124
    %v3539 = vpop.permute.xlu0 %3538
    %3540 = vrot.lane.b32.xlu0 %v3199, 124
    %v3541 = vpop.permute.xlu0 %3540
    %3542 = vrot.lane.b32.xlu0 %v3200, 124
    %v3543 = vpop.permute.xlu0 %3542
    %3544 = vrot.lane.b32.xlu0 %v3201, 124
    %v3545 = vpop.permute.xlu0 %3544
    %3546 = vrot.lane.b32.xlu0 %v3202, 124
    %v3547 = vpop.permute.xlu0 %3546
    %v3548 = vsel %vm465, %v3539, %v3541
    %v3549 = vsel %vm465, %v3541, %v3543
    %v3550 = vsel %vm465, %v3543, %v3545
    %v3551 = vsel %vm465, %v3545, %v3547
    %3557 = vst [vmem:[#allocation3 + $0x168] sm:$0x3f] %v3548
    %3558 = vst [vmem:[#allocation3 + $0x170] sm:$0x3f] %v3549
    %3559 = vst [vmem:[#allocation3 + $0x178] sm:$0x3f] %v3550
    %3560 = vst [vmem:[#allocation3 + $0x180] sm:$0x3f] %v3551
    %3561 = vst.msk [vmem:[#allocation3 + $0x188] sm:$0x3f] %vm3208, %v3547
    %3562 = vrot.lane.b32.xlu0 %v3216, 122
    %v3563 = vpop.permute.xlu0 %3562
    %3564 = vrot.lane.b32.xlu0 %v3217, 122
    %v3565 = vpop.permute.xlu0 %3564
    %3566 = vrot.lane.b32.xlu0 %v3218, 122
    %v3567 = vpop.permute.xlu0 %3566
    %3568 = vrot.lane.b32.xlu0 %v3219, 122
    %v3569 = vpop.permute.xlu0 %3568
    %3570 = vrot.lane.b32.xlu0 %v3344, 122
    %v3571 = vpop.permute.xlu0 %3570
    %v3572 = vsel %vm3302, %v3563, %v3565
    %v3573 = vsel %vm3302, %v3565, %v3567
    %v3574 = vsel %vm3302, %v3567, %v3569
    %v3575 = vsel %vm3302, %v3569, %v3571
    %3581 = vst [vmem:[#allocation3 + $0x168] sm:$0xc0] %v3572
    %3582 = vst [vmem:[#allocation3 + $0x170] sm:$0xc0] %v3573
    %3583 = vst [vmem:[#allocation3 + $0x178] sm:$0xc0] %v3574
    %3584 = vst [vmem:[#allocation3 + $0x180] sm:$0xc0] %v3575
    %3585 = vst.msk [vmem:[#allocation3 + $0x188] sm:$0xc0] %vm3243, %v3571
    %3586 = vst [vmem:[#allocation3 + $0x190] sm:$0xf] %v3572
    %3587 = vst [vmem:[#allocation3 + $0x198] sm:$0xf] %v3573
    %3588 = vst [vmem:[#allocation3 + $0x1a0] sm:$0xf] %v3574
    %3589 = vst [vmem:[#allocation3 + $0x1a8] sm:$0xf] %v3575
    %3590 = vst.msk [vmem:[#allocation3 + $0x1b0] sm:$0xf] %vm3249, %v3571
    %3591 = vrot.lane.b32.xlu0 %v3252, 120
    %v3592 = vpop.permute.xlu0 %3591
    %3593 = vrot.lane.b32.xlu0 %v3253, 120
    %v3594 = vpop.permute.xlu0 %3593
    %3595 = vrot.lane.b32.xlu0 %v3254, 120
    %v3596 = vpop.permute.xlu0 %3595
    %3597 = vrot.lane.b32.xlu0 %v3255, 120
    %v3598 = vpop.permute.xlu0 %3597
    %3599 = vrot.lane.b32.xlu0 %v3377, 120
    %v3600 = vpop.permute.xlu0 %3599
    %v3601 = vsel %vm3328, %v3592, %v3594
    %v3602 = vsel %vm3328, %v3594, %v3596
    %v3603 = vsel %vm3328, %v3596, %v3598
    %v3604 = vsel %vm3328, %v3598, %v3600
    %3610 = vst [vmem:[#allocation3 + $0x190] sm:$0xf0] %v3601
    %3611 = vst [vmem:[#allocation3 + $0x198] sm:$0xf0] %v3602
    %3612 = vst [vmem:[#allocation3 + $0x1a0] sm:$0xf0] %v3603
    %3613 = vst [vmem:[#allocation3 + $0x1a8] sm:$0xf0] %v3604
    %3614 = vst.msk [vmem:[#allocation3 + $0x1b0] sm:$0xf0] %vm3279, %v3600
    %3615 = vst [vmem:[#allocation3 + $0x1b8] sm:$0x3] %v3601
    %3616 = vst [vmem:[#allocation3 + $0x1c0] sm:$0x3] %v3602
    %3617 = vst [vmem:[#allocation3 + $0x1c8] sm:$0x3] %v3603
    %3618 = vst [vmem:[#allocation3 + $0x1d0] sm:$0x3] %v3604
    %3619 = vst.msk [vmem:[#allocation3 + $0x1d8] sm:$0x3] %vm3285, %v3600
    %v3621 = vrot.slane %v3203, 6
    %3622 = vrot.lane.b32.xlu0 %v3288, 64
    %v3623 = vpop.permute.xlu0 %3622
    %3624 = vrot.lane.b32.xlu0 %v3289, 64
    %v3625 = vpop.permute.xlu0 %3624
    %3626 = vrot.lane.b32.xlu0 %v3290, 64
    %v3627 = vpop.permute.xlu0 %3626
    %3628 = vrot.lane.b32.xlu0 %v3291, 64
    %v3629 = vpop.permute.xlu0 %3628
    %3630 = vrot.lane.b32.xlu0 %v3410, 64
    %v3631 = vpop.permute.xlu0 %3630
    %3632 = vrot.lane.b32.xlu0 %v3621, 64
    %v3633 = vpop.permute.xlu0 %3632
    %v3634 = vsel %vm1156, %v3623, %v3625
    %v3635 = vsel %vm1156, %v3625, %v3627
    %v3636 = vsel %vm1156, %v3627, %v3629
    %v3637 = vsel %vm1156, %v3629, %v3631
    %v3638 = vsel %vm1156, %v3631, %v3633
    %3644 = vst [vmem:[#allocation3 + $0x1b8] sm:$0xfc] %v3634
    %3645 = vst [vmem:[#allocation3 + $0x1c0] sm:$0xfc] %v3635
    %3646 = vst [vmem:[#allocation3 + $0x1c8] sm:$0xfc] %v3636
    %3647 = vst [vmem:[#allocation3 + $0x1d0] sm:$0xfc] %v3637
    %3648 = vst.msk [vmem:[#allocation3 + $0x1d8] sm:$0xfc] %vm3316, %v3638
    %3649 = vrot.lane.b32.xlu0 %v3198, 62
    %v3650 = vpop.permute.xlu0 %3649
    %3651 = vrot.lane.b32.xlu0 %v3199, 62
    %v3652 = vpop.permute.xlu0 %3651
    %3653 = vrot.lane.b32.xlu0 %v3200, 62
    %v3654 = vpop.permute.xlu0 %3653
    %3655 = vrot.lane.b32.xlu0 %v3201, 62
    %v3656 = vpop.permute.xlu0 %3655
    %3657 = vrot.lane.b32.xlu0 %v3202, 62
    %v3658 = vpop.permute.xlu0 %3657
    %3659 = vrot.lane.b32.xlu0 %v3203, 62
    %v3660 = vpop.permute.xlu0 %3659
    %v3661 = vsel %vm1384, %v3650, %v3652
    %v3662 = vsel %vm1384, %v3652, %v3654
    %v3663 = vsel %vm1384, %v3654, %v3656
    %v3664 = vsel %vm1384, %v3656, %v3658
    %v3665 = vsel %vm1384, %v3658, %v3660
    %3671 = vst [vmem:[#allocation3 + $0x1e0] sm:$0x3f] %v3661
    %3672 = vst [vmem:[#allocation3 + $0x1e8] sm:$0x3f] %v3662
    %3673 = vst [vmem:[#allocation3 + $0x1f0] sm:$0x3f] %v3663
    %3674 = vst [vmem:[#allocation3 + $0x1f8] sm:$0x3f] %v3664
    %3675 = vst.msk [vmem:[#allocation3 + $0x200] sm:$0x3f] %vm3208, %v3665
    %v3676 = vrot.slane %v3203, 2
    %3677 = vrot.lane.b32.xlu0 %v3216, 60
    %v3678 = vpop.permute.xlu0 %3677
    %3679 = vrot.lane.b32.xlu0 %v3217, 60
    %v3680 = vpop.permute.xlu0 %3679
    %3681 = vrot.lane.b32.xlu0 %v3218, 60
    %v3682 = vpop.permute.xlu0 %3681
    %3683 = vrot.lane.b32.xlu0 %v3219, 60
    %v3684 = vpop.permute.xlu0 %3683
    %3685 = vrot.lane.b32.xlu0 %v3344, 60
    %v3686 = vpop.permute.xlu0 %3685
    %3687 = vrot.lane.b32.xlu0 %v3676, 60
    %v3688 = vpop.permute.xlu0 %3687
    %v3689 = vsel %vm1628, %v3678, %v3680
    %v3690 = vsel %vm1628, %v3680, %v3682
    %v3691 = vsel %vm1628, %v3682, %v3684
    %v3692 = vsel %vm1628, %v3684, %v3686
    %v3693 = vsel %vm1628, %v3686, %v3688
    %3699 = vst [vmem:[#allocation3 + $0x1e0] sm:$0xc0] %v3689
    %3700 = vst [vmem:[#allocation3 + $0x1e8] sm:$0xc0] %v3690
    %3701 = vst [vmem:[#allocation3 + $0x1f0] sm:$0xc0] %v3691
    %3702 = vst [vmem:[#allocation3 + $0x1f8] sm:$0xc0] %v3692
    %3703 = vst.msk [vmem:[#allocation3 + $0x200] sm:$0xc0] %vm3243, %v3693
    %3704 = vst [vmem:[#allocation3 + $0x208] sm:$0xf] %v3689
    %3705 = vst [vmem:[#allocation3 + $0x210] sm:$0xf] %v3690
    %3706 = vst [vmem:[#allocation3 + $0x218] sm:$0xf] %v3691
    %3707 = vst [vmem:[#allocation3 + $0x220] sm:$0xf] %v3692
    %3708 = vst.msk [vmem:[#allocation3 + $0x228] sm:$0xf] %vm3249, %v3693
    %v3709 = vrot.slane %v3203, 4
    %3710 = vrot.lane.b32.xlu0 %v3252, 58
    %v3711 = vpop.permute.xlu0 %3710
    %3712 = vrot.lane.b32.xlu0 %v3253, 58
    %v3713 = vpop.permute.xlu0 %3712
    %3714 = vrot.lane.b32.xlu0 %v3254, 58
    %v3715 = vpop.permute.xlu0 %3714
    %3716 = vrot.lane.b32.xlu0 %v3255, 58
    %v3717 = vpop.permute.xlu0 %3716
    %3718 = vrot.lane.b32.xlu0 %v3377, 58
    %v3719 = vpop.permute.xlu0 %3718
    %3720 = vrot.lane.b32.xlu0 %v3709, 58
    %v3721 = vpop.permute.xlu0 %3720
    %v3722 = vsel %vm3450, %v3711, %v3713
    %v3723 = vsel %vm3450, %v3713, %v3715
    %v3724 = vsel %vm3450, %v3715, %v3717
    %v3725 = vsel %vm3450, %v3717, %v3719
    %v3726 = vsel %vm3450, %v3719, %v3721
    %3732 = vst [vmem:[#allocation3 + $0x208] sm:$0xf0] %v3722
    %3733 = vst [vmem:[#allocation3 + $0x210] sm:$0xf0] %v3723
    %3734 = vst [vmem:[#allocation3 + $0x218] sm:$0xf0] %v3724
    %3735 = vst [vmem:[#allocation3 + $0x220] sm:$0xf0] %v3725
    %3736 = vst.msk [vmem:[#allocation3 + $0x228] sm:$0xf0] %vm3279, %v3726
    %3737 = vst [vmem:[#allocation3 + $0x230] sm:$0x3] %v3722
    %3738 = vst [vmem:[#allocation3 + $0x238] sm:$0x3] %v3723
    %3739 = vst [vmem:[#allocation3 + $0x240] sm:$0x3] %v3724
    %3740 = vst [vmem:[#allocation3 + $0x248] sm:$0x3] %v3725
    %3741 = vst.msk [vmem:[#allocation3 + $0x250] sm:$0x3] %vm3285, %v3726
    %3742 = vrot.lane.b32.xlu0 %v3288, 56
    %v3743 = vpop.permute.xlu0 %3742
    %3744 = vrot.lane.b32.xlu0 %v3289, 56
    %v3745 = vpop.permute.xlu0 %3744
    %3746 = vrot.lane.b32.xlu0 %v3290, 56
    %v3747 = vpop.permute.xlu0 %3746
    %3748 = vrot.lane.b32.xlu0 %v3291, 56
    %v3749 = vpop.permute.xlu0 %3748
    %3750 = vrot.lane.b32.xlu0 %v3410, 56
    %v3751 = vpop.permute.xlu0 %3750
    %3752 = vrot.lane.b32.xlu0 %v3621, 56
    %v3753 = vpop.permute.xlu0 %3752
    %v3754 = vsel %vm3478, %v3743, %v3745
    %v3755 = vsel %vm3478, %v3745, %v3747
    %v3756 = vsel %vm3478, %v3747, %v3749
    %v3757 = vsel %vm3478, %v3749, %v3751
    %v3758 = vsel %vm3478, %v3751, %v3753
    %3764 = vst [vmem:[#allocation3 + $0x230] sm:$0xfc] %v3754
    %3765 = vst [vmem:[#allocation3 + $0x238] sm:$0xfc] %v3755
    %3766 = vst [vmem:[#allocation3 + $0x240] sm:$0xfc] %v3756
    %3767 = vst [vmem:[#allocation3 + $0x248] sm:$0xfc] %v3757
    %3768 = vst.msk [vmem:[#allocation3 + $0x250] sm:$0xfc] %vm3316, %v3758
    %3769 = vst [vmem:[#allocation3 + $0x258] sm:$0x3f] %v3199
    %3770 = vst [vmem:[#allocation3 + $0x260] sm:$0x3f] %v3200
    %3771 = vst [vmem:[#allocation3 + $0x268] sm:$0x3f] %v3201
    %3772 = vst [vmem:[#allocation3 + $0x270] sm:$0x3f] %v3202
    %3773 = vst.msk [vmem:[#allocation3 + $0x278] sm:$0x3f] %vm3208, %v3203
    %3774 = vrot.lane.b32.xlu0 %v3344, 126
    %v3775 = vpop.permute.xlu0 %3774
    %3776 = vrot.lane.b32.xlu0 %v3676, 126
    %v3777 = vpop.permute.xlu0 %3776
    %v3778 = vsel %vm250, %v3229, %v3775
    %v3779 = vsel %vm250, %v3775, %v3777
    %3783 = vst [vmem:[#allocation3 + $0x258] sm:$0xc0] %v3232
    %3784 = vst [vmem:[#allocation3 + $0x260] sm:$0xc0] %v3233
    %3785 = vst [vmem:[#allocation3 + $0x268] sm:$0xc0] %v3778
    %3786 = vst [vmem:[#allocation3 + $0x270] sm:$0xc0] %v3779
    %3787 = vst.msk [vmem:[#allocation3 + $0x278] sm:$0xc0] %vm3243, %v3777
    %3788 = vst [vmem:[#allocation3 + $0x280] sm:$0xf] %v3232
    %3789 = vst [vmem:[#allocation3 + $0x288] sm:$0xf] %v3233
    %3790 = vst [vmem:[#allocation3 + $0x290] sm:$0xf] %v3778
    %3791 = vst [vmem:[#allocation3 + $0x298] sm:$0xf] %v3779
    %3792 = vst.msk [vmem:[#allocation3 + $0x2a0] sm:$0xf] %vm3249, %v3777
    %3793 = vrot.lane.b32.xlu0 %v3377, 124
    %v3794 = vpop.permute.xlu0 %3793
    %3795 = vrot.lane.b32.xlu0 %v3709, 124
    %v3796 = vpop.permute.xlu0 %3795
    %v3797 = vsel %vm465, %v3265, %v3794
    %v3798 = vsel %vm465, %v3794, %v3796
    %3802 = vst [vmem:[#allocation3 + $0x280] sm:$0xf0] %v3268
    %3803 = vst [vmem:[#allocation3 + $0x288] sm:$0xf0] %v3269
    %3804 = vst [vmem:[#allocation3 + $0x290] sm:$0xf0] %v3797
    %3805 = vst [vmem:[#allocation3 + $0x298] sm:$0xf0] %v3798
    %3806 = vst.msk [vmem:[#allocation3 + $0x2a0] sm:$0xf0] %vm3279, %v3796
    %3807 = vst [vmem:[#allocation3 + $0x2a8] sm:$0x3] %v3268
    %3808 = vst [vmem:[#allocation3 + $0x2b0] sm:$0x3] %v3269
    %3809 = vst [vmem:[#allocation3 + $0x2b8] sm:$0x3] %v3797
    %3810 = vst [vmem:[#allocation3 + $0x2c0] sm:$0x3] %v3798
    %3811 = vst.msk [vmem:[#allocation3 + $0x2c8] sm:$0x3] %vm3285, %v3796
    %3812 = vrot.lane.b32.xlu0 %v3410, 122
    %v3813 = vpop.permute.xlu0 %3812
    %3814 = vrot.lane.b32.xlu0 %v3621, 122
    %v3815 = vpop.permute.xlu0 %3814
    %v3816 = vsel %vm3302, %v3301, %v3813
    %v3817 = vsel %vm3302, %v3813, %v3815
    %3821 = vst [vmem:[#allocation3 + $0x2a8] sm:$0xfc] %v3305
    %3822 = vst [vmem:[#allocation3 + $0x2b0] sm:$0xfc] %v3306
    %3823 = vst [vmem:[#allocation3 + $0x2b8] sm:$0xfc] %v3816
    %3824 = vst [vmem:[#allocation3 + $0x2c0] sm:$0xfc] %v3817
    %3825 = vst.msk [vmem:[#allocation3 + $0x2c8] sm:$0xfc] %vm3316, %v3815
    %3826 = vrot.lane.b32.xlu0 %v3202, 120
    %v3827 = vpop.permute.xlu0 %3826
    %3828 = vrot.lane.b32.xlu0 %v3203, 120
    %v3829 = vpop.permute.xlu0 %3828
    %v3830 = vsel %vm3328, %v3327, %v3827
    %v3831 = vsel %vm3328, %v3827, %v3829
    %3835 = vst [vmem:[#allocation3 + $0x2d0] sm:$0x3f] %v3331
    %3836 = vst [vmem:[#allocation3 + $0x2d8] sm:$0x3f] %v3332
    %3837 = vst [vmem:[#allocation3 + $0x2e0] sm:$0x3f] %v3830
    %3838 = vst [vmem:[#allocation3 + $0x2e8] sm:$0x3f] %v3831
    %3839 = vst.msk [vmem:[#allocation3 + $0x2f0] sm:$0x3f] %vm3208, %v3829
    %v3840 = vld [vmem:[#allocation3] sm:$0xff]
    %v3841 = vld [vmem:[#allocation3 + $0x8] sm:$0xff]
    %v3842 = vld [vmem:[#allocation3 + $0x10] sm:$0xff]
    %v3843 = vld [vmem:[#allocation3 + $0x18] sm:$0xff]
    %v3844 = vld [vmem:[#allocation3 + $0x20] sm:$0xff]
    %v3845 = vld [vmem:[#allocation3 + $0x28] sm:$0xff]
    %v3846 = vld [vmem:[#allocation3 + $0x30] sm:$0xff]
    %v3847 = vld [vmem:[#allocation3 + $0x38] sm:$0xff]
    %v3848 = vld [vmem:[#allocation3 + $0x40] sm:$0xff]
    %v3849 = vld [vmem:[#allocation3 + $0x48] sm:$0xff]
    %v3850 = vld [vmem:[#allocation3 + $0x50] sm:$0xff]
    %v3851 = vld [vmem:[#allocation3 + $0x58] sm:$0xff]
    %v3852 = vld [vmem:[#allocation3 + $0x60] sm:$0xff]
    %v3853 = vld [vmem:[#allocation3 + $0x68] sm:$0xff]
    %v3854 = vld [vmem:[#allocation3 + $0x70] sm:$0xff]
    %v3855 = vld [vmem:[#allocation3 + $0x78] sm:$0xff]
    %v3856 = vld [vmem:[#allocation3 + $0x80] sm:$0xff]
    %v3857 = vld [vmem:[#allocation3 + $0x88] sm:$0xff]
    %v3858 = vld [vmem:[#allocation3 + $0x90] sm:$0xff]
    %v3859 = vld [vmem:[#allocation3 + $0x98] sm:$0xff]
    %v3860 = vld [vmem:[#allocation3 + $0xa0] sm:$0xff]
    %v3861 = vld [vmem:[#allocation3 + $0xa8] sm:$0xff]
    %v3862 = vld [vmem:[#allocation3 + $0xb0] sm:$0xff]
    %v3863 = vld [vmem:[#allocation3 + $0xb8] sm:$0xff]
    %v3864 = vld [vmem:[#allocation3 + $0xc0] sm:$0xff]
    %v3865 = vld [vmem:[#allocation3 + $0xc8] sm:$0xff]
    %v3866 = vld [vmem:[#allocation3 + $0xd0] sm:$0xff]
    %v3867 = vld [vmem:[#allocation3 + $0xd8] sm:$0xff]
    %v3868 = vld [vmem:[#allocation3 + $0xe0] sm:$0xff]
    %v3869 = vld [vmem:[#allocation3 + $0xe8] sm:$0xff]
    %v3870 = vld [vmem:[#allocation3 + $0xf0] sm:$0xff]
    %v3871 = vld [vmem:[#allocation3 + $0xf8] sm:$0xff]
    %v3872 = vld [vmem:[#allocation3 + $0x100] sm:$0xff]
    %v3873 = vld [vmem:[#allocation3 + $0x108] sm:$0xff]
    %v3874 = vld [vmem:[#allocation3 + $0x110] sm:$0xff]
    %v3875 = vld [vmem:[#allocation3 + $0x118] sm:$0xff]
    %v3876 = vld [vmem:[#allocation3 + $0x120] sm:$0xff]
    %v3877 = vld [vmem:[#allocation3 + $0x128] sm:$0xff]
    %v3878 = vld [vmem:[#allocation3 + $0x130] sm:$0xff]
    %v3879 = vld [vmem:[#allocation3 + $0x138] sm:$0xff]
    %v3880 = vld [vmem:[#allocation3 + $0x140] sm:$0xff]
    %v3881 = vld [vmem:[#allocation3 + $0x148] sm:$0xff]
    %v3882 = vld [vmem:[#allocation3 + $0x150] sm:$0xff]
    %v3883 = vld [vmem:[#allocation3 + $0x158] sm:$0xff]
    %v3884 = vld [vmem:[#allocation3 + $0x160] sm:$0xff]
    %v3885 = vld [vmem:[#allocation3 + $0x168] sm:$0xff]
    %v3886 = vld [vmem:[#allocation3 + $0x170] sm:$0xff]
    %v3887 = vld [vmem:[#allocation3 + $0x178] sm:$0xff]
    %v3888 = vld [vmem:[#allocation3 + $0x180] sm:$0xff]
    %v3889 = vld [vmem:[#allocation3 + $0x188] sm:$0xff]
    %v3890 = vld [vmem:[#allocation3 + $0x190] sm:$0xff]
    %v3891 = vld [vmem:[#allocation3 + $0x198] sm:$0xff]
    %v3892 = vld [vmem:[#allocation3 + $0x1a0] sm:$0xff]
    %v3893 = vld [vmem:[#allocation3 + $0x1a8] sm:$0xff]
    %v3894 = vld [vmem:[#allocation3 + $0x1b0] sm:$0xff]
    %v3895 = vld [vmem:[#allocation3 + $0x1b8] sm:$0xff]
    %v3896 = vld [vmem:[#allocation3 + $0x1c0] sm:$0xff]
    %v3897 = vld [vmem:[#allocation3 + $0x1c8] sm:$0xff]
    %v3898 = vld [vmem:[#allocation3 + $0x1d0] sm:$0xff]
    %v3899 = vld [vmem:[#allocation3 + $0x1d8] sm:$0xff]
    %v3900 = vld [vmem:[#allocation3 + $0x1e0] sm:$0xff]
    %v3901 = vld [vmem:[#allocation3 + $0x1e8] sm:$0xff]
    %v3902 = vld [vmem:[#allocation3 + $0x1f0] sm:$0xff]
    %v3903 = vld [vmem:[#allocation3 + $0x1f8] sm:$0xff]
    %v3904 = vld [vmem:[#allocation3 + $0x200] sm:$0xff]
    %v3905 = vld [vmem:[#allocation3 + $0x208] sm:$0xff]
    %v3906 = vld [vmem:[#allocation3 + $0x210] sm:$0xff]
    %v3907 = vld [vmem:[#allocation3 + $0x218] sm:$0xff]
    %v3908 = vld [vmem:[#allocation3 + $0x220] sm:$0xff]
    %v3909 = vld [vmem:[#allocation3 + $0x228] sm:$0xff]
    %v3910 = vld [vmem:[#allocation3 + $0x230] sm:$0xff]
    %v3911 = vld [vmem:[#allocation3 + $0x238] sm:$0xff]
    %v3912 = vld [vmem:[#allocation3 + $0x240] sm:$0xff]
    %v3913 = vld [vmem:[#allocation3 + $0x248] sm:$0xff]
    %v3914 = vld [vmem:[#allocation3 + $0x250] sm:$0xff]
    %v3915 = vld [vmem:[#allocation3 + $0x258] sm:$0xff]
    %v3916 = vld [vmem:[#allocation3 + $0x260] sm:$0xff]
    %v3917 = vld [vmem:[#allocation3 + $0x268] sm:$0xff]
    %v3918 = vld [vmem:[#allocation3 + $0x270] sm:$0xff]
    %v3919 = vld [vmem:[#allocation3 + $0x278] sm:$0xff]
    %v3920 = vld [vmem:[#allocation3 + $0x280] sm:$0xff]
    %v3921 = vld [vmem:[#allocation3 + $0x288] sm:$0xff]
    %v3922 = vld [vmem:[#allocation3 + $0x290] sm:$0xff]
    %v3923 = vld [vmem:[#allocation3 + $0x298] sm:$0xff]
    %v3924 = vld [vmem:[#allocation3 + $0x2a0] sm:$0xff]
    %v3925 = vld [vmem:[#allocation3 + $0x2a8] sm:$0xff]
    %v3926 = vld [vmem:[#allocation3 + $0x2b0] sm:$0xff]
    %v3927 = vld [vmem:[#allocation3 + $0x2b8] sm:$0xff]
    %v3928 = vld [vmem:[#allocation3 + $0x2c0] sm:$0xff]
    %v3929 = vld [vmem:[#allocation3 + $0x2c8] sm:$0xff]
    %v3930 = vld [vmem:[#allocation3 + $0x2d0] sm:$0x3f]
    %v3931 = vld [vmem:[#allocation3 + $0x2d8] sm:$0x3f]
    %v3932 = vld [vmem:[#allocation3 + $0x2e0] sm:$0x3f]
    %v3933 = vld [vmem:[#allocation3 + $0x2e8] sm:$0x3f]
    %v3934 = vld [vmem:[#allocation3 + $0x2f0] sm:$0x3f]
    %3936 = vset.pattern.permute.xlu0 0
    %3937 = vperm.xlu0 %3936, %v2712
    %v3938 = vpop.permute.xlu0 %3937
    %3941 = vset.pattern.permute.xlu0 0
    %3942 = vperm.xlu0 %3941, %v2713
    %v3943 = vpop.permute.xlu0 %3942
    %vm3945 = vcmask 179200
    %v3947 = vsel %vm3945, %v2709, 0
    %v3950 = vsel %vm3945, %v2711, 0
    %vm3952 = vcmask 1045504
    %v3954 = vsel %vm3952, %v3930, 0
    %v3957 = vsel %vm3952, %v3931, 0
    %v3960 = vsel %vm3952, %v3932, 0
    %v3963 = vsel %vm3952, %v3933, 0
    %v3966 = vsel %vm3952, %v3934, 0
    %3968 = vmatprep.subr.mxu0 %v3916
    %3969 = vmatpush1.msra.mxu0 %v3915
    %3970 = vmatprep.subr.mxu0 %v3911
    %3971 = vmatpush1.msra.mxu0 %v3910
    %3972 = vmatprep.subr.mxu0 %v3906
    %3973 = vmatpush1.msra.mxu0 %v3905
    %3974 = vmatprep.subr.mxu0 %v3901
    %3975 = vmatpush1.msra.mxu0 %v3900
    %3976 = vmatprep.subr.mxu0 %v3896
    %3977 = vmatpush1.msra.mxu0 %v3895
    %3978 = vmatprep.subr.mxu0 %v3891
    %3979 = vmatpush1.msra.mxu0 %v3890
    %3980 = vmatprep.subr.mxu0 %v3886
    %3981 = vmatpush1.msra.mxu0 %v3885
    %3982 = vmatprep.subr.mxu0 %v3881
    %3983 = vmatpush1.msra.mxu0 %v3880
    %3984 = vmatprep.subr.mxu0 %v3876
    %3985 = vmatpush1.msra.mxu0 %v3875
    %3986 = vmatprep.subr.mxu0 %v3871
    %3987 = vmatpush1.msra.mxu0 %v3870
    %3988 = vmatprep.subr.mxu0 %v3866
    %3989 = vmatpush1.msra.mxu0 %v3865
    %3990 = vmatprep.subr.mxu0 %v3861
    %3991 = vmatpush1.msra.mxu0 %v3860
    %3992 = vmatprep.subr.mxu0 %v3856
    %3993 = vmatpush1.msra.mxu0 %v3855
    %3994 = vmatprep.subr.mxu0 %v3851
    %3995 = vmatpush1.msra.mxu0 %v3850
    %3996 = vmatprep.subr.mxu0 %v3846
    %3997 = vmatpush1.msra.mxu0 %v3845
    %3998 = vmatprep.subr.mxu0 %v3841
    %3999 = vmatpush1.msra.mxu0 %v3840
    %4000 = vmatprep.subr.mxu0 0.0
    %4001 = vmatpush2.msra.mxu0 0.0
    %4002 = vmatprep.subr.mxu0 0.0
    %4003 = vmatpush2.msra.mxu0 0.0
    %4004 = vmatprep.subr.mxu0 0.0
    %4005 = vmatpush2.msra.mxu0 0.0
    %4006 = vmatprep.subr.mxu0 0.0
    %4007 = vmatpush2.msra.mxu0 0.0
    %4008 = vmatprep.subr.mxu0 0.0
    %4009 = vmatpush2.msra.mxu0 0.0
    %4010 = vmatprep.subr.mxu0 0.0
    %4011 = vmatpush2.msra.mxu0 0.0
    %4012 = vmatprep.subr.mxu0 0.0
    %4013 = vmatpush2.msra.mxu0 0.0
    %4014 = vmatprep.subr.mxu0 0.0
    %4015 = vmatpush2.msra.mxu0 0.0
    %4016 = vmatprep.subr.mxu0 0.0
    %4017 = vmatpush2.msra.mxu0 0.0
    %4018 = vmatprep.subr.mxu0 0.0
    %4019 = vmatpush2.msra.mxu0 0.0
    %4020 = vmatprep.subr.mxu0 0.0
    %4021 = vmatpush2.msra.mxu0 0.0
    %4022 = vmatprep.subr.mxu0 0.0
    %4023 = vmatpush2.msra.mxu0 0.0
    %4024 = vmatprep.subr.mxu0 0.0
    %4025 = vmatpush2.msra.mxu0 0.0
    %4026 = vmatprep.subr.mxu0 %v3957
    %4027 = vmatpush2.msra.mxu0 %v3954
    %4028 = vmatprep.subr.mxu0 %v3926
    %4029 = vmatpush2.msra.mxu0 %v3925
    %4030 = vmatprep.subr.mxu0 %v3921
    %4031 = vmatpush2.msra.mxu0 %v3920
    %4032 = vmatprep.mubr.f32.mxu0 %v3947
    %4033 = vmatmul.mubr.f32.gmra.mxu0 %v2708
    %v4034 = vpop.f32.mrf.mxu0
    %v4035 = vadd.f32 %v3938, %v4034
    %v4036 = vpop.f32.mrf.mxu0
    %v4037 = vadd.f32 %v3938, %v4036
    %4038 = vmatprep.mubr.f32.mxu0 %v3950
    %4039 = vmatmul.mubr.f32.gmra.mxu0 %v2710
    %v4040 = vpop.f32.mrf.mxu0
    %v4041 = vadd.f32 %v3943, %v4040
    %v4042 = vpop.f32.mrf.mxu0
    %v4043 = vadd.f32 %v3943, %v4042
    %4044 = vdwg.mxu0
    %4045 = vmatprep.subr.mxu0 %v3918
    %4046 = vmatpush1.msra.mxu0 %v3917
    %4047 = vmatprep.subr.mxu0 %v3913
    %4048 = vmatpush1.msra.mxu0 %v3912
    %4049 = vmatprep.subr.mxu0 %v3908
    %4050 = vmatpush1.msra.mxu0 %v3907
    %4051 = vmatprep.subr.mxu0 %v3903
    %4052 = vmatpush1.msra.mxu0 %v3902
    %4053 = vmatprep.subr.mxu0 %v3898
    %4054 = vmatpush1.msra.mxu0 %v3897
    %4055 = vmatprep.subr.mxu0 %v3893
    %4056 = vmatpush1.msra.mxu0 %v3892
    %4057 = vmatprep.subr.mxu0 %v3888
    %4058 = vmatpush1.msra.mxu0 %v3887
    %4059 = vmatprep.subr.mxu0 %v3883
    %4060 = vmatpush1.msra.mxu0 %v3882
    %4061 = vmatprep.subr.mxu0 %v3878
    %4062 = vmatpush1.msra.mxu0 %v3877
    %4063 = vmatprep.subr.mxu0 %v3873
    %4064 = vmatpush1.msra.mxu0 %v3872
    %4065 = vmatprep.subr.mxu0 %v3868
    %4066 = vmatpush1.msra.mxu0 %v3867
    %4067 = vmatprep.subr.mxu0 %v3863
    %4068 = vmatpush1.msra.mxu0 %v3862
    %4069 = vmatprep.subr.mxu0 %v3858
    %4070 = vmatpush1.msra.mxu0 %v3857
    %4071 = vmatprep.subr.mxu0 %v3853
    %4072 = vmatpush1.msra.mxu0 %v3852
    %4073 = vmatprep.subr.mxu0 %v3848
    %4074 = vmatpush1.msra.mxu0 %v3847
    %4075 = vmatprep.subr.mxu0 %v3843
    %4076 = vmatpush1.msra.mxu0 %v3842
    %4077 = vmatprep.subr.mxu0 0.0
    %4078 = vmatpush2.msra.mxu0 0.0
    %4079 = vmatprep.subr.mxu0 0.0
    %4080 = vmatpush2.msra.mxu0 0.0
    %4081 = vmatprep.subr.mxu0 0.0
    %4082 = vmatpush2.msra.mxu0 0.0
    %4083 = vmatprep.subr.mxu0 0.0
    %4084 = vmatpush2.msra.mxu0 0.0
    %4085 = vmatprep.subr.mxu0 0.0
    %4086 = vmatpush2.msra.mxu0 0.0
    %4087 = vmatprep.subr.mxu0 0.0
    %4088 = vmatpush2.msra.mxu0 0.0
    %4089 = vmatprep.subr.mxu0 0.0
    %4090 = vmatpush2.msra.mxu0 0.0
    %4091 = vmatprep.subr.mxu0 0.0
    %4092 = vmatpush2.msra.mxu0 0.0
    %4093 = vmatprep.subr.mxu0 0.0
    %4094 = vmatpush2.msra.mxu0 0.0
    %4095 = vmatprep.subr.mxu0 0.0
    %4096 = vmatpush2.msra.mxu0 0.0
    %4097 = vmatprep.subr.mxu0 0.0
    %4098 = vmatpush2.msra.mxu0 0.0
    %4099 = vmatprep.subr.mxu0 0.0
    %4100 = vmatpush2.msra.mxu0 0.0
    %4101 = vmatprep.subr.mxu0 0.0
    %4102 = vmatpush2.msra.mxu0 0.0
    %4103 = vmatprep.subr.mxu0 %v3963
    %4104 = vmatpush2.msra.mxu0 %v3960
    %4105 = vmatprep.subr.mxu0 %v3928
    %4106 = vmatpush2.msra.mxu0 %v3927
    %4107 = vmatprep.subr.mxu0 %v3923
    %4108 = vmatpush2.msra.mxu0 %v3922
    %4109 = vmatprep.mubr.f32.mxu0 %v3947
    %4110 = vmatmul.mubr.f32.gmra.mxu0 %v2708
    %v4111 = vpop.f32.mrf.mxu0
    %v4112 = vadd.f32 %v3938, %v4111
    %v4113 = vpop.f32.mrf.mxu0
    %v4114 = vadd.f32 %v3938, %v4113
    %4115 = vmatprep.mubr.f32.mxu0 %v3950
    %4116 = vmatmul.mubr.f32.gmra.mxu0 %v2710
    %v4117 = vpop.f32.mrf.mxu0
    %v4118 = vadd.f32 %v3943, %v4117
    %v4119 = vpop.f32.mrf.mxu0
    %v4120 = vadd.f32 %v3943, %v4119
    %4121 = vdwg.mxu0
    %4122 = vmatprep.subr.mxu0 0.0
    %4123 = vmatpush1.msra.mxu0 %v3919
    %4124 = vmatprep.subr.mxu0 0.0
    %4125 = vmatpush1.msra.mxu0 %v3914
    %4126 = vmatprep.subr.mxu0 0.0
    %4127 = vmatpush1.msra.mxu0 %v3909
    %4128 = vmatprep.subr.mxu0 0.0
    %4129 = vmatpush1.msra.mxu0 %v3904
    %4130 = vmatprep.subr.mxu0 0.0
    %4131 = vmatpush1.msra.mxu0 %v3899
    %4132 = vmatprep.subr.mxu0 0.0
    %4133 = vmatpush1.msra.mxu0 %v3894
    %4134 = vmatprep.subr.mxu0 0.0
    %4135 = vmatpush1.msra.mxu0 %v3889
    %4136 = vmatprep.subr.mxu0 0.0
    %4137 = vmatpush1.msra.mxu0 %v3884
    %4138 = vmatprep.subr.mxu0 0.0
    %4139 = vmatpush1.msra.mxu0 %v3879
    %4140 = vmatprep.subr.mxu0 0.0
    %4141 = vmatpush1.msra.mxu0 %v3874
    %4142 = vmatprep.subr.mxu0 0.0
    %4143 = vmatpush1.msra.mxu0 %v3869
    %4144 = vmatprep.subr.mxu0 0.0
    %4145 = vmatpush1.msra.mxu0 %v3864
    %4146 = vmatprep.subr.mxu0 0.0
    %4147 = vmatpush1.msra.mxu0 %v3859
    %4148 = vmatprep.subr.mxu0 0.0
    %4149 = vmatpush1.msra.mxu0 %v3854
    %4150 = vmatprep.subr.mxu0 0.0
    %4151 = vmatpush1.msra.mxu0 %v3849
    %4152 = vmatprep.subr.mxu0 0.0
    %4153 = vmatpush1.msra.mxu0 %v3844
    %4154 = vmatprep.subr.mxu0 0.0
    %4155 = vmatpush2.msra.mxu0 0.0
    %4156 = vmatprep.subr.mxu0 0.0
    %4157 = vmatpush2.msra.mxu0 0.0
    %4158 = vmatprep.subr.mxu0 0.0
    %4159 = vmatpush2.msra.mxu0 0.0
    %4160 = vmatprep.subr.mxu0 0.0
    %4161 = vmatpush2.msra.mxu0 0.0
    %4162 = vmatprep.subr.mxu0 0.0
    %4163 = vmatpush2.msra.mxu0 0.0
    %4164 = vmatprep.subr.mxu0 0.0
    %4165 = vmatpush2.msra.mxu0 0.0
    %4166 = vmatprep.subr.mxu0 0.0
    %4167 = vmatpush2.msra.mxu0 0.0
    %4168 = vmatprep.subr.mxu0 0.0
    %4169 = vmatpush2.msra.mxu0 0.0
    %4170 = vmatprep.subr.mxu0 0.0
    %4171 = vmatpush2.msra.mxu0 0.0
    %4172 = vmatprep.subr.mxu0 0.0
    %4173 = vmatpush2.msra.mxu0 0.0
    %4174 = vmatprep.subr.mxu0 0.0
    %4175 = vmatpush2.msra.mxu0 0.0
    %4176 = vmatprep.subr.mxu0 0.0
    %4177 = vmatpush2.msra.mxu0 0.0
    %4178 = vmatprep.subr.mxu0 0.0
    %4179 = vmatpush2.msra.mxu0 0.0
    %4180 = vmatprep.subr.mxu0 0.0
    %4181 = vmatpush2.msra.mxu0 %v3966
    %4182 = vmatprep.subr.mxu0 0.0
    %4183 = vmatpush2.msra.mxu0 %v3929
    %4184 = vmatprep.subr.mxu0 0.0
    %4185 = vmatpush2.msra.mxu0 %v3924
    %4186 = vmatprep.mubr.f32.mxu0 %v3947
    %4187 = vmatmul.mubr.f32.gmra.mxu0 %v2708
    %v4188 = vpop.f32.mrf.mxu0
    %v4189 = vadd.f32 %v3938, %v4188
    %v4190 = vpop.f32.mrf.mxu0
    %4191 = vmatprep.mubr.f32.mxu0 %v3950
    %4192 = vmatmul.mubr.f32.gmra.mxu0 %v2710
    %v4193 = vpop.f32.mrf.mxu0
    %v4194 = vadd.f32 %v3943, %v4193
    %v4195 = vpop.f32.mrf.mxu0
    %4196 = vdwg.mxu0
    %v4197 = vmax.f32 %v4035, 0.0
    %v4198 = vmax.f32 %v4037, 0.0
    %v4199 = vmax.f32 %v4112, 0.0
    %v4200 = vmax.f32 %v4114, 0.0
    %v4201 = vmax.f32 %v4189, 0.0
    %v4202 = vmax.f32 %v4041, 0.0
    %v4203 = vmax.f32 %v4043, 0.0
    %v4204 = vmax.f32 %v4118, 0.0
    %v4205 = vmax.f32 %v4120, 0.0
    %v4206 = vmax.f32 %v4194, 0.0
    %4217 = vrot.lane.b32.xlu0 %v4197, 126
    %v4218 = vpop.permute.xlu0 %4217
    %4219 = vrot.lane.b32.xlu0 %v4198, 126
    %v4220 = vpop.permute.xlu0 %4219
    %4221 = vrot.lane.b32.xlu0 %v4199, 126
    %v4222 = vpop.permute.xlu0 %4221
    %4223 = vrot.lane.b32.xlu0 %v4200, 126
    %v4224 = vpop.permute.xlu0 %4223
    %4225 = vrot.lane.b32.xlu0 %v4201, 126
    %v4226 = vpop.permute.xlu0 %4225
    %4227 = vrot.lane.b32.xlu0 %v4202, 126
    %v4228 = vpop.permute.xlu0 %4227
    %4229 = vrot.lane.b32.xlu0 %v4203, 126
    %v4230 = vpop.permute.xlu0 %4229
    %4231 = vrot.lane.b32.xlu0 %v4204, 126
    %v4232 = vpop.permute.xlu0 %4231
    %4233 = vrot.lane.b32.xlu0 %v4205, 126
    %v4234 = vpop.permute.xlu0 %4233
    %4235 = vrot.lane.b32.xlu0 %v4206, 126
    %v4236 = vpop.permute.xlu0 %4235
    %v4237 = vsel %vm250, %v4218, %v4220
    %v4238 = vsel %vm250, %v4220, %v4222
    %v4239 = vsel %vm250, %v4222, %v4224
    %v4240 = vsel %vm250, %v4224, %v4226
    %v4241 = vsel %vm250, %v4228, %v4230
    %v4242 = vsel %vm250, %v4230, %v4232
    %v4243 = vsel %vm250, %v4232, %v4234
    %v4244 = vsel %vm250, %v4234, %v4236
    %v4255 = vmax.f32 %v4197, %v4237
    %v4256 = vmax.f32 %v4198, %v4238
    %v4257 = vmax.f32 %v4199, %v4239
    %v4258 = vmax.f32 %v4200, %v4240
    %v4259 = vmax.f32 %v4201, %v4226
    %v4260 = vmax.f32 %v4202, %v4241
    %v4261 = vmax.f32 %v4203, %v4242
    %v4262 = vmax.f32 %v4204, %v4243
    %v4263 = vmax.f32 %v4205, %v4244
    %v4264 = vmax.f32 %v4206, %v4236
    %4275 = vrot.lane.b32.xlu0 %v4255, 64
    %v4276 = vpop.permute.xlu0 %4275
    %4277 = vrot.lane.b32.xlu0 %v4256, 64
    %v4278 = vpop.permute.xlu0 %4277
    %4279 = vrot.lane.b32.xlu0 %v4257, 64
    %v4280 = vpop.permute.xlu0 %4279
    %4281 = vrot.lane.b32.xlu0 %v4258, 64
    %v4282 = vpop.permute.xlu0 %4281
    %4283 = vrot.lane.b32.xlu0 %v4259, 64
    %v4284 = vpop.permute.xlu0 %4283
    %4285 = vrot.lane.b32.xlu0 %v4260, 64
    %v4286 = vpop.permute.xlu0 %4285
    %4287 = vrot.lane.b32.xlu0 %v4261, 64
    %v4288 = vpop.permute.xlu0 %4287
    %4289 = vrot.lane.b32.xlu0 %v4262, 64
    %v4290 = vpop.permute.xlu0 %4289
    %4291 = vrot.lane.b32.xlu0 %v4263, 64
    %v4292 = vpop.permute.xlu0 %4291
    %4293 = vrot.lane.b32.xlu0 %v4264, 64
    %v4294 = vpop.permute.xlu0 %4293
    %v4295 = vsel %vm1156, %v4276, %v4278
    %v4296 = vsel %vm1156, %v4278, %v4280
    %v4297 = vsel %vm1156, %v4280, %v4282
    %v4298 = vsel %vm1156, %v4282, %v4284
    %v4299 = vsel %vm1156, %v4286, %v4288
    %v4300 = vsel %vm1156, %v4288, %v4290
    %v4301 = vsel %vm1156, %v4290, %v4292
    %v4302 = vsel %vm1156, %v4292, %v4294
    %v4313 = vmax.f32 %v4255, %v4295
    %v4314 = vmax.f32 %v4256, %v4296
    %v4315 = vmax.f32 %v4257, %v4297
    %v4316 = vmax.f32 %v4258, %v4298
    %v4317 = vmax.f32 %v4259, %v4284
    %v4318 = vmax.f32 %v4260, %v4299
    %v4319 = vmax.f32 %v4261, %v4300
    %v4320 = vmax.f32 %v4262, %v4301
    %v4321 = vmax.f32 %v4263, %v4302
    %v4322 = vmax.f32 %v4264, %v4294
    %vm4323 = vcmask 7168
    %4324 = vst.msk [vmem:[#allocation4] sm:$0xff] %vm4323, %v4313
    %4325 = vst.msk [vmem:[#allocation4 + $0x8] sm:$0xff] %vm4323, %v4318
    %4328 = vrot.lane.b32.xlu0 %v4313, 125
    %v4329 = vpop.permute.xlu0 %4328
    %4330 = vrot.lane.b32.xlu0 %v4318, 125
    %v4331 = vpop.permute.xlu0 %4330
    %vm4334 = vcmask 15368
    %4335 = vst.msk [vmem:[#allocation4] sm:$0xff] %vm4334, %v4329
    %4336 = vst.msk [vmem:[#allocation4 + $0x8] sm:$0xff] %vm4334, %v4331
    %4337 = vrot.lane.b32.xlu0 %v4313, 122
    %v4338 = vpop.permute.xlu0 %4337
    %4339 = vrot.lane.b32.xlu0 %v4318, 122
    %v4340 = vpop.permute.xlu0 %4339
    %vm4343 = vcmask 23568
    %4344 = vst.msk [vmem:[#allocation4] sm:$0xff] %vm4343, %v4338
    %4345 = vst.msk [vmem:[#allocation4 + $0x8] sm:$0xff] %vm4343, %v4340
    %4346 = vrot.lane.b32.xlu0 %v4313, 119
    %v4347 = vpop.permute.xlu0 %4346
    %4348 = vrot.lane.b32.xlu0 %v4318, 119
    %v4349 = vpop.permute.xlu0 %4348
    %vm4352 = vcmask 31768
    %4353 = vst.msk [vmem:[#allocation4] sm:$0xff] %vm4352, %v4347
    %4354 = vst.msk [vmem:[#allocation4 + $0x8] sm:$0xff] %vm4352, %v4349
    %4355 = vrot.lane.b32.xlu0 %v4313, 116
    %v4356 = vpop.permute.xlu0 %4355
    %4357 = vrot.lane.b32.xlu0 %v4318, 116
    %v4358 = vpop.permute.xlu0 %4357
    %vm4361 = vcmask 39968
    %4362 = vst.msk [vmem:[#allocation4] sm:$0xff] %vm4361, %v4356
    %4363 = vst.msk [vmem:[#allocation4 + $0x8] sm:$0xff] %vm4361, %v4358
    %4366 = vrot.lane.b32.xlu0 %v4314, 5
    %v4367 = vpop.permute.xlu0 %4366
    %4368 = vrot.lane.b32.xlu0 %v4319, 5
    %v4369 = vpop.permute.xlu0 %4368
    %vm4372 = vcmask 48168
    %4373 = vst.msk [vmem:[#allocation4] sm:$0xff] %vm4372, %v4367
    %4374 = vst.msk [vmem:[#allocation4 + $0x8] sm:$0xff] %vm4372, %v4369
    %4375 = vrot.lane.b32.xlu0 %v4314, 2
    %v4376 = vpop.permute.xlu0 %4375
    %4377 = vrot.lane.b32.xlu0 %v4319, 2
    %v4378 = vpop.permute.xlu0 %4377
    %vm4381 = vcmask 56368
    %4382 = vst.msk [vmem:[#allocation4] sm:$0xff] %vm4381, %v4376
    %4383 = vst.msk [vmem:[#allocation4 + $0x8] sm:$0xff] %vm4381, %v4378
    %4384 = vrot.lane.b32.xlu0 %v4314, 127
    %v4385 = vpop.permute.xlu0 %4384
    %4386 = vrot.lane.b32.xlu0 %v4319, 127
    %v4387 = vpop.permute.xlu0 %4386
    %vm4390 = vcmask 64568
    %4391 = vst.msk [vmem:[#allocation4] sm:$0xff] %vm4390, %v4385
    %4392 = vst.msk [vmem:[#allocation4 + $0x8] sm:$0xff] %vm4390, %v4387
    %4393 = vrot.lane.b32.xlu0 %v4314, 124
    %v4394 = vpop.permute.xlu0 %4393
    %4395 = vrot.lane.b32.xlu0 %v4319, 124
    %v4396 = vpop.permute.xlu0 %4395
    %vm4399 = vcmask 72768
    %4400 = vst.msk [vmem:[#allocation4] sm:$0xff] %vm4399, %v4394
    %4401 = vst.msk [vmem:[#allocation4 + $0x8] sm:$0xff] %vm4399, %v4396
    %4402 = vrot.lane.b32.xlu0 %v4314, 121
    %v4403 = vpop.permute.xlu0 %4402
    %4404 = vrot.lane.b32.xlu0 %v4319, 121
    %v4405 = vpop.permute.xlu0 %4404
    %vm4408 = vcmask 80968
    %4409 = vst.msk [vmem:[#allocation4] sm:$0xff] %vm4408, %v4403
    %4410 = vst.msk [vmem:[#allocation4 + $0x8] sm:$0xff] %vm4408, %v4405
    %4413 = vrot.lane.b32.xlu0 %v4315, 10
    %v4414 = vpop.permute.xlu0 %4413
    %4415 = vrot.lane.b32.xlu0 %v4320, 10
    %v4416 = vpop.permute.xlu0 %4415
    %vm4419 = vcmask 89168
    %4420 = vst.msk [vmem:[#allocation4] sm:$0xff] %vm4419, %v4414
    %4421 = vst.msk [vmem:[#allocation4 + $0x8] sm:$0xff] %vm4419, %v4416
    %4422 = vrot.lane.b32.xlu0 %v4315, 7
    %v4423 = vpop.permute.xlu0 %4422
    %4424 = vrot.lane.b32.xlu0 %v4320, 7
    %v4425 = vpop.permute.xlu0 %4424
    %vm4428 = vcmask 97368
    %4429 = vst.msk [vmem:[#allocation4] sm:$0xff] %vm4428, %v4423
    %4430 = vst.msk [vmem:[#allocation4 + $0x8] sm:$0xff] %vm4428, %v4425
    %4431 = vrot.lane.b32.xlu0 %v4315, 4
    %v4432 = vpop.permute.xlu0 %4431
    %4433 = vrot.lane.b32.xlu0 %v4320, 4
    %v4434 = vpop.permute.xlu0 %4433
    %vm4437 = vcmask 105568
    %4438 = vst.msk [vmem:[#allocation4] sm:$0xff] %vm4437, %v4432
    %4439 = vst.msk [vmem:[#allocation4 + $0x8] sm:$0xff] %vm4437, %v4434
    %4440 = vrot.lane.b32.xlu0 %v4315, 1
    %v4441 = vpop.permute.xlu0 %4440
    %4442 = vrot.lane.b32.xlu0 %v4320, 1
    %v4443 = vpop.permute.xlu0 %4442
    %vm4446 = vcmask 113768
    %4447 = vst.msk [vmem:[#allocation4] sm:$0xff] %vm4446, %v4441
    %4448 = vst.msk [vmem:[#allocation4 + $0x8] sm:$0xff] %vm4446, %v4443
    %4449 = vrot.lane.b32.xlu0 %v4315, 126
    %v4450 = vpop.permute.xlu0 %4449
    %4451 = vrot.lane.b32.xlu0 %v4320, 126
    %v4452 = vpop.permute.xlu0 %4451
    %vm4455 = vcmask 121968
    %4456 = vst.msk [vmem:[#allocation4] sm:$0xff] %vm4455, %v4450
    %4457 = vst.msk [vmem:[#allocation4 + $0x8] sm:$0xff] %vm4455, %v4452
    %4460 = vrot.lane.b32.xlu0 %v4316, 15
    %v4461 = vpop.permute.xlu0 %4460
    %4462 = vrot.lane.b32.xlu0 %v4321, 15
    %v4463 = vpop.permute.xlu0 %4462
    %vm4466 = vcmask 130168
    %4467 = vst.msk [vmem:[#allocation4] sm:$0xff] %vm4466, %v4461
    %4468 = vst.msk [vmem:[#allocation4 + $0x8] sm:$0xff] %vm4466, %v4463
    %4469 = vrot.lane.b32.xlu0 %v4316, 12
    %v4470 = vpop.permute.xlu0 %4469
    %4471 = vrot.lane.b32.xlu0 %v4321, 12
    %v4472 = vpop.permute.xlu0 %4471
    %vm4475 = vcmask 138368
    %4476 = vst.msk [vmem:[#allocation4] sm:$0xff] %vm4475, %v4470
    %4477 = vst.msk [vmem:[#allocation4 + $0x8] sm:$0xff] %vm4475, %v4472
    %4478 = vrot.lane.b32.xlu0 %v4316, 9
    %v4479 = vpop.permute.xlu0 %4478
    %4480 = vrot.lane.b32.xlu0 %v4321, 9
    %v4481 = vpop.permute.xlu0 %4480
    %vm4484 = vcmask 146568
    %4485 = vst.msk [vmem:[#allocation4] sm:$0xff] %vm4484, %v4479
    %4486 = vst.msk [vmem:[#allocation4 + $0x8] sm:$0xff] %vm4484, %v4481
    %4487 = vrot.lane.b32.xlu0 %v4316, 6
    %v4488 = vpop.permute.xlu0 %4487
    %4489 = vrot.lane.b32.xlu0 %v4321, 6
    %v4490 = vpop.permute.xlu0 %4489
    %vm4493 = vcmask 154768
    %4494 = vst.msk [vmem:[#allocation4] sm:$0xff] %vm4493, %v4488
    %4495 = vst.msk [vmem:[#allocation4 + $0x8] sm:$0xff] %vm4493, %v4490
    %4496 = vrot.lane.b32.xlu0 %v4316, 3
    %v4497 = vpop.permute.xlu0 %4496
    %4498 = vrot.lane.b32.xlu0 %v4321, 3
    %v4499 = vpop.permute.xlu0 %4498
    %vm4502 = vcmask 162968
    %4503 = vst.msk [vmem:[#allocation4] sm:$0xff] %vm4502, %v4497
    %4504 = vst.msk [vmem:[#allocation4 + $0x8] sm:$0xff] %vm4502, %v4499
    %4507 = vrot.lane.b32.xlu0 %v4317, 20
    %v4508 = vpop.permute.xlu0 %4507
    %4509 = vrot.lane.b32.xlu0 %v4322, 20
    %v4510 = vpop.permute.xlu0 %4509
    %vm4513 = vcmask 171168
    %4514 = vst.msk [vmem:[#allocation4] sm:$0xff] %vm4513, %v4508
    %4515 = vst.msk [vmem:[#allocation4 + $0x8] sm:$0xff] %vm4513, %v4510
    %4516 = vrot.lane.b32.xlu0 %v4317, 17
    %v4517 = vpop.permute.xlu0 %4516
    %4518 = vrot.lane.b32.xlu0 %v4322, 17
    %v4519 = vpop.permute.xlu0 %4518
    %vm4522 = vcmask 179368
    %4523 = vst.msk [vmem:[#allocation4] sm:$0xff] %vm4522, %v4517
    %4524 = vst.msk [vmem:[#allocation4 + $0x8] sm:$0xff] %vm4522, %v4519
    %4525 = vrot.lane.b32.xlu0 %v4317, 14
    %v4526 = vpop.permute.xlu0 %4525
    %4527 = vrot.lane.b32.xlu0 %v4322, 14
    %v4528 = vpop.permute.xlu0 %4527
    %vm4531 = vcmask 187568
    %4532 = vst.msk [vmem:[#allocation4] sm:$0xff] %vm4531, %v4526
    %4533 = vst.msk [vmem:[#allocation4 + $0x8] sm:$0xff] %vm4531, %v4528
    %4534 = vrot.lane.b32.xlu0 %v4317, 11
    %v4535 = vpop.permute.xlu0 %4534
    %4536 = vrot.lane.b32.xlu0 %v4322, 11
    %v4537 = vpop.permute.xlu0 %4536
    %vm4540 = vcmask 195768
    %4541 = vst.msk [vmem:[#allocation4] sm:$0xff] %vm4540, %v4535
    %4542 = vst.msk [vmem:[#allocation4 + $0x8] sm:$0xff] %vm4540, %v4537
    %4543 = vrot.lane.b32.xlu0 %v4317, 8
    %v4544 = vpop.permute.xlu0 %4543
    %4545 = vrot.lane.b32.xlu0 %v4322, 8
    %v4546 = vpop.permute.xlu0 %4545
    %vm4549 = vcmask 203968
    %4550 = vst.msk [vmem:[#allocation4] sm:$0xff] %vm4549, %v4544
    %4551 = vst.msk [vmem:[#allocation4 + $0x8] sm:$0xff] %vm4549, %v4546
    %s4552 = scalar_lea.vmem [#allocation2], 560
    %v4553 = vld [vmem:[%s4552] sm:$0xff]
    %v4554 = vld [vmem:[%s4552 + $0x8] sm:$0xff]
    %v4555 = vld [vmem:[%s4552 + $0x10] sm:$0xff]
    %v4556 = vld [vmem:[%s4552 + $0x18] sm:$0xff]
    %v4557 = vld [vmem:[%s4552 + $0x20] sm:$0xff]
    %v4558 = vld [vmem:[%s4552 + $0x28] sm:$0xff]
    %v4559 = vld [vmem:[%s4552 + $0x30] sm:$0xff]
    %v4560 = vld [vmem:[%s4552 + $0x38] sm:$0xff]
    %v4561 = vld [vmem:[%s4552 + $0x40] sm:$0xff]
    %v4562 = vld [vmem:[%s4552 + $0x48] sm:$0xff]
    %v4563 = vld [vmem:[%s4552 + $0x50] sm:$0xff]
    %v4564 = vld [vmem:[%s4552 + $0x58] sm:$0xff]
    %v4565 = vld [vmem:[%s4552 + $0x60] sm:$0xff]
    %v4566 = vld [vmem:[%s4552 + $0x68] sm:$0xff]
    %v4567 = vld [vmem:[%s4552 + $0x70] sm:$0xff]
    %v4568 = vld [vmem:[%s4552 + $0x78] sm:$0xff]
    %v4569 = vld [vmem:[%s4552 + $0x80] sm:$0xff]
    %v4570 = vld [vmem:[%s4552 + $0x88] sm:$0xff]
    %v4571 = vld [vmem:[%s4552 + $0x90] sm:$0xff]
    %v4572 = vld [vmem:[%s4552 + $0x98] sm:$0xff]
    %v4573 = vld [vmem:[%s4552 + $0xa0] sm:$0xff]
    %v4574 = vld [vmem:[%s4552 + $0xa8] sm:$0xff]
    %v4575 = vld [vmem:[%s4552 + $0xb0] sm:$0xff]
    %v4576 = vld [vmem:[%s4552 + $0xb8] sm:$0xff]
    %v4577 = vld [vmem:[%s4552 + $0xc0] sm:$0xff]
    %v4578 = vld [vmem:[%s4552 + $0xc8] sm:$0xff]
    %v4579 = vld [vmem:[%s4552 + $0xd0] sm:$0xff]
    %v4580 = vld [vmem:[%s4552 + $0xd8] sm:$0xff]
    %v4581 = vld [vmem:[%s4552 + $0xe0] sm:$0xff]
    %v4582 = vld [vmem:[%s4552 + $0xe8] sm:$0xff]
    %v4583 = vld [vmem:[%s4552 + $0xf0] sm:$0xff]
    %v4584 = vld [vmem:[%s4552 + $0xf8] sm:$0xff]
    %v4585 = vld [vmem:[%s4552 + $0x100] sm:$0xff]
    %v4586 = vld [vmem:[%s4552 + $0x108] sm:$0xff]
    %v4587 = vld [vmem:[%s4552 + $0x110] sm:$0xff]
    %v4588 = vld [vmem:[%s4552 + $0x118] sm:$0xff]
    %v4589 = vld [vmem:[%s4552 + $0x120] sm:$0xff]
    %v4590 = vld [vmem:[%s4552 + $0x128] sm:$0xff]
    %v4591 = vld [vmem:[%s4552 + $0x130] sm:$0xff]
    %v4592 = vld [vmem:[%s4552 + $0x138] sm:$0xff]
    %v4593 = vld [vmem:[%s4552 + $0x140] sm:$0xff]
    %v4594 = vld [vmem:[%s4552 + $0x148] sm:$0xff]
    %v4595 = vld [vmem:[%s4552 + $0x150] sm:$0xff]
    %v4596 = vld [vmem:[%s4552 + $0x158] sm:$0xff]
    %v4597 = vld [vmem:[%s4552 + $0x160] sm:$0xff]
    %v4598 = vld [vmem:[%s4552 + $0x168] sm:$0xff]
    %v4599 = vld [vmem:[%s4552 + $0x170] sm:$0xff]
    %v4600 = vld [vmem:[%s4552 + $0x178] sm:$0xff]
    %v4601 = vld [vmem:[%s4552 + $0x180] sm:$0xff]
    %v4602 = vld [vmem:[%s4552 + $0x188] sm:$0xff]
    %v4603 = vld [vmem:[%s4552 + $0x190] sm:$0xff]
    %v4604 = vld [vmem:[%s4552 + $0x198] sm:$0xff]
    %v4605 = vld [vmem:[%s4552 + $0x1a0] sm:$0xff]
    %v4606 = vld [vmem:[%s4552 + $0x1a8] sm:$0xff]
    %v4607 = vld [vmem:[%s4552 + $0x1b0] sm:$0xff]
    %v4608 = vld [vmem:[%s4552 + $0x1b8] sm:$0xff]
    %v4609 = vld [vmem:[%s4552 + $0x1c0] sm:$0xff]
    %v4610 = vld [vmem:[%s4552 + $0x1c8] sm:$0xff]
    %v4611 = vld [vmem:[%s4552 + $0x1d0] sm:$0xff]
    %v4612 = vld [vmem:[%s4552 + $0x1d8] sm:$0xff]
    %v4613 = vld [vmem:[%s4552 + $0x1e0] sm:$0xff]
    %v4614 = vld [vmem:[%s4552 + $0x1e8] sm:$0xff]
    %v4615 = vld [vmem:[%s4552 + $0x1f0] sm:$0xff]
    %v4616 = vld [vmem:[%s4552 + $0x1f8] sm:$0x7]
    %v4617 = vld [vmem:[%s4552 + $0x200] sm:$0x7]
    %v4618 = vld [vmem:[%s4552 + $0x208] sm:$0x7]
    %v4619 = vld [vmem:[%s4552 + $0x210] sm:$0x7]
    %v4620 = vld [vmem:[%s4552 + $0x218] sm:$0x7]
    %v4621 = vld [vmem:[%s4552 + $0x220] sm:$0x7]
    %v4622 = vld [vmem:[%s4552 + $0x228] sm:$0x7]
    %v4624 = vsel %vm2810, %v4616, 0
    %v4627 = vsel %vm2810, %v4617, 0
    %v4630 = vsel %vm2810, %v4618, 0
    %v4633 = vsel %vm2810, %v4619, 0
    %v4636 = vsel %vm2810, %v4620, 0
    %v4639 = vsel %vm2810, %v4621, 0
    %v4642 = vsel %vm2810, %v4622, 0
    %4644 = vmatprep.subr.mxu0 0.0
    %4645 = vmatpush1.msra.mxu0 0.0
    %4646 = vmatprep.subr.mxu0 0.0
    %4647 = vmatpush1.msra.mxu0 0.0
    %4648 = vmatprep.subr.mxu0 0.0
    %4649 = vmatpush1.msra.mxu0 0.0
    %4650 = vmatprep.subr.mxu0 0.0
    %4651 = vmatpush1.msra.mxu0 0.0
    %4652 = vmatprep.subr.mxu0 0.0
    %4653 = vmatpush1.msra.mxu0 0.0
    %4654 = vmatprep.subr.mxu0 0.0
    %4655 = vmatpush1.msra.mxu0 0.0
    %4656 = vmatprep.subr.mxu0 %v4627
    %4657 = vmatpush1.msra.mxu0 %v4624
    %4658 = vmatprep.subr.mxu0 %v4610
    %4659 = vmatpush1.msra.mxu0 %v4609
    %4660 = vmatprep.subr.mxu0 %v4603
    %4661 = vmatpush1.msra.mxu0 %v4602
    %4662 = vmatprep.subr.mxu0 %v4596
    %4663 = vmatpush1.msra.mxu0 %v4595
    %4664 = vmatprep.subr.mxu0 %v4589
    %4665 = vmatpush1.msra.mxu0 %v4588
    %4666 = vmatprep.subr.mxu0 %v4582
    %4667 = vmatpush1.msra.mxu0 %v4581
    %4668 = vmatprep.subr.mxu0 %v4575
    %4669 = vmatpush1.msra.mxu0 %v4574
    %4670 = vmatprep.subr.mxu0 %v4568
    %4671 = vmatpush1.msra.mxu0 %v4567
    %4672 = vmatprep.subr.mxu0 %v4561
    %4673 = vmatpush1.msra.mxu0 %v4560
    %4674 = vmatprep.subr.mxu0 %v4554
    %4675 = vmatpush1.msra.mxu0 %v4553
    %4676 = vmatprep.subr.mxu0 0.0
    %4677 = vmatpush2.msra.mxu0 0.0
    %4678 = vmatprep.subr.mxu0 0.0
    %4679 = vmatpush2.msra.mxu0 0.0
    %4680 = vmatprep.subr.mxu0 0.0
    %4681 = vmatpush2.msra.mxu0 0.0
    %4682 = vmatprep.subr.mxu0 0.0
    %4683 = vmatpush2.msra.mxu0 0.0
    %4684 = vmatprep.subr.mxu0 0.0
    %4685 = vmatpush2.msra.mxu0 0.0
    %4686 = vmatprep.subr.mxu0 0.0
    %4687 = vmatpush2.msra.mxu0 0.0
    %4688 = vmatprep.subr.mxu0 0.0
    %4689 = vmatpush2.msra.mxu0 0.0
    %4690 = vmatprep.subr.mxu0 0.0
    %4691 = vmatpush2.msra.mxu0 0.0
    %4692 = vmatprep.subr.mxu0 0.0
    %4693 = vmatpush2.msra.mxu0 0.0
    %4694 = vmatprep.subr.mxu0 0.0
    %4695 = vmatpush2.msra.mxu0 0.0
    %4696 = vmatprep.subr.mxu0 0.0
    %4697 = vmatpush2.msra.mxu0 0.0
    %4698 = vmatprep.subr.mxu0 0.0
    %4699 = vmatpush2.msra.mxu0 0.0
    %4700 = vmatprep.subr.mxu0 0.0
    %4701 = vmatpush2.msra.mxu0 0.0
    %4702 = vmatprep.subr.mxu0 0.0
    %4703 = vmatpush2.msra.mxu0 0.0
    %4704 = vmatprep.subr.mxu0 0.0
    %4705 = vmatpush2.msra.mxu0 0.0
    %4706 = vmatprep.subr.mxu0 0.0
    %4707 = vmatpush2.msra.mxu0 0.0
    %4708 = vmatprep.mubr.f32.mxu0 0.0
    %4709 = vmatmul.mubr.f32.gmra.mxu0 %v2808
    %v4710 = vpop.f32.mrf.mxu0
    %v4711 = vadd.f32 %v2804, %v4710
    %v4712 = vpop.f32.mrf.mxu0
    %v4713 = vadd.f32 %v2804, %v4712
    %4714 = vdwg.mxu0
    %4715 = vmatprep.subr.mxu0 0.0
    %4716 = vmatpush1.msra.mxu0 0.0
    %4717 = vmatprep.subr.mxu0 0.0
    %4718 = vmatpush1.msra.mxu0 0.0
    %4719 = vmatprep.subr.mxu0 0.0
    %4720 = vmatpush1.msra.mxu0 0.0
    %4721 = vmatprep.subr.mxu0 0.0
    %4722 = vmatpush1.msra.mxu0 0.0
    %4723 = vmatprep.subr.mxu0 0.0
    %4724 = vmatpush1.msra.mxu0 0.0
    %4725 = vmatprep.subr.mxu0 0.0
    %4726 = vmatpush1.msra.mxu0 0.0
    %4727 = vmatprep.subr.mxu0 %v4633
    %4728 = vmatpush1.msra.mxu0 %v4630
    %4729 = vmatprep.subr.mxu0 %v4612
    %4730 = vmatpush1.msra.mxu0 %v4611
    %4731 = vmatprep.subr.mxu0 %v4605
    %4732 = vmatpush1.msra.mxu0 %v4604
    %4733 = vmatprep.subr.mxu0 %v4598
    %4734 = vmatpush1.msra.mxu0 %v4597
    %4735 = vmatprep.subr.mxu0 %v4591
    %4736 = vmatpush1.msra.mxu0 %v4590
    %4737 = vmatprep.subr.mxu0 %v4584
    %4738 = vmatpush1.msra.mxu0 %v4583
    %4739 = vmatprep.subr.mxu0 %v4577
    %4740 = vmatpush1.msra.mxu0 %v4576
    %4741 = vmatprep.subr.mxu0 %v4570
    %4742 = vmatpush1.msra.mxu0 %v4569
    %4743 = vmatprep.subr.mxu0 %v4563
    %4744 = vmatpush1.msra.mxu0 %v4562
    %4745 = vmatprep.subr.mxu0 %v4556
    %4746 = vmatpush1.msra.mxu0 %v4555
    %4747 = vmatprep.subr.mxu0 0.0
    %4748 = vmatpush2.msra.mxu0 0.0
    %4749 = vmatprep.subr.mxu0 0.0
    %4750 = vmatpush2.msra.mxu0 0.0
    %4751 = vmatprep.subr.mxu0 0.0
    %4752 = vmatpush2.msra.mxu0 0.0
    %4753 = vmatprep.subr.mxu0 0.0
    %4754 = vmatpush2.msra.mxu0 0.0
    %4755 = vmatprep.subr.mxu0 0.0
    %4756 = vmatpush2.msra.mxu0 0.0
    %4757 = vmatprep.subr.mxu0 0.0
    %4758 = vmatpush2.msra.mxu0 0.0
    %4759 = vmatprep.subr.mxu0 0.0
    %4760 = vmatpush2.msra.mxu0 0.0
    %4761 = vmatprep.subr.mxu0 0.0
    %4762 = vmatpush2.msra.mxu0 0.0
    %4763 = vmatprep.subr.mxu0 0.0
    %4764 = vmatpush2.msra.mxu0 0.0
    %4765 = vmatprep.subr.mxu0 0.0
    %4766 = vmatpush2.msra.mxu0 0.0
    %4767 = vmatprep.subr.mxu0 0.0
    %4768 = vmatpush2.msra.mxu0 0.0
    %4769 = vmatprep.subr.mxu0 0.0
    %4770 = vmatpush2.msra.mxu0 0.0
    %4771 = vmatprep.subr.mxu0 0.0
    %4772 = vmatpush2.msra.mxu0 0.0
    %4773 = vmatprep.subr.mxu0 0.0
    %4774 = vmatpush2.msra.mxu0 0.0
    %4775 = vmatprep.subr.mxu0 0.0
    %4776 = vmatpush2.msra.mxu0 0.0
    %4777 = vmatprep.subr.mxu0 0.0
    %4778 = vmatpush2.msra.mxu0 0.0
    %4779 = vmatprep.mubr.f32.mxu0 0.0
    %4780 = vmatmul.mubr.f32.gmra.mxu0 %v2808
    %v4781 = vpop.f32.mrf.mxu0
    %v4782 = vadd.f32 %v2804, %v4781
    %v4783 = vpop.f32.mrf.mxu0
    %v4784 = vadd.f32 %v2804, %v4783
    %4785 = vdwg.mxu0
    %4786 = vmatprep.subr.mxu0 0.0
    %4787 = vmatpush1.msra.mxu0 0.0
    %4788 = vmatprep.subr.mxu0 0.0
    %4789 = vmatpush1.msra.mxu0 0.0
    %4790 = vmatprep.subr.mxu0 0.0
    %4791 = vmatpush1.msra.mxu0 0.0
    %4792 = vmatprep.subr.mxu0 0.0
    %4793 = vmatpush1.msra.mxu0 0.0
    %4794 = vmatprep.subr.mxu0 0.0
    %4795 = vmatpush1.msra.mxu0 0.0
    %4796 = vmatprep.subr.mxu0 0.0
    %4797 = vmatpush1.msra.mxu0 0.0
    %4798 = vmatprep.subr.mxu0 %v4639
    %4799 = vmatpush1.msra.mxu0 %v4636
    %4800 = vmatprep.subr.mxu0 %v4614
    %4801 = vmatpush1.msra.mxu0 %v4613
    %4802 = vmatprep.subr.mxu0 %v4607
    %4803 = vmatpush1.msra.mxu0 %v4606
    %4804 = vmatprep.subr.mxu0 %v4600
    %4805 = vmatpush1.msra.mxu0 %v4599
    %4806 = vmatprep.subr.mxu0 %v4593
    %4807 = vmatpush1.msra.mxu0 %v4592
    %4808 = vmatprep.subr.mxu0 %v4586
    %4809 = vmatpush1.msra.mxu0 %v4585
    %4810 = vmatprep.subr.mxu0 %v4579
    %4811 = vmatpush1.msra.mxu0 %v4578
    %4812 = vmatprep.subr.mxu0 %v4572
    %4813 = vmatpush1.msra.mxu0 %v4571
    %4814 = vmatprep.subr.mxu0 %v4565
    %4815 = vmatpush1.msra.mxu0 %v4564
    %4816 = vmatprep.subr.mxu0 %v4558
    %4817 = vmatpush1.msra.mxu0 %v4557
    %4818 = vmatprep.subr.mxu0 0.0
    %4819 = vmatpush2.msra.mxu0 0.0
    %4820 = vmatprep.subr.mxu0 0.0
    %4821 = vmatpush2.msra.mxu0 0.0
    %4822 = vmatprep.subr.mxu0 0.0
    %4823 = vmatpush2.msra.mxu0 0.0
    %4824 = vmatprep.subr.mxu0 0.0
    %4825 = vmatpush2.msra.mxu0 0.0
    %4826 = vmatprep.subr.mxu0 0.0
    %4827 = vmatpush2.msra.mxu0 0.0
    %4828 = vmatprep.subr.mxu0 0.0
    %4829 = vmatpush2.msra.mxu0 0.0
    %4830 = vmatprep.subr.mxu0 0.0
    %4831 = vmatpush2.msra.mxu0 0.0
    %4832 = vmatprep.subr.mxu0 0.0
    %4833 = vmatpush2.msra.mxu0 0.0
    %4834 = vmatprep.subr.mxu0 0.0
    %4835 = vmatpush2.msra.mxu0 0.0
    %4836 = vmatprep.subr.mxu0 0.0
    %4837 = vmatpush2.msra.mxu0 0.0
    %4838 = vmatprep.subr.mxu0 0.0
    %4839 = vmatpush2.msra.mxu0 0.0
    %4840 = vmatprep.subr.mxu0 0.0
    %4841 = vmatpush2.msra.mxu0 0.0
    %4842 = vmatprep.subr.mxu0 0.0
    %4843 = vmatpush2.msra.mxu0 0.0
    %4844 = vmatprep.subr.mxu0 0.0
    %4845 = vmatpush2.msra.mxu0 0.0
    %4846 = vmatprep.subr.mxu0 0.0
    %4847 = vmatpush2.msra.mxu0 0.0
    %4848 = vmatprep.subr.mxu0 0.0
    %4849 = vmatpush2.msra.mxu0 0.0
    %4850 = vmatprep.mubr.f32.mxu0 0.0
    %4851 = vmatmul.mubr.f32.gmra.mxu0 %v2808
    %v4852 = vpop.f32.mrf.mxu0
    %v4853 = vadd.f32 %v2804, %v4852
    %v4854 = vpop.f32.mrf.mxu0
    %v4855 = vadd.f32 %v2804, %v4854
    %4856 = vdwg.mxu0
    %4857 = vmatprep.subr.mxu0 0.0
    %4858 = vmatpush1.msra.mxu0 0.0
    %4859 = vmatprep.subr.mxu0 0.0
    %4860 = vmatpush1.msra.mxu0 0.0
    %4861 = vmatprep.subr.mxu0 0.0
    %4862 = vmatpush1.msra.mxu0 0.0
    %4863 = vmatprep.subr.mxu0 0.0
    %4864 = vmatpush1.msra.mxu0 0.0
    %4865 = vmatprep.subr.mxu0 0.0
    %4866 = vmatpush1.msra.mxu0 0.0
    %4867 = vmatprep.subr.mxu0 0.0
    %4868 = vmatpush1.msra.mxu0 0.0
    %4869 = vmatprep.subr.mxu0 0.0
    %4870 = vmatpush1.msra.mxu0 %v4642
    %4871 = vmatprep.subr.mxu0 0.0
    %4872 = vmatpush1.msra.mxu0 %v4615
    %4873 = vmatprep.subr.mxu0 0.0
    %4874 = vmatpush1.msra.mxu0 %v4608
    %4875 = vmatprep.subr.mxu0 0.0
    %4876 = vmatpush1.msra.mxu0 %v4601
    %4877 = vmatprep.subr.mxu0 0.0
    %4878 = vmatpush1.msra.mxu0 %v4594
    %4879 = vmatprep.subr.mxu0 0.0
    %4880 = vmatpush1.msra.mxu0 %v4587
    %4881 = vmatprep.subr.mxu0 0.0
    %4882 = vmatpush1.msra.mxu0 %v4580
    %4883 = vmatprep.subr.mxu0 0.0
    %4884 = vmatpush1.msra.mxu0 %v4573
    %4885 = vmatprep.subr.mxu0 0.0
    %4886 = vmatpush1.msra.mxu0 %v4566
    %4887 = vmatprep.subr.mxu0 0.0
    %4888 = vmatpush1.msra.mxu0 %v4559
    %4889 = vmatprep.subr.mxu0 0.0
    %4890 = vmatpush2.msra.mxu0 0.0
    %4891 = vmatprep.subr.mxu0 0.0
    %4892 = vmatpush2.msra.mxu0 0.0
    %4893 = vmatprep.subr.mxu0 0.0
    %4894 = vmatpush2.msra.mxu0 0.0
    %4895 = vmatprep.subr.mxu0 0.0
    %4896 = vmatpush2.msra.mxu0 0.0
    %4897 = vmatprep.subr.mxu0 0.0
    %4898 = vmatpush2.msra.mxu0 0.0
    %4899 = vmatprep.subr.mxu0 0.0
    %4900 = vmatpush2.msra.mxu0 0.0
    %4901 = vmatprep.subr.mxu0 0.0
    %4902 = vmatpush2.msra.mxu0 0.0
    %4903 = vmatprep.subr.mxu0 0.0
    %4904 = vmatpush2.msra.mxu0 0.0
    %4905 = vmatprep.subr.mxu0 0.0
    %4906 = vmatpush2.msra.mxu0 0.0
    %4907 = vmatprep.subr.mxu0 0.0
    %4908 = vmatpush2.msra.mxu0 0.0
    %4909 = vmatprep.subr.mxu0 0.0
    %4910 = vmatpush2.msra.mxu0 0.0
    %4911 = vmatprep.subr.mxu0 0.0
    %4912 = vmatpush2.msra.mxu0 0.0
    %4913 = vmatprep.subr.mxu0 0.0
    %4914 = vmatpush2.msra.mxu0 0.0
    %4915 = vmatprep.subr.mxu0 0.0
    %4916 = vmatpush2.msra.mxu0 0.0
    %4917 = vmatprep.subr.mxu0 0.0
    %4918 = vmatpush2.msra.mxu0 0.0
    %4919 = vmatprep.subr.mxu0 0.0
    %4920 = vmatpush2.msra.mxu0 0.0
    %4921 = vmatprep.mubr.f32.mxu0 0.0
    %4922 = vmatmul.mubr.f32.gmra.mxu0 %v2808
    %v4923 = vpop.f32.mrf.mxu0
    %v4924 = vadd.f32 %v2804, %v4923
    %v4925 = vpop.f32.mrf.mxu0
    %4926 = vdwg.mxu0
    %v4927 = vmax.f32 %v4711, 0.0
    %v4928 = vmax.f32 %v4713, 0.0
    %v4929 = vmax.f32 %v4782, 0.0
    %v4930 = vmax.f32 %v4784, 0.0
    %v4931 = vmax.f32 %v4853, 0.0
    %v4932 = vmax.f32 %v4855, 0.0
    %v4933 = vmax.f32 %v4924, 0.0
    %4941 = vrot.lane.b32.xlu0 %v4927, 127
    %v4942 = vpop.permute.xlu0 %4941
    %4943 = vrot.lane.b32.xlu0 %v4928, 127
    %v4944 = vpop.permute.xlu0 %4943
    %4945 = vrot.lane.b32.xlu0 %v4929, 127
    %v4946 = vpop.permute.xlu0 %4945
    %4947 = vrot.lane.b32.xlu0 %v4930, 127
    %v4948 = vpop.permute.xlu0 %4947
    %4949 = vrot.lane.b32.xlu0 %v4931, 127
    %v4950 = vpop.permute.xlu0 %4949
    %4951 = vrot.lane.b32.xlu0 %v4932, 127
    %v4952 = vpop.permute.xlu0 %4951
    %4953 = vrot.lane.b32.xlu0 %v4933, 127
    %v4954 = vpop.permute.xlu0 %4953
    %v4955 = vsel %vm144, %v4942, %v4944
    %v4956 = vsel %vm144, %v4944, %v4946
    %v4957 = vsel %vm144, %v4946, %v4948
    %v4958 = vsel %vm144, %v4948, %v4950
    %v4959 = vsel %vm144, %v4950, %v4952
    %v4960 = vsel %vm144, %v4952, %v4954
    %v4968 = vmax.f32 %v4927, %v4955
    %v4969 = vmax.f32 %v4928, %v4956
    %v4970 = vmax.f32 %v4929, %v4957
    %v4971 = vmax.f32 %v4930, %v4958
    %v4972 = vmax.f32 %v4931, %v4959
    %v4973 = vmax.f32 %v4932, %v4960
    %v4974 = vmax.f32 %v4933, %v4954
    %4982 = vrot.lane.b32.xlu0 %v4968, 96
    %v4983 = vpop.permute.xlu0 %4982
    %4984 = vrot.lane.b32.xlu0 %v4969, 96
    %v4985 = vpop.permute.xlu0 %4984
    %4986 = vrot.lane.b32.xlu0 %v4970, 96
    %v4987 = vpop.permute.xlu0 %4986
    %4988 = vrot.lane.b32.xlu0 %v4971, 96
    %v4989 = vpop.permute.xlu0 %4988
    %4990 = vrot.lane.b32.xlu0 %v4972, 96
    %v4991 = vpop.permute.xlu0 %4990
    %4992 = vrot.lane.b32.xlu0 %v4973, 96
    %v4993 = vpop.permute.xlu0 %4992
    %4994 = vrot.lane.b32.xlu0 %v4974, 96
    %v4995 = vpop.permute.xlu0 %4994
    %v4996 = vsel %vm579, %v4983, %v4985
    %v4997 = vsel %vm579, %v4985, %v4987
    %v4998 = vsel %vm579, %v4987, %v4989
    %v4999 = vsel %vm579, %v4989, %v4991
    %v5000 = vsel %vm579, %v4991, %v4993
    %v5001 = vsel %vm579, %v4993, %v4995
    %v5009 = vmax.f32 %v4968, %v4996
    %v5010 = vmax.f32 %v4969, %v4997
    %v5011 = vmax.f32 %v4970, %v4998
    %v5012 = vmax.f32 %v4971, %v4999
    %v5013 = vmax.f32 %v4972, %v5000
    %v5014 = vmax.f32 %v4973, %v5001
    %v5015 = vmax.f32 %v4974, %v4995
    %5016 = vst [vmem:[#allocation3] sm:$0x3f] %v5009
    %5017 = vst [vmem:[#allocation3 + $0x8] sm:$0x3f] %v5010
    %5018 = vst [vmem:[#allocation3 + $0x10] sm:$0x3f] %v5011
    %5019 = vst [vmem:[#allocation3 + $0x18] sm:$0x3f] %v5012
    %5020 = vst.msk [vmem:[#allocation3 + $0x20] sm:$0x3f] %vm3208, %v5013
    %v5026 = vrot.slane %v5009, 2
    %v5027 = vrot.slane %v5010, 2
    %v5028 = vrot.slane %v5011, 2
    %v5029 = vrot.slane %v5012, 2
    %v5030 = vrot.slane %v5013, 2
    %5031 = vrot.lane.b32.xlu0 %v5026, 126
    %v5032 = vpop.permute.xlu0 %5031
    %5033 = vrot.lane.b32.xlu0 %v5027, 126
    %v5034 = vpop.permute.xlu0 %5033
    %5035 = vrot.lane.b32.xlu0 %v5028, 126
    %v5036 = vpop.permute.xlu0 %5035
    %5037 = vrot.lane.b32.xlu0 %v5029, 126
    %v5038 = vpop.permute.xlu0 %5037
    %5039 = vrot.lane.b32.xlu0 %v5030, 126
    %v5040 = vpop.permute.xlu0 %5039
    %v5041 = vsel %vm250, %v5032, %v5034
    %v5042 = vsel %vm250, %v5034, %v5036
    %v5043 = vsel %vm250, %v5036, %v5038
    %v5044 = vsel %vm250, %v5038, %v5040
    %5050 = vst [vmem:[#allocation3] sm:$0xc0] %v5041
    %5051 = vst [vmem:[#allocation3 + $0x8] sm:$0xc0] %v5042
    %5052 = vst [vmem:[#allocation3 + $0x10] sm:$0xc0] %v5043
    %5053 = vst [vmem:[#allocation3 + $0x18] sm:$0xc0] %v5044
    %5054 = vst.msk [vmem:[#allocation3 + $0x20] sm:$0xc0] %vm3243, %v5040
    %5055 = vst [vmem:[#allocation3 + $0x28] sm:$0xf] %v5041
    %5056 = vst [vmem:[#allocation3 + $0x30] sm:$0xf] %v5042
    %5057 = vst [vmem:[#allocation3 + $0x38] sm:$0xf] %v5043
    %5058 = vst [vmem:[#allocation3 + $0x40] sm:$0xf] %v5044
    %5059 = vst.msk [vmem:[#allocation3 + $0x48] sm:$0xf] %vm3249, %v5040
    %v5060 = vrot.slane %v5009, 4
    %v5061 = vrot.slane %v5010, 4
    %v5062 = vrot.slane %v5011, 4
    %v5063 = vrot.slane %v5012, 4
    %v5064 = vrot.slane %v5013, 4
    %5065 = vrot.lane.b32.xlu0 %v5060, 124
    %v5066 = vpop.permute.xlu0 %5065
    %5067 = vrot.lane.b32.xlu0 %v5061, 124
    %v5068 = vpop.permute.xlu0 %5067
    %5069 = vrot.lane.b32.xlu0 %v5062, 124
    %v5070 = vpop.permute.xlu0 %5069
    %5071 = vrot.lane.b32.xlu0 %v5063, 124
    %v5072 = vpop.permute.xlu0 %5071
    %5073 = vrot.lane.b32.xlu0 %v5064, 124
    %v5074 = vpop.permute.xlu0 %5073
    %v5075 = vsel %vm465, %v5066, %v5068
    %v5076 = vsel %vm465, %v5068, %v5070
    %v5077 = vsel %vm465, %v5070, %v5072
    %v5078 = vsel %vm465, %v5072, %v5074
    %5084 = vst [vmem:[#allocation3 + $0x28] sm:$0xf0] %v5075
    %5085 = vst [vmem:[#allocation3 + $0x30] sm:$0xf0] %v5076
    %5086 = vst [vmem:[#allocation3 + $0x38] sm:$0xf0] %v5077
    %5087 = vst [vmem:[#allocation3 + $0x40] sm:$0xf0] %v5078
    %5088 = vst.msk [vmem:[#allocation3 + $0x48] sm:$0xf0] %vm3279, %v5074
    %5089 = vst [vmem:[#allocation3 + $0x50] sm:$0x3] %v5075
    %5090 = vst [vmem:[#allocation3 + $0x58] sm:$0x3] %v5076
    %5091 = vst [vmem:[#allocation3 + $0x60] sm:$0x3] %v5077
    %5092 = vst [vmem:[#allocation3 + $0x68] sm:$0x3] %v5078
    %5093 = vst.msk [vmem:[#allocation3 + $0x70] sm:$0x3] %vm3285, %v5074
    %v5094 = vrot.slane %v5009, 6
    %v5095 = vrot.slane %v5010, 6
    %v5096 = vrot.slane %v5011, 6
    %v5097 = vrot.slane %v5012, 6
    %v5098 = vrot.slane %v5013, 6
    %5099 = vrot.lane.b32.xlu0 %v5094, 122
    %v5100 = vpop.permute.xlu0 %5099
    %5101 = vrot.lane.b32.xlu0 %v5095, 122
    %v5102 = vpop.permute.xlu0 %5101
    %5103 = vrot.lane.b32.xlu0 %v5096, 122
    %v5104 = vpop.permute.xlu0 %5103
    %5105 = vrot.lane.b32.xlu0 %v5097, 122
    %v5106 = vpop.permute.xlu0 %5105
    %5107 = vrot.lane.b32.xlu0 %v5098, 122
    %v5108 = vpop.permute.xlu0 %5107
    %v5109 = vsel %vm3302, %v5100, %v5102
    %v5110 = vsel %vm3302, %v5102, %v5104
    %v5111 = vsel %vm3302, %v5104, %v5106
    %v5112 = vsel %vm3302, %v5106, %v5108
    %5118 = vst [vmem:[#allocation3 + $0x50] sm:$0xfc] %v5109
    %5119 = vst [vmem:[#allocation3 + $0x58] sm:$0xfc] %v5110
    %5120 = vst [vmem:[#allocation3 + $0x60] sm:$0xfc] %v5111
    %5121 = vst [vmem:[#allocation3 + $0x68] sm:$0xfc] %v5112
    %5122 = vst.msk [vmem:[#allocation3 + $0x70] sm:$0xfc] %vm3316, %v5108
    %5123 = vrot.lane.b32.xlu0 %v5009, 120
    %v5124 = vpop.permute.xlu0 %5123
    %5125 = vrot.lane.b32.xlu0 %v5010, 120
    %v5126 = vpop.permute.xlu0 %5125
    %5127 = vrot.lane.b32.xlu0 %v5011, 120
    %v5128 = vpop.permute.xlu0 %5127
    %5129 = vrot.lane.b32.xlu0 %v5012, 120
    %v5130 = vpop.permute.xlu0 %5129
    %5131 = vrot.lane.b32.xlu0 %v5013, 120
    %v5132 = vpop.permute.xlu0 %5131
    %v5133 = vsel %vm3328, %v5124, %v5126
    %v5134 = vsel %vm3328, %v5126, %v5128
    %v5135 = vsel %vm3328, %v5128, %v5130
    %v5136 = vsel %vm3328, %v5130, %v5132
    %5142 = vst [vmem:[#allocation3 + $0x78] sm:$0x3f] %v5133
    %5143 = vst [vmem:[#allocation3 + $0x80] sm:$0x3f] %v5134
    %5144 = vst [vmem:[#allocation3 + $0x88] sm:$0x3f] %v5135
    %5145 = vst [vmem:[#allocation3 + $0x90] sm:$0x3f] %v5136
    %5146 = vst.msk [vmem:[#allocation3 + $0x98] sm:$0x3f] %vm3208, %v5132
    %v5148 = vrot.slane %v5014, 2
    %5149 = vrot.lane.b32.xlu0 %v5026, 64
    %v5150 = vpop.permute.xlu0 %5149
    %5151 = vrot.lane.b32.xlu0 %v5027, 64
    %v5152 = vpop.permute.xlu0 %5151
    %5153 = vrot.lane.b32.xlu0 %v5028, 64
    %v5154 = vpop.permute.xlu0 %5153
    %5155 = vrot.lane.b32.xlu0 %v5029, 64
    %v5156 = vpop.permute.xlu0 %5155
    %5157 = vrot.lane.b32.xlu0 %v5030, 64
    %v5158 = vpop.permute.xlu0 %5157
    %5159 = vrot.lane.b32.xlu0 %v5148, 64
    %v5160 = vpop.permute.xlu0 %5159
    %v5161 = vsel %vm1156, %v5150, %v5152
    %v5162 = vsel %vm1156, %v5152, %v5154
    %v5163 = vsel %vm1156, %v5154, %v5156
    %v5164 = vsel %vm1156, %v5156, %v5158
    %v5165 = vsel %vm1156, %v5158, %v5160
    %5171 = vst [vmem:[#allocation3 + $0x78] sm:$0xc0] %v5161
    %5172 = vst [vmem:[#allocation3 + $0x80] sm:$0xc0] %v5162
    %5173 = vst [vmem:[#allocation3 + $0x88] sm:$0xc0] %v5163
    %5174 = vst [vmem:[#allocation3 + $0x90] sm:$0xc0] %v5164
    %5175 = vst.msk [vmem:[#allocation3 + $0x98] sm:$0xc0] %vm3243, %v5165
    %5176 = vst [vmem:[#allocation3 + $0xa0] sm:$0xf] %v5161
    %5177 = vst [vmem:[#allocation3 + $0xa8] sm:$0xf] %v5162
    %5178 = vst [vmem:[#allocation3 + $0xb0] sm:$0xf] %v5163
    %5179 = vst [vmem:[#allocation3 + $0xb8] sm:$0xf] %v5164
    %5180 = vst.msk [vmem:[#allocation3 + $0xc0] sm:$0xf] %vm3249, %v5165
    %v5181 = vrot.slane %v5014, 4
    %5182 = vrot.lane.b32.xlu0 %v5060, 62
    %v5183 = vpop.permute.xlu0 %5182
    %5184 = vrot.lane.b32.xlu0 %v5061, 62
    %v5185 = vpop.permute.xlu0 %5184
    %5186 = vrot.lane.b32.xlu0 %v5062, 62
    %v5187 = vpop.permute.xlu0 %5186
    %5188 = vrot.lane.b32.xlu0 %v5063, 62
    %v5189 = vpop.permute.xlu0 %5188
    %5190 = vrot.lane.b32.xlu0 %v5064, 62
    %v5191 = vpop.permute.xlu0 %5190
    %5192 = vrot.lane.b32.xlu0 %v5181, 62
    %v5193 = vpop.permute.xlu0 %5192
    %v5194 = vsel %vm1384, %v5183, %v5185
    %v5195 = vsel %vm1384, %v5185, %v5187
    %v5196 = vsel %vm1384, %v5187, %v5189
    %v5197 = vsel %vm1384, %v5189, %v5191
    %v5198 = vsel %vm1384, %v5191, %v5193
    %5204 = vst [vmem:[#allocation3 + $0xa0] sm:$0xf0] %v5194
    %5205 = vst [vmem:[#allocation3 + $0xa8] sm:$0xf0] %v5195
    %5206 = vst [vmem:[#allocation3 + $0xb0] sm:$0xf0] %v5196
    %5207 = vst [vmem:[#allocation3 + $0xb8] sm:$0xf0] %v5197
    %5208 = vst.msk [vmem:[#allocation3 + $0xc0] sm:$0xf0] %vm3279, %v5198
    %5209 = vst [vmem:[#allocation3 + $0xc8] sm:$0x3] %v5194
    %5210 = vst [vmem:[#allocation3 + $0xd0] sm:$0x3] %v5195
    %5211 = vst [vmem:[#allocation3 + $0xd8] sm:$0x3] %v5196
    %5212 = vst [vmem:[#allocation3 + $0xe0] sm:$0x3] %v5197
    %5213 = vst.msk [vmem:[#allocation3 + $0xe8] sm:$0x3] %vm3285, %v5198
    %v5214 = vrot.slane %v5014, 6
    %5215 = vrot.lane.b32.xlu0 %v5094, 60
    %v5216 = vpop.permute.xlu0 %5215
    %5217 = vrot.lane.b32.xlu0 %v5095, 60
    %v5218 = vpop.permute.xlu0 %5217
    %5219 = vrot.lane.b32.xlu0 %v5096, 60
    %v5220 = vpop.permute.xlu0 %5219
    %5221 = vrot.lane.b32.xlu0 %v5097, 60
    %v5222 = vpop.permute.xlu0 %5221
    %5223 = vrot.lane.b32.xlu0 %v5098, 60
    %v5224 = vpop.permute.xlu0 %5223
    %5225 = vrot.lane.b32.xlu0 %v5214, 60
    %v5226 = vpop.permute.xlu0 %5225
    %v5227 = vsel %vm1628, %v5216, %v5218
    %v5228 = vsel %vm1628, %v5218, %v5220
    %v5229 = vsel %vm1628, %v5220, %v5222
    %v5230 = vsel %vm1628, %v5222, %v5224
    %v5231 = vsel %vm1628, %v5224, %v5226
    %5237 = vst [vmem:[#allocation3 + $0xc8] sm:$0xfc] %v5227
    %5238 = vst [vmem:[#allocation3 + $0xd0] sm:$0xfc] %v5228
    %5239 = vst [vmem:[#allocation3 + $0xd8] sm:$0xfc] %v5229
    %5240 = vst [vmem:[#allocation3 + $0xe0] sm:$0xfc] %v5230
    %5241 = vst.msk [vmem:[#allocation3 + $0xe8] sm:$0xfc] %vm3316, %v5231
    %5242 = vrot.lane.b32.xlu0 %v5009, 58
    %v5243 = vpop.permute.xlu0 %5242
    %5244 = vrot.lane.b32.xlu0 %v5010, 58
    %v5245 = vpop.permute.xlu0 %5244
    %5246 = vrot.lane.b32.xlu0 %v5011, 58
    %v5247 = vpop.permute.xlu0 %5246
    %5248 = vrot.lane.b32.xlu0 %v5012, 58
    %v5249 = vpop.permute.xlu0 %5248
    %5250 = vrot.lane.b32.xlu0 %v5013, 58
    %v5251 = vpop.permute.xlu0 %5250
    %5252 = vrot.lane.b32.xlu0 %v5014, 58
    %v5253 = vpop.permute.xlu0 %5252
    %v5254 = vsel %vm3450, %v5243, %v5245
    %v5255 = vsel %vm3450, %v5245, %v5247
    %v5256 = vsel %vm3450, %v5247, %v5249
    %v5257 = vsel %vm3450, %v5249, %v5251
    %v5258 = vsel %vm3450, %v5251, %v5253
    %5264 = vst [vmem:[#allocation3 + $0xf0] sm:$0x3f] %v5254
    %5265 = vst [vmem:[#allocation3 + $0xf8] sm:$0x3f] %v5255
    %5266 = vst [vmem:[#allocation3 + $0x100] sm:$0x3f] %v5256
    %5267 = vst [vmem:[#allocation3 + $0x108] sm:$0x3f] %v5257
    %5268 = vst.msk [vmem:[#allocation3 + $0x110] sm:$0x3f] %vm3208, %v5258
    %5269 = vrot.lane.b32.xlu0 %v5026, 56
    %v5270 = vpop.permute.xlu0 %5269
    %5271 = vrot.lane.b32.xlu0 %v5027, 56
    %v5272 = vpop.permute.xlu0 %5271
    %5273 = vrot.lane.b32.xlu0 %v5028, 56
    %v5274 = vpop.permute.xlu0 %5273
    %5275 = vrot.lane.b32.xlu0 %v5029, 56
    %v5276 = vpop.permute.xlu0 %5275
    %5277 = vrot.lane.b32.xlu0 %v5030, 56
    %v5278 = vpop.permute.xlu0 %5277
    %5279 = vrot.lane.b32.xlu0 %v5148, 56
    %v5280 = vpop.permute.xlu0 %5279
    %v5281 = vsel %vm3478, %v5270, %v5272
    %v5282 = vsel %vm3478, %v5272, %v5274
    %v5283 = vsel %vm3478, %v5274, %v5276
    %v5284 = vsel %vm3478, %v5276, %v5278
    %v5285 = vsel %vm3478, %v5278, %v5280
    %5291 = vst [vmem:[#allocation3 + $0xf0] sm:$0xc0] %v5281
    %5292 = vst [vmem:[#allocation3 + $0xf8] sm:$0xc0] %v5282
    %5293 = vst [vmem:[#allocation3 + $0x100] sm:$0xc0] %v5283
    %5294 = vst [vmem:[#allocation3 + $0x108] sm:$0xc0] %v5284
    %5295 = vst.msk [vmem:[#allocation3 + $0x110] sm:$0xc0] %vm3243, %v5285
    %5296 = vst [vmem:[#allocation3 + $0x118] sm:$0xf] %v5281
    %5297 = vst [vmem:[#allocation3 + $0x120] sm:$0xf] %v5282
    %5298 = vst [vmem:[#allocation3 + $0x128] sm:$0xf] %v5283
    %5299 = vst [vmem:[#allocation3 + $0x130] sm:$0xf] %v5284
    %5300 = vst.msk [vmem:[#allocation3 + $0x138] sm:$0xf] %vm3249, %v5285
    %5306 = vst [vmem:[#allocation3 + $0x118] sm:$0xf0] %v5061
    %5307 = vst [vmem:[#allocation3 + $0x120] sm:$0xf0] %v5062
    %5308 = vst [vmem:[#allocation3 + $0x128] sm:$0xf0] %v5063
    %5309 = vst [vmem:[#allocation3 + $0x130] sm:$0xf0] %v5064
    %5310 = vst.msk [vmem:[#allocation3 + $0x138] sm:$0xf0] %vm3279, %v5181
    %5311 = vst [vmem:[#allocation3 + $0x140] sm:$0x3] %v5061
    %5312 = vst [vmem:[#allocation3 + $0x148] sm:$0x3] %v5062
    %5313 = vst [vmem:[#allocation3 + $0x150] sm:$0x3] %v5063
    %5314 = vst [vmem:[#allocation3 + $0x158] sm:$0x3] %v5064
    %5315 = vst.msk [vmem:[#allocation3 + $0x160] sm:$0x3] %vm3285, %v5181
    %5316 = vrot.lane.b32.xlu0 %v5095, 126
    %v5317 = vpop.permute.xlu0 %5316
    %5318 = vrot.lane.b32.xlu0 %v5096, 126
    %v5319 = vpop.permute.xlu0 %5318
    %5320 = vrot.lane.b32.xlu0 %v5097, 126
    %v5321 = vpop.permute.xlu0 %5320
    %5322 = vrot.lane.b32.xlu0 %v5098, 126
    %v5323 = vpop.permute.xlu0 %5322
    %5324 = vrot.lane.b32.xlu0 %v5214, 126
    %v5325 = vpop.permute.xlu0 %5324
    %v5326 = vsel %vm250, %v5317, %v5319
    %v5327 = vsel %vm250, %v5319, %v5321
    %v5328 = vsel %vm250, %v5321, %v5323
    %v5329 = vsel %vm250, %v5323, %v5325
    %5335 = vst [vmem:[#allocation3 + $0x140] sm:$0xfc] %v5326
    %5336 = vst [vmem:[#allocation3 + $0x148] sm:$0xfc] %v5327
    %5337 = vst [vmem:[#allocation3 + $0x150] sm:$0xfc] %v5328
    %5338 = vst [vmem:[#allocation3 + $0x158] sm:$0xfc] %v5329
    %5339 = vst.msk [vmem:[#allocation3 + $0x160] sm:$0xfc] %vm3316, %v5325
    %5340 = vrot.lane.b32.xlu0 %v5010, 124
    %v5341 = vpop.permute.xlu0 %5340
    %5342 = vrot.lane.b32.xlu0 %v5011, 124
    %v5343 = vpop.permute.xlu0 %5342
    %5344 = vrot.lane.b32.xlu0 %v5012, 124
    %v5345 = vpop.permute.xlu0 %5344
    %5346 = vrot.lane.b32.xlu0 %v5013, 124
    %v5347 = vpop.permute.xlu0 %5346
    %5348 = vrot.lane.b32.xlu0 %v5014, 124
    %v5349 = vpop.permute.xlu0 %5348
    %v5350 = vsel %vm465, %v5341, %v5343
    %v5351 = vsel %vm465, %v5343, %v5345
    %v5352 = vsel %vm465, %v5345, %v5347
    %v5353 = vsel %vm465, %v5347, %v5349
    %5359 = vst [vmem:[#allocation3 + $0x168] sm:$0x3f] %v5350
    %5360 = vst [vmem:[#allocation3 + $0x170] sm:$0x3f] %v5351
    %5361 = vst [vmem:[#allocation3 + $0x178] sm:$0x3f] %v5352
    %5362 = vst [vmem:[#allocation3 + $0x180] sm:$0x3f] %v5353
    %5363 = vst.msk [vmem:[#allocation3 + $0x188] sm:$0x3f] %vm3208, %v5349
    %5364 = vrot.lane.b32.xlu0 %v5027, 122
    %v5365 = vpop.permute.xlu0 %5364
    %5366 = vrot.lane.b32.xlu0 %v5028, 122
    %v5367 = vpop.permute.xlu0 %5366
    %5368 = vrot.lane.b32.xlu0 %v5029, 122
    %v5369 = vpop.permute.xlu0 %5368
    %5370 = vrot.lane.b32.xlu0 %v5030, 122
    %v5371 = vpop.permute.xlu0 %5370
    %5372 = vrot.lane.b32.xlu0 %v5148, 122
    %v5373 = vpop.permute.xlu0 %5372
    %v5374 = vsel %vm3302, %v5365, %v5367
    %v5375 = vsel %vm3302, %v5367, %v5369
    %v5376 = vsel %vm3302, %v5369, %v5371
    %v5377 = vsel %vm3302, %v5371, %v5373
    %5383 = vst [vmem:[#allocation3 + $0x168] sm:$0xc0] %v5374
    %5384 = vst [vmem:[#allocation3 + $0x170] sm:$0xc0] %v5375
    %5385 = vst [vmem:[#allocation3 + $0x178] sm:$0xc0] %v5376
    %5386 = vst [vmem:[#allocation3 + $0x180] sm:$0xc0] %v5377
    %5387 = vst.msk [vmem:[#allocation3 + $0x188] sm:$0xc0] %vm3243, %v5373
    %5388 = vst [vmem:[#allocation3 + $0x190] sm:$0xf] %v5374
    %5389 = vst [vmem:[#allocation3 + $0x198] sm:$0xf] %v5375
    %5390 = vst [vmem:[#allocation3 + $0x1a0] sm:$0xf] %v5376
    %5391 = vst [vmem:[#allocation3 + $0x1a8] sm:$0xf] %v5377
    %5392 = vst.msk [vmem:[#allocation3 + $0x1b0] sm:$0xf] %vm3249, %v5373
    %5393 = vrot.lane.b32.xlu0 %v5061, 120
    %v5394 = vpop.permute.xlu0 %5393
    %5395 = vrot.lane.b32.xlu0 %v5062, 120
    %v5396 = vpop.permute.xlu0 %5395
    %5397 = vrot.lane.b32.xlu0 %v5063, 120
    %v5398 = vpop.permute.xlu0 %5397
    %5399 = vrot.lane.b32.xlu0 %v5064, 120
    %v5400 = vpop.permute.xlu0 %5399
    %5401 = vrot.lane.b32.xlu0 %v5181, 120
    %v5402 = vpop.permute.xlu0 %5401
    %v5403 = vsel %vm3328, %v5394, %v5396
    %v5404 = vsel %vm3328, %v5396, %v5398
    %v5405 = vsel %vm3328, %v5398, %v5400
    %v5406 = vsel %vm3328, %v5400, %v5402
    %5412 = vst [vmem:[#allocation3 + $0x190] sm:$0xf0] %v5403
    %5413 = vst [vmem:[#allocation3 + $0x198] sm:$0xf0] %v5404
    %5414 = vst [vmem:[#allocation3 + $0x1a0] sm:$0xf0] %v5405
    %5415 = vst [vmem:[#allocation3 + $0x1a8] sm:$0xf0] %v5406
    %5416 = vst.msk [vmem:[#allocation3 + $0x1b0] sm:$0xf0] %vm3279, %v5402
    %5417 = vst [vmem:[#allocation3 + $0x1b8] sm:$0x3] %v5403
    %5418 = vst [vmem:[#allocation3 + $0x1c0] sm:$0x3] %v5404
    %5419 = vst [vmem:[#allocation3 + $0x1c8] sm:$0x3] %v5405
    %5420 = vst [vmem:[#allocation3 + $0x1d0] sm:$0x3] %v5406
    %5421 = vst.msk [vmem:[#allocation3 + $0x1d8] sm:$0x3] %vm3285, %v5402
    %v5423 = vrot.slane %v5015, 6
    %5424 = vrot.lane.b32.xlu0 %v5095, 64
    %v5425 = vpop.permute.xlu0 %5424
    %5426 = vrot.lane.b32.xlu0 %v5096, 64
    %v5427 = vpop.permute.xlu0 %5426
    %5428 = vrot.lane.b32.xlu0 %v5097, 64
    %v5429 = vpop.permute.xlu0 %5428
    %5430 = vrot.lane.b32.xlu0 %v5098, 64
    %v5431 = vpop.permute.xlu0 %5430
    %5432 = vrot.lane.b32.xlu0 %v5214, 64
    %v5433 = vpop.permute.xlu0 %5432
    %5434 = vrot.lane.b32.xlu0 %v5423, 64
    %v5435 = vpop.permute.xlu0 %5434
    %v5436 = vsel %vm1156, %v5425, %v5427
    %v5437 = vsel %vm1156, %v5427, %v5429
    %v5438 = vsel %vm1156, %v5429, %v5431
    %v5439 = vsel %vm1156, %v5431, %v5433
    %v5440 = vsel %vm1156, %v5433, %v5435
    %5446 = vst [vmem:[#allocation3 + $0x1b8] sm:$0xfc] %v5436
    %5447 = vst [vmem:[#allocation3 + $0x1c0] sm:$0xfc] %v5437
    %5448 = vst [vmem:[#allocation3 + $0x1c8] sm:$0xfc] %v5438
    %5449 = vst [vmem:[#allocation3 + $0x1d0] sm:$0xfc] %v5439
    %5450 = vst.msk [vmem:[#allocation3 + $0x1d8] sm:$0xfc] %vm3316, %v5440
    %5451 = vrot.lane.b32.xlu0 %v5010, 62
    %v5452 = vpop.permute.xlu0 %5451
    %5453 = vrot.lane.b32.xlu0 %v5011, 62
    %v5454 = vpop.permute.xlu0 %5453
    %5455 = vrot.lane.b32.xlu0 %v5012, 62
    %v5456 = vpop.permute.xlu0 %5455
    %5457 = vrot.lane.b32.xlu0 %v5013, 62
    %v5458 = vpop.permute.xlu0 %5457
    %5459 = vrot.lane.b32.xlu0 %v5014, 62
    %v5460 = vpop.permute.xlu0 %5459
    %5461 = vrot.lane.b32.xlu0 %v5015, 62
    %v5462 = vpop.permute.xlu0 %5461
    %v5463 = vsel %vm1384, %v5452, %v5454
    %v5464 = vsel %vm1384, %v5454, %v5456
    %v5465 = vsel %vm1384, %v5456, %v5458
    %v5466 = vsel %vm1384, %v5458, %v5460
    %v5467 = vsel %vm1384, %v5460, %v5462
    %5473 = vst [vmem:[#allocation3 + $0x1e0] sm:$0x3f] %v5463
    %5474 = vst [vmem:[#allocation3 + $0x1e8] sm:$0x3f] %v5464
    %5475 = vst [vmem:[#allocation3 + $0x1f0] sm:$0x3f] %v5465
    %5476 = vst [vmem:[#allocation3 + $0x1f8] sm:$0x3f] %v5466
    %5477 = vst.msk [vmem:[#allocation3 + $0x200] sm:$0x3f] %vm3208, %v5467
    %v5478 = vrot.slane %v5015, 2
    %5479 = vrot.lane.b32.xlu0 %v5027, 60
    %v5480 = vpop.permute.xlu0 %5479
    %5481 = vrot.lane.b32.xlu0 %v5028, 60
    %v5482 = vpop.permute.xlu0 %5481
    %5483 = vrot.lane.b32.xlu0 %v5029, 60
    %v5484 = vpop.permute.xlu0 %5483
    %5485 = vrot.lane.b32.xlu0 %v5030, 60
    %v5486 = vpop.permute.xlu0 %5485
    %5487 = vrot.lane.b32.xlu0 %v5148, 60
    %v5488 = vpop.permute.xlu0 %5487
    %5489 = vrot.lane.b32.xlu0 %v5478, 60
    %v5490 = vpop.permute.xlu0 %5489
    %v5491 = vsel %vm1628, %v5480, %v5482
    %v5492 = vsel %vm1628, %v5482, %v5484
    %v5493 = vsel %vm1628, %v5484, %v5486
    %v5494 = vsel %vm1628, %v5486, %v5488
    %v5495 = vsel %vm1628, %v5488, %v5490
    %5501 = vst [vmem:[#allocation3 + $0x1e0] sm:$0xc0] %v5491
    %5502 = vst [vmem:[#allocation3 + $0x1e8] sm:$0xc0] %v5492
    %5503 = vst [vmem:[#allocation3 + $0x1f0] sm:$0xc0] %v5493
    %5504 = vst [vmem:[#allocation3 + $0x1f8] sm:$0xc0] %v5494
    %5505 = vst.msk [vmem:[#allocation3 + $0x200] sm:$0xc0] %vm3243, %v5495
    %5506 = vst [vmem:[#allocation3 + $0x208] sm:$0xf] %v5491
    %5507 = vst [vmem:[#allocation3 + $0x210] sm:$0xf] %v5492
    %5508 = vst [vmem:[#allocation3 + $0x218] sm:$0xf] %v5493
    %5509 = vst [vmem:[#allocation3 + $0x220] sm:$0xf] %v5494
    %5510 = vst.msk [vmem:[#allocation3 + $0x228] sm:$0xf] %vm3249, %v5495
    %v5511 = vrot.slane %v5015, 4
    %5512 = vrot.lane.b32.xlu0 %v5061, 58
    %v5513 = vpop.permute.xlu0 %5512
    %5514 = vrot.lane.b32.xlu0 %v5062, 58
    %v5515 = vpop.permute.xlu0 %5514
    %5516 = vrot.lane.b32.xlu0 %v5063, 58
    %v5517 = vpop.permute.xlu0 %5516
    %5518 = vrot.lane.b32.xlu0 %v5064, 58
    %v5519 = vpop.permute.xlu0 %5518
    %5520 = vrot.lane.b32.xlu0 %v5181, 58
    %v5521 = vpop.permute.xlu0 %5520
    %5522 = vrot.lane.b32.xlu0 %v5511, 58
    %v5523 = vpop.permute.xlu0 %5522
    %v5524 = vsel %vm3450, %v5513, %v5515
    %v5525 = vsel %vm3450, %v5515, %v5517
    %v5526 = vsel %vm3450, %v5517, %v5519
    %v5527 = vsel %vm3450, %v5519, %v5521
    %v5528 = vsel %vm3450, %v5521, %v5523
    %5534 = vst [vmem:[#allocation3 + $0x208] sm:$0xf0] %v5524
    %5535 = vst [vmem:[#allocation3 + $0x210] sm:$0xf0] %v5525
    %5536 = vst [vmem:[#allocation3 + $0x218] sm:$0xf0] %v5526
    %5537 = vst [vmem:[#allocation3 + $0x220] sm:$0xf0] %v5527
    %5538 = vst.msk [vmem:[#allocation3 + $0x228] sm:$0xf0] %vm3279, %v5528
    %5539 = vst [vmem:[#allocation3 + $0x230] sm:$0x3] %v5524
    %5540 = vst [vmem:[#allocation3 + $0x238] sm:$0x3] %v5525
    %5541 = vst [vmem:[#allocation3 + $0x240] sm:$0x3] %v5526
    %5542 = vst [vmem:[#allocation3 + $0x248] sm:$0x3] %v5527
    %5543 = vst.msk [vmem:[#allocation3 + $0x250] sm:$0x3] %vm3285, %v5528
    %5544 = vrot.lane.b32.xlu0 %v5095, 56
    %v5545 = vpop.permute.xlu0 %5544
    %5546 = vrot.lane.b32.xlu0 %v5096, 56
    %v5547 = vpop.permute.xlu0 %5546
    %5548 = vrot.lane.b32.xlu0 %v5097, 56
    %v5549 = vpop.permute.xlu0 %5548
    %5550 = vrot.lane.b32.xlu0 %v5098, 56
    %v5551 = vpop.permute.xlu0 %5550
    %5552 = vrot.lane.b32.xlu0 %v5214, 56
    %v5553 = vpop.permute.xlu0 %5552
    %5554 = vrot.lane.b32.xlu0 %v5423, 56
    %v5555 = vpop.permute.xlu0 %5554
    %v5556 = vsel %vm3478, %v5545, %v5547
    %v5557 = vsel %vm3478, %v5547, %v5549
    %v5558 = vsel %vm3478, %v5549, %v5551
    %v5559 = vsel %vm3478, %v5551, %v5553
    %v5560 = vsel %vm3478, %v5553, %v5555
    %5566 = vst [vmem:[#allocation3 + $0x230] sm:$0xfc] %v5556
    %5567 = vst [vmem:[#allocation3 + $0x238] sm:$0xfc] %v5557
    %5568 = vst [vmem:[#allocation3 + $0x240] sm:$0xfc] %v5558
    %5569 = vst [vmem:[#allocation3 + $0x248] sm:$0xfc] %v5559
    %5570 = vst.msk [vmem:[#allocation3 + $0x250] sm:$0xfc] %vm3316, %v5560
    %5571 = vst [vmem:[#allocation3 + $0x258] sm:$0x3f] %v5011
    %5572 = vst [vmem:[#allocation3 + $0x260] sm:$0x3f] %v5012
    %5573 = vst [vmem:[#allocation3 + $0x268] sm:$0x3f] %v5013
    %5574 = vst [vmem:[#allocation3 + $0x270] sm:$0x3f] %v5014
    %5575 = vst.msk [vmem:[#allocation3 + $0x278] sm:$0x3f] %vm3208, %v5015
    %5576 = vrot.lane.b32.xlu0 %v5148, 126
    %v5577 = vpop.permute.xlu0 %5576
    %5578 = vrot.lane.b32.xlu0 %v5478, 126
    %v5579 = vpop.permute.xlu0 %5578
    %v5580 = vsel %vm250, %v5040, %v5577
    %v5581 = vsel %vm250, %v5577, %v5579
    %5585 = vst [vmem:[#allocation3 + $0x258] sm:$0xc0] %v5043
    %5586 = vst [vmem:[#allocation3 + $0x260] sm:$0xc0] %v5044
    %5587 = vst [vmem:[#allocation3 + $0x268] sm:$0xc0] %v5580
    %5588 = vst [vmem:[#allocation3 + $0x270] sm:$0xc0] %v5581
    %5589 = vst.msk [vmem:[#allocation3 + $0x278] sm:$0xc0] %vm3243, %v5579
    %5590 = vst [vmem:[#allocation3 + $0x280] sm:$0xf] %v5043
    %5591 = vst [vmem:[#allocation3 + $0x288] sm:$0xf] %v5044
    %5592 = vst [vmem:[#allocation3 + $0x290] sm:$0xf] %v5580
    %5593 = vst [vmem:[#allocation3 + $0x298] sm:$0xf] %v5581
    %5594 = vst.msk [vmem:[#allocation3 + $0x2a0] sm:$0xf] %vm3249, %v5579
    %5595 = vrot.lane.b32.xlu0 %v5181, 124
    %v5596 = vpop.permute.xlu0 %5595
    %5597 = vrot.lane.b32.xlu0 %v5511, 124
    %v5598 = vpop.permute.xlu0 %5597
    %v5599 = vsel %vm465, %v5074, %v5596
    %v5600 = vsel %vm465, %v5596, %v5598
    %5604 = vst [vmem:[#allocation3 + $0x280] sm:$0xf0] %v5077
    %5605 = vst [vmem:[#allocation3 + $0x288] sm:$0xf0] %v5078
    %5606 = vst [vmem:[#allocation3 + $0x290] sm:$0xf0] %v5599
    %5607 = vst [vmem:[#allocation3 + $0x298] sm:$0xf0] %v5600
    %5608 = vst.msk [vmem:[#allocation3 + $0x2a0] sm:$0xf0] %vm3279, %v5598
    %5609 = vst [vmem:[#allocation3 + $0x2a8] sm:$0x3] %v5077
    %5610 = vst [vmem:[#allocation3 + $0x2b0] sm:$0x3] %v5078
    %5611 = vst [vmem:[#allocation3 + $0x2b8] sm:$0x3] %v5599
    %5612 = vst [vmem:[#allocation3 + $0x2c0] sm:$0x3] %v5600
    %5613 = vst.msk [vmem:[#allocation3 + $0x2c8] sm:$0x3] %vm3285, %v5598
    %5614 = vrot.lane.b32.xlu0 %v5214, 122
    %v5615 = vpop.permute.xlu0 %5614
    %5616 = vrot.lane.b32.xlu0 %v5423, 122
    %v5617 = vpop.permute.xlu0 %5616
    %v5618 = vsel %vm3302, %v5108, %v5615
    %v5619 = vsel %vm3302, %v5615, %v5617
    %5623 = vst [vmem:[#allocation3 + $0x2a8] sm:$0xfc] %v5111
    %5624 = vst [vmem:[#allocation3 + $0x2b0] sm:$0xfc] %v5112
    %5625 = vst [vmem:[#allocation3 + $0x2b8] sm:$0xfc] %v5618
    %5626 = vst [vmem:[#allocation3 + $0x2c0] sm:$0xfc] %v5619
    %5627 = vst.msk [vmem:[#allocation3 + $0x2c8] sm:$0xfc] %vm3316, %v5617
    %5628 = vrot.lane.b32.xlu0 %v5014, 120
    %v5629 = vpop.permute.xlu0 %5628
    %5630 = vrot.lane.b32.xlu0 %v5015, 120
    %v5631 = vpop.permute.xlu0 %5630
    %v5632 = vsel %vm3328, %v5132, %v5629
    %v5633 = vsel %vm3328, %v5629, %v5631
    %5637 = vst [vmem:[#allocation3 + $0x2d0] sm:$0x3f] %v5135
    %5638 = vst [vmem:[#allocation3 + $0x2d8] sm:$0x3f] %v5136
    %5639 = vst [vmem:[#allocation3 + $0x2e0] sm:$0x3f] %v5632
    %5640 = vst [vmem:[#allocation3 + $0x2e8] sm:$0x3f] %v5633
    %5641 = vst.msk [vmem:[#allocation3 + $0x2f0] sm:$0x3f] %vm3208, %v5631
    %v5642 = vld [vmem:[#allocation3] sm:$0xff]
    %v5643 = vld [vmem:[#allocation3 + $0x8] sm:$0xff]
    %v5644 = vld [vmem:[#allocation3 + $0x10] sm:$0xff]
    %v5645 = vld [vmem:[#allocation3 + $0x18] sm:$0xff]
    %v5646 = vld [vmem:[#allocation3 + $0x20] sm:$0xff]
    %v5647 = vld [vmem:[#allocation3 + $0x28] sm:$0xff]
    %v5648 = vld [vmem:[#allocation3 + $0x30] sm:$0xff]
    %v5649 = vld [vmem:[#allocation3 + $0x38] sm:$0xff]
    %v5650 = vld [vmem:[#allocation3 + $0x40] sm:$0xff]
    %v5651 = vld [vmem:[#allocation3 + $0x48] sm:$0xff]
    %v5652 = vld [vmem:[#allocation3 + $0x50] sm:$0xff]
    %v5653 = vld [vmem:[#allocation3 + $0x58] sm:$0xff]
    %v5654 = vld [vmem:[#allocation3 + $0x60] sm:$0xff]
    %v5655 = vld [vmem:[#allocation3 + $0x68] sm:$0xff]
    %v5656 = vld [vmem:[#allocation3 + $0x70] sm:$0xff]
    %v5657 = vld [vmem:[#allocation3 + $0x78] sm:$0xff]
    %v5658 = vld [vmem:[#allocation3 + $0x80] sm:$0xff]
    %v5659 = vld [vmem:[#allocation3 + $0x88] sm:$0xff]
    %v5660 = vld [vmem:[#allocation3 + $0x90] sm:$0xff]
    %v5661 = vld [vmem:[#allocation3 + $0x98] sm:$0xff]
    %v5662 = vld [vmem:[#allocation3 + $0xa0] sm:$0xff]
    %v5663 = vld [vmem:[#allocation3 + $0xa8] sm:$0xff]
    %v5664 = vld [vmem:[#allocation3 + $0xb0] sm:$0xff]
    %v5665 = vld [vmem:[#allocation3 + $0xb8] sm:$0xff]
    %v5666 = vld [vmem:[#allocation3 + $0xc0] sm:$0xff]
    %v5667 = vld [vmem:[#allocation3 + $0xc8] sm:$0xff]
    %v5668 = vld [vmem:[#allocation3 + $0xd0] sm:$0xff]
    %v5669 = vld [vmem:[#allocation3 + $0xd8] sm:$0xff]
    %v5670 = vld [vmem:[#allocation3 + $0xe0] sm:$0xff]
    %v5671 = vld [vmem:[#allocation3 + $0xe8] sm:$0xff]
    %v5672 = vld [vmem:[#allocation3 + $0xf0] sm:$0xff]
    %v5673 = vld [vmem:[#allocation3 + $0xf8] sm:$0xff]
    %v5674 = vld [vmem:[#allocation3 + $0x100] sm:$0xff]
    %v5675 = vld [vmem:[#allocation3 + $0x108] sm:$0xff]
    %v5676 = vld [vmem:[#allocation3 + $0x110] sm:$0xff]
    %v5677 = vld [vmem:[#allocation3 + $0x118] sm:$0xff]
    %v5678 = vld [vmem:[#allocation3 + $0x120] sm:$0xff]
    %v5679 = vld [vmem:[#allocation3 + $0x128] sm:$0xff]
    %v5680 = vld [vmem:[#allocation3 + $0x130] sm:$0xff]
    %v5681 = vld [vmem:[#allocation3 + $0x138] sm:$0xff]
    %v5682 = vld [vmem:[#allocation3 + $0x140] sm:$0xff]
    %v5683 = vld [vmem:[#allocation3 + $0x148] sm:$0xff]
    %v5684 = vld [vmem:[#allocation3 + $0x150] sm:$0xff]
    %v5685 = vld [vmem:[#allocation3 + $0x158] sm:$0xff]
    %v5686 = vld [vmem:[#allocation3 + $0x160] sm:$0xff]
    %v5687 = vld [vmem:[#allocation3 + $0x168] sm:$0xff]
    %v5688 = vld [vmem:[#allocation3 + $0x170] sm:$0xff]
    %v5689 = vld [vmem:[#allocation3 + $0x178] sm:$0xff]
    %v5690 = vld [vmem:[#allocation3 + $0x180] sm:$0xff]
    %v5691 = vld [vmem:[#allocation3 + $0x188] sm:$0xff]
    %v5692 = vld [vmem:[#allocation3 + $0x190] sm:$0xff]
    %v5693 = vld [vmem:[#allocation3 + $0x198] sm:$0xff]
    %v5694 = vld [vmem:[#allocation3 + $0x1a0] sm:$0xff]
    %v5695 = vld [vmem:[#allocation3 + $0x1a8] sm:$0xff]
    %v5696 = vld [vmem:[#allocation3 + $0x1b0] sm:$0xff]
    %v5697 = vld [vmem:[#allocation3 + $0x1b8] sm:$0xff]
    %v5698 = vld [vmem:[#allocation3 + $0x1c0] sm:$0xff]
    %v5699 = vld [vmem:[#allocation3 + $0x1c8] sm:$0xff]
    %v5700 = vld [vmem:[#allocation3 + $0x1d0] sm:$0xff]
    %v5701 = vld [vmem:[#allocation3 + $0x1d8] sm:$0xff]
    %v5702 = vld [vmem:[#allocation3 + $0x1e0] sm:$0xff]
    %v5703 = vld [vmem:[#allocation3 + $0x1e8] sm:$0xff]
    %v5704 = vld [vmem:[#allocation3 + $0x1f0] sm:$0xff]
    %v5705 = vld [vmem:[#allocation3 + $0x1f8] sm:$0xff]
    %v5706 = vld [vmem:[#allocation3 + $0x200] sm:$0xff]
    %v5707 = vld [vmem:[#allocation3 + $0x208] sm:$0xff]
    %v5708 = vld [vmem:[#allocation3 + $0x210] sm:$0xff]
    %v5709 = vld [vmem:[#allocation3 + $0x218] sm:$0xff]
    %v5710 = vld [vmem:[#allocation3 + $0x220] sm:$0xff]
    %v5711 = vld [vmem:[#allocation3 + $0x228] sm:$0xff]
    %v5712 = vld [vmem:[#allocation3 + $0x230] sm:$0xff]
    %v5713 = vld [vmem:[#allocation3 + $0x238] sm:$0xff]
    %v5714 = vld [vmem:[#allocation3 + $0x240] sm:$0xff]
    %v5715 = vld [vmem:[#allocation3 + $0x248] sm:$0xff]
    %v5716 = vld [vmem:[#allocation3 + $0x250] sm:$0xff]
    %v5717 = vld [vmem:[#allocation3 + $0x258] sm:$0xff]
    %v5718 = vld [vmem:[#allocation3 + $0x260] sm:$0xff]
    %v5719 = vld [vmem:[#allocation3 + $0x268] sm:$0xff]
    %v5720 = vld [vmem:[#allocation3 + $0x270] sm:$0xff]
    %v5721 = vld [vmem:[#allocation3 + $0x278] sm:$0xff]
    %v5722 = vld [vmem:[#allocation3 + $0x280] sm:$0xff]
    %v5723 = vld [vmem:[#allocation3 + $0x288] sm:$0xff]
    %v5724 = vld [vmem:[#allocation3 + $0x290] sm:$0xff]
    %v5725 = vld [vmem:[#allocation3 + $0x298] sm:$0xff]
    %v5726 = vld [vmem:[#allocation3 + $0x2a0] sm:$0xff]
    %v5727 = vld [vmem:[#allocation3 + $0x2a8] sm:$0xff]
    %v5728 = vld [vmem:[#allocation3 + $0x2b0] sm:$0xff]
    %v5729 = vld [vmem:[#allocation3 + $0x2b8] sm:$0xff]
    %v5730 = vld [vmem:[#allocation3 + $0x2c0] sm:$0xff]
    %v5731 = vld [vmem:[#allocation3 + $0x2c8] sm:$0xff]
    %v5732 = vld [vmem:[#allocation3 + $0x2d0] sm:$0x3f]
    %v5733 = vld [vmem:[#allocation3 + $0x2d8] sm:$0x3f]
    %v5734 = vld [vmem:[#allocation3 + $0x2e0] sm:$0x3f]
    %v5735 = vld [vmem:[#allocation3 + $0x2e8] sm:$0x3f]
    %v5736 = vld [vmem:[#allocation3 + $0x2f0] sm:$0x3f]
    %v5738 = vsel %vm3952, %v5732, 0
    %v5741 = vsel %vm3952, %v5733, 0
    %v5744 = vsel %vm3952, %v5734, 0
    %v5747 = vsel %vm3952, %v5735, 0
    %v5750 = vsel %vm3952, %v5736, 0
    %5752 = vmatprep.subr.mxu0 %v5718
    %5753 = vmatpush1.msra.mxu0 %v5717
    %5754 = vmatprep.subr.mxu0 %v5713
    %5755 = vmatpush1.msra.mxu0 %v5712
    %5756 = vmatprep.subr.mxu0 %v5708
    %5757 = vmatpush1.msra.mxu0 %v5707
    %5758 = vmatprep.subr.mxu0 %v5703
    %5759 = vmatpush1.msra.mxu0 %v5702
    %5760 = vmatprep.subr.mxu0 %v5698
    %5761 = vmatpush1.msra.mxu0 %v5697
    %5762 = vmatprep.subr.mxu0 %v5693
    %5763 = vmatpush1.msra.mxu0 %v5692
    %5764 = vmatprep.subr.mxu0 %v5688
    %5765 = vmatpush1.msra.mxu0 %v5687
    %5766 = vmatprep.subr.mxu0 %v5683
    %5767 = vmatpush1.msra.mxu0 %v5682
    %5768 = vmatprep.subr.mxu0 %v5678
    %5769 = vmatpush1.msra.mxu0 %v5677
    %5770 = vmatprep.subr.mxu0 %v5673
    %5771 = vmatpush1.msra.mxu0 %v5672
    %5772 = vmatprep.subr.mxu0 %v5668
    %5773 = vmatpush1.msra.mxu0 %v5667
    %5774 = vmatprep.subr.mxu0 %v5663
    %5775 = vmatpush1.msra.mxu0 %v5662
    %5776 = vmatprep.subr.mxu0 %v5658
    %5777 = vmatpush1.msra.mxu0 %v5657
    %5778 = vmatprep.subr.mxu0 %v5653
    %5779 = vmatpush1.msra.mxu0 %v5652
    %5780 = vmatprep.subr.mxu0 %v5648
    %5781 = vmatpush1.msra.mxu0 %v5647
    %5782 = vmatprep.subr.mxu0 %v5643
    %5783 = vmatpush1.msra.mxu0 %v5642
    %5784 = vmatprep.subr.mxu0 0.0
    %5785 = vmatpush2.msra.mxu0 0.0
    %5786 = vmatprep.subr.mxu0 0.0
    %5787 = vmatpush2.msra.mxu0 0.0
    %5788 = vmatprep.subr.mxu0 0.0
    %5789 = vmatpush2.msra.mxu0 0.0
    %5790 = vmatprep.subr.mxu0 0.0
    %5791 = vmatpush2.msra.mxu0 0.0
    %5792 = vmatprep.subr.mxu0 0.0
    %5793 = vmatpush2.msra.mxu0 0.0
    %5794 = vmatprep.subr.mxu0 0.0
    %5795 = vmatpush2.msra.mxu0 0.0
    %5796 = vmatprep.subr.mxu0 0.0
    %5797 = vmatpush2.msra.mxu0 0.0
    %5798 = vmatprep.subr.mxu0 0.0
    %5799 = vmatpush2.msra.mxu0 0.0
    %5800 = vmatprep.subr.mxu0 0.0
    %5801 = vmatpush2.msra.mxu0 0.0
    %5802 = vmatprep.subr.mxu0 0.0
    %5803 = vmatpush2.msra.mxu0 0.0
    %5804 = vmatprep.subr.mxu0 0.0
    %5805 = vmatpush2.msra.mxu0 0.0
    %5806 = vmatprep.subr.mxu0 0.0
    %5807 = vmatpush2.msra.mxu0 0.0
    %5808 = vmatprep.subr.mxu0 0.0
    %5809 = vmatpush2.msra.mxu0 0.0
    %5810 = vmatprep.subr.mxu0 %v5741
    %5811 = vmatpush2.msra.mxu0 %v5738
    %5812 = vmatprep.subr.mxu0 %v5728
    %5813 = vmatpush2.msra.mxu0 %v5727
    %5814 = vmatprep.subr.mxu0 %v5723
    %5815 = vmatpush2.msra.mxu0 %v5722
    %5816 = vmatprep.mubr.f32.mxu0 %v3947
    %5817 = vmatmul.mubr.f32.gmra.mxu0 %v2708
    %v5818 = vpop.f32.mrf.mxu0
    %v5819 = vadd.f32 %v3938, %v5818
    %v5820 = vpop.f32.mrf.mxu0
    %v5821 = vadd.f32 %v3938, %v5820
    %5822 = vmatprep.mubr.f32.mxu0 %v3950
    %5823 = vmatmul.mubr.f32.gmra.mxu0 %v2710
    %v5824 = vpop.f32.mrf.mxu0
    %v5825 = vadd.f32 %v3943, %v5824
    %v5826 = vpop.f32.mrf.mxu0
    %v5827 = vadd.f32 %v3943, %v5826
    %5828 = vdwg.mxu0
    %5829 = vmatprep.subr.mxu0 %v5720
    %5830 = vmatpush1.msra.mxu0 %v5719
    %5831 = vmatprep.subr.mxu0 %v5715
    %5832 = vmatpush1.msra.mxu0 %v5714
    %5833 = vmatprep.subr.mxu0 %v5710
    %5834 = vmatpush1.msra.mxu0 %v5709
    %5835 = vmatprep.subr.mxu0 %v5705
    %5836 = vmatpush1.msra.mxu0 %v5704
    %5837 = vmatprep.subr.mxu0 %v5700
    %5838 = vmatpush1.msra.mxu0 %v5699
    %5839 = vmatprep.subr.mxu0 %v5695
    %5840 = vmatpush1.msra.mxu0 %v5694
    %5841 = vmatprep.subr.mxu0 %v5690
    %5842 = vmatpush1.msra.mxu0 %v5689
    %5843 = vmatprep.subr.mxu0 %v5685
    %5844 = vmatpush1.msra.mxu0 %v5684
    %5845 = vmatprep.subr.mxu0 %v5680
    %5846 = vmatpush1.msra.mxu0 %v5679
    %5847 = vmatprep.subr.mxu0 %v5675
    %5848 = vmatpush1.msra.mxu0 %v5674
    %5849 = vmatprep.subr.mxu0 %v5670
    %5850 = vmatpush1.msra.mxu0 %v5669
    %5851 = vmatprep.subr.mxu0 %v5665
    %5852 = vmatpush1.msra.mxu0 %v5664
    %5853 = vmatprep.subr.mxu0 %v5660
    %5854 = vmatpush1.msra.mxu0 %v5659
    %5855 = vmatprep.subr.mxu0 %v5655
    %5856 = vmatpush1.msra.mxu0 %v5654
    %5857 = vmatprep.subr.mxu0 %v5650
    %5858 = vmatpush1.msra.mxu0 %v5649
    %5859 = vmatprep.subr.mxu0 %v5645
    %5860 = vmatpush1.msra.mxu0 %v5644
    %5861 = vmatprep.subr.mxu0 0.0
    %5862 = vmatpush2.msra.mxu0 0.0
    %5863 = vmatprep.subr.mxu0 0.0
    %5864 = vmatpush2.msra.mxu0 0.0
    %5865 = vmatprep.subr.mxu0 0.0
    %5866 = vmatpush2.msra.mxu0 0.0
    %5867 = vmatprep.subr.mxu0 0.0
    %5868 = vmatpush2.msra.mxu0 0.0
    %5869 = vmatprep.subr.mxu0 0.0
    %5870 = vmatpush2.msra.mxu0 0.0
    %5871 = vmatprep.subr.mxu0 0.0
    %5872 = vmatpush2.msra.mxu0 0.0
    %5873 = vmatprep.subr.mxu0 0.0
    %5874 = vmatpush2.msra.mxu0 0.0
    %5875 = vmatprep.subr.mxu0 0.0
    %5876 = vmatpush2.msra.mxu0 0.0
    %5877 = vmatprep.subr.mxu0 0.0
    %5878 = vmatpush2.msra.mxu0 0.0
    %5879 = vmatprep.subr.mxu0 0.0
    %5880 = vmatpush2.msra.mxu0 0.0
    %5881 = vmatprep.subr.mxu0 0.0
    %5882 = vmatpush2.msra.mxu0 0.0
    %5883 = vmatprep.subr.mxu0 0.0
    %5884 = vmatpush2.msra.mxu0 0.0
    %5885 = vmatprep.subr.mxu0 0.0
    %5886 = vmatpush2.msra.mxu0 0.0
    %5887 = vmatprep.subr.mxu0 %v5747
    %5888 = vmatpush2.msra.mxu0 %v5744
    %5889 = vmatprep.subr.mxu0 %v5730
    %5890 = vmatpush2.msra.mxu0 %v5729
    %5891 = vmatprep.subr.mxu0 %v5725
    %5892 = vmatpush2.msra.mxu0 %v5724
    %5893 = vmatprep.mubr.f32.mxu0 %v3947
    %5894 = vmatmul.mubr.f32.gmra.mxu0 %v2708
    %v5895 = vpop.f32.mrf.mxu0
    %v5896 = vadd.f32 %v3938, %v5895
    %v5897 = vpop.f32.mrf.mxu0
    %v5898 = vadd.f32 %v3938, %v5897
    %5899 = vmatprep.mubr.f32.mxu0 %v3950
    %5900 = vmatmul.mubr.f32.gmra.mxu0 %v2710
    %v5901 = vpop.f32.mrf.mxu0
    %v5902 = vadd.f32 %v3943, %v5901
    %v5903 = vpop.f32.mrf.mxu0
    %v5904 = vadd.f32 %v3943, %v5903
    %5905 = vdwg.mxu0
    %5906 = vmatprep.subr.mxu0 0.0
    %5907 = vmatpush1.msra.mxu0 %v5721
    %5908 = vmatprep.subr.mxu0 0.0
    %5909 = vmatpush1.msra.mxu0 %v5716
    %5910 = vmatprep.subr.mxu0 0.0
    %5911 = vmatpush1.msra.mxu0 %v5711
    %5912 = vmatprep.subr.mxu0 0.0
    %5913 = vmatpush1.msra.mxu0 %v5706
    %5914 = vmatprep.subr.mxu0 0.0
    %5915 = vmatpush1.msra.mxu0 %v5701
    %5916 = vmatprep.subr.mxu0 0.0
    %5917 = vmatpush1.msra.mxu0 %v5696
    %5918 = vmatprep.subr.mxu0 0.0
    %5919 = vmatpush1.msra.mxu0 %v5691
    %5920 = vmatprep.subr.mxu0 0.0
    %5921 = vmatpush1.msra.mxu0 %v5686
    %5922 = vmatprep.subr.mxu0 0.0
    %5923 = vmatpush1.msra.mxu0 %v5681
    %5924 = vmatprep.subr.mxu0 0.0
    %5925 = vmatpush1.msra.mxu0 %v5676
    %5926 = vmatprep.subr.mxu0 0.0
    %5927 = vmatpush1.msra.mxu0 %v5671
    %5928 = vmatprep.subr.mxu0 0.0
    %5929 = vmatpush1.msra.mxu0 %v5666
    %5930 = vmatprep.subr.mxu0 0.0
    %5931 = vmatpush1.msra.mxu0 %v5661
    %5932 = vmatprep.subr.mxu0 0.0
    %5933 = vmatpush1.msra.mxu0 %v5656
    %5934 = vmatprep.subr.mxu0 0.0
    %5935 = vmatpush1.msra.mxu0 %v5651
    %5936 = vmatprep.subr.mxu0 0.0
    %5937 = vmatpush1.msra.mxu0 %v5646
    %5938 = vmatprep.subr.mxu0 0.0
    %5939 = vmatpush2.msra.mxu0 0.0
    %5940 = vmatprep.subr.mxu0 0.0
    %5941 = vmatpush2.msra.mxu0 0.0
    %5942 = vmatprep.subr.mxu0 0.0
    %5943 = vmatpush2.msra.mxu0 0.0
    %5944 = vmatprep.subr.mxu0 0.0
    %5945 = vmatpush2.msra.mxu0 0.0
    %5946 = vmatprep.subr.mxu0 0.0
    %5947 = vmatpush2.msra.mxu0 0.0
    %5948 = vmatprep.subr.mxu0 0.0
    %5949 = vmatpush2.msra.mxu0 0.0
    %5950 = vmatprep.subr.mxu0 0.0
    %5951 = vmatpush2.msra.mxu0 0.0
    %5952 = vmatprep.subr.mxu0 0.0
    %5953 = vmatpush2.msra.mxu0 0.0
    %5954 = vmatprep.subr.mxu0 0.0
    %5955 = vmatpush2.msra.mxu0 0.0
    %5956 = vmatprep.subr.mxu0 0.0
    %5957 = vmatpush2.msra.mxu0 0.0
    %5958 = vmatprep.subr.mxu0 0.0
    %5959 = vmatpush2.msra.mxu0 0.0
    %5960 = vmatprep.subr.mxu0 0.0
    %5961 = vmatpush2.msra.mxu0 0.0
    %5962 = vmatprep.subr.mxu0 0.0
    %5963 = vmatpush2.msra.mxu0 0.0
    %5964 = vmatprep.subr.mxu0 0.0
    %5965 = vmatpush2.msra.mxu0 %v5750
    %5966 = vmatprep.subr.mxu0 0.0
    %5967 = vmatpush2.msra.mxu0 %v5731
    %5968 = vmatprep.subr.mxu0 0.0
    %5969 = vmatpush2.msra.mxu0 %v5726
    %5970 = vmatprep.mubr.f32.mxu0 %v3947
    %5971 = vmatmul.mubr.f32.gmra.mxu0 %v2708
    %v5972 = vpop.f32.mrf.mxu0
    %v5973 = vadd.f32 %v3938, %v5972
    %v5974 = vpop.f32.mrf.mxu0
    %5975 = vmatprep.mubr.f32.mxu0 %v3950
    %5976 = vmatmul.mubr.f32.gmra.mxu0 %v2710
    %v5977 = vpop.f32.mrf.mxu0
    %v5978 = vadd.f32 %v3943, %v5977
    %v5979 = vpop.f32.mrf.mxu0
    %5980 = vdwg.mxu0
    %v5981 = vmax.f32 %v5819, 0.0
    %v5982 = vmax.f32 %v5821, 0.0
    %v5983 = vmax.f32 %v5896, 0.0
    %v5984 = vmax.f32 %v5898, 0.0
    %v5985 = vmax.f32 %v5973, 0.0
    %v5986 = vmax.f32 %v5825, 0.0
    %v5987 = vmax.f32 %v5827, 0.0
    %v5988 = vmax.f32 %v5902, 0.0
    %v5989 = vmax.f32 %v5904, 0.0
    %v5990 = vmax.f32 %v5978, 0.0
    %6001 = vrot.lane.b32.xlu0 %v5981, 126
    %v6002 = vpop.permute.xlu0 %6001
    %6003 = vrot.lane.b32.xlu0 %v5982, 126
    %v6004 = vpop.permute.xlu0 %6003
    %6005 = vrot.lane.b32.xlu0 %v5983, 126
    %v6006 = vpop.permute.xlu0 %6005
    %6007 = vrot.lane.b32.xlu0 %v5984, 126
    %v6008 = vpop.permute.xlu0 %6007
    %6009 = vrot.lane.b32.xlu0 %v5985, 126
    %v6010 = vpop.permute.xlu0 %6009
    %6011 = vrot.lane.b32.xlu0 %v5986, 126
    %v6012 = vpop.permute.xlu0 %6011
    %6013 = vrot.lane.b32.xlu0 %v5987, 126
    %v6014 = vpop.permute.xlu0 %6013
    %6015 = vrot.lane.b32.xlu0 %v5988, 126
    %v6016 = vpop.permute.xlu0 %6015
    %6017 = vrot.lane.b32.xlu0 %v5989, 126
    %v6018 = vpop.permute.xlu0 %6017
    %6019 = vrot.lane.b32.xlu0 %v5990, 126
    %v6020 = vpop.permute.xlu0 %6019
    %v6021 = vsel %vm250, %v6002, %v6004
    %v6022 = vsel %vm250, %v6004, %v6006
    %v6023 = vsel %vm250, %v6006, %v6008
    %v6024 = vsel %vm250, %v6008, %v6010
    %v6025 = vsel %vm250, %v6012, %v6014
    %v6026 = vsel %vm250, %v6014, %v6016
    %v6027 = vsel %vm250, %v6016, %v6018
    %v6028 = vsel %vm250, %v6018, %v6020
    %v6039 = vmax.f32 %v5981, %v6021
    %v6040 = vmax.f32 %v5982, %v6022
    %v6041 = vmax.f32 %v5983, %v6023
    %v6042 = vmax.f32 %v5984, %v6024
    %v6043 = vmax.f32 %v5985, %v6010
    %v6044 = vmax.f32 %v5986, %v6025
    %v6045 = vmax.f32 %v5987, %v6026
    %v6046 = vmax.f32 %v5988, %v6027
    %v6047 = vmax.f32 %v5989, %v6028
    %v6048 = vmax.f32 %v5990, %v6020
    %6059 = vrot.lane.b32.xlu0 %v6039, 64
    %v6060 = vpop.permute.xlu0 %6059
    %6061 = vrot.lane.b32.xlu0 %v6040, 64
    %v6062 = vpop.permute.xlu0 %6061
    %6063 = vrot.lane.b32.xlu0 %v6041, 64
    %v6064 = vpop.permute.xlu0 %6063
    %6065 = vrot.lane.b32.xlu0 %v6042, 64
    %v6066 = vpop.permute.xlu0 %6065
    %6067 = vrot.lane.b32.xlu0 %v6043, 64
    %v6068 = vpop.permute.xlu0 %6067
    %6069 = vrot.lane.b32.xlu0 %v6044, 64
    %v6070 = vpop.permute.xlu0 %6069
    %6071 = vrot.lane.b32.xlu0 %v6045, 64
    %v6072 = vpop.permute.xlu0 %6071
    %6073 = vrot.lane.b32.xlu0 %v6046, 64
    %v6074 = vpop.permute.xlu0 %6073
    %6075 = vrot.lane.b32.xlu0 %v6047, 64
    %v6076 = vpop.permute.xlu0 %6075
    %6077 = vrot.lane.b32.xlu0 %v6048, 64
    %v6078 = vpop.permute.xlu0 %6077
    %v6079 = vsel %vm1156, %v6060, %v6062
    %v6080 = vsel %vm1156, %v6062, %v6064
    %v6081 = vsel %vm1156, %v6064, %v6066
    %v6082 = vsel %vm1156, %v6066, %v6068
    %v6083 = vsel %vm1156, %v6070, %v6072
    %v6084 = vsel %vm1156, %v6072, %v6074
    %v6085 = vsel %vm1156, %v6074, %v6076
    %v6086 = vsel %vm1156, %v6076, %v6078
    %v6097 = vmax.f32 %v6039, %v6079
    %v6098 = vmax.f32 %v6040, %v6080
    %v6099 = vmax.f32 %v6041, %v6081
    %v6100 = vmax.f32 %v6042, %v6082
    %v6101 = vmax.f32 %v6043, %v6068
    %v6102 = vmax.f32 %v6044, %v6083
    %v6103 = vmax.f32 %v6045, %v6084
    %v6104 = vmax.f32 %v6046, %v6085
    %v6105 = vmax.f32 %v6047, %v6086
    %v6106 = vmax.f32 %v6048, %v6078
    %s6107 = scalar_lea.vmem [#allocation4], 16
    %6108 = vst.msk [vmem:[%s6107] sm:$0xff] %vm4323, %v6097
    %6109 = vst.msk [vmem:[%s6107 + $0x8] sm:$0xff] %vm4323, %v6102
    %6112 = vrot.lane.b32.xlu0 %v6097, 125
    %v6113 = vpop.permute.xlu0 %6112
    %6114 = vrot.lane.b32.xlu0 %v6102, 125
    %v6115 = vpop.permute.xlu0 %6114
    %6118 = vst.msk [vmem:[%s6107] sm:$0xff] %vm4334, %v6113
    %6119 = vst.msk [vmem:[%s6107 + $0x8] sm:$0xff] %vm4334, %v6115
    %6120 = vrot.lane.b32.xlu0 %v6097, 122
    %v6121 = vpop.permute.xlu0 %6120
    %6122 = vrot.lane.b32.xlu0 %v6102, 122
    %v6123 = vpop.permute.xlu0 %6122
    %6126 = vst.msk [vmem:[%s6107] sm:$0xff] %vm4343, %v6121
    %6127 = vst.msk [vmem:[%s6107 + $0x8] sm:$0xff] %vm4343, %v6123
    %6128 = vrot.lane.b32.xlu0 %v6097, 119
    %v6129 = vpop.permute.xlu0 %6128
    %6130 = vrot.lane.b32.xlu0 %v6102, 119
    %v6131 = vpop.permute.xlu0 %6130
    %6134 = vst.msk [vmem:[%s6107] sm:$0xff] %vm4352, %v6129
    %6135 = vst.msk [vmem:[%s6107 + $0x8] sm:$0xff] %vm4352, %v6131
    %6136 = vrot.lane.b32.xlu0 %v6097, 116
    %v6137 = vpop.permute.xlu0 %6136
    %6138 = vrot.lane.b32.xlu0 %v6102, 116
    %v6139 = vpop.permute.xlu0 %6138
    %6142 = vst.msk [vmem:[%s6107] sm:$0xff] %vm4361, %v6137
    %6143 = vst.msk [vmem:[%s6107 + $0x8] sm:$0xff] %vm4361, %v6139
    %6146 = vrot.lane.b32.xlu0 %v6098, 5
    %v6147 = vpop.permute.xlu0 %6146
    %6148 = vrot.lane.b32.xlu0 %v6103, 5
    %v6149 = vpop.permute.xlu0 %6148
    %6152 = vst.msk [vmem:[%s6107] sm:$0xff] %vm4372, %v6147
    %6153 = vst.msk [vmem:[%s6107 + $0x8] sm:$0xff] %vm4372, %v6149
    %6154 = vrot.lane.b32.xlu0 %v6098, 2
    %v6155 = vpop.permute.xlu0 %6154
    %6156 = vrot.lane.b32.xlu0 %v6103, 2
    %v6157 = vpop.permute.xlu0 %6156
    %6160 = vst.msk [vmem:[%s6107] sm:$0xff] %vm4381, %v6155
    %6161 = vst.msk [vmem:[%s6107 + $0x8] sm:$0xff] %vm4381, %v6157
    %6162 = vrot.lane.b32.xlu0 %v6098, 127
    %v6163 = vpop.permute.xlu0 %6162
    %6164 = vrot.lane.b32.xlu0 %v6103, 127
    %v6165 = vpop.permute.xlu0 %6164
    %6168 = vst.msk [vmem:[%s6107] sm:$0xff] %vm4390, %v6163
    %6169 = vst.msk [vmem:[%s6107 + $0x8] sm:$0xff] %vm4390, %v6165
    %6170 = vrot.lane.b32.xlu0 %v6098, 124
    %v6171 = vpop.permute.xlu0 %6170
    %6172 = vrot.lane.b32.xlu0 %v6103, 124
    %v6173 = vpop.permute.xlu0 %6172
    %6176 = vst.msk [vmem:[%s6107] sm:$0xff] %vm4399, %v6171
    %6177 = vst.msk [vmem:[%s6107 + $0x8] sm:$0xff] %vm4399, %v6173
    %6178 = vrot.lane.b32.xlu0 %v6098, 121
    %v6179 = vpop.permute.xlu0 %6178
    %6180 = vrot.lane.b32.xlu0 %v6103, 121
    %v6181 = vpop.permute.xlu0 %6180
    %6184 = vst.msk [vmem:[%s6107] sm:$0xff] %vm4408, %v6179
    %6185 = vst.msk [vmem:[%s6107 + $0x8] sm:$0xff] %vm4408, %v6181
    %6188 = vrot.lane.b32.xlu0 %v6099, 10
    %v6189 = vpop.permute.xlu0 %6188
    %6190 = vrot.lane.b32.xlu0 %v6104, 10
    %v6191 = vpop.permute.xlu0 %6190
    %6194 = vst.msk [vmem:[%s6107] sm:$0xff] %vm4419, %v6189
    %6195 = vst.msk [vmem:[%s6107 + $0x8] sm:$0xff] %vm4419, %v6191
    %6196 = vrot.lane.b32.xlu0 %v6099, 7
    %v6197 = vpop.permute.xlu0 %6196
    %6198 = vrot.lane.b32.xlu0 %v6104, 7
    %v6199 = vpop.permute.xlu0 %6198
    %6202 = vst.msk [vmem:[%s6107] sm:$0xff] %vm4428, %v6197
    %6203 = vst.msk [vmem:[%s6107 + $0x8] sm:$0xff] %vm4428, %v6199
    %6204 = vrot.lane.b32.xlu0 %v6099, 4
    %v6205 = vpop.permute.xlu0 %6204
    %6206 = vrot.lane.b32.xlu0 %v6104, 4
    %v6207 = vpop.permute.xlu0 %6206
    %6210 = vst.msk [vmem:[%s6107] sm:$0xff] %vm4437, %v6205
    %6211 = vst.msk [vmem:[%s6107 + $0x8] sm:$0xff] %vm4437, %v6207
    %6212 = vrot.lane.b32.xlu0 %v6099, 1
    %v6213 = vpop.permute.xlu0 %6212
    %6214 = vrot.lane.b32.xlu0 %v6104, 1
    %v6215 = vpop.permute.xlu0 %6214
    %6218 = vst.msk [vmem:[%s6107] sm:$0xff] %vm4446, %v6213
    %6219 = vst.msk [vmem:[%s6107 + $0x8] sm:$0xff] %vm4446, %v6215
    %6220 = vrot.lane.b32.xlu0 %v6099, 126
    %v6221 = vpop.permute.xlu0 %6220
    %6222 = vrot.lane.b32.xlu0 %v6104, 126
    %v6223 = vpop.permute.xlu0 %6222
    %6226 = vst.msk [vmem:[%s6107] sm:$0xff] %vm4455, %v6221
    %6227 = vst.msk [vmem:[%s6107 + $0x8] sm:$0xff] %vm4455, %v6223
    %6230 = vrot.lane.b32.xlu0 %v6100, 15
    %v6231 = vpop.permute.xlu0 %6230
    %6232 = vrot.lane.b32.xlu0 %v6105, 15
    %v6233 = vpop.permute.xlu0 %6232
    %6236 = vst.msk [vmem:[%s6107] sm:$0xff] %vm4466, %v6231
    %6237 = vst.msk [vmem:[%s6107 + $0x8] sm:$0xff] %vm4466, %v6233
    %6238 = vrot.lane.b32.xlu0 %v6100, 12
    %v6239 = vpop.permute.xlu0 %6238
    %6240 = vrot.lane.b32.xlu0 %v6105, 12
    %v6241 = vpop.permute.xlu0 %6240
    %6244 = vst.msk [vmem:[%s6107] sm:$0xff] %vm4475, %v6239
    %6245 = vst.msk [vmem:[%s6107 + $0x8] sm:$0xff] %vm4475, %v6241
    %6246 = vrot.lane.b32.xlu0 %v6100, 9
    %v6247 = vpop.permute.xlu0 %6246
    %6248 = vrot.lane.b32.xlu0 %v6105, 9
    %v6249 = vpop.permute.xlu0 %6248
    %6252 = vst.msk [vmem:[%s6107] sm:$0xff] %vm4484, %v6247
    %6253 = vst.msk [vmem:[%s6107 + $0x8] sm:$0xff] %vm4484, %v6249
    %6254 = vrot.lane.b32.xlu0 %v6100, 6
    %v6255 = vpop.permute.xlu0 %6254
    %6256 = vrot.lane.b32.xlu0 %v6105, 6
    %v6257 = vpop.permute.xlu0 %6256
    %6260 = vst.msk [vmem:[%s6107] sm:$0xff] %vm4493, %v6255
    %6261 = vst.msk [vmem:[%s6107 + $0x8] sm:$0xff] %vm4493, %v6257
    %6262 = vrot.lane.b32.xlu0 %v6100, 3
    %v6263 = vpop.permute.xlu0 %6262
    %6264 = vrot.lane.b32.xlu0 %v6105, 3
    %v6265 = vpop.permute.xlu0 %6264
    %6268 = vst.msk [vmem:[%s6107] sm:$0xff] %vm4502, %v6263
    %6269 = vst.msk [vmem:[%s6107 + $0x8] sm:$0xff] %vm4502, %v6265
    %6272 = vrot.lane.b32.xlu0 %v6101, 20
    %v6273 = vpop.permute.xlu0 %6272
    %6274 = vrot.lane.b32.xlu0 %v6106, 20
    %v6275 = vpop.permute.xlu0 %6274
    %6278 = vst.msk [vmem:[%s6107] sm:$0xff] %vm4513, %v6273
    %6279 = vst.msk [vmem:[%s6107 + $0x8] sm:$0xff] %vm4513, %v6275
    %6280 = vrot.lane.b32.xlu0 %v6101, 17
    %v6281 = vpop.permute.xlu0 %6280
    %6282 = vrot.lane.b32.xlu0 %v6106, 17
    %v6283 = vpop.permute.xlu0 %6282
    %6286 = vst.msk [vmem:[%s6107] sm:$0xff] %vm4522, %v6281
    %6287 = vst.msk [vmem:[%s6107 + $0x8] sm:$0xff] %vm4522, %v6283
    %6288 = vrot.lane.b32.xlu0 %v6101, 14
    %v6289 = vpop.permute.xlu0 %6288
    %6290 = vrot.lane.b32.xlu0 %v6106, 14
    %v6291 = vpop.permute.xlu0 %6290
    %6294 = vst.msk [vmem:[%s6107] sm:$0xff] %vm4531, %v6289
    %6295 = vst.msk [vmem:[%s6107 + $0x8] sm:$0xff] %vm4531, %v6291
    %6296 = vrot.lane.b32.xlu0 %v6101, 11
    %v6297 = vpop.permute.xlu0 %6296
    %6298 = vrot.lane.b32.xlu0 %v6106, 11
    %v6299 = vpop.permute.xlu0 %6298
    %6302 = vst.msk [vmem:[%s6107] sm:$0xff] %vm4540, %v6297
    %6303 = vst.msk [vmem:[%s6107 + $0x8] sm:$0xff] %vm4540, %v6299
    %6304 = vrot.lane.b32.xlu0 %v6101, 8
    %v6305 = vpop.permute.xlu0 %6304
    %6306 = vrot.lane.b32.xlu0 %v6106, 8
    %v6307 = vpop.permute.xlu0 %6306
    %6310 = vst.msk [vmem:[%s6107] sm:$0xff] %vm4549, %v6305
    %6311 = vst.msk [vmem:[%s6107 + $0x8] sm:$0xff] %vm4549, %v6307
    %v6312 = vld [vmem:[#allocation4] sm:$0x1]
    %v6313 = vld [vmem:[#allocation4 + $0x10] sm:$0x1]
    %v6314 = vld [vmem:[#allocation4 + $0x20] sm:$0x1]
    %v6315 = vld [vmem:[#allocation4 + $0x30] sm:$0x1]
    %v6316 = vld [vmem:[#allocation4 + $0x40] sm:$0x1]
    %v6317 = vld [vmem:[#allocation4 + $0x50] sm:$0x1]
    %v6318 = vld [vmem:[#allocation4 + $0x60] sm:$0x1]
    %v6319 = vld [vmem:[#allocation4 + $0x70] sm:$0x1]
    %v6320 = vld [vmem:[%s5] sm:$0xff]
    %v6321 = vld [vmem:[%s5 + $0x8] sm:$0xff]
    %v6322 = vld [vmem:[%s5 + $0x10] sm:$0xff]
    %v6323 = vld [vmem:[%s5 + $0x18] sm:$0x1]
    %v6324 = vld [vmem:[#allocation4 + $0x1] sm:$0x1]
    %v6325 = vld [vmem:[#allocation4 + $0x11] sm:$0x1]
    %v6326 = vld [vmem:[#allocation4 + $0x21] sm:$0x1]
    %v6327 = vld [vmem:[#allocation4 + $0x31] sm:$0x1]
    %v6328 = vld [vmem:[#allocation4 + $0x41] sm:$0x1]
    %v6329 = vld [vmem:[#allocation4 + $0x51] sm:$0x1]
    %v6330 = vld [vmem:[#allocation4 + $0x61] sm:$0x1]
    %v6331 = vld [vmem:[#allocation4 + $0x71] sm:$0x1]
    %s6332 = scalar_lea.vmem %s5, 32
    %v6333 = vld [vmem:[%s6332] sm:$0xff]
    %v6334 = vld [vmem:[%s6332 + $0x8] sm:$0xff]
    %v6335 = vld [vmem:[%s6332 + $0x10] sm:$0xff]
    %v6336 = vld [vmem:[%s6332 + $0x18] sm:$0x1]
    %v6345 = vrot.slane %v6325, 7
    %vm6346 = vcmask 1041409
    %v6347 = vsel %vm6346, %v6345, %v6324
    %v6348 = vrot.slane %v6326, 6
    %vm6349 = vcmask 1042434
    %v6350 = vsel %vm6349, %v6348, %v6347
    %v6351 = vrot.slane %v6327, 5
    %vm6352 = vcmask 1043459
    %v6353 = vsel %vm6352, %v6351, %v6350
    %v6354 = vrot.slane %v6328, 4
    %vm6355 = vcmask 1044484
    %v6356 = vsel %vm6355, %v6354, %v6353
    %v6357 = vrot.slane %v6329, 3
    %vm6358 = vcmask 1045509
    %v6359 = vsel %vm6358, %v6357, %v6356
    %v6360 = vrot.slane %v6330, 2
    %vm6361 = vcmask 1046534
    %v6362 = vsel %vm6361, %v6360, %v6359
    %v6363 = vrot.slane %v6331, 1
    %vm6364 = vcmask 1047559
    %v6365 = vsel %vm6364, %v6363, %v6362
    %v6366 = vsel %vm2714, %v6365, 0
    %vm6368 = vcmask 1040384
    %v6370 = vsel %vm6368, %v6336, 0
    %6372 = vmatprep.subr.mxu0 0.0
    %6373 = vmatpush1.msra.mxu0 0.0
    %6374 = vmatprep.subr.mxu0 0.0
    %6375 = vmatpush1.msra.mxu0 0.0
    %6376 = vmatprep.subr.mxu0 0.0
    %6377 = vmatpush1.msra.mxu0 0.0
    %6378 = vmatprep.subr.mxu0 0.0
    %6379 = vmatpush1.msra.mxu0 0.0
    %6380 = vmatprep.subr.mxu0 0.0
    %6381 = vmatpush1.msra.mxu0 0.0
    %6382 = vmatprep.subr.mxu0 0.0
    %6383 = vmatpush1.msra.mxu0 0.0
    %6384 = vmatprep.subr.mxu0 0.0
    %6385 = vmatpush1.msra.mxu0 0.0
    %6386 = vmatprep.subr.mxu0 0.0
    %6387 = vmatpush1.msra.mxu0 0.0
    %6388 = vmatprep.subr.mxu0 0.0
    %6389 = vmatpush1.msra.mxu0 0.0
    %6390 = vmatprep.subr.mxu0 0.0
    %6391 = vmatpush1.msra.mxu0 0.0
    %6392 = vmatprep.subr.mxu0 0.0
    %6393 = vmatpush1.msra.mxu0 0.0
    %6394 = vmatprep.subr.mxu0 0.0
    %6395 = vmatpush1.msra.mxu0 0.0
    %6396 = vmatprep.subr.mxu0 0.0
    %6397 = vmatpush1.msra.mxu0 %v6370
    %6398 = vmatprep.subr.mxu0 0.0
    %6399 = vmatpush1.msra.mxu0 %v6335
    %6400 = vmatprep.subr.mxu0 0.0
    %6401 = vmatpush1.msra.mxu0 %v6334
    %6402 = vmatprep.subr.mxu0 0.0
    %6403 = vmatpush1.msra.mxu0 %v6333
    %6404 = vmatprep.subr.mxu0 0.0
    %6405 = vmatpush2.msra.mxu0 0.0
    %6406 = vmatprep.subr.mxu0 0.0
    %6407 = vmatpush2.msra.mxu0 0.0
    %6408 = vmatprep.subr.mxu0 0.0
    %6409 = vmatpush2.msra.mxu0 0.0
    %6410 = vmatprep.subr.mxu0 0.0
    %6411 = vmatpush2.msra.mxu0 0.0
    %6412 = vmatprep.subr.mxu0 0.0
    %6413 = vmatpush2.msra.mxu0 0.0
    %6414 = vmatprep.subr.mxu0 0.0
    %6415 = vmatpush2.msra.mxu0 0.0
    %6416 = vmatprep.subr.mxu0 0.0
    %6417 = vmatpush2.msra.mxu0 0.0
    %6418 = vmatprep.subr.mxu0 0.0
    %6419 = vmatpush2.msra.mxu0 0.0
    %6420 = vmatprep.subr.mxu0 0.0
    %6421 = vmatpush2.msra.mxu0 0.0
    %6422 = vmatprep.subr.mxu0 0.0
    %6423 = vmatpush2.msra.mxu0 0.0
    %6424 = vmatprep.subr.mxu0 0.0
    %6425 = vmatpush2.msra.mxu0 0.0
    %6426 = vmatprep.subr.mxu0 0.0
    %6427 = vmatpush2.msra.mxu0 0.0
    %6428 = vmatprep.subr.mxu0 0.0
    %6429 = vmatpush2.msra.mxu0 0.0
    %6430 = vmatprep.subr.mxu0 0.0
    %6431 = vmatpush2.msra.mxu0 0.0
    %6432 = vmatprep.subr.mxu0 0.0
    %6433 = vmatpush2.msra.mxu0 0.0
    %6434 = vmatprep.subr.mxu0 0.0
    %6435 = vmatpush2.msra.mxu0 0.0
    %6436 = vmatprep.mubr.f32.mxu0 0.0
    %6437 = vmatmul.mubr.f32.gmra.mxu0 %v6366
    %v6438 = vpop.f32.mrf.mxu0
    %v6439 = vadd.f32 0.0, %v6438
    %v6440 = vpop.f32.mrf.mxu0
    %6441 = vdwg.mxu0
    %v6450 = vrot.slane %v6313, 7
    %v6451 = vsel %vm6346, %v6450, %v6312
    %v6452 = vrot.slane %v6314, 6
    %v6453 = vsel %vm6349, %v6452, %v6451
    %v6454 = vrot.slane %v6315, 5
    %v6455 = vsel %vm6352, %v6454, %v6453
    %v6456 = vrot.slane %v6316, 4
    %v6457 = vsel %vm6355, %v6456, %v6455
    %v6458 = vrot.slane %v6317, 3
    %v6459 = vsel %vm6358, %v6458, %v6457
    %v6460 = vrot.slane %v6318, 2
    %v6461 = vsel %vm6361, %v6460, %v6459
    %v6462 = vrot.slane %v6319, 1
    %v6463 = vsel %vm6364, %v6462, %v6461
    %v6464 = vsel %vm2714, %v6463, 0
    %v6467 = vsel %vm6368, %v6323, 0
    %6469 = vmatprep.subr.mxu0 0.0
    %6470 = vmatpush1.msra.mxu0 0.0
    %6471 = vmatprep.subr.mxu0 0.0
    %6472 = vmatpush1.msra.mxu0 0.0
    %6473 = vmatprep.subr.mxu0 0.0
    %6474 = vmatpush1.msra.mxu0 0.0
    %6475 = vmatprep.subr.mxu0 0.0
    %6476 = vmatpush1.msra.mxu0 0.0
    %6477 = vmatprep.subr.mxu0 0.0
    %6478 = vmatpush1.msra.mxu0 0.0
    %6479 = vmatprep.subr.mxu0 0.0
    %6480 = vmatpush1.msra.mxu0 0.0
    %6481 = vmatprep.subr.mxu0 0.0
    %6482 = vmatpush1.msra.mxu0 0.0
    %6483 = vmatprep.subr.mxu0 0.0
    %6484 = vmatpush1.msra.mxu0 0.0
    %6485 = vmatprep.subr.mxu0 0.0
    %6486 = vmatpush1.msra.mxu0 0.0
    %6487 = vmatprep.subr.mxu0 0.0
    %6488 = vmatpush1.msra.mxu0 0.0
    %6489 = vmatprep.subr.mxu0 0.0
    %6490 = vmatpush1.msra.mxu0 0.0
    %6491 = vmatprep.subr.mxu0 0.0
    %6492 = vmatpush1.msra.mxu0 0.0
    %6493 = vmatprep.subr.mxu0 0.0
    %6494 = vmatpush1.msra.mxu0 %v6467
    %6495 = vmatprep.subr.mxu0 0.0
    %6496 = vmatpush1.msra.mxu0 %v6322
    %6497 = vmatprep.subr.mxu0 0.0
    %6498 = vmatpush1.msra.mxu0 %v6321
    %6499 = vmatprep.subr.mxu0 0.0
    %6500 = vmatpush1.msra.mxu0 %v6320
    %6501 = vmatprep.subr.mxu0 0.0
    %6502 = vmatpush2.msra.mxu0 0.0
    %6503 = vmatprep.subr.mxu0 0.0
    %6504 = vmatpush2.msra.mxu0 0.0
    %6505 = vmatprep.subr.mxu0 0.0
    %6506 = vmatpush2.msra.mxu0 0.0
    %6507 = vmatprep.subr.mxu0 0.0
    %6508 = vmatpush2.msra.mxu0 0.0
    %6509 = vmatprep.subr.mxu0 0.0
    %6510 = vmatpush2.msra.mxu0 0.0
    %6511 = vmatprep.subr.mxu0 0.0
    %6512 = vmatpush2.msra.mxu0 0.0
    %6513 = vmatprep.subr.mxu0 0.0
    %6514 = vmatpush2.msra.mxu0 0.0
    %6515 = vmatprep.subr.mxu0 0.0
    %6516 = vmatpush2.msra.mxu0 0.0
    %6517 = vmatprep.subr.mxu0 0.0
    %6518 = vmatpush2.msra.mxu0 0.0
    %6519 = vmatprep.subr.mxu0 0.0
    %6520 = vmatpush2.msra.mxu0 0.0
    %6521 = vmatprep.subr.mxu0 0.0
    %6522 = vmatpush2.msra.mxu0 0.0
    %6523 = vmatprep.subr.mxu0 0.0
    %6524 = vmatpush2.msra.mxu0 0.0
    %6525 = vmatprep.subr.mxu0 0.0
    %6526 = vmatpush2.msra.mxu0 0.0
    %6527 = vmatprep.subr.mxu0 0.0
    %6528 = vmatpush2.msra.mxu0 0.0
    %6529 = vmatprep.subr.mxu0 0.0
    %6530 = vmatpush2.msra.mxu0 0.0
    %6531 = vmatprep.subr.mxu0 0.0
    %6532 = vmatpush2.msra.mxu0 0.0
    %6533 = vmatprep.mubr.f32.mxu0 0.0
    %6534 = vmatmul.mubr.f32.gmra.mxu0 %v6464
    %v6535 = vpop.f32.mrf.mxu0
    %v6536 = vadd.f32 %v6439, %v6535
    %v6537 = vpop.f32.mrf.mxu0
    %6538 = vdwg.mxu0
    %v6539 = vld [vmem:[#allocation4 + $0x2] sm:$0x1]
    %v6540 = vld [vmem:[#allocation4 + $0x12] sm:$0x1]
    %v6541 = vld [vmem:[#allocation4 + $0x22] sm:$0x1]
    %v6542 = vld [vmem:[#allocation4 + $0x32] sm:$0x1]
    %v6543 = vld [vmem:[#allocation4 + $0x42] sm:$0x1]
    %v6544 = vld [vmem:[#allocation4 + $0x52] sm:$0x1]
    %v6545 = vld [vmem:[#allocation4 + $0x62] sm:$0x1]
    %v6546 = vld [vmem:[#allocation4 + $0x72] sm:$0x1]
    %s6547 = scalar_lea.vmem %s5, 64
    %v6548 = vld [vmem:[%s6547] sm:$0xff]
    %v6549 = vld [vmem:[%s6547 + $0x8] sm:$0xff]
    %v6550 = vld [vmem:[%s6547 + $0x10] sm:$0xff]
    %v6551 = vld [vmem:[%s6547 + $0x18] sm:$0x1]
    %v6560 = vrot.slane %v6540, 7
    %v6561 = vsel %vm6346, %v6560, %v6539
    %v6562 = vrot.slane %v6541, 6
    %v6563 = vsel %vm6349, %v6562, %v6561
    %v6564 = vrot.slane %v6542, 5
    %v6565 = vsel %vm6352, %v6564, %v6563
    %v6566 = vrot.slane %v6543, 4
    %v6567 = vsel %vm6355, %v6566, %v6565
    %v6568 = vrot.slane %v6544, 3
    %v6569 = vsel %vm6358, %v6568, %v6567
    %v6570 = vrot.slane %v6545, 2
    %v6571 = vsel %vm6361, %v6570, %v6569
    %v6572 = vrot.slane %v6546, 1
    %v6573 = vsel %vm6364, %v6572, %v6571
    %v6574 = vsel %vm2714, %v6573, 0
    %v6577 = vsel %vm6368, %v6551, 0
    %6579 = vmatprep.subr.mxu0 0.0
    %6580 = vmatpush1.msra.mxu0 0.0
    %6581 = vmatprep.subr.mxu0 0.0
    %6582 = vmatpush1.msra.mxu0 0.0
    %6583 = vmatprep.subr.mxu0 0.0
    %6584 = vmatpush1.msra.mxu0 0.0
    %6585 = vmatprep.subr.mxu0 0.0
    %6586 = vmatpush1.msra.mxu0 0.0
    %6587 = vmatprep.subr.mxu0 0.0
    %6588 = vmatpush1.msra.mxu0 0.0
    %6589 = vmatprep.subr.mxu0 0.0
    %6590 = vmatpush1.msra.mxu0 0.0
    %6591 = vmatprep.subr.mxu0 0.0
    %6592 = vmatpush1.msra.mxu0 0.0
    %6593 = vmatprep.subr.mxu0 0.0
    %6594 = vmatpush1.msra.mxu0 0.0
    %6595 = vmatprep.subr.mxu0 0.0
    %6596 = vmatpush1.msra.mxu0 0.0
    %6597 = vmatprep.subr.mxu0 0.0
    %6598 = vmatpush1.msra.mxu0 0.0
    %6599 = vmatprep.subr.mxu0 0.0
    %6600 = vmatpush1.msra.mxu0 0.0
    %6601 = vmatprep.subr.mxu0 0.0
    %6602 = vmatpush1.msra.mxu0 0.0
    %6603 = vmatprep.subr.mxu0 0.0
    %6604 = vmatpush1.msra.mxu0 %v6577
    %6605 = vmatprep.subr.mxu0 0.0
    %6606 = vmatpush1.msra.mxu0 %v6550
    %6607 = vmatprep.subr.mxu0 0.0
    %6608 = vmatpush1.msra.mxu0 %v6549
    %6609 = vmatprep.subr.mxu0 0.0
    %6610 = vmatpush1.msra.mxu0 %v6548
    %6611 = vmatprep.subr.mxu0 0.0
    %6612 = vmatpush2.msra.mxu0 0.0
    %6613 = vmatprep.subr.mxu0 0.0
    %6614 = vmatpush2.msra.mxu0 0.0
    %6615 = vmatprep.subr.mxu0 0.0
    %6616 = vmatpush2.msra.mxu0 0.0
    %6617 = vmatprep.subr.mxu0 0.0
    %6618 = vmatpush2.msra.mxu0 0.0
    %6619 = vmatprep.subr.mxu0 0.0
    %6620 = vmatpush2.msra.mxu0 0.0
    %6621 = vmatprep.subr.mxu0 0.0
    %6622 = vmatpush2.msra.mxu0 0.0
    %6623 = vmatprep.subr.mxu0 0.0
    %6624 = vmatpush2.msra.mxu0 0.0
    %6625 = vmatprep.subr.mxu0 0.0
    %6626 = vmatpush2.msra.mxu0 0.0
    %6627 = vmatprep.subr.mxu0 0.0
    %6628 = vmatpush2.msra.mxu0 0.0
    %6629 = vmatprep.subr.mxu0 0.0
    %6630 = vmatpush2.msra.mxu0 0.0
    %6631 = vmatprep.subr.mxu0 0.0
    %6632 = vmatpush2.msra.mxu0 0.0
    %6633 = vmatprep.subr.mxu0 0.0
    %6634 = vmatpush2.msra.mxu0 0.0
    %6635 = vmatprep.subr.mxu0 0.0
    %6636 = vmatpush2.msra.mxu0 0.0
    %6637 = vmatprep.subr.mxu0 0.0
    %6638 = vmatpush2.msra.mxu0 0.0
    %6639 = vmatprep.subr.mxu0 0.0
    %6640 = vmatpush2.msra.mxu0 0.0
    %6641 = vmatprep.subr.mxu0 0.0
    %6642 = vmatpush2.msra.mxu0 0.0
    %6643 = vmatprep.mubr.f32.mxu0 0.0
    %6644 = vmatmul.mubr.f32.gmra.mxu0 %v6574
    %v6645 = vpop.f32.mrf.mxu0
    %v6646 = vadd.f32 0.0, %v6645
    %v6647 = vpop.f32.mrf.mxu0
    %6648 = vdwg.mxu0
    %v6649 = vadd.f32 %v6536, %v6646
    %v6650 = vld [vmem:[#allocation4 + $0x3] sm:$0x1]
    %v6651 = vld [vmem:[#allocation4 + $0x13] sm:$0x1]
    %v6652 = vld [vmem:[#allocation4 + $0x23] sm:$0x1]
    %v6653 = vld [vmem:[#allocation4 + $0x33] sm:$0x1]
    %v6654 = vld [vmem:[#allocation4 + $0x43] sm:$0x1]
    %v6655 = vld [vmem:[#allocation4 + $0x53] sm:$0x1]
    %v6656 = vld [vmem:[#allocation4 + $0x63] sm:$0x1]
    %v6657 = vld [vmem:[#allocation4 + $0x73] sm:$0x1]
    %s6658 = scalar_lea.vmem %s5, 96
    %v6659 = vld [vmem:[%s6658] sm:$0xff]
    %v6660 = vld [vmem:[%s6658 + $0x8] sm:$0xff]
    %v6661 = vld [vmem:[%s6658 + $0x10] sm:$0xff]
    %v6662 = vld [vmem:[%s6658 + $0x18] sm:$0x1]
    %v6671 = vrot.slane %v6651, 7
    %v6672 = vsel %vm6346, %v6671, %v6650
    %v6673 = vrot.slane %v6652, 6
    %v6674 = vsel %vm6349, %v6673, %v6672
    %v6675 = vrot.slane %v6653, 5
    %v6676 = vsel %vm6352, %v6675, %v6674
    %v6677 = vrot.slane %v6654, 4
    %v6678 = vsel %vm6355, %v6677, %v6676
    %v6679 = vrot.slane %v6655, 3
    %v6680 = vsel %vm6358, %v6679, %v6678
    %v6681 = vrot.slane %v6656, 2
    %v6682 = vsel %vm6361, %v6681, %v6680
    %v6683 = vrot.slane %v6657, 1
    %v6684 = vsel %vm6364, %v6683, %v6682
    %v6685 = vsel %vm2714, %v6684, 0
    %v6688 = vsel %vm6368, %v6662, 0
    %6690 = vmatprep.subr.mxu0 0.0
    %6691 = vmatpush1.msra.mxu0 0.0
    %6692 = vmatprep.subr.mxu0 0.0
    %6693 = vmatpush1.msra.mxu0 0.0
    %6694 = vmatprep.subr.mxu0 0.0
    %6695 = vmatpush1.msra.mxu0 0.0
    %6696 = vmatprep.subr.mxu0 0.0
    %6697 = vmatpush1.msra.mxu0 0.0
    %6698 = vmatprep.subr.mxu0 0.0
    %6699 = vmatpush1.msra.mxu0 0.0
    %6700 = vmatprep.subr.mxu0 0.0
    %6701 = vmatpush1.msra.mxu0 0.0
    %6702 = vmatprep.subr.mxu0 0.0
    %6703 = vmatpush1.msra.mxu0 0.0
    %6704 = vmatprep.subr.mxu0 0.0
    %6705 = vmatpush1.msra.mxu0 0.0
    %6706 = vmatprep.subr.mxu0 0.0
    %6707 = vmatpush1.msra.mxu0 0.0
    %6708 = vmatprep.subr.mxu0 0.0
    %6709 = vmatpush1.msra.mxu0 0.0
    %6710 = vmatprep.subr.mxu0 0.0
    %6711 = vmatpush1.msra.mxu0 0.0
    %6712 = vmatprep.subr.mxu0 0.0
    %6713 = vmatpush1.msra.mxu0 0.0
    %6714 = vmatprep.subr.mxu0 0.0
    %6715 = vmatpush1.msra.mxu0 %v6688
    %6716 = vmatprep.subr.mxu0 0.0
    %6717 = vmatpush1.msra.mxu0 %v6661
    %6718 = vmatprep.subr.mxu0 0.0
    %6719 = vmatpush1.msra.mxu0 %v6660
    %6720 = vmatprep.subr.mxu0 0.0
    %6721 = vmatpush1.msra.mxu0 %v6659
    %6722 = vmatprep.subr.mxu0 0.0
    %6723 = vmatpush2.msra.mxu0 0.0
    %6724 = vmatprep.subr.mxu0 0.0
    %6725 = vmatpush2.msra.mxu0 0.0
    %6726 = vmatprep.subr.mxu0 0.0
    %6727 = vmatpush2.msra.mxu0 0.0
    %6728 = vmatprep.subr.mxu0 0.0
    %6729 = vmatpush2.msra.mxu0 0.0
    %6730 = vmatprep.subr.mxu0 0.0
    %6731 = vmatpush2.msra.mxu0 0.0
    %6732 = vmatprep.subr.mxu0 0.0
    %6733 = vmatpush2.msra.mxu0 0.0
    %6734 = vmatprep.subr.mxu0 0.0
    %6735 = vmatpush2.msra.mxu0 0.0
    %6736 = vmatprep.subr.mxu0 0.0
    %6737 = vmatpush2.msra.mxu0 0.0
    %6738 = vmatprep.subr.mxu0 0.0
    %6739 = vmatpush2.msra.mxu0 0.0
    %6740 = vmatprep.subr.mxu0 0.0
    %6741 = vmatpush2.msra.mxu0 0.0
    %6742 = vmatprep.subr.mxu0 0.0
    %6743 = vmatpush2.msra.mxu0 0.0
    %6744 = vmatprep.subr.mxu0 0.0
    %6745 = vmatpush2.msra.mxu0 0.0
    %6746 = vmatprep.subr.mxu0 0.0
    %6747 = vmatpush2.msra.mxu0 0.0
    %6748 = vmatprep.subr.mxu0 0.0
    %6749 = vmatpush2.msra.mxu0 0.0
    %6750 = vmatprep.subr.mxu0 0.0
    %6751 = vmatpush2.msra.mxu0 0.0
    %6752 = vmatprep.subr.mxu0 0.0
    %6753 = vmatpush2.msra.mxu0 0.0
    %6754 = vmatprep.mubr.f32.mxu0 0.0
    %6755 = vmatmul.mubr.f32.gmra.mxu0 %v6685
    %v6756 = vpop.f32.mrf.mxu0
    %v6757 = vadd.f32 0.0, %v6756
    %v6758 = vpop.f32.mrf.mxu0
    %6759 = vdwg.mxu0
    %v6760 = vadd.f32 %v6649, %v6757
    %v6761 = vld [vmem:[#allocation4 + $0x4] sm:$0x1]
    %v6762 = vld [vmem:[#allocation4 + $0x14] sm:$0x1]
    %v6763 = vld [vmem:[#allocation4 + $0x24] sm:$0x1]
    %v6764 = vld [vmem:[#allocation4 + $0x34] sm:$0x1]
    %v6765 = vld [vmem:[#allocation4 + $0x44] sm:$0x1]
    %v6766 = vld [vmem:[#allocation4 + $0x54] sm:$0x1]
    %v6767 = vld [vmem:[#allocation4 + $0x64] sm:$0x1]
    %v6768 = vld [vmem:[#allocation4 + $0x74] sm:$0x1]
    %s6769 = scalar_lea.vmem %s5, 128
    %v6770 = vld [vmem:[%s6769] sm:$0xff]
    %v6771 = vld [vmem:[%s6769 + $0x8] sm:$0xff]
    %v6772 = vld [vmem:[%s6769 + $0x10] sm:$0xff]
    %v6773 = vld [vmem:[%s6769 + $0x18] sm:$0x1]
    %v6782 = vrot.slane %v6762, 7
    %v6783 = vsel %vm6346, %v6782, %v6761
    %v6784 = vrot.slane %v6763, 6
    %v6785 = vsel %vm6349, %v6784, %v6783
    %v6786 = vrot.slane %v6764, 5
    %v6787 = vsel %vm6352, %v6786, %v6785
    %v6788 = vrot.slane %v6765, 4
    %v6789 = vsel %vm6355, %v6788, %v6787
    %v6790 = vrot.slane %v6766, 3
    %v6791 = vsel %vm6358, %v6790, %v6789
    %v6792 = vrot.slane %v6767, 2
    %v6793 = vsel %vm6361, %v6792, %v6791
    %v6794 = vrot.slane %v6768, 1
    %v6795 = vsel %vm6364, %v6794, %v6793
    %v6796 = vsel %vm2714, %v6795, 0
    %v6799 = vsel %vm6368, %v6773, 0
    %6801 = vmatprep.subr.mxu0 0.0
    %6802 = vmatpush1.msra.mxu0 0.0
    %6803 = vmatprep.subr.mxu0 0.0
    %6804 = vmatpush1.msra.mxu0 0.0
    %6805 = vmatprep.subr.mxu0 0.0
    %6806 = vmatpush1.msra.mxu0 0.0
    %6807 = vmatprep.subr.mxu0 0.0
    %6808 = vmatpush1.msra.mxu0 0.0
    %6809 = vmatprep.subr.mxu0 0.0
    %6810 = vmatpush1.msra.mxu0 0.0
    %6811 = vmatprep.subr.mxu0 0.0
    %6812 = vmatpush1.msra.mxu0 0.0
    %6813 = vmatprep.subr.mxu0 0.0
    %6814 = vmatpush1.msra.mxu0 0.0
    %6815 = vmatprep.subr.mxu0 0.0
    %6816 = vmatpush1.msra.mxu0 0.0
    %6817 = vmatprep.subr.mxu0 0.0
    %6818 = vmatpush1.msra.mxu0 0.0
    %6819 = vmatprep.subr.mxu0 0.0
    %6820 = vmatpush1.msra.mxu0 0.0
    %6821 = vmatprep.subr.mxu0 0.0
    %6822 = vmatpush1.msra.mxu0 0.0
    %6823 = vmatprep.subr.mxu0 0.0
    %6824 = vmatpush1.msra.mxu0 0.0
    %6825 = vmatprep.subr.mxu0 0.0
    %6826 = vmatpush1.msra.mxu0 %v6799
    %6827 = vmatprep.subr.mxu0 0.0
    %6828 = vmatpush1.msra.mxu0 %v6772
    %6829 = vmatprep.subr.mxu0 0.0
    %6830 = vmatpush1.msra.mxu0 %v6771
    %6831 = vmatprep.subr.mxu0 0.0
    %6832 = vmatpush1.msra.mxu0 %v6770
    %6833 = vmatprep.subr.mxu0 0.0
    %6834 = vmatpush2.msra.mxu0 0.0
    %6835 = vmatprep.subr.mxu0 0.0
    %6836 = vmatpush2.msra.mxu0 0.0
    %6837 = vmatprep.subr.mxu0 0.0
    %6838 = vmatpush2.msra.mxu0 0.0
    %6839 = vmatprep.subr.mxu0 0.0
    %6840 = vmatpush2.msra.mxu0 0.0
    %6841 = vmatprep.subr.mxu0 0.0
    %6842 = vmatpush2.msra.mxu0 0.0
    %6843 = vmatprep.subr.mxu0 0.0
    %6844 = vmatpush2.msra.mxu0 0.0
    %6845 = vmatprep.subr.mxu0 0.0
    %6846 = vmatpush2.msra.mxu0 0.0
    %6847 = vmatprep.subr.mxu0 0.0
    %6848 = vmatpush2.msra.mxu0 0.0
    %6849 = vmatprep.subr.mxu0 0.0
    %6850 = vmatpush2.msra.mxu0 0.0
    %6851 = vmatprep.subr.mxu0 0.0
    %6852 = vmatpush2.msra.mxu0 0.0
    %6853 = vmatprep.subr.mxu0 0.0
    %6854 = vmatpush2.msra.mxu0 0.0
    %6855 = vmatprep.subr.mxu0 0.0
    %6856 = vmatpush2.msra.mxu0 0.0
    %6857 = vmatprep.subr.mxu0 0.0
    %6858 = vmatpush2.msra.mxu0 0.0
    %6859 = vmatprep.subr.mxu0 0.0
    %6860 = vmatpush2.msra.mxu0 0.0
    %6861 = vmatprep.subr.mxu0 0.0
    %6862 = vmatpush2.msra.mxu0 0.0
    %6863 = vmatprep.subr.mxu0 0.0
    %6864 = vmatpush2.msra.mxu0 0.0
    %6865 = vmatprep.mubr.f32.mxu0 0.0
    %6866 = vmatmul.mubr.f32.gmra.mxu0 %v6796
    %v6867 = vpop.f32.mrf.mxu0
    %v6868 = vadd.f32 0.0, %v6867
    %v6869 = vpop.f32.mrf.mxu0
    %6870 = vdwg.mxu0
    %v6871 = vadd.f32 %v6760, %v6868
    %v6872 = vld [vmem:[#allocation4 + $0x5] sm:$0x1]
    %v6873 = vld [vmem:[#allocation4 + $0x15] sm:$0x1]
    %v6874 = vld [vmem:[#allocation4 + $0x25] sm:$0x1]
    %v6875 = vld [vmem:[#allocation4 + $0x35] sm:$0x1]
    %v6876 = vld [vmem:[#allocation4 + $0x45] sm:$0x1]
    %v6877 = vld [vmem:[#allocation4 + $0x55] sm:$0x1]
    %v6878 = vld [vmem:[#allocation4 + $0x65] sm:$0x1]
    %v6879 = vld [vmem:[#allocation4 + $0x75] sm:$0x1]
    %s6880 = scalar_lea.vmem %s5, 160
    %v6881 = vld [vmem:[%s6880] sm:$0xff]
    %v6882 = vld [vmem:[%s6880 + $0x8] sm:$0xff]
    %v6883 = vld [vmem:[%s6880 + $0x10] sm:$0xff]
    %v6884 = vld [vmem:[%s6880 + $0x18] sm:$0x1]
    %v6893 = vrot.slane %v6873, 7
    %v6894 = vsel %vm6346, %v6893, %v6872
    %v6895 = vrot.slane %v6874, 6
    %v6896 = vsel %vm6349, %v6895, %v6894
    %v6897 = vrot.slane %v6875, 5
    %v6898 = vsel %vm6352, %v6897, %v6896
    %v6899 = vrot.slane %v6876, 4
    %v6900 = vsel %vm6355, %v6899, %v6898
    %v6901 = vrot.slane %v6877, 3
    %v6902 = vsel %vm6358, %v6901, %v6900
    %v6903 = vrot.slane %v6878, 2
    %v6904 = vsel %vm6361, %v6903, %v6902
    %v6905 = vrot.slane %v6879, 1
    %v6906 = vsel %vm6364, %v6905, %v6904
    %v6907 = vsel %vm2714, %v6906, 0
    %v6910 = vsel %vm6368, %v6884, 0
    %6912 = vmatprep.subr.mxu0 0.0
    %6913 = vmatpush1.msra.mxu0 0.0
    %6914 = vmatprep.subr.mxu0 0.0
    %6915 = vmatpush1.msra.mxu0 0.0
    %6916 = vmatprep.subr.mxu0 0.0
    %6917 = vmatpush1.msra.mxu0 0.0
    %6918 = vmatprep.subr.mxu0 0.0
    %6919 = vmatpush1.msra.mxu0 0.0
    %6920 = vmatprep.subr.mxu0 0.0
    %6921 = vmatpush1.msra.mxu0 0.0
    %6922 = vmatprep.subr.mxu0 0.0
    %6923 = vmatpush1.msra.mxu0 0.0
    %6924 = vmatprep.subr.mxu0 0.0
    %6925 = vmatpush1.msra.mxu0 0.0
    %6926 = vmatprep.subr.mxu0 0.0
    %6927 = vmatpush1.msra.mxu0 0.0
    %6928 = vmatprep.subr.mxu0 0.0
    %6929 = vmatpush1.msra.mxu0 0.0
    %6930 = vmatprep.subr.mxu0 0.0
    %6931 = vmatpush1.msra.mxu0 0.0
    %6932 = vmatprep.subr.mxu0 0.0
    %6933 = vmatpush1.msra.mxu0 0.0
    %6934 = vmatprep.subr.mxu0 0.0
    %6935 = vmatpush1.msra.mxu0 0.0
    %6936 = vmatprep.subr.mxu0 0.0
    %6937 = vmatpush1.msra.mxu0 %v6910
    %6938 = vmatprep.subr.mxu0 0.0
    %6939 = vmatpush1.msra.mxu0 %v6883
    %6940 = vmatprep.subr.mxu0 0.0
    %6941 = vmatpush1.msra.mxu0 %v6882
    %6942 = vmatprep.subr.mxu0 0.0
    %6943 = vmatpush1.msra.mxu0 %v6881
    %6944 = vmatprep.subr.mxu0 0.0
    %6945 = vmatpush2.msra.mxu0 0.0
    %6946 = vmatprep.subr.mxu0 0.0
    %6947 = vmatpush2.msra.mxu0 0.0
    %6948 = vmatprep.subr.mxu0 0.0
    %6949 = vmatpush2.msra.mxu0 0.0
    %6950 = vmatprep.subr.mxu0 0.0
    %6951 = vmatpush2.msra.mxu0 0.0
    %6952 = vmatprep.subr.mxu0 0.0
    %6953 = vmatpush2.msra.mxu0 0.0
    %6954 = vmatprep.subr.mxu0 0.0
    %6955 = vmatpush2.msra.mxu0 0.0
    %6956 = vmatprep.subr.mxu0 0.0
    %6957 = vmatpush2.msra.mxu0 0.0
    %6958 = vmatprep.subr.mxu0 0.0
    %6959 = vmatpush2.msra.mxu0 0.0
    %6960 = vmatprep.subr.mxu0 0.0
    %6961 = vmatpush2.msra.mxu0 0.0
    %6962 = vmatprep.subr.mxu0 0.0
    %6963 = vmatpush2.msra.mxu0 0.0
    %6964 = vmatprep.subr.mxu0 0.0
    %6965 = vmatpush2.msra.mxu0 0.0
    %6966 = vmatprep.subr.mxu0 0.0
    %6967 = vmatpush2.msra.mxu0 0.0
    %6968 = vmatprep.subr.mxu0 0.0
    %6969 = vmatpush2.msra.mxu0 0.0
    %6970 = vmatprep.subr.mxu0 0.0
    %6971 = vmatpush2.msra.mxu0 0.0
    %6972 = vmatprep.subr.mxu0 0.0
    %6973 = vmatpush2.msra.mxu0 0.0
    %6974 = vmatprep.subr.mxu0 0.0
    %6975 = vmatpush2.msra.mxu0 0.0
    %6976 = vmatprep.mubr.f32.mxu0 0.0
    %6977 = vmatmul.mubr.f32.gmra.mxu0 %v6907
    %v6978 = vpop.f32.mrf.mxu0
    %v6979 = vadd.f32 0.0, %v6978
    %v6980 = vpop.f32.mrf.mxu0
    %6981 = vdwg.mxu0
    %v6982 = vadd.f32 %v6871, %v6979
    %v6983 = vld [vmem:[#allocation4 + $0x6] sm:$0x1]
    %v6984 = vld [vmem:[#allocation4 + $0x16] sm:$0x1]
    %v6985 = vld [vmem:[#allocation4 + $0x26] sm:$0x1]
    %v6986 = vld [vmem:[#allocation4 + $0x36] sm:$0x1]
    %v6987 = vld [vmem:[#allocation4 + $0x46] sm:$0x1]
    %v6988 = vld [vmem:[#allocation4 + $0x56] sm:$0x1]
    %v6989 = vld [vmem:[#allocation4 + $0x66] sm:$0x1]
    %v6990 = vld [vmem:[#allocation4 + $0x76] sm:$0x1]
    %s6991 = scalar_lea.vmem %s5, 192
    %v6992 = vld [vmem:[%s6991] sm:$0xff]
    %v6993 = vld [vmem:[%s6991 + $0x8] sm:$0xff]
    %v6994 = vld [vmem:[%s6991 + $0x10] sm:$0xff]
    %v6995 = vld [vmem:[%s6991 + $0x18] sm:$0x1]
    %v7004 = vrot.slane %v6984, 7
    %v7005 = vsel %vm6346, %v7004, %v6983
    %v7006 = vrot.slane %v6985, 6
    %v7007 = vsel %vm6349, %v7006, %v7005
    %v7008 = vrot.slane %v6986, 5
    %v7009 = vsel %vm6352, %v7008, %v7007
    %v7010 = vrot.slane %v6987, 4
    %v7011 = vsel %vm6355, %v7010, %v7009
    %v7012 = vrot.slane %v6988, 3
    %v7013 = vsel %vm6358, %v7012, %v7011
    %v7014 = vrot.slane %v6989, 2
    %v7015 = vsel %vm6361, %v7014, %v7013
    %v7016 = vrot.slane %v6990, 1
    %v7017 = vsel %vm6364, %v7016, %v7015
    %v7018 = vsel %vm2714, %v7017, 0
    %v7021 = vsel %vm6368, %v6995, 0
    %7023 = vmatprep.subr.mxu0 0.0
    %7024 = vmatpush1.msra.mxu0 0.0
    %7025 = vmatprep.subr.mxu0 0.0
    %7026 = vmatpush1.msra.mxu0 0.0
    %7027 = vmatprep.subr.mxu0 0.0
    %7028 = vmatpush1.msra.mxu0 0.0
    %7029 = vmatprep.subr.mxu0 0.0
    %7030 = vmatpush1.msra.mxu0 0.0
    %7031 = vmatprep.subr.mxu0 0.0
    %7032 = vmatpush1.msra.mxu0 0.0
    %7033 = vmatprep.subr.mxu0 0.0
    %7034 = vmatpush1.msra.mxu0 0.0
    %7035 = vmatprep.subr.mxu0 0.0
    %7036 = vmatpush1.msra.mxu0 0.0
    %7037 = vmatprep.subr.mxu0 0.0
    %7038 = vmatpush1.msra.mxu0 0.0
    %7039 = vmatprep.subr.mxu0 0.0
    %7040 = vmatpush1.msra.mxu0 0.0
    %7041 = vmatprep.subr.mxu0 0.0
    %7042 = vmatpush1.msra.mxu0 0.0
    %7043 = vmatprep.subr.mxu0 0.0
    %7044 = vmatpush1.msra.mxu0 0.0
    %7045 = vmatprep.subr.mxu0 0.0
    %7046 = vmatpush1.msra.mxu0 0.0
    %7047 = vmatprep.subr.mxu0 0.0
    %7048 = vmatpush1.msra.mxu0 %v7021
    %7049 = vmatprep.subr.mxu0 0.0
    %7050 = vmatpush1.msra.mxu0 %v6994
    %7051 = vmatprep.subr.mxu0 0.0
    %7052 = vmatpush1.msra.mxu0 %v6993
    %7053 = vmatprep.subr.mxu0 0.0
    %7054 = vmatpush1.msra.mxu0 %v6992
    %7055 = vmatprep.subr.mxu0 0.0
    %7056 = vmatpush2.msra.mxu0 0.0
    %7057 = vmatprep.subr.mxu0 0.0
    %7058 = vmatpush2.msra.mxu0 0.0
    %7059 = vmatprep.subr.mxu0 0.0
    %7060 = vmatpush2.msra.mxu0 0.0
    %7061 = vmatprep.subr.mxu0 0.0
    %7062 = vmatpush2.msra.mxu0 0.0
    %7063 = vmatprep.subr.mxu0 0.0
    %7064 = vmatpush2.msra.mxu0 0.0
    %7065 = vmatprep.subr.mxu0 0.0
    %7066 = vmatpush2.msra.mxu0 0.0
    %7067 = vmatprep.subr.mxu0 0.0
    %7068 = vmatpush2.msra.mxu0 0.0
    %7069 = vmatprep.subr.mxu0 0.0
    %7070 = vmatpush2.msra.mxu0 0.0
    %7071 = vmatprep.subr.mxu0 0.0
    %7072 = vmatpush2.msra.mxu0 0.0
    %7073 = vmatprep.subr.mxu0 0.0
    %7074 = vmatpush2.msra.mxu0 0.0
    %7075 = vmatprep.subr.mxu0 0.0
    %7076 = vmatpush2.msra.mxu0 0.0
    %7077 = vmatprep.subr.mxu0 0.0
    %7078 = vmatpush2.msra.mxu0 0.0
    %7079 = vmatprep.subr.mxu0 0.0
    %7080 = vmatpush2.msra.mxu0 0.0
    %7081 = vmatprep.subr.mxu0 0.0
    %7082 = vmatpush2.msra.mxu0 0.0
    %7083 = vmatprep.subr.mxu0 0.0
    %7084 = vmatpush2.msra.mxu0 0.0
    %7085 = vmatprep.subr.mxu0 0.0
    %7086 = vmatpush2.msra.mxu0 0.0
    %7087 = vmatprep.mubr.f32.mxu0 0.0
    %7088 = vmatmul.mubr.f32.gmra.mxu0 %v7018
    %v7089 = vpop.f32.mrf.mxu0
    %v7090 = vadd.f32 0.0, %v7089
    %v7091 = vpop.f32.mrf.mxu0
    %7092 = vdwg.mxu0
    %v7093 = vadd.f32 %v6982, %v7090
    %v7094 = vld [vmem:[#allocation4 + $0x7] sm:$0x1]
    %v7095 = vld [vmem:[#allocation4 + $0x17] sm:$0x1]
    %v7096 = vld [vmem:[#allocation4 + $0x27] sm:$0x1]
    %v7097 = vld [vmem:[#allocation4 + $0x37] sm:$0x1]
    %v7098 = vld [vmem:[#allocation4 + $0x47] sm:$0x1]
    %v7099 = vld [vmem:[#allocation4 + $0x57] sm:$0x1]
    %v7100 = vld [vmem:[#allocation4 + $0x67] sm:$0x1]
    %v7101 = vld [vmem:[#allocation4 + $0x77] sm:$0x1]
    %s7102 = scalar_lea.vmem %s5, 224
    %v7103 = vld [vmem:[%s7102] sm:$0xff]
    %v7104 = vld [vmem:[%s7102 + $0x8] sm:$0xff]
    %v7105 = vld [vmem:[%s7102 + $0x10] sm:$0xff]
    %v7106 = vld [vmem:[%s7102 + $0x18] sm:$0x1]
    %v7115 = vrot.slane %v7095, 7
    %v7116 = vsel %vm6346, %v7115, %v7094
    %v7117 = vrot.slane %v7096, 6
    %v7118 = vsel %vm6349, %v7117, %v7116
    %v7119 = vrot.slane %v7097, 5
    %v7120 = vsel %vm6352, %v7119, %v7118
    %v7121 = vrot.slane %v7098, 4
    %v7122 = vsel %vm6355, %v7121, %v7120
    %v7123 = vrot.slane %v7099, 3
    %v7124 = vsel %vm6358, %v7123, %v7122
    %v7125 = vrot.slane %v7100, 2
    %v7126 = vsel %vm6361, %v7125, %v7124
    %v7127 = vrot.slane %v7101, 1
    %v7128 = vsel %vm6364, %v7127, %v7126
    %v7129 = vsel %vm2714, %v7128, 0
    %v7132 = vsel %vm6368, %v7106, 0
    %7134 = vmatprep.subr.mxu0 0.0
    %7135 = vmatpush1.msra.mxu0 0.0
    %7136 = vmatprep.subr.mxu0 0.0
    %7137 = vmatpush1.msra.mxu0 0.0
    %7138 = vmatprep.subr.mxu0 0.0
    %7139 = vmatpush1.msra.mxu0 0.0
    %7140 = vmatprep.subr.mxu0 0.0
    %7141 = vmatpush1.msra.mxu0 0.0
    %7142 = vmatprep.subr.mxu0 0.0
    %7143 = vmatpush1.msra.mxu0 0.0
    %7144 = vmatprep.subr.mxu0 0.0
    %7145 = vmatpush1.msra.mxu0 0.0
    %7146 = vmatprep.subr.mxu0 0.0
    %7147 = vmatpush1.msra.mxu0 0.0
    %7148 = vmatprep.subr.mxu0 0.0
    %7149 = vmatpush1.msra.mxu0 0.0
    %7150 = vmatprep.subr.mxu0 0.0
    %7151 = vmatpush1.msra.mxu0 0.0
    %7152 = vmatprep.subr.mxu0 0.0
    %7153 = vmatpush1.msra.mxu0 0.0
    %7154 = vmatprep.subr.mxu0 0.0
    %7155 = vmatpush1.msra.mxu0 0.0
    %7156 = vmatprep.subr.mxu0 0.0
    %7157 = vmatpush1.msra.mxu0 0.0
    %7158 = vmatprep.subr.mxu0 0.0
    %7159 = vmatpush1.msra.mxu0 %v7132
    %7160 = vmatprep.subr.mxu0 0.0
    %7161 = vmatpush1.msra.mxu0 %v7105
    %7162 = vmatprep.subr.mxu0 0.0
    %7163 = vmatpush1.msra.mxu0 %v7104
    %7164 = vmatprep.subr.mxu0 0.0
    %7165 = vmatpush1.msra.mxu0 %v7103
    %7166 = vmatprep.subr.mxu0 0.0
    %7167 = vmatpush2.msra.mxu0 0.0
    %7168 = vmatprep.subr.mxu0 0.0
    %7169 = vmatpush2.msra.mxu0 0.0
    %7170 = vmatprep.subr.mxu0 0.0
    %7171 = vmatpush2.msra.mxu0 0.0
    %7172 = vmatprep.subr.mxu0 0.0
    %7173 = vmatpush2.msra.mxu0 0.0
    %7174 = vmatprep.subr.mxu0 0.0
    %7175 = vmatpush2.msra.mxu0 0.0
    %7176 = vmatprep.subr.mxu0 0.0
    %7177 = vmatpush2.msra.mxu0 0.0
    %7178 = vmatprep.subr.mxu0 0.0
    %7179 = vmatpush2.msra.mxu0 0.0
    %7180 = vmatprep.subr.mxu0 0.0
    %7181 = vmatpush2.msra.mxu0 0.0
    %7182 = vmatprep.subr.mxu0 0.0
    %7183 = vmatpush2.msra.mxu0 0.0
    %7184 = vmatprep.subr.mxu0 0.0
    %7185 = vmatpush2.msra.mxu0 0.0
    %7186 = vmatprep.subr.mxu0 0.0
    %7187 = vmatpush2.msra.mxu0 0.0
    %7188 = vmatprep.subr.mxu0 0.0
    %7189 = vmatpush2.msra.mxu0 0.0
    %7190 = vmatprep.subr.mxu0 0.0
    %7191 = vmatpush2.msra.mxu0 0.0
    %7192 = vmatprep.subr.mxu0 0.0
    %7193 = vmatpush2.msra.mxu0 0.0
    %7194 = vmatprep.subr.mxu0 0.0
    %7195 = vmatpush2.msra.mxu0 0.0
    %7196 = vmatprep.subr.mxu0 0.0
    %7197 = vmatpush2.msra.mxu0 0.0
    %7198 = vmatprep.mubr.f32.mxu0 0.0
    %7199 = vmatmul.mubr.f32.gmra.mxu0 %v7129
    %v7200 = vpop.f32.mrf.mxu0
    %v7201 = vadd.f32 0.0, %v7200
    %v7202 = vpop.f32.mrf.mxu0
    %7203 = vdwg.mxu0
    %v7204 = vadd.f32 %v7093, %v7201
    %v7205 = vld [vmem:[#allocation4 + $0x8] sm:$0x1]
    %v7206 = vld [vmem:[#allocation4 + $0x18] sm:$0x1]
    %v7207 = vld [vmem:[#allocation4 + $0x28] sm:$0x1]
    %v7208 = vld [vmem:[#allocation4 + $0x38] sm:$0x1]
    %v7209 = vld [vmem:[#allocation4 + $0x48] sm:$0x1]
    %v7210 = vld [vmem:[#allocation4 + $0x58] sm:$0x1]
    %v7211 = vld [vmem:[#allocation4 + $0x68] sm:$0x1]
    %v7212 = vld [vmem:[#allocation4 + $0x78] sm:$0x1]
    %s7213 = scalar_lea.vmem %s5, 256
    %v7214 = vld [vmem:[%s7213] sm:$0xff]
    %v7215 = vld [vmem:[%s7213 + $0x8] sm:$0xff]
    %v7216 = vld [vmem:[%s7213 + $0x10] sm:$0xff]
    %v7217 = vld [vmem:[%s7213 + $0x18] sm:$0x1]
    %v7226 = vrot.slane %v7206, 7
    %v7227 = vsel %vm6346, %v7226, %v7205
    %v7228 = vrot.slane %v7207, 6
    %v7229 = vsel %vm6349, %v7228, %v7227
    %v7230 = vrot.slane %v7208, 5
    %v7231 = vsel %vm6352, %v7230, %v7229
    %v7232 = vrot.slane %v7209, 4
    %v7233 = vsel %vm6355, %v7232, %v7231
    %v7234 = vrot.slane %v7210, 3
    %v7235 = vsel %vm6358, %v7234, %v7233
    %v7236 = vrot.slane %v7211, 2
    %v7237 = vsel %vm6361, %v7236, %v7235
    %v7238 = vrot.slane %v7212, 1
    %v7239 = vsel %vm6364, %v7238, %v7237
    %v7240 = vsel %vm2714, %v7239, 0
    %v7243 = vsel %vm6368, %v7217, 0
    %7245 = vmatprep.subr.mxu0 0.0
    %7246 = vmatpush1.msra.mxu0 0.0
    %7247 = vmatprep.subr.mxu0 0.0
    %7248 = vmatpush1.msra.mxu0 0.0
    %7249 = vmatprep.subr.mxu0 0.0
    %7250 = vmatpush1.msra.mxu0 0.0
    %7251 = vmatprep.subr.mxu0 0.0
    %7252 = vmatpush1.msra.mxu0 0.0
    %7253 = vmatprep.subr.mxu0 0.0
    %7254 = vmatpush1.msra.mxu0 0.0
    %7255 = vmatprep.subr.mxu0 0.0
    %7256 = vmatpush1.msra.mxu0 0.0
    %7257 = vmatprep.subr.mxu0 0.0
    %7258 = vmatpush1.msra.mxu0 0.0
    %7259 = vmatprep.subr.mxu0 0.0
    %7260 = vmatpush1.msra.mxu0 0.0
    %7261 = vmatprep.subr.mxu0 0.0
    %7262 = vmatpush1.msra.mxu0 0.0
    %7263 = vmatprep.subr.mxu0 0.0
    %7264 = vmatpush1.msra.mxu0 0.0
    %7265 = vmatprep.subr.mxu0 0.0
    %7266 = vmatpush1.msra.mxu0 0.0
    %7267 = vmatprep.subr.mxu0 0.0
    %7268 = vmatpush1.msra.mxu0 0.0
    %7269 = vmatprep.subr.mxu0 0.0
    %7270 = vmatpush1.msra.mxu0 %v7243
    %7271 = vmatprep.subr.mxu0 0.0
    %7272 = vmatpush1.msra.mxu0 %v7216
    %7273 = vmatprep.subr.mxu0 0.0
    %7274 = vmatpush1.msra.mxu0 %v7215
    %7275 = vmatprep.subr.mxu0 0.0
    %7276 = vmatpush1.msra.mxu0 %v7214
    %7277 = vmatprep.subr.mxu0 0.0
    %7278 = vmatpush2.msra.mxu0 0.0
    %7279 = vmatprep.subr.mxu0 0.0
    %7280 = vmatpush2.msra.mxu0 0.0
    %7281 = vmatprep.subr.mxu0 0.0
    %7282 = vmatpush2.msra.mxu0 0.0
    %7283 = vmatprep.subr.mxu0 0.0
    %7284 = vmatpush2.msra.mxu0 0.0
    %7285 = vmatprep.subr.mxu0 0.0
    %7286 = vmatpush2.msra.mxu0 0.0
    %7287 = vmatprep.subr.mxu0 0.0
    %7288 = vmatpush2.msra.mxu0 0.0
    %7289 = vmatprep.subr.mxu0 0.0
    %7290 = vmatpush2.msra.mxu0 0.0
    %7291 = vmatprep.subr.mxu0 0.0
    %7292 = vmatpush2.msra.mxu0 0.0
    %7293 = vmatprep.subr.mxu0 0.0
    %7294 = vmatpush2.msra.mxu0 0.0
    %7295 = vmatprep.subr.mxu0 0.0
    %7296 = vmatpush2.msra.mxu0 0.0
    %7297 = vmatprep.subr.mxu0 0.0
    %7298 = vmatpush2.msra.mxu0 0.0
    %7299 = vmatprep.subr.mxu0 0.0
    %7300 = vmatpush2.msra.mxu0 0.0
    %7301 = vmatprep.subr.mxu0 0.0
    %7302 = vmatpush2.msra.mxu0 0.0
    %7303 = vmatprep.subr.mxu0 0.0
    %7304 = vmatpush2.msra.mxu0 0.0
    %7305 = vmatprep.subr.mxu0 0.0
    %7306 = vmatpush2.msra.mxu0 0.0
    %7307 = vmatprep.subr.mxu0 0.0
    %7308 = vmatpush2.msra.mxu0 0.0
    %7309 = vmatprep.mubr.f32.mxu0 0.0
    %7310 = vmatmul.mubr.f32.gmra.mxu0 %v7240
    %v7311 = vpop.f32.mrf.mxu0
    %v7312 = vadd.f32 0.0, %v7311
    %v7313 = vpop.f32.mrf.mxu0
    %7314 = vdwg.mxu0
    %v7315 = vadd.f32 %v7204, %v7312
    %v7316 = vld [vmem:[#allocation4 + $0x9] sm:$0x1]
    %v7317 = vld [vmem:[#allocation4 + $0x19] sm:$0x1]
    %v7318 = vld [vmem:[#allocation4 + $0x29] sm:$0x1]
    %v7319 = vld [vmem:[#allocation4 + $0x39] sm:$0x1]
    %v7320 = vld [vmem:[#allocation4 + $0x49] sm:$0x1]
    %v7321 = vld [vmem:[#allocation4 + $0x59] sm:$0x1]
    %v7322 = vld [vmem:[#allocation4 + $0x69] sm:$0x1]
    %v7323 = vld [vmem:[#allocation4 + $0x79] sm:$0x1]
    %s7324 = scalar_lea.vmem %s5, 288
    %v7325 = vld [vmem:[%s7324] sm:$0xff]
    %v7326 = vld [vmem:[%s7324 + $0x8] sm:$0xff]
    %v7327 = vld [vmem:[%s7324 + $0x10] sm:$0xff]
    %v7328 = vld [vmem:[%s7324 + $0x18] sm:$0x1]
    %v7337 = vrot.slane %v7317, 7
    %v7338 = vsel %vm6346, %v7337, %v7316
    %v7339 = vrot.slane %v7318, 6
    %v7340 = vsel %vm6349, %v7339, %v7338
    %v7341 = vrot.slane %v7319, 5
    %v7342 = vsel %vm6352, %v7341, %v7340
    %v7343 = vrot.slane %v7320, 4
    %v7344 = vsel %vm6355, %v7343, %v7342
    %v7345 = vrot.slane %v7321, 3
    %v7346 = vsel %vm6358, %v7345, %v7344
    %v7347 = vrot.slane %v7322, 2
    %v7348 = vsel %vm6361, %v7347, %v7346
    %v7349 = vrot.slane %v7323, 1
    %v7350 = vsel %vm6364, %v7349, %v7348
    %v7351 = vsel %vm2714, %v7350, 0
    %v7354 = vsel %vm6368, %v7328, 0
    %7356 = vmatprep.subr.mxu0 0.0
    %7357 = vmatpush1.msra.mxu0 0.0
    %7358 = vmatprep.subr.mxu0 0.0
    %7359 = vmatpush1.msra.mxu0 0.0
    %7360 = vmatprep.subr.mxu0 0.0
    %7361 = vmatpush1.msra.mxu0 0.0
    %7362 = vmatprep.subr.mxu0 0.0
    %7363 = vmatpush1.msra.mxu0 0.0
    %7364 = vmatprep.subr.mxu0 0.0
    %7365 = vmatpush1.msra.mxu0 0.0
    %7366 = vmatprep.subr.mxu0 0.0
    %7367 = vmatpush1.msra.mxu0 0.0
    %7368 = vmatprep.subr.mxu0 0.0
    %7369 = vmatpush1.msra.mxu0 0.0
    %7370 = vmatprep.subr.mxu0 0.0
    %7371 = vmatpush1.msra.mxu0 0.0
    %7372 = vmatprep.subr.mxu0 0.0
    %7373 = vmatpush1.msra.mxu0 0.0
    %7374 = vmatprep.subr.mxu0 0.0
    %7375 = vmatpush1.msra.mxu0 0.0
    %7376 = vmatprep.subr.mxu0 0.0
    %7377 = vmatpush1.msra.mxu0 0.0
    %7378 = vmatprep.subr.mxu0 0.0
    %7379 = vmatpush1.msra.mxu0 0.0
    %7380 = vmatprep.subr.mxu0 0.0
    %7381 = vmatpush1.msra.mxu0 %v7354
    %7382 = vmatprep.subr.mxu0 0.0
    %7383 = vmatpush1.msra.mxu0 %v7327
    %7384 = vmatprep.subr.mxu0 0.0
    %7385 = vmatpush1.msra.mxu0 %v7326
    %7386 = vmatprep.subr.mxu0 0.0
    %7387 = vmatpush1.msra.mxu0 %v7325
    %7388 = vmatprep.subr.mxu0 0.0
    %7389 = vmatpush2.msra.mxu0 0.0
    %7390 = vmatprep.subr.mxu0 0.0
    %7391 = vmatpush2.msra.mxu0 0.0
    %7392 = vmatprep.subr.mxu0 0.0
    %7393 = vmatpush2.msra.mxu0 0.0
    %7394 = vmatprep.subr.mxu0 0.0
    %7395 = vmatpush2.msra.mxu0 0.0
    %7396 = vmatprep.subr.mxu0 0.0
    %7397 = vmatpush2.msra.mxu0 0.0
    %7398 = vmatprep.subr.mxu0 0.0
    %7399 = vmatpush2.msra.mxu0 0.0
    %7400 = vmatprep.subr.mxu0 0.0
    %7401 = vmatpush2.msra.mxu0 0.0
    %7402 = vmatprep.subr.mxu0 0.0
    %7403 = vmatpush2.msra.mxu0 0.0
    %7404 = vmatprep.subr.mxu0 0.0
    %7405 = vmatpush2.msra.mxu0 0.0
    %7406 = vmatprep.subr.mxu0 0.0
    %7407 = vmatpush2.msra.mxu0 0.0
    %7408 = vmatprep.subr.mxu0 0.0
    %7409 = vmatpush2.msra.mxu0 0.0
    %7410 = vmatprep.subr.mxu0 0.0
    %7411 = vmatpush2.msra.mxu0 0.0
    %7412 = vmatprep.subr.mxu0 0.0
    %7413 = vmatpush2.msra.mxu0 0.0
    %7414 = vmatprep.subr.mxu0 0.0
    %7415 = vmatpush2.msra.mxu0 0.0
    %7416 = vmatprep.subr.mxu0 0.0
    %7417 = vmatpush2.msra.mxu0 0.0
    %7418 = vmatprep.subr.mxu0 0.0
    %7419 = vmatpush2.msra.mxu0 0.0
    %7420 = vmatprep.mubr.f32.mxu0 0.0
    %7421 = vmatmul.mubr.f32.gmra.mxu0 %v7351
    %v7422 = vpop.f32.mrf.mxu0
    %v7423 = vadd.f32 0.0, %v7422
    %v7424 = vpop.f32.mrf.mxu0
    %7425 = vdwg.mxu0
    %v7426 = vadd.f32 %v7315, %v7423
    %v7427 = vld [vmem:[#allocation4 + $0xa] sm:$0x1]
    %v7428 = vld [vmem:[#allocation4 + $0x1a] sm:$0x1]
    %v7429 = vld [vmem:[#allocation4 + $0x2a] sm:$0x1]
    %v7430 = vld [vmem:[#allocation4 + $0x3a] sm:$0x1]
    %v7431 = vld [vmem:[#allocation4 + $0x4a] sm:$0x1]
    %v7432 = vld [vmem:[#allocation4 + $0x5a] sm:$0x1]
    %v7433 = vld [vmem:[#allocation4 + $0x6a] sm:$0x1]
    %v7434 = vld [vmem:[#allocation4 + $0x7a] sm:$0x1]
    %s7435 = scalar_lea.vmem %s5, 320
    %v7436 = vld [vmem:[%s7435] sm:$0xff]
    %v7437 = vld [vmem:[%s7435 + $0x8] sm:$0xff]
    %v7438 = vld [vmem:[%s7435 + $0x10] sm:$0xff]
    %v7439 = vld [vmem:[%s7435 + $0x18] sm:$0x1]
    %v7448 = vrot.slane %v7428, 7
    %v7449 = vsel %vm6346, %v7448, %v7427
    %v7450 = vrot.slane %v7429, 6
    %v7451 = vsel %vm6349, %v7450, %v7449
    %v7452 = vrot.slane %v7430, 5
    %v7453 = vsel %vm6352, %v7452, %v7451
    %v7454 = vrot.slane %v7431, 4
    %v7455 = vsel %vm6355, %v7454, %v7453
    %v7456 = vrot.slane %v7432, 3
    %v7457 = vsel %vm6358, %v7456, %v7455
    %v7458 = vrot.slane %v7433, 2
    %v7459 = vsel %vm6361, %v7458, %v7457
    %v7460 = vrot.slane %v7434, 1
    %v7461 = vsel %vm6364, %v7460, %v7459
    %v7462 = vsel %vm2714, %v7461, 0
    %v7465 = vsel %vm6368, %v7439, 0
    %7467 = vmatprep.subr.mxu0 0.0
    %7468 = vmatpush1.msra.mxu0 0.0
    %7469 = vmatprep.subr.mxu0 0.0
    %7470 = vmatpush1.msra.mxu0 0.0
    %7471 = vmatprep.subr.mxu0 0.0
    %7472 = vmatpush1.msra.mxu0 0.0
    %7473 = vmatprep.subr.mxu0 0.0
    %7474 = vmatpush1.msra.mxu0 0.0
    %7475 = vmatprep.subr.mxu0 0.0
    %7476 = vmatpush1.msra.mxu0 0.0
    %7477 = vmatprep.subr.mxu0 0.0
    %7478 = vmatpush1.msra.mxu0 0.0
    %7479 = vmatprep.subr.mxu0 0.0
    %7480 = vmatpush1.msra.mxu0 0.0
    %7481 = vmatprep.subr.mxu0 0.0
    %7482 = vmatpush1.msra.mxu0 0.0
    %7483 = vmatprep.subr.mxu0 0.0
    %7484 = vmatpush1.msra.mxu0 0.0
    %7485 = vmatprep.subr.mxu0 0.0
    %7486 = vmatpush1.msra.mxu0 0.0
    %7487 = vmatprep.subr.mxu0 0.0
    %7488 = vmatpush1.msra.mxu0 0.0
    %7489 = vmatprep.subr.mxu0 0.0
    %7490 = vmatpush1.msra.mxu0 0.0
    %7491 = vmatprep.subr.mxu0 0.0
    %7492 = vmatpush1.msra.mxu0 %v7465
    %7493 = vmatprep.subr.mxu0 0.0
    %7494 = vmatpush1.msra.mxu0 %v7438
    %7495 = vmatprep.subr.mxu0 0.0
    %7496 = vmatpush1.msra.mxu0 %v7437
    %7497 = vmatprep.subr.mxu0 0.0
    %7498 = vmatpush1.msra.mxu0 %v7436
    %7499 = vmatprep.subr.mxu0 0.0
    %7500 = vmatpush2.msra.mxu0 0.0
    %7501 = vmatprep.subr.mxu0 0.0
    %7502 = vmatpush2.msra.mxu0 0.0
    %7503 = vmatprep.subr.mxu0 0.0
    %7504 = vmatpush2.msra.mxu0 0.0
    %7505 = vmatprep.subr.mxu0 0.0
    %7506 = vmatpush2.msra.mxu0 0.0
    %7507 = vmatprep.subr.mxu0 0.0
    %7508 = vmatpush2.msra.mxu0 0.0
    %7509 = vmatprep.subr.mxu0 0.0
    %7510 = vmatpush2.msra.mxu0 0.0
    %7511 = vmatprep.subr.mxu0 0.0
    %7512 = vmatpush2.msra.mxu0 0.0
    %7513 = vmatprep.subr.mxu0 0.0
    %7514 = vmatpush2.msra.mxu0 0.0
    %7515 = vmatprep.subr.mxu0 0.0
    %7516 = vmatpush2.msra.mxu0 0.0
    %7517 = vmatprep.subr.mxu0 0.0
    %7518 = vmatpush2.msra.mxu0 0.0
    %7519 = vmatprep.subr.mxu0 0.0
    %7520 = vmatpush2.msra.mxu0 0.0
    %7521 = vmatprep.subr.mxu0 0.0
    %7522 = vmatpush2.msra.mxu0 0.0
    %7523 = vmatprep.subr.mxu0 0.0
    %7524 = vmatpush2.msra.mxu0 0.0
    %7525 = vmatprep.subr.mxu0 0.0
    %7526 = vmatpush2.msra.mxu0 0.0
    %7527 = vmatprep.subr.mxu0 0.0
    %7528 = vmatpush2.msra.mxu0 0.0
    %7529 = vmatprep.subr.mxu0 0.0
    %7530 = vmatpush2.msra.mxu0 0.0
    %7531 = vmatprep.mubr.f32.mxu0 0.0
    %7532 = vmatmul.mubr.f32.gmra.mxu0 %v7462
    %v7533 = vpop.f32.mrf.mxu0
    %v7534 = vadd.f32 0.0, %v7533
    %v7535 = vpop.f32.mrf.mxu0
    %7536 = vdwg.mxu0
    %v7537 = vadd.f32 %v7426, %v7534
    %v7538 = vld [vmem:[#allocation4 + $0xb] sm:$0x1]
    %v7539 = vld [vmem:[#allocation4 + $0x1b] sm:$0x1]
    %v7540 = vld [vmem:[#allocation4 + $0x2b] sm:$0x1]
    %v7541 = vld [vmem:[#allocation4 + $0x3b] sm:$0x1]
    %v7542 = vld [vmem:[#allocation4 + $0x4b] sm:$0x1]
    %v7543 = vld [vmem:[#allocation4 + $0x5b] sm:$0x1]
    %v7544 = vld [vmem:[#allocation4 + $0x6b] sm:$0x1]
    %v7545 = vld [vmem:[#allocation4 + $0x7b] sm:$0x1]
    %s7546 = scalar_lea.vmem %s5, 352
    %v7547 = vld [vmem:[%s7546] sm:$0xff]
    %v7548 = vld [vmem:[%s7546 + $0x8] sm:$0xff]
    %v7549 = vld [vmem:[%s7546 + $0x10] sm:$0xff]
    %v7550 = vld [vmem:[%s7546 + $0x18] sm:$0x1]
    %v7559 = vrot.slane %v7539, 7
    %v7560 = vsel %vm6346, %v7559, %v7538
    %v7561 = vrot.slane %v7540, 6
    %v7562 = vsel %vm6349, %v7561, %v7560
    %v7563 = vrot.slane %v7541, 5
    %v7564 = vsel %vm6352, %v7563, %v7562
    %v7565 = vrot.slane %v7542, 4
    %v7566 = vsel %vm6355, %v7565, %v7564
    %v7567 = vrot.slane %v7543, 3
    %v7568 = vsel %vm6358, %v7567, %v7566
    %v7569 = vrot.slane %v7544, 2
    %v7570 = vsel %vm6361, %v7569, %v7568
    %v7571 = vrot.slane %v7545, 1
    %v7572 = vsel %vm6364, %v7571, %v7570
    %v7573 = vsel %vm2714, %v7572, 0
    %v7576 = vsel %vm6368, %v7550, 0
    %7578 = vmatprep.subr.mxu0 0.0
    %7579 = vmatpush1.msra.mxu0 0.0
    %7580 = vmatprep.subr.mxu0 0.0
    %7581 = vmatpush1.msra.mxu0 0.0
    %7582 = vmatprep.subr.mxu0 0.0
    %7583 = vmatpush1.msra.mxu0 0.0
    %7584 = vmatprep.subr.mxu0 0.0
    %7585 = vmatpush1.msra.mxu0 0.0
    %7586 = vmatprep.subr.mxu0 0.0
    %7587 = vmatpush1.msra.mxu0 0.0
    %7588 = vmatprep.subr.mxu0 0.0
    %7589 = vmatpush1.msra.mxu0 0.0
    %7590 = vmatprep.subr.mxu0 0.0
    %7591 = vmatpush1.msra.mxu0 0.0
    %7592 = vmatprep.subr.mxu0 0.0
    %7593 = vmatpush1.msra.mxu0 0.0
    %7594 = vmatprep.subr.mxu0 0.0
    %7595 = vmatpush1.msra.mxu0 0.0
    %7596 = vmatprep.subr.mxu0 0.0
    %7597 = vmatpush1.msra.mxu0 0.0
    %7598 = vmatprep.subr.mxu0 0.0
    %7599 = vmatpush1.msra.mxu0 0.0
    %7600 = vmatprep.subr.mxu0 0.0
    %7601 = vmatpush1.msra.mxu0 0.0
    %7602 = vmatprep.subr.mxu0 0.0
    %7603 = vmatpush1.msra.mxu0 %v7576
    %7604 = vmatprep.subr.mxu0 0.0
    %7605 = vmatpush1.msra.mxu0 %v7549
    %7606 = vmatprep.subr.mxu0 0.0
    %7607 = vmatpush1.msra.mxu0 %v7548
    %7608 = vmatprep.subr.mxu0 0.0
    %7609 = vmatpush1.msra.mxu0 %v7547
    %7610 = vmatprep.subr.mxu0 0.0
    %7611 = vmatpush2.msra.mxu0 0.0
    %7612 = vmatprep.subr.mxu0 0.0
    %7613 = vmatpush2.msra.mxu0 0.0
    %7614 = vmatprep.subr.mxu0 0.0
    %7615 = vmatpush2.msra.mxu0 0.0
    %7616 = vmatprep.subr.mxu0 0.0
    %7617 = vmatpush2.msra.mxu0 0.0
    %7618 = vmatprep.subr.mxu0 0.0
    %7619 = vmatpush2.msra.mxu0 0.0
    %7620 = vmatprep.subr.mxu0 0.0
    %7621 = vmatpush2.msra.mxu0 0.0
    %7622 = vmatprep.subr.mxu0 0.0
    %7623 = vmatpush2.msra.mxu0 0.0
    %7624 = vmatprep.subr.mxu0 0.0
    %7625 = vmatpush2.msra.mxu0 0.0
    %7626 = vmatprep.subr.mxu0 0.0
    %7627 = vmatpush2.msra.mxu0 0.0
    %7628 = vmatprep.subr.mxu0 0.0
    %7629 = vmatpush2.msra.mxu0 0.0
    %7630 = vmatprep.subr.mxu0 0.0
    %7631 = vmatpush2.msra.mxu0 0.0
    %7632 = vmatprep.subr.mxu0 0.0
    %7633 = vmatpush2.msra.mxu0 0.0
    %7634 = vmatprep.subr.mxu0 0.0
    %7635 = vmatpush2.msra.mxu0 0.0
    %7636 = vmatprep.subr.mxu0 0.0
    %7637 = vmatpush2.msra.mxu0 0.0
    %7638 = vmatprep.subr.mxu0 0.0
    %7639 = vmatpush2.msra.mxu0 0.0
    %7640 = vmatprep.subr.mxu0 0.0
    %7641 = vmatpush2.msra.mxu0 0.0
    %7642 = vmatprep.mubr.f32.mxu0 0.0
    %7643 = vmatmul.mubr.f32.gmra.mxu0 %v7573
    %v7644 = vpop.f32.mrf.mxu0
    %v7645 = vadd.f32 0.0, %v7644
    %v7646 = vpop.f32.mrf.mxu0
    %7647 = vdwg.mxu0
    %v7648 = vadd.f32 %v7537, %v7645
    %v7649 = vld [vmem:[#allocation4 + $0xc] sm:$0x1]
    %v7650 = vld [vmem:[#allocation4 + $0x1c] sm:$0x1]
    %v7651 = vld [vmem:[#allocation4 + $0x2c] sm:$0x1]
    %v7652 = vld [vmem:[#allocation4 + $0x3c] sm:$0x1]
    %v7653 = vld [vmem:[#allocation4 + $0x4c] sm:$0x1]
    %v7654 = vld [vmem:[#allocation4 + $0x5c] sm:$0x1]
    %v7655 = vld [vmem:[#allocation4 + $0x6c] sm:$0x1]
    %v7656 = vld [vmem:[#allocation4 + $0x7c] sm:$0x1]
    %s7657 = scalar_lea.vmem %s5, 384
    %v7658 = vld [vmem:[%s7657] sm:$0xff]
    %v7659 = vld [vmem:[%s7657 + $0x8] sm:$0xff]
    %v7660 = vld [vmem:[%s7657 + $0x10] sm:$0xff]
    %v7661 = vld [vmem:[%s7657 + $0x18] sm:$0x1]
    %v7670 = vrot.slane %v7650, 7
    %v7671 = vsel %vm6346, %v7670, %v7649
    %v7672 = vrot.slane %v7651, 6
    %v7673 = vsel %vm6349, %v7672, %v7671
    %v7674 = vrot.slane %v7652, 5
    %v7675 = vsel %vm6352, %v7674, %v7673
    %v7676 = vrot.slane %v7653, 4
    %v7677 = vsel %vm6355, %v7676, %v7675
    %v7678 = vrot.slane %v7654, 3
    %v7679 = vsel %vm6358, %v7678, %v7677
    %v7680 = vrot.slane %v7655, 2
    %v7681 = vsel %vm6361, %v7680, %v7679
    %v7682 = vrot.slane %v7656, 1
    %v7683 = vsel %vm6364, %v7682, %v7681
    %v7684 = vsel %vm2714, %v7683, 0
    %v7687 = vsel %vm6368, %v7661, 0
    %7689 = vmatprep.subr.mxu0 0.0
    %7690 = vmatpush1.msra.mxu0 0.0
    %7691 = vmatprep.subr.mxu0 0.0
    %7692 = vmatpush1.msra.mxu0 0.0
    %7693 = vmatprep.subr.mxu0 0.0
    %7694 = vmatpush1.msra.mxu0 0.0
    %7695 = vmatprep.subr.mxu0 0.0
    %7696 = vmatpush1.msra.mxu0 0.0
    %7697 = vmatprep.subr.mxu0 0.0
    %7698 = vmatpush1.msra.mxu0 0.0
    %7699 = vmatprep.subr.mxu0 0.0
    %7700 = vmatpush1.msra.mxu0 0.0
    %7701 = vmatprep.subr.mxu0 0.0
    %7702 = vmatpush1.msra.mxu0 0.0
    %7703 = vmatprep.subr.mxu0 0.0
    %7704 = vmatpush1.msra.mxu0 0.0
    %7705 = vmatprep.subr.mxu0 0.0
    %7706 = vmatpush1.msra.mxu0 0.0
    %7707 = vmatprep.subr.mxu0 0.0
    %7708 = vmatpush1.msra.mxu0 0.0
    %7709 = vmatprep.subr.mxu0 0.0
    %7710 = vmatpush1.msra.mxu0 0.0
    %7711 = vmatprep.subr.mxu0 0.0
    %7712 = vmatpush1.msra.mxu0 0.0
    %7713 = vmatprep.subr.mxu0 0.0
    %7714 = vmatpush1.msra.mxu0 %v7687
    %7715 = vmatprep.subr.mxu0 0.0
    %7716 = vmatpush1.msra.mxu0 %v7660
    %7717 = vmatprep.subr.mxu0 0.0
    %7718 = vmatpush1.msra.mxu0 %v7659
    %7719 = vmatprep.subr.mxu0 0.0
    %7720 = vmatpush1.msra.mxu0 %v7658
    %7721 = vmatprep.subr.mxu0 0.0
    %7722 = vmatpush2.msra.mxu0 0.0
    %7723 = vmatprep.subr.mxu0 0.0
    %7724 = vmatpush2.msra.mxu0 0.0
    %7725 = vmatprep.subr.mxu0 0.0
    %7726 = vmatpush2.msra.mxu0 0.0
    %7727 = vmatprep.subr.mxu0 0.0
    %7728 = vmatpush2.msra.mxu0 0.0
    %7729 = vmatprep.subr.mxu0 0.0
    %7730 = vmatpush2.msra.mxu0 0.0
    %7731 = vmatprep.subr.mxu0 0.0
    %7732 = vmatpush2.msra.mxu0 0.0
    %7733 = vmatprep.subr.mxu0 0.0
    %7734 = vmatpush2.msra.mxu0 0.0
    %7735 = vmatprep.subr.mxu0 0.0
    %7736 = vmatpush2.msra.mxu0 0.0
    %7737 = vmatprep.subr.mxu0 0.0
    %7738 = vmatpush2.msra.mxu0 0.0
    %7739 = vmatprep.subr.mxu0 0.0
    %7740 = vmatpush2.msra.mxu0 0.0
    %7741 = vmatprep.subr.mxu0 0.0
    %7742 = vmatpush2.msra.mxu0 0.0
    %7743 = vmatprep.subr.mxu0 0.0
    %7744 = vmatpush2.msra.mxu0 0.0
    %7745 = vmatprep.subr.mxu0 0.0
    %7746 = vmatpush2.msra.mxu0 0.0
    %7747 = vmatprep.subr.mxu0 0.0
    %7748 = vmatpush2.msra.mxu0 0.0
    %7749 = vmatprep.subr.mxu0 0.0
    %7750 = vmatpush2.msra.mxu0 0.0
    %7751 = vmatprep.subr.mxu0 0.0
    %7752 = vmatpush2.msra.mxu0 0.0
    %7753 = vmatprep.mubr.f32.mxu0 0.0
    %7754 = vmatmul.mubr.f32.gmra.mxu0 %v7684
    %v7755 = vpop.f32.mrf.mxu0
    %v7756 = vadd.f32 0.0, %v7755
    %v7757 = vpop.f32.mrf.mxu0
    %7758 = vdwg.mxu0
    %v7759 = vadd.f32 %v7648, %v7756
    %v7760 = vld [vmem:[#allocation4 + $0xd] sm:$0x1]
    %v7761 = vld [vmem:[#allocation4 + $0x1d] sm:$0x1]
    %v7762 = vld [vmem:[#allocation4 + $0x2d] sm:$0x1]
    %v7763 = vld [vmem:[#allocation4 + $0x3d] sm:$0x1]
    %v7764 = vld [vmem:[#allocation4 + $0x4d] sm:$0x1]
    %v7765 = vld [vmem:[#allocation4 + $0x5d] sm:$0x1]
    %v7766 = vld [vmem:[#allocation4 + $0x6d] sm:$0x1]
    %v7767 = vld [vmem:[#allocation4 + $0x7d] sm:$0x1]
    %s7768 = scalar_lea.vmem %s5, 416
    %v7769 = vld [vmem:[%s7768] sm:$0xff]
    %v7770 = vld [vmem:[%s7768 + $0x8] sm:$0xff]
    %v7771 = vld [vmem:[%s7768 + $0x10] sm:$0xff]
    %v7772 = vld [vmem:[%s7768 + $0x18] sm:$0x1]
    %v7781 = vrot.slane %v7761, 7
    %v7782 = vsel %vm6346, %v7781, %v7760
    %v7783 = vrot.slane %v7762, 6
    %v7784 = vsel %vm6349, %v7783, %v7782
    %v7785 = vrot.slane %v7763, 5
    %v7786 = vsel %vm6352, %v7785, %v7784
    %v7787 = vrot.slane %v7764, 4
    %v7788 = vsel %vm6355, %v7787, %v7786
    %v7789 = vrot.slane %v7765, 3
    %v7790 = vsel %vm6358, %v7789, %v7788
    %v7791 = vrot.slane %v7766, 2
    %v7792 = vsel %vm6361, %v7791, %v7790
    %v7793 = vrot.slane %v7767, 1
    %v7794 = vsel %vm6364, %v7793, %v7792
    %v7795 = vsel %vm2714, %v7794, 0
    %v7798 = vsel %vm6368, %v7772, 0
    %7800 = vmatprep.subr.mxu0 0.0
    %7801 = vmatpush1.msra.mxu0 0.0
    %7802 = vmatprep.subr.mxu0 0.0
    %7803 = vmatpush1.msra.mxu0 0.0
    %7804 = vmatprep.subr.mxu0 0.0
    %7805 = vmatpush1.msra.mxu0 0.0
    %7806 = vmatprep.subr.mxu0 0.0
    %7807 = vmatpush1.msra.mxu0 0.0
    %7808 = vmatprep.subr.mxu0 0.0
    %7809 = vmatpush1.msra.mxu0 0.0
    %7810 = vmatprep.subr.mxu0 0.0
    %7811 = vmatpush1.msra.mxu0 0.0
    %7812 = vmatprep.subr.mxu0 0.0
    %7813 = vmatpush1.msra.mxu0 0.0
    %7814 = vmatprep.subr.mxu0 0.0
    %7815 = vmatpush1.msra.mxu0 0.0
    %7816 = vmatprep.subr.mxu0 0.0
    %7817 = vmatpush1.msra.mxu0 0.0
    %7818 = vmatprep.subr.mxu0 0.0
    %7819 = vmatpush1.msra.mxu0 0.0
    %7820 = vmatprep.subr.mxu0 0.0
    %7821 = vmatpush1.msra.mxu0 0.0
    %7822 = vmatprep.subr.mxu0 0.0
    %7823 = vmatpush1.msra.mxu0 0.0
    %7824 = vmatprep.subr.mxu0 0.0
    %7825 = vmatpush1.msra.mxu0 %v7798
    %7826 = vmatprep.subr.mxu0 0.0
    %7827 = vmatpush1.msra.mxu0 %v7771
    %7828 = vmatprep.subr.mxu0 0.0
    %7829 = vmatpush1.msra.mxu0 %v7770
    %7830 = vmatprep.subr.mxu0 0.0
    %7831 = vmatpush1.msra.mxu0 %v7769
    %7832 = vmatprep.subr.mxu0 0.0
    %7833 = vmatpush2.msra.mxu0 0.0
    %7834 = vmatprep.subr.mxu0 0.0
    %7835 = vmatpush2.msra.mxu0 0.0
    %7836 = vmatprep.subr.mxu0 0.0
    %7837 = vmatpush2.msra.mxu0 0.0
    %7838 = vmatprep.subr.mxu0 0.0
    %7839 = vmatpush2.msra.mxu0 0.0
    %7840 = vmatprep.subr.mxu0 0.0
    %7841 = vmatpush2.msra.mxu0 0.0
    %7842 = vmatprep.subr.mxu0 0.0
    %7843 = vmatpush2.msra.mxu0 0.0
    %7844 = vmatprep.subr.mxu0 0.0
    %7845 = vmatpush2.msra.mxu0 0.0
    %7846 = vmatprep.subr.mxu0 0.0
    %7847 = vmatpush2.msra.mxu0 0.0
    %7848 = vmatprep.subr.mxu0 0.0
    %7849 = vmatpush2.msra.mxu0 0.0
    %7850 = vmatprep.subr.mxu0 0.0
    %7851 = vmatpush2.msra.mxu0 0.0
    %7852 = vmatprep.subr.mxu0 0.0
    %7853 = vmatpush2.msra.mxu0 0.0
    %7854 = vmatprep.subr.mxu0 0.0
    %7855 = vmatpush2.msra.mxu0 0.0
    %7856 = vmatprep.subr.mxu0 0.0
    %7857 = vmatpush2.msra.mxu0 0.0
    %7858 = vmatprep.subr.mxu0 0.0
    %7859 = vmatpush2.msra.mxu0 0.0
    %7860 = vmatprep.subr.mxu0 0.0
    %7861 = vmatpush2.msra.mxu0 0.0
    %7862 = vmatprep.subr.mxu0 0.0
    %7863 = vmatpush2.msra.mxu0 0.0
    %7864 = vmatprep.mubr.f32.mxu0 0.0
    %7865 = vmatmul.mubr.f32.gmra.mxu0 %v7795
    %v7866 = vpop.f32.mrf.mxu0
    %v7867 = vadd.f32 0.0, %v7866
    %v7868 = vpop.f32.mrf.mxu0
    %7869 = vdwg.mxu0
    %v7870 = vadd.f32 %v7759, %v7867
    %v7871 = vld [vmem:[#allocation4 + $0xe] sm:$0x1]
    %v7872 = vld [vmem:[#allocation4 + $0x1e] sm:$0x1]
    %v7873 = vld [vmem:[#allocation4 + $0x2e] sm:$0x1]
    %v7874 = vld [vmem:[#allocation4 + $0x3e] sm:$0x1]
    %v7875 = vld [vmem:[#allocation4 + $0x4e] sm:$0x1]
    %v7876 = vld [vmem:[#allocation4 + $0x5e] sm:$0x1]
    %v7877 = vld [vmem:[#allocation4 + $0x6e] sm:$0x1]
    %v7878 = vld [vmem:[#allocation4 + $0x7e] sm:$0x1]
    %s7879 = scalar_lea.vmem %s5, 448
    %v7880 = vld [vmem:[%s7879] sm:$0xff]
    %v7881 = vld [vmem:[%s7879 + $0x8] sm:$0xff]
    %v7882 = vld [vmem:[%s7879 + $0x10] sm:$0xff]
    %v7883 = vld [vmem:[%s7879 + $0x18] sm:$0x1]
    %v7892 = vrot.slane %v7872, 7
    %v7893 = vsel %vm6346, %v7892, %v7871
    %v7894 = vrot.slane %v7873, 6
    %v7895 = vsel %vm6349, %v7894, %v7893
    %v7896 = vrot.slane %v7874, 5
    %v7897 = vsel %vm6352, %v7896, %v7895
    %v7898 = vrot.slane %v7875, 4
    %v7899 = vsel %vm6355, %v7898, %v7897
    %v7900 = vrot.slane %v7876, 3
    %v7901 = vsel %vm6358, %v7900, %v7899
    %v7902 = vrot.slane %v7877, 2
    %v7903 = vsel %vm6361, %v7902, %v7901
    %v7904 = vrot.slane %v7878, 1
    %v7905 = vsel %vm6364, %v7904, %v7903
    %v7906 = vsel %vm2714, %v7905, 0
    %v7909 = vsel %vm6368, %v7883, 0
    %7911 = vmatprep.subr.mxu0 0.0
    %7912 = vmatpush1.msra.mxu0 0.0
    %7913 = vmatprep.subr.mxu0 0.0
    %7914 = vmatpush1.msra.mxu0 0.0
    %7915 = vmatprep.subr.mxu0 0.0
    %7916 = vmatpush1.msra.mxu0 0.0
    %7917 = vmatprep.subr.mxu0 0.0
    %7918 = vmatpush1.msra.mxu0 0.0
    %7919 = vmatprep.subr.mxu0 0.0
    %7920 = vmatpush1.msra.mxu0 0.0
    %7921 = vmatprep.subr.mxu0 0.0
    %7922 = vmatpush1.msra.mxu0 0.0
    %7923 = vmatprep.subr.mxu0 0.0
    %7924 = vmatpush1.msra.mxu0 0.0
    %7925 = vmatprep.subr.mxu0 0.0
    %7926 = vmatpush1.msra.mxu0 0.0
    %7927 = vmatprep.subr.mxu0 0.0
    %7928 = vmatpush1.msra.mxu0 0.0
    %7929 = vmatprep.subr.mxu0 0.0
    %7930 = vmatpush1.msra.mxu0 0.0
    %7931 = vmatprep.subr.mxu0 0.0
    %7932 = vmatpush1.msra.mxu0 0.0
    %7933 = vmatprep.subr.mxu0 0.0
    %7934 = vmatpush1.msra.mxu0 0.0
    %7935 = vmatprep.subr.mxu0 0.0
    %7936 = vmatpush1.msra.mxu0 %v7909
    %7937 = vmatprep.subr.mxu0 0.0
    %7938 = vmatpush1.msra.mxu0 %v7882
    %7939 = vmatprep.subr.mxu0 0.0
    %7940 = vmatpush1.msra.mxu0 %v7881
    %7941 = vmatprep.subr.mxu0 0.0
    %7942 = vmatpush1.msra.mxu0 %v7880
    %7943 = vmatprep.subr.mxu0 0.0
    %7944 = vmatpush2.msra.mxu0 0.0
    %7945 = vmatprep.subr.mxu0 0.0
    %7946 = vmatpush2.msra.mxu0 0.0
    %7947 = vmatprep.subr.mxu0 0.0
    %7948 = vmatpush2.msra.mxu0 0.0
    %7949 = vmatprep.subr.mxu0 0.0
    %7950 = vmatpush2.msra.mxu0 0.0
    %7951 = vmatprep.subr.mxu0 0.0
    %7952 = vmatpush2.msra.mxu0 0.0
    %7953 = vmatprep.subr.mxu0 0.0
    %7954 = vmatpush2.msra.mxu0 0.0
    %7955 = vmatprep.subr.mxu0 0.0
    %7956 = vmatpush2.msra.mxu0 0.0
    %7957 = vmatprep.subr.mxu0 0.0
    %7958 = vmatpush2.msra.mxu0 0.0
    %7959 = vmatprep.subr.mxu0 0.0
    %7960 = vmatpush2.msra.mxu0 0.0
    %7961 = vmatprep.subr.mxu0 0.0
    %7962 = vmatpush2.msra.mxu0 0.0
    %7963 = vmatprep.subr.mxu0 0.0
    %7964 = vmatpush2.msra.mxu0 0.0
    %7965 = vmatprep.subr.mxu0 0.0
    %7966 = vmatpush2.msra.mxu0 0.0
    %7967 = vmatprep.subr.mxu0 0.0
    %7968 = vmatpush2.msra.mxu0 0.0
    %7969 = vmatprep.subr.mxu0 0.0
    %7970 = vmatpush2.msra.mxu0 0.0
    %7971 = vmatprep.subr.mxu0 0.0
    %7972 = vmatpush2.msra.mxu0 0.0
    %7973 = vmatprep.subr.mxu0 0.0
    %7974 = vmatpush2.msra.mxu0 0.0
    %7975 = vmatprep.mubr.f32.mxu0 0.0
    %7976 = vmatmul.mubr.f32.gmra.mxu0 %v7906
    %v7977 = vpop.f32.mrf.mxu0
    %v7978 = vadd.f32 0.0, %v7977
    %v7979 = vpop.f32.mrf.mxu0
    %7980 = vdwg.mxu0
    %v7981 = vadd.f32 %v7870, %v7978
    %v7982 = vld [vmem:[#allocation4 + $0xf] sm:$0x1]
    %v7983 = vld [vmem:[#allocation4 + $0x1f] sm:$0x1]
    %v7984 = vld [vmem:[#allocation4 + $0x2f] sm:$0x1]
    %v7985 = vld [vmem:[#allocation4 + $0x3f] sm:$0x1]
    %v7986 = vld [vmem:[#allocation4 + $0x4f] sm:$0x1]
    %v7987 = vld [vmem:[#allocation4 + $0x5f] sm:$0x1]
    %v7988 = vld [vmem:[#allocation4 + $0x6f] sm:$0x1]
    %v7989 = vld [vmem:[#allocation4 + $0x7f] sm:$0x1]
    %s7990 = scalar_lea.vmem %s5, 480
    %v7991 = vld [vmem:[%s7990] sm:$0xff]
    %v7992 = vld [vmem:[%s7990 + $0x8] sm:$0xff]
    %v7993 = vld [vmem:[%s7990 + $0x10] sm:$0xff]
    %v7994 = vld [vmem:[%s7990 + $0x18] sm:$0x1]
    %v8003 = vrot.slane %v7983, 7
    %v8004 = vsel %vm6346, %v8003, %v7982
    %v8005 = vrot.slane %v7984, 6
    %v8006 = vsel %vm6349, %v8005, %v8004
    %v8007 = vrot.slane %v7985, 5
    %v8008 = vsel %vm6352, %v8007, %v8006
    %v8009 = vrot.slane %v7986, 4
    %v8010 = vsel %vm6355, %v8009, %v8008
    %v8011 = vrot.slane %v7987, 3
    %v8012 = vsel %vm6358, %v8011, %v8010
    %v8013 = vrot.slane %v7988, 2
    %v8014 = vsel %vm6361, %v8013, %v8012
    %v8015 = vrot.slane %v7989, 1
    %v8016 = vsel %vm6364, %v8015, %v8014
    %v8017 = vsel %vm2714, %v8016, 0
    %v8020 = vsel %vm6368, %v7994, 0
    %8022 = vmatprep.subr.mxu0 0.0
    %8023 = vmatpush1.msra.mxu0 0.0
    %8024 = vmatprep.subr.mxu0 0.0
    %8025 = vmatpush1.msra.mxu0 0.0
    %8026 = vmatprep.subr.mxu0 0.0
    %8027 = vmatpush1.msra.mxu0 0.0
    %8028 = vmatprep.subr.mxu0 0.0
    %8029 = vmatpush1.msra.mxu0 0.0
    %8030 = vmatprep.subr.mxu0 0.0
    %8031 = vmatpush1.msra.mxu0 0.0
    %8032 = vmatprep.subr.mxu0 0.0
    %8033 = vmatpush1.msra.mxu0 0.0
    %8034 = vmatprep.subr.mxu0 0.0
    %8035 = vmatpush1.msra.mxu0 0.0
    %8036 = vmatprep.subr.mxu0 0.0
    %8037 = vmatpush1.msra.mxu0 0.0
    %8038 = vmatprep.subr.mxu0 0.0
    %8039 = vmatpush1.msra.mxu0 0.0
    %8040 = vmatprep.subr.mxu0 0.0
    %8041 = vmatpush1.msra.mxu0 0.0
    %8042 = vmatprep.subr.mxu0 0.0
    %8043 = vmatpush1.msra.mxu0 0.0
    %8044 = vmatprep.subr.mxu0 0.0
    %8045 = vmatpush1.msra.mxu0 0.0
    %8046 = vmatprep.subr.mxu0 0.0
    %8047 = vmatpush1.msra.mxu0 %v8020
    %8048 = vmatprep.subr.mxu0 0.0
    %8049 = vmatpush1.msra.mxu0 %v7993
    %8050 = vmatprep.subr.mxu0 0.0
    %8051 = vmatpush1.msra.mxu0 %v7992
    %8052 = vmatprep.subr.mxu0 0.0
    %8053 = vmatpush1.msra.mxu0 %v7991
    %8054 = vmatprep.subr.mxu0 0.0
    %8055 = vmatpush2.msra.mxu0 0.0
    %8056 = vmatprep.subr.mxu0 0.0
    %8057 = vmatpush2.msra.mxu0 0.0
    %8058 = vmatprep.subr.mxu0 0.0
    %8059 = vmatpush2.msra.mxu0 0.0
    %8060 = vmatprep.subr.mxu0 0.0
    %8061 = vmatpush2.msra.mxu0 0.0
    %8062 = vmatprep.subr.mxu0 0.0
    %8063 = vmatpush2.msra.mxu0 0.0
    %8064 = vmatprep.subr.mxu0 0.0
    %8065 = vmatpush2.msra.mxu0 0.0
    %8066 = vmatprep.subr.mxu0 0.0
    %8067 = vmatpush2.msra.mxu0 0.0
    %8068 = vmatprep.subr.mxu0 0.0
    %8069 = vmatpush2.msra.mxu0 0.0
    %8070 = vmatprep.subr.mxu0 0.0
    %8071 = vmatpush2.msra.mxu0 0.0
    %8072 = vmatprep.subr.mxu0 0.0
    %8073 = vmatpush2.msra.mxu0 0.0
    %8074 = vmatprep.subr.mxu0 0.0
    %8075 = vmatpush2.msra.mxu0 0.0
    %8076 = vmatprep.subr.mxu0 0.0
    %8077 = vmatpush2.msra.mxu0 0.0
    %8078 = vmatprep.subr.mxu0 0.0
    %8079 = vmatpush2.msra.mxu0 0.0
    %8080 = vmatprep.subr.mxu0 0.0
    %8081 = vmatpush2.msra.mxu0 0.0
    %8082 = vmatprep.subr.mxu0 0.0
    %8083 = vmatpush2.msra.mxu0 0.0
    %8084 = vmatprep.subr.mxu0 0.0
    %8085 = vmatpush2.msra.mxu0 0.0
    %8086 = vmatprep.mubr.f32.mxu0 0.0
    %8087 = vmatmul.mubr.f32.gmra.mxu0 %v8017
    %v8088 = vpop.f32.mrf.mxu0
    %v8089 = vadd.f32 0.0, %v8088
    %v8090 = vpop.f32.mrf.mxu0
    %8091 = vdwg.mxu0
    %v8092 = vadd.f32 %v7981, %v8089
    %v8093 = vld [vmem:[%s6] sm:$0x1]
    %v8095 = vlaneseq
    %v8096 = vshrl.u32 %v8095, 7
    %v8097 = vsub.s32 0, %v8096
    %v8098 = vrot.slane %v8093, %v8097
    %v8100 = vadd.f32 %v8092, %v8098
    %v8101 = vmax.f32 %v8100, 0.0
    %v8102 = vld [vmem:[%s7] sm:$0xff]
    %v8103 = vld [vmem:[%s7 + $0x8] sm:$0xff]
    %v8104 = vld [vmem:[%s7 + $0x10] sm:$0xff]
    %v8105 = vld [vmem:[%s7 + $0x18] sm:$0xff]
    %v8106 = vld [vmem:[%s7 + $0x20] sm:$0xff]
    %v8107 = vld [vmem:[%s7 + $0x28] sm:$0xff]
    %v8108 = vld [vmem:[%s7 + $0x30] sm:$0xff]
    %v8109 = vld [vmem:[%s7 + $0x38] sm:$0xff]
    %v8110 = vld [vmem:[%s7 + $0x40] sm:$0xff]
    %v8111 = vld [vmem:[%s7 + $0x48] sm:$0xff]
    %v8112 = vld [vmem:[%s7 + $0x50] sm:$0xff]
    %v8113 = vld [vmem:[%s7 + $0x58] sm:$0xff]
    %v8114 = vld [vmem:[%s7 + $0x60] sm:$0xff]
    %v8115 = vld [vmem:[%s7 + $0x68] sm:$0xff]
    %v8116 = vld [vmem:[%s7 + $0x70] sm:$0xff]
    %v8117 = vld [vmem:[%s8] sm:$0x1]
    %v8119 = vlaneseq
    %v8120 = vshrl.u32 %v8119, 7
    %v8121 = vsub.s32 0, %v8120
    %v8122 = vrot.slane %v8117, %v8121
    %v8125 = vsel %vm3328, %v8101, 0
    %8127 = vmatprep.subr.mxu0 0.0
    %8128 = vmatpush1.msra.mxu0 0.0
    %8129 = vmatprep.subr.mxu0 0.0
    %8130 = vmatpush1.msra.mxu0 %v8116
    %8131 = vmatprep.subr.mxu0 0.0
    %8132 = vmatpush1.msra.mxu0 %v8115
    %8133 = vmatprep.subr.mxu0 0.0
    %8134 = vmatpush1.msra.mxu0 %v8114
    %8135 = vmatprep.subr.mxu0 0.0
    %8136 = vmatpush1.msra.mxu0 %v8113
    %8137 = vmatprep.subr.mxu0 0.0
    %8138 = vmatpush1.msra.mxu0 %v8112
    %8139 = vmatprep.subr.mxu0 0.0
    %8140 = vmatpush1.msra.mxu0 %v8111
    %8141 = vmatprep.subr.mxu0 0.0
    %8142 = vmatpush1.msra.mxu0 %v8110
    %8143 = vmatprep.subr.mxu0 0.0
    %8144 = vmatpush1.msra.mxu0 %v8109
    %8145 = vmatprep.subr.mxu0 0.0
    %8146 = vmatpush1.msra.mxu0 %v8108
    %8147 = vmatprep.subr.mxu0 0.0
    %8148 = vmatpush1.msra.mxu0 %v8107
    %8149 = vmatprep.subr.mxu0 0.0
    %8150 = vmatpush1.msra.mxu0 %v8106
    %8151 = vmatprep.subr.mxu0 0.0
    %8152 = vmatpush1.msra.mxu0 %v8105
    %8153 = vmatprep.subr.mxu0 0.0
    %8154 = vmatpush1.msra.mxu0 %v8104
    %8155 = vmatprep.subr.mxu0 0.0
    %8156 = vmatpush1.msra.mxu0 %v8103
    %8157 = vmatprep.subr.mxu0 0.0
    %8158 = vmatpush1.msra.mxu0 %v8102
    %8159 = vmatprep.subr.mxu0 0.0
    %8160 = vmatpush2.msra.mxu0 0.0
    %8161 = vmatprep.subr.mxu0 0.0
    %8162 = vmatpush2.msra.mxu0 0.0
    %8163 = vmatprep.subr.mxu0 0.0
    %8164 = vmatpush2.msra.mxu0 0.0
    %8165 = vmatprep.subr.mxu0 0.0
    %8166 = vmatpush2.msra.mxu0 0.0
    %8167 = vmatprep.subr.mxu0 0.0
    %8168 = vmatpush2.msra.mxu0 0.0
    %8169 = vmatprep.subr.mxu0 0.0
    %8170 = vmatpush2.msra.mxu0 0.0
    %8171 = vmatprep.subr.mxu0 0.0
    %8172 = vmatpush2.msra.mxu0 0.0
    %8173 = vmatprep.subr.mxu0 0.0
    %8174 = vmatpush2.msra.mxu0 0.0
    %8175 = vmatprep.subr.mxu0 0.0
    %8176 = vmatpush2.msra.mxu0 0.0
    %8177 = vmatprep.subr.mxu0 0.0
    %8178 = vmatpush2.msra.mxu0 0.0
    %8179 = vmatprep.subr.mxu0 0.0
    %8180 = vmatpush2.msra.mxu0 0.0
    %8181 = vmatprep.subr.mxu0 0.0
    %8182 = vmatpush2.msra.mxu0 0.0
    %8183 = vmatprep.subr.mxu0 0.0
    %8184 = vmatpush2.msra.mxu0 0.0
    %8185 = vmatprep.subr.mxu0 0.0
    %8186 = vmatpush2.msra.mxu0 0.0
    %8187 = vmatprep.subr.mxu0 0.0
    %8188 = vmatpush2.msra.mxu0 0.0
    %8189 = vmatprep.subr.mxu0 0.0
    %8190 = vmatpush2.msra.mxu0 0.0
    %8191 = vmatprep.mubr.f32.mxu0 0.0
    %8192 = vmatmul.mubr.f32.gmra.mxu0 %v8125
    %v8193 = vpop.f32.mrf.mxu0
    %v8194 = vadd.f32 %v8122, %v8193
    %v8195 = vpop.f32.mrf.mxu0
    %8196 = vdwg.mxu0
    %v8197 = vmax.f32 %v8194, 0.0
    %v8198 = vld [vmem:[%s9] sm:$0xff]
    %v8199 = vld [vmem:[%s9 + $0x8] sm:$0xff]
    %v8200 = vld [vmem:[%s9 + $0x10] sm:$0xff]
    %v8201 = vld [vmem:[%s9 + $0x18] sm:$0xff]
    %v8202 = vld [vmem:[%s9 + $0x20] sm:$0xff]
    %v8203 = vld [vmem:[%s9 + $0x28] sm:$0xff]
    %v8204 = vld [vmem:[%s9 + $0x30] sm:$0xff]
    %v8205 = vld [vmem:[%s9 + $0x38] sm:$0xff]
    %v8206 = vld [vmem:[%s9 + $0x40] sm:$0xff]
    %v8207 = vld [vmem:[%s9 + $0x48] sm:$0xff]
    %v8208 = vld [vmem:[%s9 + $0x50] sm:$0xf]
    %v8209 = vld [vmem:[%s10] sm:$0x1]
    %v8211 = vlaneseq
    %v8212 = vshrl.u32 %v8211, 7
    %v8213 = vsub.s32 0, %v8212
    %v8214 = vrot.slane %v8209, %v8213
    %vm8216 = vcmask 687104
    %v8218 = vsel %vm8216, %v8197, 0
    %vm8220 = vcmask 1043456
    %v8222 = vsel %vm8220, %v8208, 0
    %8224 = vmatprep.subr.mxu0 0.0
    %8225 = vmatpush1.msra.mxu0 0.0
    %8226 = vmatprep.subr.mxu0 0.0
    %8227 = vmatpush1.msra.mxu0 0.0
    %8228 = vmatprep.subr.mxu0 0.0
    %8229 = vmatpush1.msra.mxu0 0.0
    %8230 = vmatprep.subr.mxu0 0.0
    %8231 = vmatpush1.msra.mxu0 0.0
    %8232 = vmatprep.subr.mxu0 0.0
    %8233 = vmatpush1.msra.mxu0 0.0
    %8234 = vmatprep.subr.mxu0 0.0
    %8235 = vmatpush1.msra.mxu0 %v8222
    %8236 = vmatprep.subr.mxu0 0.0
    %8237 = vmatpush1.msra.mxu0 %v8207
    %8238 = vmatprep.subr.mxu0 0.0
    %8239 = vmatpush1.msra.mxu0 %v8206
    %8240 = vmatprep.subr.mxu0 0.0
    %8241 = vmatpush1.msra.mxu0 %v8205
    %8242 = vmatprep.subr.mxu0 0.0
    %8243 = vmatpush1.msra.mxu0 %v8204
    %8244 = vmatprep.subr.mxu0 0.0
    %8245 = vmatpush1.msra.mxu0 %v8203
    %8246 = vmatprep.subr.mxu0 0.0
    %8247 = vmatpush1.msra.mxu0 %v8202
    %8248 = vmatprep.subr.mxu0 0.0
    %8249 = vmatpush1.msra.mxu0 %v8201
    %8250 = vmatprep.subr.mxu0 0.0
    %8251 = vmatpush1.msra.mxu0 %v8200
    %8252 = vmatprep.subr.mxu0 0.0
    %8253 = vmatpush1.msra.mxu0 %v8199
    %8254 = vmatprep.subr.mxu0 0.0
    %8255 = vmatpush1.msra.mxu0 %v8198
    %8256 = vmatprep.subr.mxu0 0.0
    %8257 = vmatpush2.msra.mxu0 0.0
    %8258 = vmatprep.subr.mxu0 0.0
    %8259 = vmatpush2.msra.mxu0 0.0
    %8260 = vmatprep.subr.mxu0 0.0
    %8261 = vmatpush2.msra.mxu0 0.0
    %8262 = vmatprep.subr.mxu0 0.0
    %8263 = vmatpush2.msra.mxu0 0.0
    %8264 = vmatprep.subr.mxu0 0.0
    %8265 = vmatpush2.msra.mxu0 0.0
    %8266 = vmatprep.subr.mxu0 0.0
    %8267 = vmatpush2.msra.mxu0 0.0
    %8268 = vmatprep.subr.mxu0 0.0
    %8269 = vmatpush2.msra.mxu0 0.0
    %8270 = vmatprep.subr.mxu0 0.0
    %8271 = vmatpush2.msra.mxu0 0.0
    %8272 = vmatprep.subr.mxu0 0.0
    %8273 = vmatpush2.msra.mxu0 0.0
    %8274 = vmatprep.subr.mxu0 0.0
    %8275 = vmatpush2.msra.mxu0 0.0
    %8276 = vmatprep.subr.mxu0 0.0
    %8277 = vmatpush2.msra.mxu0 0.0
    %8278 = vmatprep.subr.mxu0 0.0
    %8279 = vmatpush2.msra.mxu0 0.0
    %8280 = vmatprep.subr.mxu0 0.0
    %8281 = vmatpush2.msra.mxu0 0.0
    %8282 = vmatprep.subr.mxu0 0.0
    %8283 = vmatpush2.msra.mxu0 0.0
    %8284 = vmatprep.subr.mxu0 0.0
    %8285 = vmatpush2.msra.mxu0 0.0
    %8286 = vmatprep.subr.mxu0 0.0
    %8287 = vmatpush2.msra.mxu0 0.0
    %8288 = vmatprep.mubr.f32.mxu0 0.0
    %8289 = vmatmul.mubr.f32.gmra.mxu0 %v8218
    %v8290 = vpop.f32.mrf.mxu0
    %v8291 = vadd.f32 %v8214, %v8290
    %v8292 = vpop.f32.mrf.mxu0
    %8293 = vdwg.mxu0
    %vm8294 = vcmask 74752
    %8295 = vst.msk [vmem:[#allocation5] sm:$0x3] %vm8294, %v8291
    // Predicated region
    $region46: #{net_forward.1} parent=1 // pred_check
      _
    $region47: #{net_forward.1} parent=1 // pred_check_branch
      %8297 = sbr.rel (0) target = $region49
    $region48: #{net_forward.1} parent=1 // pred_region
      %s8299 = ssub.s32 32, 32
      %8300 = vsyncadd [#allocation6], %s8299
      %s8302 = sshll.u32 [#allocation5], 4
      %s8303 = int_to_ptr.vmem [resolvable:$true] %s8302
      %8305 = dma.vmem_to_hbm [thread:$0]  %s8303, 32, %s11, [#allocation6]
    $region49: #{net_forward.1} parent=1 // pred_fallthru
      _
    // Predicated region
    $region50: #{net_forward.1} parent=1 // pred_check
      _
    $region51: #{net_forward.1} parent=1 // pred_check_branch
      %8307 = sbr.rel (0) target = $region53
    $region52: #{net_forward.1} parent=1 // pred_region
      %8308 = dma.done [#allocation6], 32
    $region53: #{net_forward.1} parent=1 // pred_fallthru
      _
    %8309 = vsyncpa [#allocation6], 1

</llo_original>
